<compile_context>
chip_gen: v6e
topology: v6e:2x2x1
jax: 0.10.0
libtpu: 0.0.40
codegen_flags: <defaults>
</compile_context>

<pallas_src>
import functools

import jax
import jax.numpy as jnp
from jax.experimental import pallas as pl
from jax.experimental.pallas import tpu as pltpu

BN_EPS = 1e-5


# ------------------------------ Pallas kernel ------------------------------ #

def _conv3x3x3_bn_act_kernel(*refs, wp, hwp, with_residual):
    """Fused 3x3x3 conv (stride 1, pad 1) + folded-BN bias (+ residual) + ReLU.

    refs = (x_d0, x_d1, x_d2, [res,] w, b, out)
      x_dk : (PP, Cin)      bf16  padded, plane-flattened slab at depth d+k
      res  : (PP, Ct)       bf16  padded slab of the identity input (conv2 only)
      w    : (27, Cin, Ct)  bf16  per-tap weights with BN scale folded in
      b    : (1, Ct)        f32   folded BN bias
      out  : (HWp, Ct)            H*(W+2) rows; columns w >= W are junk and are
                                  dropped by the wrapper.
    """
    if with_residual:
        x0, x1, x2, res_ref, w_ref, b_ref, o_ref = refs
    else:
        x0, x1, x2, w_ref, b_ref, o_ref = refs
        res_ref = None
    slabs = (x0, x1, x2)

    acc = jnp.zeros(o_ref.shape, jnp.float32)
    for kd in range(3):
        x_slab = slabs[kd]
        for kh in range(3):
            for kw in range(3):
                off = kh * wp + kw                       # static row offset
                tap = x_slab[pl.ds(off, hwp), :]         # (HWp, Cin) bf16
                wk = w_ref[kd * 9 + kh * 3 + kw]         # (Cin, Ct)  bf16
                acc = acc + jnp.dot(tap, wk,
                                    preferred_element_type=jnp.float32)

    y = acc + b_ref[...]                                 # folded BN bias (f32)
    if res_ref is not None:
        # identity residual: original x lives at row offset Wp+1 of its slab.
        y = y + res_ref[pl.ds(wp + 1, hwp), :].astype(jnp.float32)
    o_ref[...] = jnp.maximum(y, 0.0).astype(o_ref.dtype)


def _conv3x3x3_bn_act(x_flat, w_packed, bias, *, H, W, residual=None,
                      out_dtype=jnp.float32):
    """x_flat: (N, D+2, (H+3)*(W+2), Cin) bf16 (padded + plane-flattened).

    Returns (N, D, H*(W+2), Cout) in out_dtype (junk columns w >= W included).
    """
    N, Dp, PP, Cin = x_flat.shape
    D = Dp - 2
    Wp = W + 2
    HWp = H * Wp
    assert PP == (H + 3) * Wp
    n_taps, w_cin, Cout = w_packed.shape
    assert n_taps == 27 and w_cin == Cin

    # Cout tiling: lane-dense 128-wide tiles when possible, else full channels.
    if Cout <= 128:
        tn = Cout
    else:
        assert Cout % 128 == 0, "Cout > 128 must be a multiple of 128"
        tn = 128
    n_j = Cout // tn

    grid = (N, n_j, D)  # innermost D => weight/bias blocks fetched once per (n, j)

    def _slab_spec(kd):
        return pl.BlockSpec((None, None, PP, Cin),
                            lambda n, j, d: (n, d + kd, 0, 0))

    in_specs = [_slab_spec(0), _slab_spec(1), _slab_spec(2)]
    args = [x_flat, x_flat, x_flat]
    if residual is not None:
        assert residual.shape == (N, Dp, PP, Cout), residual.shape
        in_specs.append(pl.BlockSpec((None, None, PP, tn),
                                     lambda n, j, d: (n, d + 1, 0, j)))
        args.append(residual)
    in_specs += [
        pl.BlockSpec((27, Cin, tn), lambda n, j, d: (0, 0, j)),
        pl.BlockSpec((1, tn), lambda n, j, d: (0, j)),
    ]
    args += [w_packed, bias]

    kernel = functools.partial(_conv3x3x3_bn_act_kernel, wp=Wp, hwp=HWp,
                               with_residual=residual is not None)

    return pl.pallas_call(
        kernel,
        out_shape=jax.ShapeDtypeStruct((N, D, HWp, Cout), out_dtype),
        grid=grid,
        in_specs=in_specs,
        out_specs=pl.BlockSpec((None, None, HWp, tn),
                               lambda n, j, d: (n, d, 0, j)),
        compiler_params=pltpu.CompilerParams(
            dimension_semantics=("parallel", "parallel", "parallel"),
            # below v7x's 64 MiB physical VMEM; raise further on v5e/v6e for
            # very large (plane x channel) products.
            vmem_limit_bytes=48 * 1024 * 1024,
        ),
    )(*args)


# -------------------------------- JAX glue --------------------------------- #

def _fold_bn(gamma, beta, running_mean, running_var, eps=BN_EPS):
    scale = gamma / jnp.sqrt(running_var + eps)
    bias = beta - running_mean * scale
    return scale, bias.reshape(1, -1).astype(jnp.float32)


def _pack_conv_weight(w_oidhw, bn_scale):
    """PyTorch (Cout, Cin, 3, 3, 3) -> (27, Cin, Cout) bf16, BN scale folded."""
    cout, cin = w_oidhw.shape[0], w_oidhw.shape[1]
    w = jnp.transpose(w_oidhw, (2, 3, 4, 1, 0)).reshape(27, cin, cout)
    w = w * bn_scale.reshape(1, 1, cout)
    return w.astype(jnp.bfloat16)


def _pad_flatten(x_ndhwc):
    """(N,D,H,W,C) -> zero-pad (D:1/1, H:1/2, W:1/1), flatten (H,W):
    (N, D+2, (H+3)*(W+2), C).  The extra bottom H row keeps every tap's
    flattened row window in bounds."""
    N, D, H, W, C = x_ndhwc.shape
    xp = jnp.pad(x_ndhwc, ((0, 0), (1, 1), (1, 2), (1, 1), (0, 0)))
    return xp.reshape(N, D + 2, (H + 3) * (W + 2), C)


def _unflatten_valid(y, H, W):
    """(N, D, H*(W+2), C) -> (N, D, H, W, C) (drop junk columns w >= W)."""
    N, D, HWp, C = y.shape
    return y.reshape(N, D, H, W + 2, C)[:, :, :, :W, :]


def init_params(key, inplanes, planes):
    """Deterministic synthetic parameters with the same shapes as the module."""
    ks = jax.random.split(key, 10)
    return {
        # conv1.conv.weight / conv2.conv.weight (bias=False)
        "w1": 0.1 * jax.random.normal(ks[0], (planes, inplanes, 3, 3, 3), jnp.float32),
        "w2": 0.1 * jax.random.normal(ks[1], (planes, planes, 3, 3, 3), jnp.float32),
        # conv1.bn / conv2.bn affine params + running stats
        "g1": 1.0 + 0.1 * jax.random.normal(ks[2], (planes,), jnp.float32),
        "b1": 0.1 * jax.random.normal(ks[3], (planes,), jnp.float32),
        "rm1": 0.1 * jax.random.normal(ks[4], (planes,), jnp.float32),
        "rv1": 0.5 + jnp.abs(jax.random.normal(ks[5], (planes,), jnp.float32)),
        "g2": 1.0 + 0.1 * jax.random.normal(ks[6], (planes,), jnp.float32),
        "b2": 0.1 * jax.random.normal(ks[7], (planes,), jnp.float32),
        "rm2": 0.1 * jax.random.normal(ks[8], (planes,), jnp.float32),
        "rv2": 0.5 + jnp.abs(jax.random.normal(ks[9], (planes,), jnp.float32)),
    }


def basic_block3d_forward(x_ncdhw, params):
    """BasicBlock3d forward. x_ncdhw: (N, C, D, H, W) f32 -> same shape f32."""
    N, C, D, H, W = x_ncdhw.shape
    planes = params["w1"].shape[0]
    assert params["w1"].shape[1] == C and params["w2"].shape[0] == planes
    # downsample=None => identity residual requires matching channel counts.
    assert planes == C, "downsample=None requires inplanes == planes"

    x = jnp.transpose(x_ncdhw, (0, 2, 3, 4, 1))                 # NDHWC f32

    s1, b1 = _fold_bn(params["g1"], params["b1"], params["rm1"], params["rv1"])
    s2, b2 = _fold_bn(params["g2"], params["b2"], params["rm2"], params["rv2"])
    w1p = _pack_conv_weight(params["w1"], s1)                   # (27, C, P) bf16
    w2p = _pack_conv_weight(params["w2"], s2)                   # (27, P, P) bf16

    x_flat = _pad_flatten(x.astype(jnp.bfloat16))               # (N, D+2, PP, C)

    # conv1 + BN1 + ReLU (bf16 output: only ever consumed as a matmul operand)
    out1 = _conv3x3x3_bn_act(x_flat, w1p, b1, H=H, W=W,
                             out_dtype=jnp.bfloat16)
    out1_flat = _pad_flatten(_unflatten_valid(out1, H, W))

    # conv2 + BN2 + identity residual (read from x_flat slabs) + ReLU
    out2 = _conv3x3x3_bn_act(out1_flat, w2p, b2, H=H, W=W,
                             residual=x_flat, out_dtype=jnp.float32)
    out2 = _unflatten_valid(out2, H, W)                         # (N, D, H, W, P)
    return jnp.transpose(out2, (0, 4, 1, 2, 3))                 # back to NCDHW


# ---------------------------- pure-JAX reference ---------------------------- #

def reference_forward(x_ncdhw, params):
    """Independent f32 oracle using XLA's conv, NCDHW end to end."""
    def conv_bn(x, w, g, b, rm, rv):
        y = jax.lax.conv_general_dilated(
            x, w, window_strides=(1, 1, 1), padding=((1, 1), (1, 1), (1, 1)),
            dimension_numbers=("NCDHW", "OIDHW", "NCDHW"))
        scale = g / jnp.sqrt(rv + BN_EPS)
        bias = b - rm * scale
        return y * scale.reshape(1, -1, 1, 1, 1) + bias.reshape(1, -1, 1, 1, 1)

    out = jnp.maximum(conv_bn(x_ncdhw, params["w1"], params["g1"], params["b1"],
                              params["rm1"], params["rv1"]), 0.0)
    out = conv_bn(out, params["w2"], params["g2"], params["b2"],
                  params["rm2"], params["rv2"]) + x_ncdhw
    return jnp.maximum(out, 0.0)


# ----------------------------------- main ----------------------------------- #

if __name__ == "__main__":
    key = jax.random.PRNGKey(0)
    k_x, k_p = jax.random.split(key)

    # Small demo shapes; inplanes == planes is required (downsample is None).
    N, C, D, H, W = 2, 8, 4, 8, 8
    x = jax.random.normal(k_x, (N, C, D, H, W), jnp.float32)
    params = init_params(k_p, inplanes=C, planes=C)

    fwd = jax.jit(basic_block3d_forward)
    out = jax.block_until_ready(fwd(x, params))
    assert out.shape == (N, C, D, H, W), out.shape

    ref = jax.block_until_ready(reference_forward(x, params))
    # Tolerance sized for bf16 matmul operands (kernel) vs a pure-f32 reference
    # accumulated over K = 27*C terms per conv.
    if not jnp.allclose(out, ref, rtol=5e-2, atol=5e-2):
        max_err = float(jnp.max(jnp.abs(out - ref)))
        raise AssertionError(
            f"Pallas output mismatch vs JAX reference (max abs err {max_err})")

    print("KERNEL_OK")
</pallas_src>

<mosaic_0001>
module attributes {stable_mosaic.version = 11 : i64} {
  func.func @_conv3x3x3_bn_act_kernel(%arg0: i32, %arg1: i32, %arg2: i32, %arg3: memref<1x1x110x8xbf16, #tpu.memory_space<vmem>>, %arg4: memref<1x1x110x8xbf16, #tpu.memory_space<vmem>>, %arg5: memref<1x1x110x8xbf16, #tpu.memory_space<vmem>>, %arg6: memref<27x8x8xbf16, #tpu.memory_space<vmem>>, %arg7: memref<1x8xf32, #tpu.memory_space<vmem>>, %arg8: memref<1x1x80x8xbf16, #tpu.memory_space<vmem>>) attributes {dimension_semantics = [#tpu.dimension_semantics<parallel>, #tpu.dimension_semantics<parallel>, #tpu.dimension_semantics<parallel>], iteration_bounds = array<i64: 2, 1, 4>, scalar_prefetch = 0 : i64, scratch_operands = 0 : i64, tpu.core_type = #tpu.core_type<tc>, window_params = [{transform_indices = @transform_0, window_bounds = array<i64: 1, 1, 110, 8>}, {transform_indices = @transform_1, window_bounds = array<i64: 1, 1, 110, 8>}, {transform_indices = @transform_2, window_bounds = array<i64: 1, 1, 110, 8>}, {transform_indices = @transform_3, window_bounds = array<i64: 27, 8, 8>}, {transform_indices = @transform_4, window_bounds = array<i64: 1, 8>}, {transform_indices = @transform_5, window_bounds = array<i64: 1, 1, 80, 8>}]} {
    %cst = arith.constant 0.000000e+00 : f32
    %0 = vector.broadcast %cst : f32 to vector<80x8xf32>
    %c0 = arith.constant 0 : index
    %c0_0 = arith.constant 0 : index
    %c0_1 = arith.constant 0 : index
    %c0_2 = arith.constant 0 : index
    %1 = vector.load %arg3[%c0, %c0_0, %c0_1, %c0_2] : memref<1x1x110x8xbf16, #tpu.memory_space<vmem>>, vector<1x1x80x8xbf16>
    %2 = vector.shape_cast %1 : vector<1x1x80x8xbf16> to vector<80x8xbf16>
    %c0_3 = arith.constant 0 : index
    %c0_4 = arith.constant 0 : index
    %c0_5 = arith.constant 0 : index
    %3 = vector.load %arg6[%c0_3, %c0_4, %c0_5] : memref<27x8x8xbf16, #tpu.memory_space<vmem>>, vector<1x8x8xbf16>
    %4 = vector.shape_cast %3 : vector<1x8x8xbf16> to vector<8x8xbf16>
    %cst_6 = arith.constant dense<0.000000e+00> : vector<80x8xf32>
    %5 = tpu.matmul %2, %4, %cst_6 {dimension_numbers = #tpu.dot_dimension_numbers<[1], [0], [0], [1], [0, 0, 1, 1], [], []>} : vector<80x8xbf16>, vector<8x8xbf16>, vector<80x8xf32> -> vector<80x8xf32>
    %6 = arith.addf %0, %5 : vector<80x8xf32>
    %c0_7 = arith.constant 0 : index
    %c0_8 = arith.constant 0 : index
    %c1 = arith.constant 1 : index
    %c0_9 = arith.constant 0 : index
    %7 = vector.load %arg3[%c0_7, %c0_8, %c1, %c0_9] : memref<1x1x110x8xbf16, #tpu.memory_space<vmem>>, vector<1x1x80x8xbf16>
    %8 = vector.shape_cast %7 : vector<1x1x80x8xbf16> to vector<80x8xbf16>
    %c1_10 = arith.constant 1 : index
    %c0_11 = arith.constant 0 : index
    %c0_12 = arith.constant 0 : index
    %9 = vector.load %arg6[%c1_10, %c0_11, %c0_12] : memref<27x8x8xbf16, #tpu.memory_space<vmem>>, vector<1x8x8xbf16>
    %10 = vector.shape_cast %9 : vector<1x8x8xbf16> to vector<8x8xbf16>
    %cst_13 = arith.constant dense<0.000000e+00> : vector<80x8xf32>
    %11 = tpu.matmul %8, %10, %cst_13 {dimension_numbers = #tpu.dot_dimension_numbers<[1], [0], [0], [1], [0, 0, 1, 1], [], []>} : vector<80x8xbf16>, vector<8x8xbf16>, vector<80x8xf32> -> vector<80x8xf32>
    %12 = arith.addf %6, %11 : vector<80x8xf32>
    %c0_14 = arith.constant 0 : index
    %c0_15 = arith.constant 0 : index
    %c2 = arith.constant 2 : index
    %c0_16 = arith.constant 0 : index
    %13 = vector.load %arg3[%c0_14, %c0_15, %c2, %c0_16] : memref<1x1x110x8xbf16, #tpu.memory_space<vmem>>, vector<1x1x80x8xbf16>
    %14 = vector.shape_cast %13 : vector<1x1x80x8xbf16> to vector<80x8xbf16>
    %c2_17 = arith.constant 2 : index
    %c0_18 = arith.constant 0 : index
    %c0_19 = arith.constant 0 : index
    %15 = vector.load %arg6[%c2_17, %c0_18, %c0_19] : memref<27x8x8xbf16, #tpu.memory_space<vmem>>, vector<1x8x8xbf16>
    %16 = vector.shape_cast %15 : vector<1x8x8xbf16> to vector<8x8xbf16>
    %cst_20 = arith.constant dense<0.000000e+00> : vector<80x8xf32>
    %17 = tpu.matmul %14, %16, %cst_20 {dimension_numbers = #tpu.dot_dimension_numbers<[1], [0], [0], [1], [0, 0, 1, 1], [], []>} : vector<80x8xbf16>, vector<8x8xbf16>, vector<80x8xf32> -> vector<80x8xf32>
    %18 = arith.addf %12, %17 : vector<80x8xf32>
    %c0_21 = arith.constant 0 : index
    %c0_22 = arith.constant 0 : index
    %c10 = arith.constant 10 : index
    %c0_23 = arith.constant 0 : index
    %19 = vector.load %arg3[%c0_21, %c0_22, %c10, %c0_23] : memref<1x1x110x8xbf16, #tpu.memory_space<vmem>>, vector<1x1x80x8xbf16>
    %20 = vector.shape_cast %19 : vector<1x1x80x8xbf16> to vector<80x8xbf16>
    %c3 = arith.constant 3 : index
    %c0_24 = arith.constant 0 : index
    %c0_25 = arith.constant 0 : index
    %21 = vector.load %arg6[%c3, %c0_24, %c0_25] : memref<27x8x8xbf16, #tpu.memory_space<vmem>>, vector<1x8x8xbf16>
    %22 = vector.shape_cast %21 : vector<1x8x8xbf16> to vector<8x8xbf16>
    %cst_26 = arith.constant dense<0.000000e+00> : vector<80x8xf32>
    %23 = tpu.matmul %20, %22, %cst_26 {dimension_numbers = #tpu.dot_dimension_numbers<[1], [0], [0], [1], [0, 0, 1, 1], [], []>} : vector<80x8xbf16>, vector<8x8xbf16>, vector<80x8xf32> -> vector<80x8xf32>
    %24 = arith.addf %18, %23 : vector<80x8xf32>
    %c0_27 = arith.constant 0 : index
    %c0_28 = arith.constant 0 : index
    %c11 = arith.constant 11 : index
    %c0_29 = arith.constant 0 : index
    %25 = vector.load %arg3[%c0_27, %c0_28, %c11, %c0_29] : memref<1x1x110x8xbf16, #tpu.memory_space<vmem>>, vector<1x1x80x8xbf16>
    %26 = vector.shape_cast %25 : vector<1x1x80x8xbf16> to vector<80x8xbf16>
    %c4 = arith.constant 4 : index
    %c0_30 = arith.constant 0 : index
    %c0_31 = arith.constant 0 : index
    %27 = vector.load %arg6[%c4, %c0_30, %c0_31] : memref<27x8x8xbf16, #tpu.memory_space<vmem>>, vector<1x8x8xbf16>
    %28 = vector.shape_cast %27 : vector<1x8x8xbf16> to vector<8x8xbf16>
    %cst_32 = arith.constant dense<0.000000e+00> : vector<80x8xf32>
    %29 = tpu.matmul %26, %28, %cst_32 {dimension_numbers = #tpu.dot_dimension_numbers<[1], [0], [0], [1], [0, 0, 1, 1], [], []>} : vector<80x8xbf16>, vector<8x8xbf16>, vector<80x8xf32> -> vector<80x8xf32>
    %30 = arith.addf %24, %29 : vector<80x8xf32>
    %c0_33 = arith.constant 0 : index
    %c0_34 = arith.constant 0 : index
    %c12 = arith.constant 12 : index
    %c0_35 = arith.constant 0 : index
    %31 = vector.load %arg3[%c0_33, %c0_34, %c12, %c0_35] : memref<1x1x110x8xbf16, #tpu.memory_space<vmem>>, vector<1x1x80x8xbf16>
    %32 = vector.shape_cast %31 : vector<1x1x80x8xbf16> to vector<80x8xbf16>
    %c5 = arith.constant 5 : index
    %c0_36 = arith.constant 0 : index
    %c0_37 = arith.constant 0 : index
    %33 = vector.load %arg6[%c5, %c0_36, %c0_37] : memref<27x8x8xbf16, #tpu.memory_space<vmem>>, vector<1x8x8xbf16>
    %34 = vector.shape_cast %33 : vector<1x8x8xbf16> to vector<8x8xbf16>
    %cst_38 = arith.constant dense<0.000000e+00> : vector<80x8xf32>
    %35 = tpu.matmul %32, %34, %cst_38 {dimension_numbers = #tpu.dot_dimension_numbers<[1], [0], [0], [1], [0, 0, 1, 1], [], []>} : vector<80x8xbf16>, vector<8x8xbf16>, vector<80x8xf32> -> vector<80x8xf32>
    %36 = arith.addf %30, %35 : vector<80x8xf32>
    %c0_39 = arith.constant 0 : index
    %c0_40 = arith.constant 0 : index
    %c20 = arith.constant 20 : index
    %c0_41 = arith.constant 0 : index
    %37 = vector.load %arg3[%c0_39, %c0_40, %c20, %c0_41] : memref<1x1x110x8xbf16, #tpu.memory_space<vmem>>, vector<1x1x80x8xbf16>
    %38 = vector.shape_cast %37 : vector<1x1x80x8xbf16> to vector<80x8xbf16>
    %c6 = arith.constant 6 : index
    %c0_42 = arith.constant 0 : index
    %c0_43 = arith.constant 0 : index
    %39 = vector.load %arg6[%c6, %c0_42, %c0_43] : memref<27x8x8xbf16, #tpu.memory_space<vmem>>, vector<1x8x8xbf16>
    %40 = vector.shape_cast %39 : vector<1x8x8xbf16> to vector<8x8xbf16>
    %cst_44 = arith.constant dense<0.000000e+00> : vector<80x8xf32>
    %41 = tpu.matmul %38, %40, %cst_44 {dimension_numbers = #tpu.dot_dimension_numbers<[1], [0], [0], [1], [0, 0, 1, 1], [], []>} : vector<80x8xbf16>, vector<8x8xbf16>, vector<80x8xf32> -> vector<80x8xf32>
    %42 = arith.addf %36, %41 : vector<80x8xf32>
    %c0_45 = arith.constant 0 : index
    %c0_46 = arith.constant 0 : index
    %c21 = arith.constant 21 : index
    %c0_47 = arith.constant 0 : index
    %43 = vector.load %arg3[%c0_45, %c0_46, %c21, %c0_47] : memref<1x1x110x8xbf16, #tpu.memory_space<vmem>>, vector<1x1x80x8xbf16>
    %44 = vector.shape_cast %43 : vector<1x1x80x8xbf16> to vector<80x8xbf16>
    %c7 = arith.constant 7 : index
    %c0_48 = arith.constant 0 : index
    %c0_49 = arith.constant 0 : index
    %45 = vector.load %arg6[%c7, %c0_48, %c0_49] : memref<27x8x8xbf16, #tpu.memory_space<vmem>>, vector<1x8x8xbf16>
    %46 = vector.shape_cast %45 : vector<1x8x8xbf16> to vector<8x8xbf16>
    %cst_50 = arith.constant dense<0.000000e+00> : vector<80x8xf32>
    %47 = tpu.matmul %44, %46, %cst_50 {dimension_numbers = #tpu.dot_dimension_numbers<[1], [0], [0], [1], [0, 0, 1, 1], [], []>} : vector<80x8xbf16>, vector<8x8xbf16>, vector<80x8xf32> -> vector<80x8xf32>
    %48 = arith.addf %42, %47 : vector<80x8xf32>
    %c0_51 = arith.constant 0 : index
    %c0_52 = arith.constant 0 : index
    %c22 = arith.constant 22 : index
    %c0_53 = arith.constant 0 : index
    %49 = vector.load %arg3[%c0_51, %c0_52, %c22, %c0_53] : memref<1x1x110x8xbf16, #tpu.memory_space<vmem>>, vector<1x1x80x8xbf16>
    %50 = vector.shape_cast %49 : vector<1x1x80x8xbf16> to vector<80x8xbf16>
    %c8 = arith.constant 8 : index
    %c0_54 = arith.constant 0 : index
    %c0_55 = arith.constant 0 : index
    %51 = vector.load %arg6[%c8, %c0_54, %c0_55] : memref<27x8x8xbf16, #tpu.memory_space<vmem>>, vector<1x8x8xbf16>
    %52 = vector.shape_cast %51 : vector<1x8x8xbf16> to vector<8x8xbf16>
    %cst_56 = arith.constant dense<0.000000e+00> : vector<80x8xf32>
    %53 = tpu.matmul %50, %52, %cst_56 {dimension_numbers = #tpu.dot_dimension_numbers<[1], [0], [0], [1], [0, 0, 1, 1], [], []>} : vector<80x8xbf16>, vector<8x8xbf16>, vector<80x8xf32> -> vector<80x8xf32>
    %54 = arith.addf %48, %53 : vector<80x8xf32>
    %c0_57 = arith.constant 0 : index
    %c0_58 = arith.constant 0 : index
    %c0_59 = arith.constant 0 : index
    %c0_60 = arith.constant 0 : index
    %55 = vector.load %arg4[%c0_57, %c0_58, %c0_59, %c0_60] : memref<1x1x110x8xbf16, #tpu.memory_space<vmem>>, vector<1x1x80x8xbf16>
    %56 = vector.shape_cast %55 : vector<1x1x80x8xbf16> to vector<80x8xbf16>
    %c9 = arith.constant 9 : index
    %c0_61 = arith.constant 0 : index
    %c0_62 = arith.constant 0 : index
    %57 = vector.load %arg6[%c9, %c0_61, %c0_62] : memref<27x8x8xbf16, #tpu.memory_space<vmem>>, vector<1x8x8xbf16>
    %58 = vector.shape_cast %57 : vector<1x8x8xbf16> to vector<8x8xbf16>
    %cst_63 = arith.constant dense<0.000000e+00> : vector<80x8xf32>
    %59 = tpu.matmul %56, %58, %cst_63 {dimension_numbers = #tpu.dot_dimension_numbers<[1], [0], [0], [1], [0, 0, 1, 1], [], []>} : vector<80x8xbf16>, vector<8x8xbf16>, vector<80x8xf32> -> vector<80x8xf32>
    %60 = arith.addf %54, %59 : vector<80x8xf32>
    %c0_64 = arith.constant 0 : index
    %c0_65 = arith.constant 0 : index
    %c1_66 = arith.constant 1 : index
    %c0_67 = arith.constant 0 : index
    %61 = vector.load %arg4[%c0_64, %c0_65, %c1_66, %c0_67] : memref<1x1x110x8xbf16, #tpu.memory_space<vmem>>, vector<1x1x80x8xbf16>
    %62 = vector.shape_cast %61 : vector<1x1x80x8xbf16> to vector<80x8xbf16>
    %c10_68 = arith.constant 10 : index
    %c0_69 = arith.constant 0 : index
    %c0_70 = arith.constant 0 : index
    %63 = vector.load %arg6[%c10_68, %c0_69, %c0_70] : memref<27x8x8xbf16, #tpu.memory_space<vmem>>, vector<1x8x8xbf16>
    %64 = vector.shape_cast %63 : vector<1x8x8xbf16> to vector<8x8xbf16>
    %cst_71 = arith.constant dense<0.000000e+00> : vector<80x8xf32>
    %65 = tpu.matmul %62, %64, %cst_71 {dimension_numbers = #tpu.dot_dimension_numbers<[1], [0], [0], [1], [0, 0, 1, 1], [], []>} : vector<80x8xbf16>, vector<8x8xbf16>, vector<80x8xf32> -> vector<80x8xf32>
    %66 = arith.addf %60, %65 : vector<80x8xf32>
    %c0_72 = arith.constant 0 : index
    %c0_73 = arith.constant 0 : index
    %c2_74 = arith.constant 2 : index
    %c0_75 = arith.constant 0 : index
    %67 = vector.load %arg4[%c0_72, %c0_73, %c2_74, %c0_75] : memref<1x1x110x8xbf16, #tpu.memory_space<vmem>>, vector<1x1x80x8xbf16>
    %68 = vector.shape_cast %67 : vector<1x1x80x8xbf16> to vector<80x8xbf16>
    %c11_76 = arith.constant 11 : index
    %c0_77 = arith.constant 0 : index
    %c0_78 = arith.constant 0 : index
    %69 = vector.load %arg6[%c11_76, %c0_77, %c0_78] : memref<27x8x8xbf16, #tpu.memory_space<vmem>>, vector<1x8x8xbf16>
    %70 = vector.shape_cast %69 : vector<1x8x8xbf16> to vector<8x8xbf16>
    %cst_79 = arith.constant dense<0.000000e+00> : vector<80x8xf32>
    %71 = tpu.matmul %68, %70, %cst_79 {dimension_numbers = #tpu.dot_dimension_numbers<[1], [0], [0], [1], [0, 0, 1, 1], [], []>} : vector<80x8xbf16>, vector<8x8xbf16>, vector<80x8xf32> -> vector<80x8xf32>
    %72 = arith.addf %66, %71 : vector<80x8xf32>
    %c0_80 = arith.constant 0 : index
    %c0_81 = arith.constant 0 : index
    %c10_82 = arith.constant 10 : index
    %c0_83 = arith.constant 0 : index
    %73 = vector.load %arg4[%c0_80, %c0_81, %c10_82, %c0_83] : memref<1x1x110x8xbf16, #tpu.memory_space<vmem>>, vector<1x1x80x8xbf16>
    %74 = vector.shape_cast %73 : vector<1x1x80x8xbf16> to vector<80x8xbf16>
    %c12_84 = arith.constant 12 : index
    %c0_85 = arith.constant 0 : index
    %c0_86 = arith.constant 0 : index
    %75 = vector.load %arg6[%c12_84, %c0_85, %c0_86] : memref<27x8x8xbf16, #tpu.memory_space<vmem>>, vector<1x8x8xbf16>
    %76 = vector.shape_cast %75 : vector<1x8x8xbf16> to vector<8x8xbf16>
    %cst_87 = arith.constant dense<0.000000e+00> : vector<80x8xf32>
    %77 = tpu.matmul %74, %76, %cst_87 {dimension_numbers = #tpu.dot_dimension_numbers<[1], [0], [0], [1], [0, 0, 1, 1], [], []>} : vector<80x8xbf16>, vector<8x8xbf16>, vector<80x8xf32> -> vector<80x8xf32>
    %78 = arith.addf %72, %77 : vector<80x8xf32>
    %c0_88 = arith.constant 0 : index
    %c0_89 = arith.constant 0 : index
    %c11_90 = arith.constant 11 : index
    %c0_91 = arith.constant 0 : index
    %79 = vector.load %arg4[%c0_88, %c0_89, %c11_90, %c0_91] : memref<1x1x110x8xbf16, #tpu.memory_space<vmem>>, vector<1x1x80x8xbf16>
    %80 = vector.shape_cast %79 : vector<1x1x80x8xbf16> to vector<80x8xbf16>
    %c13 = arith.constant 13 : index
    %c0_92 = arith.constant 0 : index
    %c0_93 = arith.constant 0 : index
    %81 = vector.load %arg6[%c13, %c0_92, %c0_93] : memref<27x8x8xbf16, #tpu.memory_space<vmem>>, vector<1x8x8xbf16>
    %82 = vector.shape_cast %81 : vector<1x8x8xbf16> to vector<8x8xbf16>
    %cst_94 = arith.constant dense<0.000000e+00> : vector<80x8xf32>
    %83 = tpu.matmul %80, %82, %cst_94 {dimension_numbers = #tpu.dot_dimension_numbers<[1], [0], [0], [1], [0, 0, 1, 1], [], []>} : vector<80x8xbf16>, vector<8x8xbf16>, vector<80x8xf32> -> vector<80x8xf32>
    %84 = arith.addf %78, %83 : vector<80x8xf32>
    %c0_95 = arith.constant 0 : index
    %c0_96 = arith.constant 0 : index
    %c12_97 = arith.constant 12 : index
    %c0_98 = arith.constant 0 : index
    %85 = vector.load %arg4[%c0_95, %c0_96, %c12_97, %c0_98] : memref<1x1x110x8xbf16, #tpu.memory_space<vmem>>, vector<1x1x80x8xbf16>
    %86 = vector.shape_cast %85 : vector<1x1x80x8xbf16> to vector<80x8xbf16>
    %c14 = arith.constant 14 : index
    %c0_99 = arith.constant 0 : index
    %c0_100 = arith.constant 0 : index
    %87 = vector.load %arg6[%c14, %c0_99, %c0_100] : memref<27x8x8xbf16, #tpu.memory_space<vmem>>, vector<1x8x8xbf16>
    %88 = vector.shape_cast %87 : vector<1x8x8xbf16> to vector<8x8xbf16>
    %cst_101 = arith.constant dense<0.000000e+00> : vector<80x8xf32>
    %89 = tpu.matmul %86, %88, %cst_101 {dimension_numbers = #tpu.dot_dimension_numbers<[1], [0], [0], [1], [0, 0, 1, 1], [], []>} : vector<80x8xbf16>, vector<8x8xbf16>, vector<80x8xf32> -> vector<80x8xf32>
    %90 = arith.addf %84, %89 : vector<80x8xf32>
    %c0_102 = arith.constant 0 : index
    %c0_103 = arith.constant 0 : index
    %c20_104 = arith.constant 20 : index
    %c0_105 = arith.constant 0 : index
    %91 = vector.load %arg4[%c0_102, %c0_103, %c20_104, %c0_105] : memref<1x1x110x8xbf16, #tpu.memory_space<vmem>>, vector<1x1x80x8xbf16>
    %92 = vector.shape_cast %91 : vector<1x1x80x8xbf16> to vector<80x8xbf16>
    %c15 = arith.constant 15 : index
    %c0_106 = arith.constant 0 : index
    %c0_107 = arith.constant 0 : index
    %93 = vector.load %arg6[%c15, %c0_106, %c0_107] : memref<27x8x8xbf16, #tpu.memory_space<vmem>>, vector<1x8x8xbf16>
    %94 = vector.shape_cast %93 : vector<1x8x8xbf16> to vector<8x8xbf16>
    %cst_108 = arith.constant dense<0.000000e+00> : vector<80x8xf32>
    %95 = tpu.matmul %92, %94, %cst_108 {dimension_numbers = #tpu.dot_dimension_numbers<[1], [0], [0], [1], [0, 0, 1, 1], [], []>} : vector<80x8xbf16>, vector<8x8xbf16>, vector<80x8xf32> -> vector<80x8xf32>
    %96 = arith.addf %90, %95 : vector<80x8xf32>
    %c0_109 = arith.constant 0 : index
    %c0_110 = arith.constant 0 : index
    %c21_111 = arith.constant 21 : index
    %c0_112 = arith.constant 0 : index
    %97 = vector.load %arg4[%c0_109, %c0_110, %c21_111, %c0_112] : memref<1x1x110x8xbf16, #tpu.memory_space<vmem>>, vector<1x1x80x8xbf16>
    %98 = vector.shape_cast %97 : vector<1x1x80x8xbf16> to vector<80x8xbf16>
    %c16 = arith.constant 16 : index
    %c0_113 = arith.constant 0 : index
    %c0_114 = arith.constant 0 : index
    %99 = vector.load %arg6[%c16, %c0_113, %c0_114] : memref<27x8x8xbf16, #tpu.memory_space<vmem>>, vector<1x8x8xbf16>
    %100 = vector.shape_cast %99 : vector<1x8x8xbf16> to vector<8x8xbf16>
    %cst_115 = arith.constant dense<0.000000e+00> : vector<80x8xf32>
    %101 = tpu.matmul %98, %100, %cst_115 {dimension_numbers = #tpu.dot_dimension_numbers<[1], [0], [0], [1], [0, 0, 1, 1], [], []>} : vector<80x8xbf16>, vector<8x8xbf16>, vector<80x8xf32> -> vector<80x8xf32>
    %102 = arith.addf %96, %101 : vector<80x8xf32>
    %c0_116 = arith.constant 0 : index
    %c0_117 = arith.constant 0 : index
    %c22_118 = arith.constant 22 : index
    %c0_119 = arith.constant 0 : index
    %103 = vector.load %arg4[%c0_116, %c0_117, %c22_118, %c0_119] : memref<1x1x110x8xbf16, #tpu.memory_space<vmem>>, vector<1x1x80x8xbf16>
    %104 = vector.shape_cast %103 : vector<1x1x80x8xbf16> to vector<80x8xbf16>
    %c17 = arith.constant 17 : index
    %c0_120 = arith.constant 0 : index
    %c0_121 = arith.constant 0 : index
    %105 = vector.load %arg6[%c17, %c0_120, %c0_121] : memref<27x8x8xbf16, #tpu.memory_space<vmem>>, vector<1x8x8xbf16>
    %106 = vector.shape_cast %105 : vector<1x8x8xbf16> to vector<8x8xbf16>
    %cst_122 = arith.constant dense<0.000000e+00> : vector<80x8xf32>
    %107 = tpu.matmul %104, %106, %cst_122 {dimension_numbers = #tpu.dot_dimension_numbers<[1], [0], [0], [1], [0, 0, 1, 1], [], []>} : vector<80x8xbf16>, vector<8x8xbf16>, vector<80x8xf32> -> vector<80x8xf32>
    %108 = arith.addf %102, %107 : vector<80x8xf32>
    %c0_123 = arith.constant 0 : index
    %c0_124 = arith.constant 0 : index
    %c0_125 = arith.constant 0 : index
    %c0_126 = arith.constant 0 : index
    %109 = vector.load %arg5[%c0_123, %c0_124, %c0_125, %c0_126] : memref<1x1x110x8xbf16, #tpu.memory_space<vmem>>, vector<1x1x80x8xbf16>
    %110 = vector.shape_cast %109 : vector<1x1x80x8xbf16> to vector<80x8xbf16>
    %c18 = arith.constant 18 : index
    %c0_127 = arith.constant 0 : index
    %c0_128 = arith.constant 0 : index
    %111 = vector.load %arg6[%c18, %c0_127, %c0_128] : memref<27x8x8xbf16, #tpu.memory_space<vmem>>, vector<1x8x8xbf16>
    %112 = vector.shape_cast %111 : vector<1x8x8xbf16> to vector<8x8xbf16>
    %cst_129 = arith.constant dense<0.000000e+00> : vector<80x8xf32>
    %113 = tpu.matmul %110, %112, %cst_129 {dimension_numbers = #tpu.dot_dimension_numbers<[1], [0], [0], [1], [0, 0, 1, 1], [], []>} : vector<80x8xbf16>, vector<8x8xbf16>, vector<80x8xf32> -> vector<80x8xf32>
    %114 = arith.addf %108, %113 : vector<80x8xf32>
    %c0_130 = arith.constant 0 : index
    %c0_131 = arith.constant 0 : index
    %c1_132 = arith.constant 1 : index
    %c0_133 = arith.constant 0 : index
    %115 = vector.load %arg5[%c0_130, %c0_131, %c1_132, %c0_133] : memref<1x1x110x8xbf16, #tpu.memory_space<vmem>>, vector<1x1x80x8xbf16>
    %116 = vector.shape_cast %115 : vector<1x1x80x8xbf16> to vector<80x8xbf16>
    %c19 = arith.constant 19 : index
    %c0_134 = arith.constant 0 : index
    %c0_135 = arith.constant 0 : index
    %117 = vector.load %arg6[%c19, %c0_134, %c0_135] : memref<27x8x8xbf16, #tpu.memory_space<vmem>>, vector<1x8x8xbf16>
    %118 = vector.shape_cast %117 : vector<1x8x8xbf16> to vector<8x8xbf16>
    %cst_136 = arith.constant dense<0.000000e+00> : vector<80x8xf32>
    %119 = tpu.matmul %116, %118, %cst_136 {dimension_numbers = #tpu.dot_dimension_numbers<[1], [0], [0], [1], [0, 0, 1, 1], [], []>} : vector<80x8xbf16>, vector<8x8xbf16>, vector<80x8xf32> -> vector<80x8xf32>
    %120 = arith.addf %114, %119 : vector<80x8xf32>
    %c0_137 = arith.constant 0 : index
    %c0_138 = arith.constant 0 : index
    %c2_139 = arith.constant 2 : index
    %c0_140 = arith.constant 0 : index
    %121 = vector.load %arg5[%c0_137, %c0_138, %c2_139, %c0_140] : memref<1x1x110x8xbf16, #tpu.memory_space<vmem>>, vector<1x1x80x8xbf16>
    %122 = vector.shape_cast %121 : vector<1x1x80x8xbf16> to vector<80x8xbf16>
    %c20_141 = arith.constant 20 : index
    %c0_142 = arith.constant 0 : index
    %c0_143 = arith.constant 0 : index
    %123 = vector.load %arg6[%c20_141, %c0_142, %c0_143] : memref<27x8x8xbf16, #tpu.memory_space<vmem>>, vector<1x8x8xbf16>
    %124 = vector.shape_cast %123 : vector<1x8x8xbf16> to vector<8x8xbf16>
    %cst_144 = arith.constant dense<0.000000e+00> : vector<80x8xf32>
    %125 = tpu.matmul %122, %124, %cst_144 {dimension_numbers = #tpu.dot_dimension_numbers<[1], [0], [0], [1], [0, 0, 1, 1], [], []>} : vector<80x8xbf16>, vector<8x8xbf16>, vector<80x8xf32> -> vector<80x8xf32>
    %126 = arith.addf %120, %125 : vector<80x8xf32>
    %c0_145 = arith.constant 0 : index
    %c0_146 = arith.constant 0 : index
    %c10_147 = arith.constant 10 : index
    %c0_148 = arith.constant 0 : index
    %127 = vector.load %arg5[%c0_145, %c0_146, %c10_147, %c0_148] : memref<1x1x110x8xbf16, #tpu.memory_space<vmem>>, vector<1x1x80x8xbf16>
    %128 = vector.shape_cast %127 : vector<1x1x80x8xbf16> to vector<80x8xbf16>
    %c21_149 = arith.constant 21 : index
    %c0_150 = arith.constant 0 : index
    %c0_151 = arith.constant 0 : index
    %129 = vector.load %arg6[%c21_149, %c0_150, %c0_151] : memref<27x8x8xbf16, #tpu.memory_space<vmem>>, vector<1x8x8xbf16>
    %130 = vector.shape_cast %129 : vector<1x8x8xbf16> to vector<8x8xbf16>
    %cst_152 = arith.constant dense<0.000000e+00> : vector<80x8xf32>
    %131 = tpu.matmul %128, %130, %cst_152 {dimension_numbers = #tpu.dot_dimension_numbers<[1], [0], [0], [1], [0, 0, 1, 1], [], []>} : vector<80x8xbf16>, vector<8x8xbf16>, vector<80x8xf32> -> vector<80x8xf32>
    %132 = arith.addf %126, %131 : vector<80x8xf32>
    %c0_153 = arith.constant 0 : index
    %c0_154 = arith.constant 0 : index
    %c11_155 = arith.constant 11 : index
    %c0_156 = arith.constant 0 : index
    %133 = vector.load %arg5[%c0_153, %c0_154, %c11_155, %c0_156] : memref<1x1x110x8xbf16, #tpu.memory_space<vmem>>, vector<1x1x80x8xbf16>
    %134 = vector.shape_cast %133 : vector<1x1x80x8xbf16> to vector<80x8xbf16>
    %c22_157 = arith.constant 22 : index
    %c0_158 = arith.constant 0 : index
    %c0_159 = arith.constant 0 : index
    %135 = vector.load %arg6[%c22_157, %c0_158, %c0_159] : memref<27x8x8xbf16, #tpu.memory_space<vmem>>, vector<1x8x8xbf16>
    %136 = vector.shape_cast %135 : vector<1x8x8xbf16> to vector<8x8xbf16>
    %cst_160 = arith.constant dense<0.000000e+00> : vector<80x8xf32>
    %137 = tpu.matmul %134, %136, %cst_160 {dimension_numbers = #tpu.dot_dimension_numbers<[1], [0], [0], [1], [0, 0, 1, 1], [], []>} : vector<80x8xbf16>, vector<8x8xbf16>, vector<80x8xf32> -> vector<80x8xf32>
    %138 = arith.addf %132, %137 : vector<80x8xf32>
    %c0_161 = arith.constant 0 : index
    %c0_162 = arith.constant 0 : index
    %c12_163 = arith.constant 12 : index
    %c0_164 = arith.constant 0 : index
    %139 = vector.load %arg5[%c0_161, %c0_162, %c12_163, %c0_164] : memref<1x1x110x8xbf16, #tpu.memory_space<vmem>>, vector<1x1x80x8xbf16>
    %140 = vector.shape_cast %139 : vector<1x1x80x8xbf16> to vector<80x8xbf16>
    %c23 = arith.constant 23 : index
    %c0_165 = arith.constant 0 : index
    %c0_166 = arith.constant 0 : index
    %141 = vector.load %arg6[%c23, %c0_165, %c0_166] : memref<27x8x8xbf16, #tpu.memory_space<vmem>>, vector<1x8x8xbf16>
    %142 = vector.shape_cast %141 : vector<1x8x8xbf16> to vector<8x8xbf16>
    %cst_167 = arith.constant dense<0.000000e+00> : vector<80x8xf32>
    %143 = tpu.matmul %140, %142, %cst_167 {dimension_numbers = #tpu.dot_dimension_numbers<[1], [0], [0], [1], [0, 0, 1, 1], [], []>} : vector<80x8xbf16>, vector<8x8xbf16>, vector<80x8xf32> -> vector<80x8xf32>
    %144 = arith.addf %138, %143 : vector<80x8xf32>
    %c0_168 = arith.constant 0 : index
    %c0_169 = arith.constant 0 : index
    %c20_170 = arith.constant 20 : index
    %c0_171 = arith.constant 0 : index
    %145 = vector.load %arg5[%c0_168, %c0_169, %c20_170, %c0_171] : memref<1x1x110x8xbf16, #tpu.memory_space<vmem>>, vector<1x1x80x8xbf16>
    %146 = vector.shape_cast %145 : vector<1x1x80x8xbf16> to vector<80x8xbf16>
    %c24 = arith.constant 24 : index
    %c0_172 = arith.constant 0 : index
    %c0_173 = arith.constant 0 : index
    %147 = vector.load %arg6[%c24, %c0_172, %c0_173] : memref<27x8x8xbf16, #tpu.memory_space<vmem>>, vector<1x8x8xbf16>
    %148 = vector.shape_cast %147 : vector<1x8x8xbf16> to vector<8x8xbf16>
    %cst_174 = arith.constant dense<0.000000e+00> : vector<80x8xf32>
    %149 = tpu.matmul %146, %148, %cst_174 {dimension_numbers = #tpu.dot_dimension_numbers<[1], [0], [0], [1], [0, 0, 1, 1], [], []>} : vector<80x8xbf16>, vector<8x8xbf16>, vector<80x8xf32> -> vector<80x8xf32>
    %150 = arith.addf %144, %149 : vector<80x8xf32>
    %c0_175 = arith.constant 0 : index
    %c0_176 = arith.constant 0 : index
    %c21_177 = arith.constant 21 : index
    %c0_178 = arith.constant 0 : index
    %151 = vector.load %arg5[%c0_175, %c0_176, %c21_177, %c0_178] : memref<1x1x110x8xbf16, #tpu.memory_space<vmem>>, vector<1x1x80x8xbf16>
    %152 = vector.shape_cast %151 : vector<1x1x80x8xbf16> to vector<80x8xbf16>
    %c25 = arith.constant 25 : index
    %c0_179 = arith.constant 0 : index
    %c0_180 = arith.constant 0 : index
    %153 = vector.load %arg6[%c25, %c0_179, %c0_180] : memref<27x8x8xbf16, #tpu.memory_space<vmem>>, vector<1x8x8xbf16>
    %154 = vector.shape_cast %153 : vector<1x8x8xbf16> to vector<8x8xbf16>
    %cst_181 = arith.constant dense<0.000000e+00> : vector<80x8xf32>
    %155 = tpu.matmul %152, %154, %cst_181 {dimension_numbers = #tpu.dot_dimension_numbers<[1], [0], [0], [1], [0, 0, 1, 1], [], []>} : vector<80x8xbf16>, vector<8x8xbf16>, vector<80x8xf32> -> vector<80x8xf32>
    %156 = arith.addf %150, %155 : vector<80x8xf32>
    %c0_182 = arith.constant 0 : index
    %c0_183 = arith.constant 0 : index
    %c22_184 = arith.constant 22 : index
    %c0_185 = arith.constant 0 : index
    %157 = vector.load %arg5[%c0_182, %c0_183, %c22_184, %c0_185] : memref<1x1x110x8xbf16, #tpu.memory_space<vmem>>, vector<1x1x80x8xbf16>
    %158 = vector.shape_cast %157 : vector<1x1x80x8xbf16> to vector<80x8xbf16>
    %c26 = arith.constant 26 : index
    %c0_186 = arith.constant 0 : index
    %c0_187 = arith.constant 0 : index
    %159 = vector.load %arg6[%c26, %c0_186, %c0_187] : memref<27x8x8xbf16, #tpu.memory_space<vmem>>, vector<1x8x8xbf16>
    %160 = vector.shape_cast %159 : vector<1x8x8xbf16> to vector<8x8xbf16>
    %cst_188 = arith.constant dense<0.000000e+00> : vector<80x8xf32>
    %161 = tpu.matmul %158, %160, %cst_188 {dimension_numbers = #tpu.dot_dimension_numbers<[1], [0], [0], [1], [0, 0, 1, 1], [], []>} : vector<80x8xbf16>, vector<8x8xbf16>, vector<80x8xf32> -> vector<80x8xf32>
    %162 = arith.addf %156, %161 : vector<80x8xf32>
    %c0_189 = arith.constant 0 : index
    %c0_190 = arith.constant 0 : index
    %163 = vector.load %arg7[%c0_189, %c0_190] : memref<1x8xf32, #tpu.memory_space<vmem>>, vector<1x8xf32>
    %164 = vector.broadcast %163 : vector<1x8xf32> to vector<80x8xf32>
    %165 = arith.addf %162, %164 : vector<80x8xf32>
    %cst_191 = arith.constant 0.000000e+00 : f32
    %166 = vector.broadcast %cst_191 : f32 to vector<80x8xf32>
    %167 = arith.maximumf %165, %166 : vector<80x8xf32>
    %168 = arith.truncf %167 : vector<80x8xf32> to vector<80x8xbf16>
    %c0_192 = arith.constant 0 : index
    %c0_193 = arith.constant 0 : index
    %c0_194 = arith.constant 0 : index
    %c0_195 = arith.constant 0 : index
    %169 = vector.load %arg8[%c0_192, %c0_193, %c0_194, %c0_195] : memref<1x1x80x8xbf16, #tpu.memory_space<vmem>>, vector<1x1x80x8xbf16>
    %170 = vector.shape_cast %169 : vector<1x1x80x8xbf16> to vector<80x8xbf16>
    %171 = vector.shape_cast %168 : vector<80x8xbf16> to vector<1x1x80x8xbf16>
    tpu.vector_store %arg8[%c0_192, %c0_193, %c0_194, %c0_195], %171 {strides = array<i32>} : memref<1x1x80x8xbf16, #tpu.memory_space<vmem>>, vector<1x1x80x8xbf16>,
    return
  }
  func.func @transform_0(%arg0: i32, %arg1: i32, %arg2: i32) -> (i32, i32, i32, i32) {
    %c0_i32 = arith.constant 0 : i32
    %0 = arith.addi %arg2, %c0_i32 : i32
    %c0_i32_0 = arith.constant 0 : i32
    %c0_i32_1 = arith.constant 0 : i32
    %c0_i32_2 = arith.constant 0 : i32
    return %arg0, %0, %c0_i32_0, %c0_i32_1 : i32, i32, i32, i32
  }
  func.func @transform_1(%arg0: i32, %arg1: i32, %arg2: i32) -> (i32, i32, i32, i32) {
    %c1_i32 = arith.constant 1 : i32
    %0 = arith.addi %arg2, %c1_i32 : i32
    %c0_i32 = arith.constant 0 : i32
    %c0_i32_0 = arith.constant 0 : i32
    %c0_i32_1 = arith.constant 0 : i32
    return %arg0, %0, %c0_i32, %c0_i32_0 : i32, i32, i32, i32
  }
  func.func @transform_2(%arg0: i32, %arg1: i32, %arg2: i32) -> (i32, i32, i32, i32) {
    %c2_i32 = arith.constant 2 : i32
    %0 = arith.addi %arg2, %c2_i32 : i32
    %c0_i32 = arith.constant 0 : i32
    %c0_i32_0 = arith.constant 0 : i32
    %c0_i32_1 = arith.constant 0 : i32
    return %arg0, %0, %c0_i32, %c0_i32_0 : i32, i32, i32, i32
  }
  func.func @transform_3(%arg0: i32, %arg1: i32, %arg2: i32) -> (i32, i32, i32) {
    %c0_i32 = arith.constant 0 : i32
    %c0_i32_0 = arith.constant 0 : i32
    %c0_i32_1 = arith.constant 0 : i32
    return %c0_i32, %c0_i32_0, %arg1 : i32, i32, i32
  }
  func.func @transform_4(%arg0: i32, %arg1: i32, %arg2: i32) -> (i32, i32) {
    %c0_i32 = arith.constant 0 : i32
    %c0_i32_0 = arith.constant 0 : i32
    return %c0_i32, %arg1 : i32, i32
  }
  func.func @transform_5(%arg0: i32, %arg1: i32, %arg2: i32) -> (i32, i32, i32, i32) {
    %c0_i32 = arith.constant 0 : i32
    %c0_i32_0 = arith.constant 0 : i32
    return %arg0, %arg2, %c0_i32, %arg1 : i32, i32, i32, i32
  }
}

module attributes {stable_mosaic.version = 11 : i64} {
  func.func @_conv3x3x3_bn_act_kernel(%arg0: i32, %arg1: i32, %arg2: i32, %arg3: memref<1x1x110x8xbf16, #tpu.memory_space<vmem>>, %arg4: memref<1x1x110x8xbf16, #tpu.memory_space<vmem>>, %arg5: memref<1x1x110x8xbf16, #tpu.memory_space<vmem>>, %arg6: memref<1x1x110x8xbf16, #tpu.memory_space<vmem>>, %arg7: memref<27x8x8xbf16, #tpu.memory_space<vmem>>, %arg8: memref<1x8xf32, #tpu.memory_space<vmem>>, %arg9: memref<1x1x80x8xf32, #tpu.memory_space<vmem>>) attributes {dimension_semantics = [#tpu.dimension_semantics<parallel>, #tpu.dimension_semantics<parallel>, #tpu.dimension_semantics<parallel>], iteration_bounds = array<i64: 2, 1, 4>, scalar_prefetch = 0 : i64, scratch_operands = 0 : i64, tpu.core_type = #tpu.core_type<tc>, window_params = [{transform_indices = @transform_0, window_bounds = array<i64: 1, 1, 110, 8>}, {transform_indices = @transform_1, window_bounds = array<i64: 1, 1, 110, 8>}, {transform_indices = @transform_2, window_bounds = array<i64: 1, 1, 110, 8>}, {transform_indices = @transform_3, window_bounds = array<i64: 1, 1, 110, 8>}, {transform_indices = @transform_4, window_bounds = array<i64: 27, 8, 8>}, {transform_indices = @transform_5, window_bounds = array<i64: 1, 8>}, {transform_indices = @transform_6, window_bounds = array<i64: 1, 1, 80, 8>}]} {
    %cst = arith.constant 0.000000e+00 : f32
    %0 = vector.broadcast %cst : f32 to vector<80x8xf32>
    %c0 = arith.constant 0 : index
    %c0_0 = arith.constant 0 : index
    %c0_1 = arith.constant 0 : index
    %c0_2 = arith.constant 0 : index
    %1 = vector.load %arg3[%c0, %c0_0, %c0_1, %c0_2] : memref<1x1x110x8xbf16, #tpu.memory_space<vmem>>, vector<1x1x80x8xbf16>
    %2 = vector.shape_cast %1 : vector<1x1x80x8xbf16> to vector<80x8xbf16>
    %c0_3 = arith.constant 0 : index
    %c0_4 = arith.constant 0 : index
    %c0_5 = arith.constant 0 : index
    %3 = vector.load %arg7[%c0_3, %c0_4, %c0_5] : memref<27x8x8xbf16, #tpu.memory_space<vmem>>, vector<1x8x8xbf16>
    %4 = vector.shape_cast %3 : vector<1x8x8xbf16> to vector<8x8xbf16>
    %cst_6 = arith.constant dense<0.000000e+00> : vector<80x8xf32>
    %5 = tpu.matmul %2, %4, %cst_6 {dimension_numbers = #tpu.dot_dimension_numbers<[1], [0], [0], [1], [0, 0, 1, 1], [], []>} : vector<80x8xbf16>, vector<8x8xbf16>, vector<80x8xf32> -> vector<80x8xf32>
    %6 = arith.addf %0, %5 : vector<80x8xf32>
    %c0_7 = arith.constant 0 : index
    %c0_8 = arith.constant 0 : index
    %c1 = arith.constant 1 : index
    %c0_9 = arith.constant 0 : index
    %7 = vector.load %arg3[%c0_7, %c0_8, %c1, %c0_9] : memref<1x1x110x8xbf16, #tpu.memory_space<vmem>>, vector<1x1x80x8xbf16>
    %8 = vector.shape_cast %7 : vector<1x1x80x8xbf16> to vector<80x8xbf16>
    %c1_10 = arith.constant 1 : index
    %c0_11 = arith.constant 0 : index
    %c0_12 = arith.constant 0 : index
    %9 = vector.load %arg7[%c1_10, %c0_11, %c0_12] : memref<27x8x8xbf16, #tpu.memory_space<vmem>>, vector<1x8x8xbf16>
    %10 = vector.shape_cast %9 : vector<1x8x8xbf16> to vector<8x8xbf16>
    %cst_13 = arith.constant dense<0.000000e+00> : vector<80x8xf32>
    %11 = tpu.matmul %8, %10, %cst_13 {dimension_numbers = #tpu.dot_dimension_numbers<[1], [0], [0], [1], [0, 0, 1, 1], [], []>} : vector<80x8xbf16>, vector<8x8xbf16>, vector<80x8xf32> -> vector<80x8xf32>
    %12 = arith.addf %6, %11 : vector<80x8xf32>
    %c0_14 = arith.constant 0 : index
    %c0_15 = arith.constant 0 : index
    %c2 = arith.constant 2 : index
    %c0_16 = arith.constant 0 : index
    %13 = vector.load %arg3[%c0_14, %c0_15, %c2, %c0_16] : memref<1x1x110x8xbf16, #tpu.memory_space<vmem>>, vector<1x1x80x8xbf16>
    %14 = vector.shape_cast %13 : vector<1x1x80x8xbf16> to vector<80x8xbf16>
    %c2_17 = arith.constant 2 : index
    %c0_18 = arith.constant 0 : index
    %c0_19 = arith.constant 0 : index
    %15 = vector.load %arg7[%c2_17, %c0_18, %c0_19] : memref<27x8x8xbf16, #tpu.memory_space<vmem>>, vector<1x8x8xbf16>
    %16 = vector.shape_cast %15 : vector<1x8x8xbf16> to vector<8x8xbf16>
    %cst_20 = arith.constant dense<0.000000e+00> : vector<80x8xf32>
    %17 = tpu.matmul %14, %16, %cst_20 {dimension_numbers = #tpu.dot_dimension_numbers<[1], [0], [0], [1], [0, 0, 1, 1], [], []>} : vector<80x8xbf16>, vector<8x8xbf16>, vector<80x8xf32> -> vector<80x8xf32>
    %18 = arith.addf %12, %17 : vector<80x8xf32>
    %c0_21 = arith.constant 0 : index
    %c0_22 = arith.constant 0 : index
    %c10 = arith.constant 10 : index
    %c0_23 = arith.constant 0 : index
    %19 = vector.load %arg3[%c0_21, %c0_22, %c10, %c0_23] : memref<1x1x110x8xbf16, #tpu.memory_space<vmem>>, vector<1x1x80x8xbf16>
    %20 = vector.shape_cast %19 : vector<1x1x80x8xbf16> to vector<80x8xbf16>
    %c3 = arith.constant 3 : index
    %c0_24 = arith.constant 0 : index
    %c0_25 = arith.constant 0 : index
    %21 = vector.load %arg7[%c3, %c0_24, %c0_25] : memref<27x8x8xbf16, #tpu.memory_space<vmem>>, vector<1x8x8xbf16>
    %22 = vector.shape_cast %21 : vector<1x8x8xbf16> to vector<8x8xbf16>
    %cst_26 = arith.constant dense<0.000000e+00> : vector<80x8xf32>
    %23 = tpu.matmul %20, %22, %cst_26 {dimension_numbers = #tpu.dot_dimension_numbers<[1], [0], [0], [1], [0, 0, 1, 1], [], []>} : vector<80x8xbf16>, vector<8x8xbf16>, vector<80x8xf32> -> vector<80x8xf32>
    %24 = arith.addf %18, %23 : vector<80x8xf32>
    %c0_27 = arith.constant 0 : index
    %c0_28 = arith.constant 0 : index
    %c11 = arith.constant 11 : index
    %c0_29 = arith.constant 0 : index
    %25 = vector.load %arg3[%c0_27, %c0_28, %c11, %c0_29] : memref<1x1x110x8xbf16, #tpu.memory_space<vmem>>, vector<1x1x80x8xbf16>
    %26 = vector.shape_cast %25 : vector<1x1x80x8xbf16> to vector<80x8xbf16>
    %c4 = arith.constant 4 : index
    %c0_30 = arith.constant 0 : index
    %c0_31 = arith.constant 0 : index
    %27 = vector.load %arg7[%c4, %c0_30, %c0_31] : memref<27x8x8xbf16, #tpu.memory_space<vmem>>, vector<1x8x8xbf16>
    %28 = vector.shape_cast %27 : vector<1x8x8xbf16> to vector<8x8xbf16>
    %cst_32 = arith.constant dense<0.000000e+00> : vector<80x8xf32>
    %29 = tpu.matmul %26, %28, %cst_32 {dimension_numbers = #tpu.dot_dimension_numbers<[1], [0], [0], [1], [0, 0, 1, 1], [], []>} : vector<80x8xbf16>, vector<8x8xbf16>, vector<80x8xf32> -> vector<80x8xf32>
    %30 = arith.addf %24, %29 : vector<80x8xf32>
    %c0_33 = arith.constant 0 : index
    %c0_34 = arith.constant 0 : index
    %c12 = arith.constant 12 : index
    %c0_35 = arith.constant 0 : index
    %31 = vector.load %arg3[%c0_33, %c0_34, %c12, %c0_35] : memref<1x1x110x8xbf16, #tpu.memory_space<vmem>>, vector<1x1x80x8xbf16>
    %32 = vector.shape_cast %31 : vector<1x1x80x8xbf16> to vector<80x8xbf16>
    %c5 = arith.constant 5 : index
    %c0_36 = arith.constant 0 : index
    %c0_37 = arith.constant 0 : index
    %33 = vector.load %arg7[%c5, %c0_36, %c0_37] : memref<27x8x8xbf16, #tpu.memory_space<vmem>>, vector<1x8x8xbf16>
    %34 = vector.shape_cast %33 : vector<1x8x8xbf16> to vector<8x8xbf16>
    %cst_38 = arith.constant dense<0.000000e+00> : vector<80x8xf32>
    %35 = tpu.matmul %32, %34, %cst_38 {dimension_numbers = #tpu.dot_dimension_numbers<[1], [0], [0], [1], [0, 0, 1, 1], [], []>} : vector<80x8xbf16>, vector<8x8xbf16>, vector<80x8xf32> -> vector<80x8xf32>
    %36 = arith.addf %30, %35 : vector<80x8xf32>
    %c0_39 = arith.constant 0 : index
    %c0_40 = arith.constant 0 : index
    %c20 = arith.constant 20 : index
    %c0_41 = arith.constant 0 : index
    %37 = vector.load %arg3[%c0_39, %c0_40, %c20, %c0_41] : memref<1x1x110x8xbf16, #tpu.memory_space<vmem>>, vector<1x1x80x8xbf16>
    %38 = vector.shape_cast %37 : vector<1x1x80x8xbf16> to vector<80x8xbf16>
    %c6 = arith.constant 6 : index
    %c0_42 = arith.constant 0 : index
    %c0_43 = arith.constant 0 : index
    %39 = vector.load %arg7[%c6, %c0_42, %c0_43] : memref<27x8x8xbf16, #tpu.memory_space<vmem>>, vector<1x8x8xbf16>
    %40 = vector.shape_cast %39 : vector<1x8x8xbf16> to vector<8x8xbf16>
    %cst_44 = arith.constant dense<0.000000e+00> : vector<80x8xf32>
    %41 = tpu.matmul %38, %40, %cst_44 {dimension_numbers = #tpu.dot_dimension_numbers<[1], [0], [0], [1], [0, 0, 1, 1], [], []>} : vector<80x8xbf16>, vector<8x8xbf16>, vector<80x8xf32> -> vector<80x8xf32>
    %42 = arith.addf %36, %41 : vector<80x8xf32>
    %c0_45 = arith.constant 0 : index
    %c0_46 = arith.constant 0 : index
    %c21 = arith.constant 21 : index
    %c0_47 = arith.constant 0 : index
    %43 = vector.load %arg3[%c0_45, %c0_46, %c21, %c0_47] : memref<1x1x110x8xbf16, #tpu.memory_space<vmem>>, vector<1x1x80x8xbf16>
    %44 = vector.shape_cast %43 : vector<1x1x80x8xbf16> to vector<80x8xbf16>
    %c7 = arith.constant 7 : index
    %c0_48 = arith.constant 0 : index
    %c0_49 = arith.constant 0 : index
    %45 = vector.load %arg7[%c7, %c0_48, %c0_49] : memref<27x8x8xbf16, #tpu.memory_space<vmem>>, vector<1x8x8xbf16>
    %46 = vector.shape_cast %45 : vector<1x8x8xbf16> to vector<8x8xbf16>
    %cst_50 = arith.constant dense<0.000000e+00> : vector<80x8xf32>
    %47 = tpu.matmul %44, %46, %cst_50 {dimension_numbers = #tpu.dot_dimension_numbers<[1], [0], [0], [1], [0, 0, 1, 1], [], []>} : vector<80x8xbf16>, vector<8x8xbf16>, vector<80x8xf32> -> vector<80x8xf32>
    %48 = arith.addf %42, %47 : vector<80x8xf32>
    %c0_51 = arith.constant 0 : index
    %c0_52 = arith.constant 0 : index
    %c22 = arith.constant 22 : index
    %c0_53 = arith.constant 0 : index
    %49 = vector.load %arg3[%c0_51, %c0_52, %c22, %c0_53] : memref<1x1x110x8xbf16, #tpu.memory_space<vmem>>, vector<1x1x80x8xbf16>
    %50 = vector.shape_cast %49 : vector<1x1x80x8xbf16> to vector<80x8xbf16>
    %c8 = arith.constant 8 : index
    %c0_54 = arith.constant 0 : index
    %c0_55 = arith.constant 0 : index
    %51 = vector.load %arg7[%c8, %c0_54, %c0_55] : memref<27x8x8xbf16, #tpu.memory_space<vmem>>, vector<1x8x8xbf16>
    %52 = vector.shape_cast %51 : vector<1x8x8xbf16> to vector<8x8xbf16>
    %cst_56 = arith.constant dense<0.000000e+00> : vector<80x8xf32>
    %53 = tpu.matmul %50, %52, %cst_56 {dimension_numbers = #tpu.dot_dimension_numbers<[1], [0], [0], [1], [0, 0, 1, 1], [], []>} : vector<80x8xbf16>, vector<8x8xbf16>, vector<80x8xf32> -> vector<80x8xf32>
    %54 = arith.addf %48, %53 : vector<80x8xf32>
    %c0_57 = arith.constant 0 : index
    %c0_58 = arith.constant 0 : index
    %c0_59 = arith.constant 0 : index
    %c0_60 = arith.constant 0 : index
    %55 = vector.load %arg4[%c0_57, %c0_58, %c0_59, %c0_60] : memref<1x1x110x8xbf16, #tpu.memory_space<vmem>>, vector<1x1x80x8xbf16>
    %56 = vector.shape_cast %55 : vector<1x1x80x8xbf16> to vector<80x8xbf16>
    %c9 = arith.constant 9 : index
    %c0_61 = arith.constant 0 : index
    %c0_62 = arith.constant 0 : index
    %57 = vector.load %arg7[%c9, %c0_61, %c0_62] : memref<27x8x8xbf16, #tpu.memory_space<vmem>>, vector<1x8x8xbf16>
    %58 = vector.shape_cast %57 : vector<1x8x8xbf16> to vector<8x8xbf16>
    %cst_63 = arith.constant dense<0.000000e+00> : vector<80x8xf32>
    %59 = tpu.matmul %56, %58, %cst_63 {dimension_numbers = #tpu.dot_dimension_numbers<[1], [0], [0], [1], [0, 0, 1, 1], [], []>} : vector<80x8xbf16>, vector<8x8xbf16>, vector<80x8xf32> -> vector<80x8xf32>
    %60 = arith.addf %54, %59 : vector<80x8xf32>
    %c0_64 = arith.constant 0 : index
    %c0_65 = arith.constant 0 : index
    %c1_66 = arith.constant 1 : index
    %c0_67 = arith.constant 0 : index
    %61 = vector.load %arg4[%c0_64, %c0_65, %c1_66, %c0_67] : memref<1x1x110x8xbf16, #tpu.memory_space<vmem>>, vector<1x1x80x8xbf16>
    %62 = vector.shape_cast %61 : vector<1x1x80x8xbf16> to vector<80x8xbf16>
    %c10_68 = arith.constant 10 : index
    %c0_69 = arith.constant 0 : index
    %c0_70 = arith.constant 0 : index
    %63 = vector.load %arg7[%c10_68, %c0_69, %c0_70] : memref<27x8x8xbf16, #tpu.memory_space<vmem>>, vector<1x8x8xbf16>
    %64 = vector.shape_cast %63 : vector<1x8x8xbf16> to vector<8x8xbf16>
    %cst_71 = arith.constant dense<0.000000e+00> : vector<80x8xf32>
    %65 = tpu.matmul %62, %64, %cst_71 {dimension_numbers = #tpu.dot_dimension_numbers<[1], [0], [0], [1], [0, 0, 1, 1], [], []>} : vector<80x8xbf16>, vector<8x8xbf16>, vector<80x8xf32> -> vector<80x8xf32>
    %66 = arith.addf %60, %65 : vector<80x8xf32>
    %c0_72 = arith.constant 0 : index
    %c0_73 = arith.constant 0 : index
    %c2_74 = arith.constant 2 : index
    %c0_75 = arith.constant 0 : index
    %67 = vector.load %arg4[%c0_72, %c0_73, %c2_74, %c0_75] : memref<1x1x110x8xbf16, #tpu.memory_space<vmem>>, vector<1x1x80x8xbf16>
    %68 = vector.shape_cast %67 : vector<1x1x80x8xbf16> to vector<80x8xbf16>
    %c11_76 = arith.constant 11 : index
    %c0_77 = arith.constant 0 : index
    %c0_78 = arith.constant 0 : index
    %69 = vector.load %arg7[%c11_76, %c0_77, %c0_78] : memref<27x8x8xbf16, #tpu.memory_space<vmem>>, vector<1x8x8xbf16>
    %70 = vector.shape_cast %69 : vector<1x8x8xbf16> to vector<8x8xbf16>
    %cst_79 = arith.constant dense<0.000000e+00> : vector<80x8xf32>
    %71 = tpu.matmul %68, %70, %cst_79 {dimension_numbers = #tpu.dot_dimension_numbers<[1], [0], [0], [1], [0, 0, 1, 1], [], []>} : vector<80x8xbf16>, vector<8x8xbf16>, vector<80x8xf32> -> vector<80x8xf32>
    %72 = arith.addf %66, %71 : vector<80x8xf32>
    %c0_80 = arith.constant 0 : index
    %c0_81 = arith.constant 0 : index
    %c10_82 = arith.constant 10 : index
    %c0_83 = arith.constant 0 : index
    %73 = vector.load %arg4[%c0_80, %c0_81, %c10_82, %c0_83] : memref<1x1x110x8xbf16, #tpu.memory_space<vmem>>, vector<1x1x80x8xbf16>
    %74 = vector.shape_cast %73 : vector<1x1x80x8xbf16> to vector<80x8xbf16>
    %c12_84 = arith.constant 12 : index
    %c0_85 = arith.constant 0 : index
    %c0_86 = arith.constant 0 : index
    %75 = vector.load %arg7[%c12_84, %c0_85, %c0_86] : memref<27x8x8xbf16, #tpu.memory_space<vmem>>, vector<1x8x8xbf16>
    %76 = vector.shape_cast %75 : vector<1x8x8xbf16> to vector<8x8xbf16>
    %cst_87 = arith.constant dense<0.000000e+00> : vector<80x8xf32>
    %77 = tpu.matmul %74, %76, %cst_87 {dimension_numbers = #tpu.dot_dimension_numbers<[1], [0], [0], [1], [0, 0, 1, 1], [], []>} : vector<80x8xbf16>, vector<8x8xbf16>, vector<80x8xf32> -> vector<80x8xf32>
    %78 = arith.addf %72, %77 : vector<80x8xf32>
    %c0_88 = arith.constant 0 : index
    %c0_89 = arith.constant 0 : index
    %c11_90 = arith.constant 11 : index
    %c0_91 = arith.constant 0 : index
    %79 = vector.load %arg4[%c0_88, %c0_89, %c11_90, %c0_91] : memref<1x1x110x8xbf16, #tpu.memory_space<vmem>>, vector<1x1x80x8xbf16>
    %80 = vector.shape_cast %79 : vector<1x1x80x8xbf16> to vector<80x8xbf16>
    %c13 = arith.constant 13 : index
    %c0_92 = arith.constant 0 : index
    %c0_93 = arith.constant 0 : index
    %81 = vector.load %arg7[%c13, %c0_92, %c0_93] : memref<27x8x8xbf16, #tpu.memory_space<vmem>>, vector<1x8x8xbf16>
    %82 = vector.shape_cast %81 : vector<1x8x8xbf16> to vector<8x8xbf16>
    %cst_94 = arith.constant dense<0.000000e+00> : vector<80x8xf32>
    %83 = tpu.matmul %80, %82, %cst_94 {dimension_numbers = #tpu.dot_dimension_numbers<[1], [0], [0], [1], [0, 0, 1, 1], [], []>} : vector<80x8xbf16>, vector<8x8xbf16>, vector<80x8xf32> -> vector<80x8xf32>
    %84 = arith.addf %78, %83 : vector<80x8xf32>
    %c0_95 = arith.constant 0 : index
    %c0_96 = arith.constant 0 : index
    %c12_97 = arith.constant 12 : index
    %c0_98 = arith.constant 0 : index
    %85 = vector.load %arg4[%c0_95, %c0_96, %c12_97, %c0_98] : memref<1x1x110x8xbf16, #tpu.memory_space<vmem>>, vector<1x1x80x8xbf16>
    %86 = vector.shape_cast %85 : vector<1x1x80x8xbf16> to vector<80x8xbf16>
    %c14 = arith.constant 14 : index
    %c0_99 = arith.constant 0 : index
    %c0_100 = arith.constant 0 : index
    %87 = vector.load %arg7[%c14, %c0_99, %c0_100] : memref<27x8x8xbf16, #tpu.memory_space<vmem>>, vector<1x8x8xbf16>
    %88 = vector.shape_cast %87 : vector<1x8x8xbf16> to vector<8x8xbf16>
    %cst_101 = arith.constant dense<0.000000e+00> : vector<80x8xf32>
    %89 = tpu.matmul %86, %88, %cst_101 {dimension_numbers = #tpu.dot_dimension_numbers<[1], [0], [0], [1], [0, 0, 1, 1], [], []>} : vector<80x8xbf16>, vector<8x8xbf16>, vector<80x8xf32> -> vector<80x8xf32>
    %90 = arith.addf %84, %89 : vector<80x8xf32>
    %c0_102 = arith.constant 0 : index
    %c0_103 = arith.constant 0 : index
    %c20_104 = arith.constant 20 : index
    %c0_105 = arith.constant 0 : index
    %91 = vector.load %arg4[%c0_102, %c0_103, %c20_104, %c0_105] : memref<1x1x110x8xbf16, #tpu.memory_space<vmem>>, vector<1x1x80x8xbf16>
    %92 = vector.shape_cast %91 : vector<1x1x80x8xbf16> to vector<80x8xbf16>
    %c15 = arith.constant 15 : index
    %c0_106 = arith.constant 0 : index
    %c0_107 = arith.constant 0 : index
    %93 = vector.load %arg7[%c15, %c0_106, %c0_107] : memref<27x8x8xbf16, #tpu.memory_space<vmem>>, vector<1x8x8xbf16>
    %94 = vector.shape_cast %93 : vector<1x8x8xbf16> to vector<8x8xbf16>
    %cst_108 = arith.constant dense<0.000000e+00> : vector<80x8xf32>
    %95 = tpu.matmul %92, %94, %cst_108 {dimension_numbers = #tpu.dot_dimension_numbers<[1], [0], [0], [1], [0, 0, 1, 1], [], []>} : vector<80x8xbf16>, vector<8x8xbf16>, vector<80x8xf32> -> vector<80x8xf32>
    %96 = arith.addf %90, %95 : vector<80x8xf32>
    %c0_109 = arith.constant 0 : index
    %c0_110 = arith.constant 0 : index
    %c21_111 = arith.constant 21 : index
    %c0_112 = arith.constant 0 : index
    %97 = vector.load %arg4[%c0_109, %c0_110, %c21_111, %c0_112] : memref<1x1x110x8xbf16, #tpu.memory_space<vmem>>, vector<1x1x80x8xbf16>
    %98 = vector.shape_cast %97 : vector<1x1x80x8xbf16> to vector<80x8xbf16>
    %c16 = arith.constant 16 : index
    %c0_113 = arith.constant 0 : index
    %c0_114 = arith.constant 0 : index
    %99 = vector.load %arg7[%c16, %c0_113, %c0_114] : memref<27x8x8xbf16, #tpu.memory_space<vmem>>, vector<1x8x8xbf16>
    %100 = vector.shape_cast %99 : vector<1x8x8xbf16> to vector<8x8xbf16>
    %cst_115 = arith.constant dense<0.000000e+00> : vector<80x8xf32>
    %101 = tpu.matmul %98, %100, %cst_115 {dimension_numbers = #tpu.dot_dimension_numbers<[1], [0], [0], [1], [0, 0, 1, 1], [], []>} : vector<80x8xbf16>, vector<8x8xbf16>, vector<80x8xf32> -> vector<80x8xf32>
    %102 = arith.addf %96, %101 : vector<80x8xf32>
    %c0_116 = arith.constant 0 : index
    %c0_117 = arith.constant 0 : index
    %c22_118 = arith.constant 22 : index
    %c0_119 = arith.constant 0 : index
    %103 = vector.load %arg4[%c0_116, %c0_117, %c22_118, %c0_119] : memref<1x1x110x8xbf16, #tpu.memory_space<vmem>>, vector<1x1x80x8xbf16>
    %104 = vector.shape_cast %103 : vector<1x1x80x8xbf16> to vector<80x8xbf16>
    %c17 = arith.constant 17 : index
    %c0_120 = arith.constant 0 : index
    %c0_121 = arith.constant 0 : index
    %105 = vector.load %arg7[%c17, %c0_120, %c0_121] : memref<27x8x8xbf16, #tpu.memory_space<vmem>>, vector<1x8x8xbf16>
    %106 = vector.shape_cast %105 : vector<1x8x8xbf16> to vector<8x8xbf16>
    %cst_122 = arith.constant dense<0.000000e+00> : vector<80x8xf32>
    %107 = tpu.matmul %104, %106, %cst_122 {dimension_numbers = #tpu.dot_dimension_numbers<[1], [0], [0], [1], [0, 0, 1, 1], [], []>} : vector<80x8xbf16>, vector<8x8xbf16>, vector<80x8xf32> -> vector<80x8xf32>
    %108 = arith.addf %102, %107 : vector<80x8xf32>
    %c0_123 = arith.constant 0 : index
    %c0_124 = arith.constant 0 : index
    %c0_125 = arith.constant 0 : index
    %c0_126 = arith.constant 0 : index
    %109 = vector.load %arg5[%c0_123, %c0_124, %c0_125, %c0_126] : memref<1x1x110x8xbf16, #tpu.memory_space<vmem>>, vector<1x1x80x8xbf16>
    %110 = vector.shape_cast %109 : vector<1x1x80x8xbf16> to vector<80x8xbf16>
    %c18 = arith.constant 18 : index
    %c0_127 = arith.constant 0 : index
    %c0_128 = arith.constant 0 : index
    %111 = vector.load %arg7[%c18, %c0_127, %c0_128] : memref<27x8x8xbf16, #tpu.memory_space<vmem>>, vector<1x8x8xbf16>
    %112 = vector.shape_cast %111 : vector<1x8x8xbf16> to vector<8x8xbf16>
    %cst_129 = arith.constant dense<0.000000e+00> : vector<80x8xf32>
    %113 = tpu.matmul %110, %112, %cst_129 {dimension_numbers = #tpu.dot_dimension_numbers<[1], [0], [0], [1], [0, 0, 1, 1], [], []>} : vector<80x8xbf16>, vector<8x8xbf16>, vector<80x8xf32> -> vector<80x8xf32>
    %114 = arith.addf %108, %113 : vector<80x8xf32>
    %c0_130 = arith.constant 0 : index
    %c0_131 = arith.constant 0 : index
    %c1_132 = arith.constant 1 : index
    %c0_133 = arith.constant 0 : index
    %115 = vector.load %arg5[%c0_130, %c0_131, %c1_132, %c0_133] : memref<1x1x110x8xbf16, #tpu.memory_space<vmem>>, vector<1x1x80x8xbf16>
    %116 = vector.shape_cast %115 : vector<1x1x80x8xbf16> to vector<80x8xbf16>
    %c19 = arith.constant 19 : index
    %c0_134 = arith.constant 0 : index
    %c0_135 = arith.constant 0 : index
    %117 = vector.load %arg7[%c19, %c0_134, %c0_135] : memref<27x8x8xbf16, #tpu.memory_space<vmem>>, vector<1x8x8xbf16>
    %118 = vector.shape_cast %117 : vector<1x8x8xbf16> to vector<8x8xbf16>
    %cst_136 = arith.constant dense<0.000000e+00> : vector<80x8xf32>
    %119 = tpu.matmul %116, %118, %cst_136 {dimension_numbers = #tpu.dot_dimension_numbers<[1], [0], [0], [1], [0, 0, 1, 1], [], []>} : vector<80x8xbf16>, vector<8x8xbf16>, vector<80x8xf32> -> vector<80x8xf32>
    %120 = arith.addf %114, %119 : vector<80x8xf32>
    %c0_137 = arith.constant 0 : index
    %c0_138 = arith.constant 0 : index
    %c2_139 = arith.constant 2 : index
    %c0_140 = arith.constant 0 : index
    %121 = vector.load %arg5[%c0_137, %c0_138, %c2_139, %c0_140] : memref<1x1x110x8xbf16, #tpu.memory_space<vmem>>, vector<1x1x80x8xbf16>
    %122 = vector.shape_cast %121 : vector<1x1x80x8xbf16> to vector<80x8xbf16>
    %c20_141 = arith.constant 20 : index
    %c0_142 = arith.constant 0 : index
    %c0_143 = arith.constant 0 : index
    %123 = vector.load %arg7[%c20_141, %c0_142, %c0_143] : memref<27x8x8xbf16, #tpu.memory_space<vmem>>, vector<1x8x8xbf16>
    %124 = vector.shape_cast %123 : vector<1x8x8xbf16> to vector<8x8xbf16>
    %cst_144 = arith.constant dense<0.000000e+00> : vector<80x8xf32>
    %125 = tpu.matmul %122, %124, %cst_144 {dimension_numbers = #tpu.dot_dimension_numbers<[1], [0], [0], [1], [0, 0, 1, 1], [], []>} : vector<80x8xbf16>, vector<8x8xbf16>, vector<80x8xf32> -> vector<80x8xf32>
    %126 = arith.addf %120, %125 : vector<80x8xf32>
    %c0_145 = arith.constant 0 : index
    %c0_146 = arith.constant 0 : index
    %c10_147 = arith.constant 10 : index
    %c0_148 = arith.constant 0 : index
    %127 = vector.load %arg5[%c0_145, %c0_146, %c10_147, %c0_148] : memref<1x1x110x8xbf16, #tpu.memory_space<vmem>>, vector<1x1x80x8xbf16>
    %128 = vector.shape_cast %127 : vector<1x1x80x8xbf16> to vector<80x8xbf16>
    %c21_149 = arith.constant 21 : index
    %c0_150 = arith.constant 0 : index
    %c0_151 = arith.constant 0 : index
    %129 = vector.load %arg7[%c21_149, %c0_150, %c0_151] : memref<27x8x8xbf16, #tpu.memory_space<vmem>>, vector<1x8x8xbf16>
    %130 = vector.shape_cast %129 : vector<1x8x8xbf16> to vector<8x8xbf16>
    %cst_152 = arith.constant dense<0.000000e+00> : vector<80x8xf32>
    %131 = tpu.matmul %128, %130, %cst_152 {dimension_numbers = #tpu.dot_dimension_numbers<[1], [0], [0], [1], [0, 0, 1, 1], [], []>} : vector<80x8xbf16>, vector<8x8xbf16>, vector<80x8xf32> -> vector<80x8xf32>
    %132 = arith.addf %126, %131 : vector<80x8xf32>
    %c0_153 = arith.constant 0 : index
    %c0_154 = arith.constant 0 : index
    %c11_155 = arith.constant 11 : index
    %c0_156 = arith.constant 0 : index
    %133 = vector.load %arg5[%c0_153, %c0_154, %c11_155, %c0_156] : memref<1x1x110x8xbf16, #tpu.memory_space<vmem>>, vector<1x1x80x8xbf16>
    %134 = vector.shape_cast %133 : vector<1x1x80x8xbf16> to vector<80x8xbf16>
    %c22_157 = arith.constant 22 : index
    %c0_158 = arith.constant 0 : index
    %c0_159 = arith.constant 0 : index
    %135 = vector.load %arg7[%c22_157, %c0_158, %c0_159] : memref<27x8x8xbf16, #tpu.memory_space<vmem>>, vector<1x8x8xbf16>
    %136 = vector.shape_cast %135 : vector<1x8x8xbf16> to vector<8x8xbf16>
    %cst_160 = arith.constant dense<0.000000e+00> : vector<80x8xf32>
    %137 = tpu.matmul %134, %136, %cst_160 {dimension_numbers = #tpu.dot_dimension_numbers<[1], [0], [0], [1], [0, 0, 1, 1], [], []>} : vector<80x8xbf16>, vector<8x8xbf16>, vector<80x8xf32> -> vector<80x8xf32>
    %138 = arith.addf %132, %137 : vector<80x8xf32>
    %c0_161 = arith.constant 0 : index
    %c0_162 = arith.constant 0 : index
    %c12_163 = arith.constant 12 : index
    %c0_164 = arith.constant 0 : index
    %139 = vector.load %arg5[%c0_161, %c0_162, %c12_163, %c0_164] : memref<1x1x110x8xbf16, #tpu.memory_space<vmem>>, vector<1x1x80x8xbf16>
    %140 = vector.shape_cast %139 : vector<1x1x80x8xbf16> to vector<80x8xbf16>
    %c23 = arith.constant 23 : index
    %c0_165 = arith.constant 0 : index
    %c0_166 = arith.constant 0 : index
    %141 = vector.load %arg7[%c23, %c0_165, %c0_166] : memref<27x8x8xbf16, #tpu.memory_space<vmem>>, vector<1x8x8xbf16>
    %142 = vector.shape_cast %141 : vector<1x8x8xbf16> to vector<8x8xbf16>
    %cst_167 = arith.constant dense<0.000000e+00> : vector<80x8xf32>
    %143 = tpu.matmul %140, %142, %cst_167 {dimension_numbers = #tpu.dot_dimension_numbers<[1], [0], [0], [1], [0, 0, 1, 1], [], []>} : vector<80x8xbf16>, vector<8x8xbf16>, vector<80x8xf32> -> vector<80x8xf32>
    %144 = arith.addf %138, %143 : vector<80x8xf32>
    %c0_168 = arith.constant 0 : index
    %c0_169 = arith.constant 0 : index
    %c20_170 = arith.constant 20 : index
    %c0_171 = arith.constant 0 : index
    %145 = vector.load %arg5[%c0_168, %c0_169, %c20_170, %c0_171] : memref<1x1x110x8xbf16, #tpu.memory_space<vmem>>, vector<1x1x80x8xbf16>
    %146 = vector.shape_cast %145 : vector<1x1x80x8xbf16> to vector<80x8xbf16>
    %c24 = arith.constant 24 : index
    %c0_172 = arith.constant 0 : index
    %c0_173 = arith.constant 0 : index
    %147 = vector.load %arg7[%c24, %c0_172, %c0_173] : memref<27x8x8xbf16, #tpu.memory_space<vmem>>, vector<1x8x8xbf16>
    %148 = vector.shape_cast %147 : vector<1x8x8xbf16> to vector<8x8xbf16>
    %cst_174 = arith.constant dense<0.000000e+00> : vector<80x8xf32>
    %149 = tpu.matmul %146, %148, %cst_174 {dimension_numbers = #tpu.dot_dimension_numbers<[1], [0], [0], [1], [0, 0, 1, 1], [], []>} : vector<80x8xbf16>, vector<8x8xbf16>, vector<80x8xf32> -> vector<80x8xf32>
    %150 = arith.addf %144, %149 : vector<80x8xf32>
    %c0_175 = arith.constant 0 : index
    %c0_176 = arith.constant 0 : index
    %c21_177 = arith.constant 21 : index
    %c0_178 = arith.constant 0 : index
    %151 = vector.load %arg5[%c0_175, %c0_176, %c21_177, %c0_178] : memref<1x1x110x8xbf16, #tpu.memory_space<vmem>>, vector<1x1x80x8xbf16>
    %152 = vector.shape_cast %151 : vector<1x1x80x8xbf16> to vector<80x8xbf16>
    %c25 = arith.constant 25 : index
    %c0_179 = arith.constant 0 : index
    %c0_180 = arith.constant 0 : index
    %153 = vector.load %arg7[%c25, %c0_179, %c0_180] : memref<27x8x8xbf16, #tpu.memory_space<vmem>>, vector<1x8x8xbf16>
    %154 = vector.shape_cast %153 : vector<1x8x8xbf16> to vector<8x8xbf16>
    %cst_181 = arith.constant dense<0.000000e+00> : vector<80x8xf32>
    %155 = tpu.matmul %152, %154, %cst_181 {dimension_numbers = #tpu.dot_dimension_numbers<[1], [0], [0], [1], [0, 0, 1, 1], [], []>} : vector<80x8xbf16>, vector<8x8xbf16>, vector<80x8xf32> -> vector<80x8xf32>
    %156 = arith.addf %150, %155 : vector<80x8xf32>
    %c0_182 = arith.constant 0 : index
    %c0_183 = arith.constant 0 : index
    %c22_184 = arith.constant 22 : index
    %c0_185 = arith.constant 0 : index
    %157 = vector.load %arg5[%c0_182, %c0_183, %c22_184, %c0_185] : memref<1x1x110x8xbf16, #tpu.memory_space<vmem>>, vector<1x1x80x8xbf16>
    %158 = vector.shape_cast %157 : vector<1x1x80x8xbf16> to vector<80x8xbf16>
    %c26 = arith.constant 26 : index
    %c0_186 = arith.constant 0 : index
    %c0_187 = arith.constant 0 : index
    %159 = vector.load %arg7[%c26, %c0_186, %c0_187] : memref<27x8x8xbf16, #tpu.memory_space<vmem>>, vector<1x8x8xbf16>
    %160 = vector.shape_cast %159 : vector<1x8x8xbf16> to vector<8x8xbf16>
    %cst_188 = arith.constant dense<0.000000e+00> : vector<80x8xf32>
    %161 = tpu.matmul %158, %160, %cst_188 {dimension_numbers = #tpu.dot_dimension_numbers<[1], [0], [0], [1], [0, 0, 1, 1], [], []>} : vector<80x8xbf16>, vector<8x8xbf16>, vector<80x8xf32> -> vector<80x8xf32>
    %162 = arith.addf %156, %161 : vector<80x8xf32>
    %c0_189 = arith.constant 0 : index
    %c0_190 = arith.constant 0 : index
    %163 = vector.load %arg8[%c0_189, %c0_190] : memref<1x8xf32, #tpu.memory_space<vmem>>, vector<1x8xf32>
    %164 = vector.broadcast %163 : vector<1x8xf32> to vector<80x8xf32>
    %165 = arith.addf %162, %164 : vector<80x8xf32>
    %c0_191 = arith.constant 0 : index
    %c0_192 = arith.constant 0 : index
    %c11_193 = arith.constant 11 : index
    %c0_194 = arith.constant 0 : index
    %166 = vector.load %arg6[%c0_191, %c0_192, %c11_193, %c0_194] : memref<1x1x110x8xbf16, #tpu.memory_space<vmem>>, vector<1x1x80x8xbf16>
    %167 = vector.shape_cast %166 : vector<1x1x80x8xbf16> to vector<80x8xbf16>
    %168 = arith.extf %167 : vector<80x8xbf16> to vector<80x8xf32>
    %169 = arith.addf %165, %168 : vector<80x8xf32>
    %cst_195 = arith.constant 0.000000e+00 : f32
    %170 = vector.broadcast %cst_195 : f32 to vector<80x8xf32>
    %171 = arith.maximumf %169, %170 : vector<80x8xf32>
    %c0_196 = arith.constant 0 : index
    %c0_197 = arith.constant 0 : index
    %c0_198 = arith.constant 0 : index
    %c0_199 = arith.constant 0 : index
    %172 = vector.load %arg9[%c0_196, %c0_197, %c0_198, %c0_199] : memref<1x1x80x8xf32, #tpu.memory_space<vmem>>, vector<1x1x80x8xf32>
    %173 = vector.shape_cast %172 : vector<1x1x80x8xf32> to vector<80x8xf32>
    %174 = vector.shape_cast %171 : vector<80x8xf32> to vector<1x1x80x8xf32>
    tpu.vector_store %arg9[%c0_196, %c0_197, %c0_198, %c0_199], %174 {strides = array<i32>} : memref<1x1x80x8xf32, #tpu.memory_space<vmem>>, vector<1x1x80x8xf32>,
    return
  }
  func.func @transform_0(%arg0: i32, %arg1: i32, %arg2: i32) -> (i32, i32, i32, i32) {
    %c0_i32 = arith.constant 0 : i32
    %0 = arith.addi %arg2, %c0_i32 : i32
    %c0_i32_0 = arith.constant 0 : i32
    %c0_i32_1 = arith.constant 0 : i32
    %c0_i32_2 = arith.constant 0 : i32
    return %arg0, %0, %c0_i32_0, %c0_i32_1 : i32, i32, i32, i32
  }
  func.func @transform_1(%arg0: i32, %arg1: i32, %arg2: i32) -> (i32, i32, i32, i32) {
    %c1_i32 = arith.constant 1 : i32
    %0 = arith.addi %arg2, %c1_i32 : i32
    %c0_i32 = arith.constant 0 : i32
    %c0_i32_0 = arith.constant 0 : i32
    %c0_i32_1 = arith.constant 0 : i32
    return %arg0, %0, %c0_i32, %c0_i32_0 : i32, i32, i32, i32
  }
  func.func @transform_2(%arg0: i32, %arg1: i32, %arg2: i32) -> (i32, i32, i32, i32) {
    %c2_i32 = arith.constant 2 : i32
    %0 = arith.addi %arg2, %c2_i32 : i32
    %c0_i32 = arith.constant 0 : i32
    %c0_i32_0 = arith.constant 0 : i32
    %c0_i32_1 = arith.constant 0 : i32
    return %arg0, %0, %c0_i32, %c0_i32_0 : i32, i32, i32, i32
  }
  func.func @transform_3(%arg0: i32, %arg1: i32, %arg2: i32) -> (i32, i32, i32, i32) {
    %c1_i32 = arith.constant 1 : i32
    %0 = arith.addi %arg2, %c1_i32 : i32
    %c0_i32 = arith.constant 0 : i32
    %c0_i32_0 = arith.constant 0 : i32
    return %arg0, %0, %c0_i32, %arg1 : i32, i32, i32, i32
  }
  func.func @transform_4(%arg0: i32, %arg1: i32, %arg2: i32) -> (i32, i32, i32) {
    %c0_i32 = arith.constant 0 : i32
    %c0_i32_0 = arith.constant 0 : i32
    %c0_i32_1 = arith.constant 0 : i32
    return %c0_i32, %c0_i32_0, %arg1 : i32, i32, i32
  }
  func.func @transform_5(%arg0: i32, %arg1: i32, %arg2: i32) -> (i32, i32) {
    %c0_i32 = arith.constant 0 : i32
    %c0_i32_0 = arith.constant 0 : i32
    return %c0_i32, %arg1 : i32, i32
  }
  func.func @transform_6(%arg0: i32, %arg1: i32, %arg2: i32) -> (i32, i32, i32, i32) {
    %c0_i32 = arith.constant 0 : i32
    %c0_i32_0 = arith.constant 0 : i32
    return %arg0, %arg2, %c0_i32, %arg1 : i32, i32, i32, i32
  }
}

</mosaic_0001>

<llo_original>
// kernel: basic_block3d_forward.2
$region0: #{basic_block3d_forward.2}
  #allocation0 [shape = 'u32[]', space=smem, size = 0x4, offset = 0x4, fixed_abs, tag = 'smem constant byte address 0x4 - core index']
  #allocation1 [shape = 'u32[144,128]{1,0:T(1,128)}', space=vmem, size = 0x12000, scoped, tag = 'internal scratch']
  %s0 = inlined_call_operand.vmem [shape: bf16[2,6,110,8], index: 0, kind: input, shape index: {}, may-alias: {0,1,2}]
  %s1 = inlined_call_operand.vmem [shape: bf16[2,6,110,8], index: 1, kind: input, shape index: {}, may-alias: {0,1,2}]
  %s2 = inlined_call_operand.vmem [shape: bf16[2,6,110,8], index: 2, kind: input, shape index: {}, may-alias: {0,1,2}]
  %s3 = inlined_call_operand.vmem [shape: bf16[27,8,8], index: 3, kind: input, shape index: {}]
  %s4 = inlined_call_operand.vmem [shape: f32[1,8], index: 4, kind: input, shape index: {}]
  %s5 = inlined_call_operand.vmem [shape: bf16[2,4,80,8], index: 5, kind: output, shape index: {}]
  %s6 = sld [smem:[#allocation0]]
  $region53: #{basic_block3d_forward.2} parent=0
    _
  %s8 = ssub.s32 1, %s6
  %s9 = scalar_select 0, %s8, %s6
  loop: start=0, step=1, limit=10
  $region2: #{basic_block3d_forward.2} parent=0 // loop_pre_header
    _
  $region3: #{basic_block3d_forward.2} parent=0 // loop_header
    %s11 = sphi 0, %s15
    %p12 = scmp.ge.s32.totalorder %s11, 10
    %s18 = sphi 0, %s37
    %s19 = sphi 0, %s33
    %s20 = sphi 0, %s29
    %s21 = sphi 0, %s18
    %s22 = sphi 0, %s19
    %s23 = sphi 0, %s20
    %s24 = sphi 0, %s21
    %s25 = sphi 0, %s22
    %s26 = sphi 0, %s23
    %s42 = sphi 0, %s44
    %s45 = sphi 0, %s42
    %s46 = sphi 0, %s45
    %s62 = sphi 0, %s46
    %s72 = sphi 0, %s74
    %s75 = sphi 0, %s72
    %s76 = sphi 0, %s75
    %s92 = sphi 0, %s76
    %s102 = sphi 0, %s104
    %s105 = sphi 0, %s102
    %s106 = sphi 0, %s105
    %s122 = sphi 0, %s106
    %s128 = sphi 0, %s130
    %s131 = sphi 0, %s128
    %s132 = sphi 0, %s131
    %s148 = sphi 0, %s132
    %s154 = sphi 0, %s156
    %s157 = sphi 0, %s154
    %s158 = sphi 0, %s157
    %s174 = sphi 0, %s158
    %s184 = sphi 0, %s186
    %s187 = sphi 0, %s184
    %s188 = sphi 0, %s187
    %s204 = sphi 0, %s188
  $region4: #{basic_block3d_forward.2} parent=0 // loop_header_branch
    %14 = sbr.rel (%p12) target = $region8
  $region5: #{basic_block3d_forward.2} parent=0 // loop_body
    %s16 = ssub.s32 %s11, 1
    %s17 = ssub.s32 %s11, 2
    %s27 = sadd.s32 1, %s20
    %p28 = scmp.ge.s32.totalorder %s27, 4
    %s29 = scalar_select %p28, 0, %s27
    %s30 = sadd.s32 1, %s19
    %s31 = scalar_select %p28, %s30, %s19
    %p32 = scmp.ge.s32.totalorder %s31, 1
    %s33 = scalar_select %p32, 0, %s31
    %s34 = sadd.s32 1, %s18
    %s35 = scalar_select %p32, %s34, %s18
    %p36 = scmp.ge.s32.totalorder %s35, 2
    %s37 = scalar_select %p36, 0, %s35
    %s38 = ssub.s32 %s18, %s37
    %s39 = ssub.s32 %s20, %s29
    %s40 = sor.u32 %s38, %s39
    %p41 = scmp.eq.s32.totalorder %s40, 0
    %s43 = sadd.s32 %s42, 1
    %s44 = scalar_select %p41, %s42, %s43
    %p47 = pneg %p41
    %p48 = scmp.eq.s32.totalorder %s11, 7
    %p49 = por %p47, %p48
    %p50 = scmp.ne.s32.totalorder %s42, %s45
    %p51 = scmp.eq.s32.totalorder %s11, 0
    %p52 = por %p50, %p51
    %p53 = scmp.ne.s32.totalorder %s42, %s45
    %p54 = scmp.eq.s32.totalorder %s16, 7
    %p55 = por %p53, %p54
    %p56 = scmp.ne.s32.totalorder %s45, %s46
    %p57 = scmp.eq.s32.totalorder %s16, 0
    %p58 = por %p56, %p57
    %p59 = scmp.ne.s32.totalorder %s45, %s46
    %p60 = scmp.eq.s32.totalorder %s17, 7
    %p61 = por %p59, %p60
    %p63 = scmp.ne.s32.totalorder %s46, %s62
    %p64 = scmp.eq.s32.totalorder %s17, 0
    %p65 = por %p63, %p64
    %s66 = sadd.s32 %s20, 1
    %s67 = sadd.s32 %s29, 1
    %s68 = ssub.s32 %s18, %s37
    %s69 = ssub.s32 %s66, %s67
    %s70 = sor.u32 %s68, %s69
    %p71 = scmp.eq.s32.totalorder %s70, 0
    %s73 = sadd.s32 %s72, 1
    %s74 = scalar_select %p71, %s72, %s73
    %p77 = pneg %p71
    %p78 = scmp.eq.s32.totalorder %s11, 7
    %p79 = por %p77, %p78
    %p80 = scmp.ne.s32.totalorder %s72, %s75
    %p81 = scmp.eq.s32.totalorder %s11, 0
    %p82 = por %p80, %p81
    %p83 = scmp.ne.s32.totalorder %s72, %s75
    %p84 = scmp.eq.s32.totalorder %s16, 7
    %p85 = por %p83, %p84
    %p86 = scmp.ne.s32.totalorder %s75, %s76
    %p87 = scmp.eq.s32.totalorder %s16, 0
    %p88 = por %p86, %p87
    %p89 = scmp.ne.s32.totalorder %s75, %s76
    %p90 = scmp.eq.s32.totalorder %s17, 7
    %p91 = por %p89, %p90
    %p93 = scmp.ne.s32.totalorder %s76, %s92
    %p94 = scmp.eq.s32.totalorder %s17, 0
    %p95 = por %p93, %p94
    %s96 = sadd.s32 %s20, 2
    %s97 = sadd.s32 %s29, 2
    %s98 = ssub.s32 %s18, %s37
    %s99 = ssub.s32 %s96, %s97
    %s100 = sor.u32 %s98, %s99
    %p101 = scmp.eq.s32.totalorder %s100, 0
    %s103 = sadd.s32 %s102, 1
    %s104 = scalar_select %p101, %s102, %s103
    %p107 = pneg %p101
    %p108 = scmp.eq.s32.totalorder %s11, 7
    %p109 = por %p107, %p108
    %p110 = scmp.ne.s32.totalorder %s102, %s105
    %p111 = scmp.eq.s32.totalorder %s11, 0
    %p112 = por %p110, %p111
    %p113 = scmp.ne.s32.totalorder %s102, %s105
    %p114 = scmp.eq.s32.totalorder %s16, 7
    %p115 = por %p113, %p114
    %p116 = scmp.ne.s32.totalorder %s105, %s106
    %p117 = scmp.eq.s32.totalorder %s16, 0
    %p118 = por %p116, %p117
    %p119 = scmp.ne.s32.totalorder %s105, %s106
    %p120 = scmp.eq.s32.totalorder %s17, 7
    %p121 = por %p119, %p120
    %p123 = scmp.ne.s32.totalorder %s106, %s122
    %p124 = scmp.eq.s32.totalorder %s17, 0
    %p125 = por %p123, %p124
    %s126 = ssub.s32 %s19, %s33
    %p127 = scmp.eq.s32.totalorder %s126, 0
    %s129 = sadd.s32 %s128, 1
    %s130 = scalar_select %p127, %s128, %s129
    %p133 = pneg %p127
    %p134 = scmp.eq.s32.totalorder %s11, 7
    %p135 = por %p133, %p134
    %p136 = scmp.ne.s32.totalorder %s128, %s131
    %p137 = scmp.eq.s32.totalorder %s11, 0
    %p138 = por %p136, %p137
    %p139 = scmp.ne.s32.totalorder %s128, %s131
    %p140 = scmp.eq.s32.totalorder %s16, 7
    %p141 = por %p139, %p140
    %p142 = scmp.ne.s32.totalorder %s131, %s132
    %p143 = scmp.eq.s32.totalorder %s16, 0
    %p144 = por %p142, %p143
    %p145 = scmp.ne.s32.totalorder %s131, %s132
    %p146 = scmp.eq.s32.totalorder %s17, 7
    %p147 = por %p145, %p146
    %p149 = scmp.ne.s32.totalorder %s132, %s148
    %p150 = scmp.eq.s32.totalorder %s17, 0
    %p151 = por %p149, %p150
    %s152 = ssub.s32 %s19, %s33
    %p153 = scmp.eq.s32.totalorder %s152, 0
    %s155 = sadd.s32 %s154, 1
    %s156 = scalar_select %p153, %s154, %s155
    %p159 = pneg %p153
    %p160 = scmp.eq.s32.totalorder %s11, 7
    %p161 = por %p159, %p160
    %p162 = scmp.ne.s32.totalorder %s154, %s157
    %p163 = scmp.eq.s32.totalorder %s11, 0
    %p164 = por %p162, %p163
    %p165 = scmp.ne.s32.totalorder %s154, %s157
    %p166 = scmp.eq.s32.totalorder %s16, 7
    %p167 = por %p165, %p166
    %p168 = scmp.ne.s32.totalorder %s157, %s158
    %p169 = scmp.eq.s32.totalorder %s16, 0
    %p170 = por %p168, %p169
    %p171 = scmp.ne.s32.totalorder %s157, %s158
    %p172 = scmp.eq.s32.totalorder %s17, 7
    %p173 = por %p171, %p172
    %p175 = scmp.ne.s32.totalorder %s158, %s174
    %p176 = scmp.eq.s32.totalorder %s17, 0
    %p177 = por %p175, %p176
    %s178 = ssub.s32 %s18, %s37
    %s179 = ssub.s32 %s20, %s29
    %s180 = sor.u32 %s178, %s179
    %s181 = ssub.s32 %s19, %s33
    %s182 = sor.u32 %s180, %s181
    %p183 = scmp.eq.s32.totalorder %s182, 0
    %s185 = sadd.s32 %s184, 1
    %s186 = scalar_select %p183, %s184, %s185
    %p189 = pneg %p183
    %p190 = scmp.eq.s32.totalorder %s11, 7
    %p191 = por %p189, %p190
    %p192 = scmp.ne.s32.totalorder %s184, %s187
    %p193 = scmp.eq.s32.totalorder %s11, 0
    %p194 = por %p192, %p193
    %p195 = scmp.ne.s32.totalorder %s184, %s187
    %p196 = scmp.eq.s32.totalorder %s16, 7
    %p197 = por %p195, %p196
    %p198 = scmp.ne.s32.totalorder %s187, %s188
    %p199 = scmp.eq.s32.totalorder %s16, 0
    %p200 = por %p198, %p199
    %p201 = scmp.ne.s32.totalorder %s187, %s188
    %p202 = scmp.eq.s32.totalorder %s17, 7
    %p203 = por %p201, %p202
    %p205 = scmp.ne.s32.totalorder %s188, %s204
    %p206 = scmp.eq.s32.totalorder %s17, 0
    %p207 = por %p205, %p206
    %p208 = scmp.le.s32.totalorder 1, %s11
    %p209 = scmp.lt.s32.totalorder %s11, 9
    %p210 = pnand %p208, %p209
    %p211 = pneg %p210
    // Predicated region
    $region9: #{basic_block3d_forward.2} parent=5 // pred_check
      _
    $region10: #{basic_block3d_forward.2} parent=5 // pred_check_branch
      %213 = sbr.rel (%p210) target = $region12
    $region11: #{basic_block3d_forward.2} parent=5 // pred_region
      %s214 = ssub.s32 %s11, 1
      // Predicated region
      $region13: #{basic_block3d_forward.2} parent=11 // pred_check
        %p215 = pneg %p144
      $region14: #{basic_block3d_forward.2} parent=11 // pred_check_branch
        %217 = sbr.rel (%p215) target = $region16
      $region15: #{basic_block3d_forward.2} parent=11 // pred_region
        %p218 = scmp.lt.s32.totalorder %s22, 0
        %s219 = scalar_select %p218, %s22, 0
        %s220 = smul.addr %s219, 4
        %s221 = scalar_lea.vmem %s3, %s220
      $region16: #{basic_block3d_forward.2} parent=11 // pred_fallthru
        _
      // Predicated region
      $region17: #{basic_block3d_forward.2} parent=11 // pred_check
        %p222 = pneg %p170
      $region18: #{basic_block3d_forward.2} parent=11 // pred_check_branch
        %224 = sbr.rel (%p222) target = $region20
      $region19: #{basic_block3d_forward.2} parent=11 // pred_region
        %p225 = scmp.lt.s32.totalorder %s22, 0
        %s226 = scalar_select %p225, %s22, 0
        %s227 = scalar_lea.vmem %s4, %s226
      $region20: #{basic_block3d_forward.2} parent=11 // pred_fallthru
        _
    $region12: #{basic_block3d_forward.2} parent=5 // pred_fallthru
      _
    %p228 = scmp.lt.s32.totalorder %s11, 8
    // Predicated region
    $region21: #{basic_block3d_forward.2} parent=5 // pred_check
      %p229 = pneg %p228
    $region22: #{basic_block3d_forward.2} parent=5 // pred_check_branch
      %231 = sbr.rel (%p229) target = $region24
    $region23: #{basic_block3d_forward.2} parent=5 // pred_region
      // Predicated region
      $region25: #{basic_block3d_forward.2} parent=23 // pred_check
        %p232 = pneg %p52
      $region26: #{basic_block3d_forward.2} parent=23 // pred_check_branch
        %234 = sbr.rel (%p232) target = $region28
      $region27: #{basic_block3d_forward.2} parent=23 // pred_region
        %p235 = scmp.lt.s32.totalorder %s18, 1
        %s236 = scalar_select %p235, %s18, 1
        %p237 = scmp.lt.s32.totalorder %s20, 5
        %s238 = scalar_select %p237, %s20, 5
        %s239 = smul.addr %s238, 14
        %s240 = smul.addr %s236, 84
        %s241 = sadd.s32 %s239, %s240
        %s242 = smul.addr %s241, 4
        %s243 = scalar_lea.vmem %s0, %s242
      $region28: #{basic_block3d_forward.2} parent=23 // pred_fallthru
        _
      // Predicated region
      $region29: #{basic_block3d_forward.2} parent=23 // pred_check
        %p244 = pneg %p82
      $region30: #{basic_block3d_forward.2} parent=23 // pred_check_branch
        %246 = sbr.rel (%p244) target = $region32
      $region31: #{basic_block3d_forward.2} parent=23 // pred_region
        %s247 = sadd.s32 %s20, 1
        %p248 = scmp.lt.s32.totalorder %s18, 1
        %s249 = scalar_select %p248, %s18, 1
        %p250 = scmp.lt.s32.totalorder %s247, 5
        %s251 = scalar_select %p250, %s247, 5
        %s252 = smul.addr %s251, 14
        %s253 = smul.addr %s249, 84
        %s254 = sadd.s32 %s252, %s253
        %s255 = smul.addr %s254, 4
        %s256 = scalar_lea.vmem %s1, %s255
        %s257 = sadd.s32 %s20, 1
      $region32: #{basic_block3d_forward.2} parent=23 // pred_fallthru
        _
      // Predicated region
      $region33: #{basic_block3d_forward.2} parent=23 // pred_check
        %p258 = pneg %p112
      $region34: #{basic_block3d_forward.2} parent=23 // pred_check_branch
        %260 = sbr.rel (%p258) target = $region36
      $region35: #{basic_block3d_forward.2} parent=23 // pred_region
        %s261 = sadd.s32 %s20, 2
        %p262 = scmp.lt.s32.totalorder %s18, 1
        %s263 = scalar_select %p262, %s18, 1
        %p264 = scmp.lt.s32.totalorder %s261, 5
        %s265 = scalar_select %p264, %s261, 5
        %s266 = smul.addr %s265, 14
        %s267 = smul.addr %s263, 84
        %s268 = sadd.s32 %s266, %s267
        %s269 = smul.addr %s268, 4
        %s270 = scalar_lea.vmem %s2, %s269
        %s271 = sadd.s32 %s20, 2
      $region36: #{basic_block3d_forward.2} parent=23 // pred_fallthru
        _
    $region24: #{basic_block3d_forward.2} parent=5 // pred_fallthru
      _
    %p272 = scmp.le.s32.totalorder 1, %s11
    %p273 = scmp.lt.s32.totalorder %s11, 9
    %p274 = pnand %p272, %p273
    %p275 = pneg %p274
    // Predicated region
    $region37: #{basic_block3d_forward.2} parent=5 // pred_check
      _
    $region38: #{basic_block3d_forward.2} parent=5 // pred_check_branch
      %277 = sbr.rel (%p274) target = $region40
    $region39: #{basic_block3d_forward.2} parent=5 // pred_region
      %s278 = ssub.s32 %s11, 1
      %p279 = scmp.lt.s32.totalorder %s21, 1
      %s280 = scalar_select %p279, %s21, 1
      %p281 = scmp.lt.s32.totalorder %s23, 5
      %s282 = scalar_select %p281, %s23, 5
      %s283 = smul.addr %s282, 14
      %s284 = smul.addr %s280, 84
      %s285 = sadd.s32 %s283, %s284
      %s286 = smul.addr %s285, 4
      %s287 = scalar_lea.vmem %s0, %s286
      %p288 = pneg %p58
      %p289 = pneg %p55
      %s290 = sadd.s32 %s23, 1
      %p291 = scmp.lt.s32.totalorder %s21, 1
      %s292 = scalar_select %p291, %s21, 1
      %p293 = scmp.lt.s32.totalorder %s290, 5
      %s294 = scalar_select %p293, %s290, 5
      %s295 = smul.addr %s294, 14
      %s296 = smul.addr %s292, 84
      %s297 = sadd.s32 %s295, %s296
      %s298 = smul.addr %s297, 4
      %s299 = scalar_lea.vmem %s1, %s298
      %p300 = pneg %p88
      %p301 = pneg %p85
      %s302 = sadd.s32 %s23, 2
      %p303 = scmp.lt.s32.totalorder %s21, 1
      %s304 = scalar_select %p303, %s21, 1
      %p305 = scmp.lt.s32.totalorder %s302, 5
      %s306 = scalar_select %p305, %s302, 5
      %s307 = smul.addr %s306, 14
      %s308 = smul.addr %s304, 84
      %s309 = sadd.s32 %s307, %s308
      %s310 = smul.addr %s309, 4
      %s311 = scalar_lea.vmem %s2, %s310
      %p312 = pneg %p118
      %p313 = pneg %p115
      %p314 = scmp.lt.s32.totalorder %s22, 0
      %s315 = scalar_select %p314, %s22, 0
      %s316 = smul.addr %s315, 4
      %s317 = scalar_lea.vmem %s3, %s316
      %p318 = pneg %p144
      %p319 = pneg %p141
      %p320 = scmp.lt.s32.totalorder %s22, 0
      %s321 = scalar_select %p320, %s22, 0
      %s322 = scalar_lea.vmem %s4, %s321
      %p323 = pneg %p170
      %p324 = pneg %p167
      %p325 = pneg %p200
      %p326 = pneg %p197
      %p327 = scmp.lt.s32.totalorder %s21, 1
      %s328 = scalar_select %p327, %s21, 1
      %p329 = scmp.lt.s32.totalorder %s23, 3
      %s330 = scalar_select %p329, %s23, 3
      %p331 = scmp.lt.s32.totalorder %s22, 0
      %s332 = scalar_select %p331, %s22, 0
      %s333 = smul.addr %s330, 10
      %s334 = sadd.s32 %s332, %s333
      %s335 = smul.addr %s328, 40
      %s336 = sadd.s32 %s334, %s335
      %s337 = smul.addr %s336, 4
      %s338 = scalar_lea.vmem %s5, %s337
      %p339 = scmp.lt.s32.totalorder %s21, 1
      %s340 = scalar_select %p339, %s21, 1
      %p341 = scmp.lt.s32.totalorder %s23, 5
      %s342 = scalar_select %p341, %s23, 5
      %s343 = smul.addr %s342, 14
      %s344 = smul.addr %s340, 84
      %s345 = sadd.s32 %s343, %s344
      %s346 = smul.addr %s345, 4
      %s347 = scalar_lea.vmem %s0, %s346
      %s348 = sadd.s32 %s23, 1
      %p349 = scmp.lt.s32.totalorder %s21, 1
      %s350 = scalar_select %p349, %s21, 1
      %p351 = scmp.lt.s32.totalorder %s348, 5
      %s352 = scalar_select %p351, %s348, 5
      %s353 = smul.addr %s352, 14
      %s354 = smul.addr %s350, 84
      %s355 = sadd.s32 %s353, %s354
      %s356 = smul.addr %s355, 4
      %s357 = scalar_lea.vmem %s1, %s356
      %s358 = sadd.s32 %s23, 1
      %s359 = sadd.s32 %s23, 2
      %p360 = scmp.lt.s32.totalorder %s21, 1
      %s361 = scalar_select %p360, %s21, 1
      %p362 = scmp.lt.s32.totalorder %s359, 5
      %s363 = scalar_select %p362, %s359, 5
      %s364 = smul.addr %s363, 14
      %s365 = smul.addr %s361, 84
      %s366 = sadd.s32 %s364, %s365
      %s367 = smul.addr %s366, 4
      %s368 = scalar_lea.vmem %s2, %s367
      %s369 = sadd.s32 %s23, 2
      %p370 = scmp.lt.s32.totalorder %s22, 0
      %s371 = scalar_select %p370, %s22, 0
      %s372 = smul.addr %s371, 4
      %s373 = scalar_lea.vmem %s3, %s372
      %p374 = scmp.lt.s32.totalorder %s22, 0
      %s375 = scalar_select %p374, %s22, 0
      %s376 = scalar_lea.vmem %s4, %s375
      %p377 = scmp.lt.s32.totalorder %s21, 1
      %s378 = scalar_select %p377, %s21, 1
      %p379 = scmp.lt.s32.totalorder %s23, 3
      %s380 = scalar_select %p379, %s23, 3
      %p381 = scmp.lt.s32.totalorder %s22, 0
      %s382 = scalar_select %p381, %s22, 0
      %s383 = smul.addr %s380, 10
      %s384 = sadd.s32 %s382, %s383
      %s385 = smul.addr %s378, 40
      %s386 = sadd.s32 %s384, %s385
      %s387 = smul.addr %s386, 4
      %s388 = scalar_lea.vmem %s5, %s387
      %v390 = vld [vmem:[%s347] sm:$0xf]
      %v391 = vld [vmem:[%s347 + $0x4] sm:$0xf]
      %v392 = vld [vmem:[%s347 + $0x8] sm:$0xf]
      %v393 = vld [vmem:[%s347 + $0xc] sm:$0xf]
      %v394 = vld [vmem:[%s347 + $0x10] sm:$0xf]
      %v395 = vld [vmem:[%s347 + $0x14] sm:$0xf]
      %v396 = vld [vmem:[%s347 + $0x18] sm:$0xf]
      %v397 = vld [vmem:[%s347 + $0x1c] sm:$0xf]
      %v398 = vld [vmem:[%s347 + $0x20] sm:$0xf]
      %v399 = vld [vmem:[%s347 + $0x24] sm:$0xf]
      %v400 = vld [vmem:[%s373] sm:$0xf]
      %v401 = vld [vmem:[%s347 + $0x28] sm:$0x1]
      %s402 = scalar_lea.vmem %s373, 4
      %v403 = vld [vmem:[%s402] sm:$0xf]
      %v415 = vunpack.c.l.b16 %v390
      %v416 = vunpack.c.l.b16 %v391
      %v417 = vunpack.c.l.b16 %v392
      %v418 = vunpack.c.l.b16 %v393
      %v419 = vunpack.c.l.b16 %v394
      %v420 = vunpack.c.l.b16 %v395
      %v421 = vunpack.c.l.b16 %v396
      %v422 = vunpack.c.l.b16 %v397
      %v423 = vunpack.c.l.b16 %v398
      %v424 = vunpack.c.l.b16 %v399
      %v425 = vunpack.c.l.b16 %v401
      %v426 = vpack.c.b16 %v416, %v415
      %v427 = vpack.c.b16 %v418, %v417
      %v428 = vpack.c.b16 %v420, %v419
      %v429 = vpack.c.b16 %v422, %v421
      %v430 = vpack.c.b16 %v424, %v423
      %v431 = vpack.c.b16 %v425, %v425
      %vm432 = vsmask.f32 7424
      %v434 = vshrl.u32 %v426, 16
      %v436 = vshll.u32 %v426, 16
      %v438 = vrot.slane %v436, 1
      %v439 = vor.u32 %v434, %v438
      %v441 = vshll.u32 %v427, 16
      %v443 = vrot.slane %v441, 1
      %v444 = vsel %vm432, %v439, %v443
      %v445 = vshrl.u32 %v427, 16
      %v447 = vor.u32 %v445, %v443
      %v449 = vshll.u32 %v428, 16
      %v451 = vrot.slane %v449, 1
      %v452 = vsel %vm432, %v447, %v451
      %v453 = vshrl.u32 %v428, 16
      %v455 = vor.u32 %v453, %v451
      %v457 = vshll.u32 %v429, 16
      %v459 = vrot.slane %v457, 1
      %v460 = vsel %vm432, %v455, %v459
      %v461 = vshrl.u32 %v429, 16
      %v463 = vor.u32 %v461, %v459
      %v465 = vshll.u32 %v430, 16
      %v467 = vrot.slane %v465, 1
      %v468 = vsel %vm432, %v463, %v467
      %v469 = vshrl.u32 %v430, 16
      %v471 = vor.u32 %v469, %v467
      %v473 = vshll.u32 %v431, 16
      %v475 = vrot.slane %v473, 1
      %v476 = vsel %vm432, %v471, %v475
      %vm477 = vcmask 64512
      %v479 = vsel %vm477, %v444, 0
      %v482 = vsel %vm477, %v452, 0
      %v485 = vsel %vm477, %v460, 0
      %v488 = vsel %vm477, %v468, 0
      %v491 = vsel %vm477, %v476, 0
      %vm493 = vcmask 1043456
      %v495 = vsel %vm493, %v403, 0
      %497 = vmatprep.subr.bf16.mxu0 0
      %498 = vmatpush1.bf16.msra.mxu0 0
      %499 = vmatprep.subr.bf16.mxu0 0
      %500 = vmatpush1.bf16.msra.mxu0 0
      %501 = vmatprep.subr.bf16.mxu0 0
      %502 = vmatpush1.bf16.msra.mxu0 0
      %503 = vmatprep.subr.bf16.mxu0 0
      %504 = vmatpush1.bf16.msra.mxu0 0
      %505 = vmatprep.subr.bf16.mxu0 0
      %506 = vmatpush1.bf16.msra.mxu0 0
      %507 = vmatprep.subr.bf16.mxu0 0
      %508 = vmatpush1.bf16.msra.mxu0 0
      %509 = vmatprep.subr.bf16.mxu0 0
      %510 = vmatpush1.bf16.msra.mxu0 0
      %511 = vmatprep.subr.bf16.mxu0 0
      %512 = vmatpush1.bf16.msra.mxu0 %v495
      %513 = vmatprep.subr.bf16.mxu0 0
      %514 = vmatpush2.bf16.msra.mxu0 0
      %515 = vmatprep.subr.bf16.mxu0 0
      %516 = vmatpush2.bf16.msra.mxu0 0
      %517 = vmatprep.subr.bf16.mxu0 0
      %518 = vmatpush2.bf16.msra.mxu0 0
      %519 = vmatprep.subr.bf16.mxu0 0
      %520 = vmatpush2.bf16.msra.mxu0 0
      %521 = vmatprep.subr.bf16.mxu0 0
      %522 = vmatpush2.bf16.msra.mxu0 0
      %523 = vmatprep.subr.bf16.mxu0 0
      %524 = vmatpush2.bf16.msra.mxu0 0
      %525 = vmatprep.subr.bf16.mxu0 0
      %526 = vmatpush2.bf16.msra.mxu0 0
      %527 = vmatprep.subr.bf16.mxu0 0
      %528 = vmatpush2.bf16.msra.mxu0 0
      %529 = vmatprep.mubr.bf16.mxu0 0
      %530 = vmatmul.mubr.bf16.gmra.mxu0 %v479
      %v531 = vpop.f32.mrf.mxu0
      %v532 = vadd.f32 0.0, %v531
      %v533 = vpop.f32.mrf.mxu0
      %v534 = vpop.f32.mrf.mxu0
      %v535 = vadd.f32 0.0, %v534
      %v536 = vpop.f32.mrf.mxu0
      %537 = vmatprep.mubr.bf16.mxu0 0
      %538 = vmatmul.mubr.bf16.gmra.mxu0 %v482
      %v539 = vpop.f32.mrf.mxu0
      %v540 = vadd.f32 0.0, %v539
      %v541 = vpop.f32.mrf.mxu0
      %v542 = vpop.f32.mrf.mxu0
      %v543 = vadd.f32 0.0, %v542
      %v544 = vpop.f32.mrf.mxu0
      %545 = vmatprep.mubr.bf16.mxu0 0
      %546 = vmatmul.mubr.bf16.gmra.mxu0 %v485
      %v547 = vpop.f32.mrf.mxu0
      %v548 = vadd.f32 0.0, %v547
      %v549 = vpop.f32.mrf.mxu0
      %v550 = vpop.f32.mrf.mxu0
      %v551 = vadd.f32 0.0, %v550
      %v552 = vpop.f32.mrf.mxu0
      %553 = vmatprep.mubr.bf16.mxu0 0
      %554 = vmatmul.mubr.bf16.gmra.mxu0 %v488
      %v555 = vpop.f32.mrf.mxu0
      %v556 = vadd.f32 0.0, %v555
      %v557 = vpop.f32.mrf.mxu0
      %v558 = vpop.f32.mrf.mxu0
      %v559 = vadd.f32 0.0, %v558
      %v560 = vpop.f32.mrf.mxu0
      %561 = vmatprep.mubr.bf16.mxu0 0
      %562 = vmatmul.mubr.bf16.gmra.mxu0 %v491
      %v563 = vpop.f32.mrf.mxu0
      %v564 = vadd.f32 0.0, %v563
      %v565 = vpop.f32.mrf.mxu0
      %v566 = vpop.f32.mrf.mxu0
      %v567 = vadd.f32 0.0, %v566
      %v568 = vpop.f32.mrf.mxu0
      %569 = vdwg.mxu0
      %v570 = vsel %vm477, %v426, 0
      %v572 = vsel %vm477, %v427, 0
      %v574 = vsel %vm477, %v428, 0
      %v576 = vsel %vm477, %v429, 0
      %v578 = vsel %vm477, %v430, 0
      %v581 = vsel %vm493, %v400, 0
      %583 = vmatprep.subr.bf16.mxu0 0
      %584 = vmatpush1.bf16.msra.mxu0 0
      %585 = vmatprep.subr.bf16.mxu0 0
      %586 = vmatpush1.bf16.msra.mxu0 0
      %587 = vmatprep.subr.bf16.mxu0 0
      %588 = vmatpush1.bf16.msra.mxu0 0
      %589 = vmatprep.subr.bf16.mxu0 0
      %590 = vmatpush1.bf16.msra.mxu0 0
      %591 = vmatprep.subr.bf16.mxu0 0
      %592 = vmatpush1.bf16.msra.mxu0 0
      %593 = vmatprep.subr.bf16.mxu0 0
      %594 = vmatpush1.bf16.msra.mxu0 0
      %595 = vmatprep.subr.bf16.mxu0 0
      %596 = vmatpush1.bf16.msra.mxu0 0
      %597 = vmatprep.subr.bf16.mxu0 0
      %598 = vmatpush1.bf16.msra.mxu0 %v581
      %599 = vmatprep.subr.bf16.mxu0 0
      %600 = vmatpush2.bf16.msra.mxu0 0
      %601 = vmatprep.subr.bf16.mxu0 0
      %602 = vmatpush2.bf16.msra.mxu0 0
      %603 = vmatprep.subr.bf16.mxu0 0
      %604 = vmatpush2.bf16.msra.mxu0 0
      %605 = vmatprep.subr.bf16.mxu0 0
      %606 = vmatpush2.bf16.msra.mxu0 0
      %607 = vmatprep.subr.bf16.mxu0 0
      %608 = vmatpush2.bf16.msra.mxu0 0
      %609 = vmatprep.subr.bf16.mxu0 0
      %610 = vmatpush2.bf16.msra.mxu0 0
      %611 = vmatprep.subr.bf16.mxu0 0
      %612 = vmatpush2.bf16.msra.mxu0 0
      %613 = vmatprep.subr.bf16.mxu0 0
      %614 = vmatpush2.bf16.msra.mxu0 0
      %615 = vmatprep.mubr.bf16.mxu0 0
      %616 = vmatmul.mubr.bf16.gmra.mxu0 %v570
      %v617 = vpop.f32.mrf.mxu0
      %v618 = vadd.f32 %v532, %v617
      %v619 = vpop.f32.mrf.mxu0
      %v620 = vpop.f32.mrf.mxu0
      %v621 = vadd.f32 %v535, %v620
      %v622 = vpop.f32.mrf.mxu0
      %623 = vmatprep.mubr.bf16.mxu0 0
      %624 = vmatmul.mubr.bf16.gmra.mxu0 %v572
      %v625 = vpop.f32.mrf.mxu0
      %v626 = vadd.f32 %v540, %v625
      %v627 = vpop.f32.mrf.mxu0
      %v628 = vpop.f32.mrf.mxu0
      %v629 = vadd.f32 %v543, %v628
      %v630 = vpop.f32.mrf.mxu0
      %631 = vmatprep.mubr.bf16.mxu0 0
      %632 = vmatmul.mubr.bf16.gmra.mxu0 %v574
      %v633 = vpop.f32.mrf.mxu0
      %v634 = vadd.f32 %v548, %v633
      %v635 = vpop.f32.mrf.mxu0
      %v636 = vpop.f32.mrf.mxu0
      %v637 = vadd.f32 %v551, %v636
      %v638 = vpop.f32.mrf.mxu0
      %639 = vmatprep.mubr.bf16.mxu0 0
      %640 = vmatmul.mubr.bf16.gmra.mxu0 %v576
      %v641 = vpop.f32.mrf.mxu0
      %v642 = vadd.f32 %v556, %v641
      %v643 = vpop.f32.mrf.mxu0
      %v644 = vpop.f32.mrf.mxu0
      %v645 = vadd.f32 %v559, %v644
      %v646 = vpop.f32.mrf.mxu0
      %647 = vmatprep.mubr.bf16.mxu0 0
      %648 = vmatmul.mubr.bf16.gmra.mxu0 %v578
      %v649 = vpop.f32.mrf.mxu0
      %v650 = vadd.f32 %v564, %v649
      %v651 = vpop.f32.mrf.mxu0
      %v652 = vpop.f32.mrf.mxu0
      %v653 = vadd.f32 %v567, %v652
      %v654 = vpop.f32.mrf.mxu0
      %655 = vdwg.mxu0
      %v656 = vld [vmem:[%s347] sm:$0xe]
      %s657 = scalar_lea.vmem %s373, 8
      %v658 = vld [vmem:[%s657] sm:$0xf]
      %v660 = vunpack.c.l.b16 %v656
      %v661 = vpack.c.b16 %v416, %v660
      %vm662 = vcmask 1046528
      %v663 = vrot.slane %v661, 1
      %v664 = vrot.slane %v427, 1
      %v665 = vsel %vm662, %v663, %v664
      %v666 = vrot.slane %v428, 1
      %v667 = vsel %vm662, %v664, %v666
      %v668 = vrot.slane %v429, 1
      %v669 = vsel %vm662, %v666, %v668
      %v670 = vrot.slane %v430, 1
      %v671 = vsel %vm662, %v668, %v670
      %v672 = vrot.slane %v431, 1
      %v673 = vsel %vm662, %v670, %v672
      %v675 = vsel %vm477, %v665, 0
      %v678 = vsel %vm477, %v667, 0
      %v681 = vsel %vm477, %v669, 0
      %v684 = vsel %vm477, %v671, 0
      %v687 = vsel %vm477, %v673, 0
      %v690 = vsel %vm493, %v658, 0
      %692 = vmatprep.subr.bf16.mxu0 0
      %693 = vmatpush1.bf16.msra.mxu0 0
      %694 = vmatprep.subr.bf16.mxu0 0
      %695 = vmatpush1.bf16.msra.mxu0 0
      %696 = vmatprep.subr.bf16.mxu0 0
      %697 = vmatpush1.bf16.msra.mxu0 0
      %698 = vmatprep.subr.bf16.mxu0 0
      %699 = vmatpush1.bf16.msra.mxu0 0
      %700 = vmatprep.subr.bf16.mxu0 0
      %701 = vmatpush1.bf16.msra.mxu0 0
      %702 = vmatprep.subr.bf16.mxu0 0
      %703 = vmatpush1.bf16.msra.mxu0 0
      %704 = vmatprep.subr.bf16.mxu0 0
      %705 = vmatpush1.bf16.msra.mxu0 0
      %706 = vmatprep.subr.bf16.mxu0 0
      %707 = vmatpush1.bf16.msra.mxu0 %v690
      %708 = vmatprep.subr.bf16.mxu0 0
      %709 = vmatpush2.bf16.msra.mxu0 0
      %710 = vmatprep.subr.bf16.mxu0 0
      %711 = vmatpush2.bf16.msra.mxu0 0
      %712 = vmatprep.subr.bf16.mxu0 0
      %713 = vmatpush2.bf16.msra.mxu0 0
      %714 = vmatprep.subr.bf16.mxu0 0
      %715 = vmatpush2.bf16.msra.mxu0 0
      %716 = vmatprep.subr.bf16.mxu0 0
      %717 = vmatpush2.bf16.msra.mxu0 0
      %718 = vmatprep.subr.bf16.mxu0 0
      %719 = vmatpush2.bf16.msra.mxu0 0
      %720 = vmatprep.subr.bf16.mxu0 0
      %721 = vmatpush2.bf16.msra.mxu0 0
      %722 = vmatprep.subr.bf16.mxu0 0
      %723 = vmatpush2.bf16.msra.mxu0 0
      %724 = vmatprep.mubr.bf16.mxu0 0
      %725 = vmatmul.mubr.bf16.gmra.mxu0 %v675
      %v726 = vpop.f32.mrf.mxu0
      %v727 = vadd.f32 0.0, %v726
      %v728 = vpop.f32.mrf.mxu0
      %v729 = vpop.f32.mrf.mxu0
      %v730 = vadd.f32 0.0, %v729
      %v731 = vpop.f32.mrf.mxu0
      %732 = vmatprep.mubr.bf16.mxu0 0
      %733 = vmatmul.mubr.bf16.gmra.mxu0 %v678
      %v734 = vpop.f32.mrf.mxu0
      %v735 = vadd.f32 0.0, %v734
      %v736 = vpop.f32.mrf.mxu0
      %v737 = vpop.f32.mrf.mxu0
      %v738 = vadd.f32 0.0, %v737
      %v739 = vpop.f32.mrf.mxu0
      %740 = vmatprep.mubr.bf16.mxu0 0
      %741 = vmatmul.mubr.bf16.gmra.mxu0 %v681
      %v742 = vpop.f32.mrf.mxu0
      %v743 = vadd.f32 0.0, %v742
      %v744 = vpop.f32.mrf.mxu0
      %v745 = vpop.f32.mrf.mxu0
      %v746 = vadd.f32 0.0, %v745
      %v747 = vpop.f32.mrf.mxu0
      %748 = vmatprep.mubr.bf16.mxu0 0
      %749 = vmatmul.mubr.bf16.gmra.mxu0 %v684
      %v750 = vpop.f32.mrf.mxu0
      %v751 = vadd.f32 0.0, %v750
      %v752 = vpop.f32.mrf.mxu0
      %v753 = vpop.f32.mrf.mxu0
      %v754 = vadd.f32 0.0, %v753
      %v755 = vpop.f32.mrf.mxu0
      %756 = vmatprep.mubr.bf16.mxu0 0
      %757 = vmatmul.mubr.bf16.gmra.mxu0 %v687
      %v758 = vpop.f32.mrf.mxu0
      %v759 = vadd.f32 0.0, %v758
      %v760 = vpop.f32.mrf.mxu0
      %v761 = vpop.f32.mrf.mxu0
      %v762 = vadd.f32 0.0, %v761
      %v763 = vpop.f32.mrf.mxu0
      %764 = vdwg.mxu0
      %v765 = vadd.f32 %v618, %v727
      %v766 = vadd.f32 %v621, %v730
      %v767 = vadd.f32 %v626, %v735
      %v768 = vadd.f32 %v629, %v738
      %v769 = vadd.f32 %v634, %v743
      %v770 = vadd.f32 %v637, %v746
      %v771 = vadd.f32 %v642, %v751
      %v772 = vadd.f32 %v645, %v754
      %v773 = vadd.f32 %v650, %v759
      %v774 = vadd.f32 %v653, %v762
      %v775 = vld [vmem:[%s347 + $0x4] sm:$0xe]
      %v776 = vld [vmem:[%s347 + $0x8] sm:$0xf]
      %v777 = vld [vmem:[%s347 + $0xc] sm:$0xf]
      %v778 = vld [vmem:[%s347 + $0x10] sm:$0xf]
      %v779 = vld [vmem:[%s347 + $0x14] sm:$0xf]
      %v780 = vld [vmem:[%s347 + $0x18] sm:$0xf]
      %v781 = vld [vmem:[%s347 + $0x1c] sm:$0xf]
      %v782 = vld [vmem:[%s347 + $0x20] sm:$0xf]
      %v783 = vld [vmem:[%s347 + $0x24] sm:$0xf]
      %v784 = vld [vmem:[%s347 + $0x28] sm:$0xf]
      %v785 = vld [vmem:[%s347 + $0x2c] sm:$0x1]
      %s786 = scalar_lea.vmem %s373, 12
      %v787 = vld [vmem:[%s786] sm:$0xf]
      %v799 = vunpack.c.l.b16 %v775
      %v800 = vunpack.c.l.b16 %v776
      %v801 = vunpack.c.l.b16 %v777
      %v802 = vunpack.c.l.b16 %v778
      %v803 = vunpack.c.l.b16 %v779
      %v804 = vunpack.c.l.b16 %v780
      %v805 = vunpack.c.l.b16 %v781
      %v806 = vunpack.c.l.b16 %v782
      %v807 = vunpack.c.l.b16 %v783
      %v808 = vunpack.c.l.b16 %v784
      %v809 = vunpack.c.l.b16 %v785
      %v810 = vpack.c.b16 %v800, %v799
      %v811 = vpack.c.b16 %v802, %v801
      %v812 = vpack.c.b16 %v804, %v803
      %v813 = vpack.c.b16 %v806, %v805
      %v814 = vpack.c.b16 %v808, %v807
      %v815 = vpack.c.b16 %v809, %v809
      %v816 = vrot.slane %v810, 1
      %v817 = vrot.slane %v811, 1
      %v818 = vsel %vm662, %v816, %v817
      %v819 = vrot.slane %v812, 1
      %v820 = vsel %vm662, %v817, %v819
      %v821 = vrot.slane %v813, 1
      %v822 = vsel %vm662, %v819, %v821
      %v823 = vrot.slane %v814, 1
      %v824 = vsel %vm662, %v821, %v823
      %v825 = vrot.slane %v815, 1
      %v826 = vsel %vm662, %v823, %v825
      %v828 = vsel %vm477, %v818, 0
      %v831 = vsel %vm477, %v820, 0
      %v834 = vsel %vm477, %v822, 0
      %v837 = vsel %vm477, %v824, 0
      %v840 = vsel %vm477, %v826, 0
      %v843 = vsel %vm493, %v787, 0
      %845 = vmatprep.subr.bf16.mxu0 0
      %846 = vmatpush1.bf16.msra.mxu0 0
      %847 = vmatprep.subr.bf16.mxu0 0
      %848 = vmatpush1.bf16.msra.mxu0 0
      %849 = vmatprep.subr.bf16.mxu0 0
      %850 = vmatpush1.bf16.msra.mxu0 0
      %851 = vmatprep.subr.bf16.mxu0 0
      %852 = vmatpush1.bf16.msra.mxu0 0
      %853 = vmatprep.subr.bf16.mxu0 0
      %854 = vmatpush1.bf16.msra.mxu0 0
      %855 = vmatprep.subr.bf16.mxu0 0
      %856 = vmatpush1.bf16.msra.mxu0 0
      %857 = vmatprep.subr.bf16.mxu0 0
      %858 = vmatpush1.bf16.msra.mxu0 0
      %859 = vmatprep.subr.bf16.mxu0 0
      %860 = vmatpush1.bf16.msra.mxu0 %v843
      %861 = vmatprep.subr.bf16.mxu0 0
      %862 = vmatpush2.bf16.msra.mxu0 0
      %863 = vmatprep.subr.bf16.mxu0 0
      %864 = vmatpush2.bf16.msra.mxu0 0
      %865 = vmatprep.subr.bf16.mxu0 0
      %866 = vmatpush2.bf16.msra.mxu0 0
      %867 = vmatprep.subr.bf16.mxu0 0
      %868 = vmatpush2.bf16.msra.mxu0 0
      %869 = vmatprep.subr.bf16.mxu0 0
      %870 = vmatpush2.bf16.msra.mxu0 0
      %871 = vmatprep.subr.bf16.mxu0 0
      %872 = vmatpush2.bf16.msra.mxu0 0
      %873 = vmatprep.subr.bf16.mxu0 0
      %874 = vmatpush2.bf16.msra.mxu0 0
      %875 = vmatprep.subr.bf16.mxu0 0
      %876 = vmatpush2.bf16.msra.mxu0 0
      %877 = vmatprep.mubr.bf16.mxu0 0
      %878 = vmatmul.mubr.bf16.gmra.mxu0 %v828
      %v879 = vpop.f32.mrf.mxu0
      %v880 = vadd.f32 0.0, %v879
      %v881 = vpop.f32.mrf.mxu0
      %v882 = vpop.f32.mrf.mxu0
      %v883 = vadd.f32 0.0, %v882
      %v884 = vpop.f32.mrf.mxu0
      %885 = vmatprep.mubr.bf16.mxu0 0
      %886 = vmatmul.mubr.bf16.gmra.mxu0 %v831
      %v887 = vpop.f32.mrf.mxu0
      %v888 = vadd.f32 0.0, %v887
      %v889 = vpop.f32.mrf.mxu0
      %v890 = vpop.f32.mrf.mxu0
      %v891 = vadd.f32 0.0, %v890
      %v892 = vpop.f32.mrf.mxu0
      %893 = vmatprep.mubr.bf16.mxu0 0
      %894 = vmatmul.mubr.bf16.gmra.mxu0 %v834
      %v895 = vpop.f32.mrf.mxu0
      %v896 = vadd.f32 0.0, %v895
      %v897 = vpop.f32.mrf.mxu0
      %v898 = vpop.f32.mrf.mxu0
      %v899 = vadd.f32 0.0, %v898
      %v900 = vpop.f32.mrf.mxu0
      %901 = vmatprep.mubr.bf16.mxu0 0
      %902 = vmatmul.mubr.bf16.gmra.mxu0 %v837
      %v903 = vpop.f32.mrf.mxu0
      %v904 = vadd.f32 0.0, %v903
      %v905 = vpop.f32.mrf.mxu0
      %v906 = vpop.f32.mrf.mxu0
      %v907 = vadd.f32 0.0, %v906
      %v908 = vpop.f32.mrf.mxu0
      %909 = vmatprep.mubr.bf16.mxu0 0
      %910 = vmatmul.mubr.bf16.gmra.mxu0 %v840
      %v911 = vpop.f32.mrf.mxu0
      %v912 = vadd.f32 0.0, %v911
      %v913 = vpop.f32.mrf.mxu0
      %v914 = vpop.f32.mrf.mxu0
      %v915 = vadd.f32 0.0, %v914
      %v916 = vpop.f32.mrf.mxu0
      %917 = vdwg.mxu0
      %v918 = vadd.f32 %v765, %v880
      %v919 = vadd.f32 %v766, %v883
      %v920 = vadd.f32 %v767, %v888
      %v921 = vadd.f32 %v768, %v891
      %v922 = vadd.f32 %v769, %v896
      %v923 = vadd.f32 %v770, %v899
      %v924 = vadd.f32 %v771, %v904
      %v925 = vadd.f32 %v772, %v907
      %v926 = vadd.f32 %v773, %v912
      %v927 = vadd.f32 %v774, %v915
      %v928 = vld [vmem:[%s347 + $0x2c] sm:$0x3]
      %s929 = scalar_lea.vmem %s373, 16
      %v930 = vld [vmem:[%s929] sm:$0xf]
      %v932 = vunpack.c.l.b16 %v928
      %v933 = vpack.c.b16 %v932, %v932
      %vm934 = vsmask.f32 6400
      %v936 = vshrl.u32 %v810, 16
      %v938 = vrot.slane %v936, 1
      %v939 = vshll.u32 %v810, 16
      %v941 = vrot.slane %v939, 2
      %v942 = vor.u32 %v938, %v941
      %v944 = vshrl.u32 %v811, 16
      %v946 = vrot.slane %v944, 1
      %v947 = vshll.u32 %v811, 16
      %v949 = vrot.slane %v947, 2
      %v950 = vor.u32 %v946, %v949
      %v951 = vsel %vm934, %v942, %v950
      %v953 = vshrl.u32 %v812, 16
      %v955 = vrot.slane %v953, 1
      %v956 = vshll.u32 %v812, 16
      %v958 = vrot.slane %v956, 2
      %v959 = vor.u32 %v955, %v958
      %v960 = vsel %vm934, %v950, %v959
      %v962 = vshrl.u32 %v813, 16
      %v964 = vrot.slane %v962, 1
      %v965 = vshll.u32 %v813, 16
      %v967 = vrot.slane %v965, 2
      %v968 = vor.u32 %v964, %v967
      %v969 = vsel %vm934, %v959, %v968
      %v971 = vshrl.u32 %v814, 16
      %v973 = vrot.slane %v971, 1
      %v974 = vshll.u32 %v814, 16
      %v976 = vrot.slane %v974, 2
      %v977 = vor.u32 %v973, %v976
      %v978 = vsel %vm934, %v968, %v977
      %v980 = vshrl.u32 %v933, 16
      %v982 = vrot.slane %v980, 1
      %v983 = vshll.u32 %v933, 16
      %v985 = vrot.slane %v983, 2
      %v986 = vor.u32 %v982, %v985
      %v987 = vsel %vm934, %v977, %v986
      %v989 = vsel %vm477, %v951, 0
      %v992 = vsel %vm477, %v960, 0
      %v995 = vsel %vm477, %v969, 0
      %v998 = vsel %vm477, %v978, 0
      %v1001 = vsel %vm477, %v987, 0
      %v1004 = vsel %vm493, %v930, 0
      %1006 = vmatprep.subr.bf16.mxu0 0
      %1007 = vmatpush1.bf16.msra.mxu0 0
      %1008 = vmatprep.subr.bf16.mxu0 0
      %1009 = vmatpush1.bf16.msra.mxu0 0
      %1010 = vmatprep.subr.bf16.mxu0 0
      %1011 = vmatpush1.bf16.msra.mxu0 0
      %1012 = vmatprep.subr.bf16.mxu0 0
      %1013 = vmatpush1.bf16.msra.mxu0 0
      %1014 = vmatprep.subr.bf16.mxu0 0
      %1015 = vmatpush1.bf16.msra.mxu0 0
      %1016 = vmatprep.subr.bf16.mxu0 0
      %1017 = vmatpush1.bf16.msra.mxu0 0
      %1018 = vmatprep.subr.bf16.mxu0 0
      %1019 = vmatpush1.bf16.msra.mxu0 0
      %1020 = vmatprep.subr.bf16.mxu0 0
      %1021 = vmatpush1.bf16.msra.mxu0 %v1004
      %1022 = vmatprep.subr.bf16.mxu0 0
      %1023 = vmatpush2.bf16.msra.mxu0 0
      %1024 = vmatprep.subr.bf16.mxu0 0
      %1025 = vmatpush2.bf16.msra.mxu0 0
      %1026 = vmatprep.subr.bf16.mxu0 0
      %1027 = vmatpush2.bf16.msra.mxu0 0
      %1028 = vmatprep.subr.bf16.mxu0 0
      %1029 = vmatpush2.bf16.msra.mxu0 0
      %1030 = vmatprep.subr.bf16.mxu0 0
      %1031 = vmatpush2.bf16.msra.mxu0 0
      %1032 = vmatprep.subr.bf16.mxu0 0
      %1033 = vmatpush2.bf16.msra.mxu0 0
      %1034 = vmatprep.subr.bf16.mxu0 0
      %1035 = vmatpush2.bf16.msra.mxu0 0
      %1036 = vmatprep.subr.bf16.mxu0 0
      %1037 = vmatpush2.bf16.msra.mxu0 0
      %1038 = vmatprep.mubr.bf16.mxu0 0
      %1039 = vmatmul.mubr.bf16.gmra.mxu0 %v989
      %v1040 = vpop.f32.mrf.mxu0
      %v1041 = vadd.f32 0.0, %v1040
      %v1042 = vpop.f32.mrf.mxu0
      %v1043 = vpop.f32.mrf.mxu0
      %v1044 = vadd.f32 0.0, %v1043
      %v1045 = vpop.f32.mrf.mxu0
      %1046 = vmatprep.mubr.bf16.mxu0 0
      %1047 = vmatmul.mubr.bf16.gmra.mxu0 %v992
      %v1048 = vpop.f32.mrf.mxu0
      %v1049 = vadd.f32 0.0, %v1048
      %v1050 = vpop.f32.mrf.mxu0
      %v1051 = vpop.f32.mrf.mxu0
      %v1052 = vadd.f32 0.0, %v1051
      %v1053 = vpop.f32.mrf.mxu0
      %1054 = vmatprep.mubr.bf16.mxu0 0
      %1055 = vmatmul.mubr.bf16.gmra.mxu0 %v995
      %v1056 = vpop.f32.mrf.mxu0
      %v1057 = vadd.f32 0.0, %v1056
      %v1058 = vpop.f32.mrf.mxu0
      %v1059 = vpop.f32.mrf.mxu0
      %v1060 = vadd.f32 0.0, %v1059
      %v1061 = vpop.f32.mrf.mxu0
      %1062 = vmatprep.mubr.bf16.mxu0 0
      %1063 = vmatmul.mubr.bf16.gmra.mxu0 %v998
      %v1064 = vpop.f32.mrf.mxu0
      %v1065 = vadd.f32 0.0, %v1064
      %v1066 = vpop.f32.mrf.mxu0
      %v1067 = vpop.f32.mrf.mxu0
      %v1068 = vadd.f32 0.0, %v1067
      %v1069 = vpop.f32.mrf.mxu0
      %1070 = vmatprep.mubr.bf16.mxu0 0
      %1071 = vmatmul.mubr.bf16.gmra.mxu0 %v1001
      %v1072 = vpop.f32.mrf.mxu0
      %v1073 = vadd.f32 0.0, %v1072
      %v1074 = vpop.f32.mrf.mxu0
      %v1075 = vpop.f32.mrf.mxu0
      %v1076 = vadd.f32 0.0, %v1075
      %v1077 = vpop.f32.mrf.mxu0
      %1078 = vdwg.mxu0
      %v1079 = vadd.f32 %v918, %v1041
      %v1080 = vadd.f32 %v919, %v1044
      %v1081 = vadd.f32 %v920, %v1049
      %v1082 = vadd.f32 %v921, %v1052
      %v1083 = vadd.f32 %v922, %v1057
      %v1084 = vadd.f32 %v923, %v1060
      %v1085 = vadd.f32 %v924, %v1065
      %v1086 = vadd.f32 %v925, %v1068
      %v1087 = vadd.f32 %v926, %v1073
      %v1088 = vadd.f32 %v927, %v1076
      %v1089 = vld [vmem:[%s347 + $0x4] sm:$0xc]
      %s1090 = scalar_lea.vmem %s373, 20
      %v1091 = vld [vmem:[%s1090] sm:$0xf]
      %v1093 = vunpack.c.l.b16 %v1089
      %v1094 = vpack.c.b16 %v800, %v1093
      %vm1095 = vcmask 1045504
      %v1096 = vrot.slane %v1094, 2
      %v1097 = vrot.slane %v811, 2
      %v1098 = vsel %vm1095, %v1096, %v1097
      %v1099 = vrot.slane %v812, 2
      %v1100 = vsel %vm1095, %v1097, %v1099
      %v1101 = vrot.slane %v813, 2
      %v1102 = vsel %vm1095, %v1099, %v1101
      %v1103 = vrot.slane %v814, 2
      %v1104 = vsel %vm1095, %v1101, %v1103
      %v1105 = vrot.slane %v933, 2
      %v1106 = vsel %vm1095, %v1103, %v1105
      %v1108 = vsel %vm477, %v1098, 0
      %v1111 = vsel %vm477, %v1100, 0
      %v1114 = vsel %vm477, %v1102, 0
      %v1117 = vsel %vm477, %v1104, 0
      %v1120 = vsel %vm477, %v1106, 0
      %v1123 = vsel %vm493, %v1091, 0
      %1125 = vmatprep.subr.bf16.mxu0 0
      %1126 = vmatpush1.bf16.msra.mxu0 0
      %1127 = vmatprep.subr.bf16.mxu0 0
      %1128 = vmatpush1.bf16.msra.mxu0 0
      %1129 = vmatprep.subr.bf16.mxu0 0
      %1130 = vmatpush1.bf16.msra.mxu0 0
      %1131 = vmatprep.subr.bf16.mxu0 0
      %1132 = vmatpush1.bf16.msra.mxu0 0
      %1133 = vmatprep.subr.bf16.mxu0 0
      %1134 = vmatpush1.bf16.msra.mxu0 0
      %1135 = vmatprep.subr.bf16.mxu0 0
      %1136 = vmatpush1.bf16.msra.mxu0 0
      %1137 = vmatprep.subr.bf16.mxu0 0
      %1138 = vmatpush1.bf16.msra.mxu0 0
      %1139 = vmatprep.subr.bf16.mxu0 0
      %1140 = vmatpush1.bf16.msra.mxu0 %v1123
      %1141 = vmatprep.subr.bf16.mxu0 0
      %1142 = vmatpush2.bf16.msra.mxu0 0
      %1143 = vmatprep.subr.bf16.mxu0 0
      %1144 = vmatpush2.bf16.msra.mxu0 0
      %1145 = vmatprep.subr.bf16.mxu0 0
      %1146 = vmatpush2.bf16.msra.mxu0 0
      %1147 = vmatprep.subr.bf16.mxu0 0
      %1148 = vmatpush2.bf16.msra.mxu0 0
      %1149 = vmatprep.subr.bf16.mxu0 0
      %1150 = vmatpush2.bf16.msra.mxu0 0
      %1151 = vmatprep.subr.bf16.mxu0 0
      %1152 = vmatpush2.bf16.msra.mxu0 0
      %1153 = vmatprep.subr.bf16.mxu0 0
      %1154 = vmatpush2.bf16.msra.mxu0 0
      %1155 = vmatprep.subr.bf16.mxu0 0
      %1156 = vmatpush2.bf16.msra.mxu0 0
      %1157 = vmatprep.mubr.bf16.mxu0 0
      %1158 = vmatmul.mubr.bf16.gmra.mxu0 %v1108
      %v1159 = vpop.f32.mrf.mxu0
      %v1160 = vadd.f32 0.0, %v1159
      %v1161 = vpop.f32.mrf.mxu0
      %v1162 = vpop.f32.mrf.mxu0
      %v1163 = vadd.f32 0.0, %v1162
      %v1164 = vpop.f32.mrf.mxu0
      %1165 = vmatprep.mubr.bf16.mxu0 0
      %1166 = vmatmul.mubr.bf16.gmra.mxu0 %v1111
      %v1167 = vpop.f32.mrf.mxu0
      %v1168 = vadd.f32 0.0, %v1167
      %v1169 = vpop.f32.mrf.mxu0
      %v1170 = vpop.f32.mrf.mxu0
      %v1171 = vadd.f32 0.0, %v1170
      %v1172 = vpop.f32.mrf.mxu0
      %1173 = vmatprep.mubr.bf16.mxu0 0
      %1174 = vmatmul.mubr.bf16.gmra.mxu0 %v1114
      %v1175 = vpop.f32.mrf.mxu0
      %v1176 = vadd.f32 0.0, %v1175
      %v1177 = vpop.f32.mrf.mxu0
      %v1178 = vpop.f32.mrf.mxu0
      %v1179 = vadd.f32 0.0, %v1178
      %v1180 = vpop.f32.mrf.mxu0
      %1181 = vmatprep.mubr.bf16.mxu0 0
      %1182 = vmatmul.mubr.bf16.gmra.mxu0 %v1117
      %v1183 = vpop.f32.mrf.mxu0
      %v1184 = vadd.f32 0.0, %v1183
      %v1185 = vpop.f32.mrf.mxu0
      %v1186 = vpop.f32.mrf.mxu0
      %v1187 = vadd.f32 0.0, %v1186
      %v1188 = vpop.f32.mrf.mxu0
      %1189 = vmatprep.mubr.bf16.mxu0 0
      %1190 = vmatmul.mubr.bf16.gmra.mxu0 %v1120
      %v1191 = vpop.f32.mrf.mxu0
      %v1192 = vadd.f32 0.0, %v1191
      %v1193 = vpop.f32.mrf.mxu0
      %v1194 = vpop.f32.mrf.mxu0
      %v1195 = vadd.f32 0.0, %v1194
      %v1196 = vpop.f32.mrf.mxu0
      %1197 = vdwg.mxu0
      %v1198 = vadd.f32 %v1079, %v1160
      %v1199 = vadd.f32 %v1080, %v1163
      %v1200 = vadd.f32 %v1081, %v1168
      %v1201 = vadd.f32 %v1082, %v1171
      %v1202 = vadd.f32 %v1083, %v1176
      %v1203 = vadd.f32 %v1084, %v1179
      %v1204 = vadd.f32 %v1085, %v1184
      %v1205 = vadd.f32 %v1086, %v1187
      %v1206 = vadd.f32 %v1087, %v1192
      %v1207 = vadd.f32 %v1088, %v1195
      %v1208 = vld [vmem:[%s347 + $0x8] sm:$0xc]
      %v1209 = vld [vmem:[%s347 + $0xc] sm:$0xf]
      %v1210 = vld [vmem:[%s347 + $0x10] sm:$0xf]
      %v1211 = vld [vmem:[%s347 + $0x14] sm:$0xf]
      %v1212 = vld [vmem:[%s347 + $0x18] sm:$0xf]
      %v1213 = vld [vmem:[%s347 + $0x1c] sm:$0xf]
      %v1214 = vld [vmem:[%s347 + $0x20] sm:$0xf]
      %v1215 = vld [vmem:[%s347 + $0x24] sm:$0xf]
      %v1216 = vld [vmem:[%s347 + $0x28] sm:$0xf]
      %v1217 = vld [vmem:[%s347 + $0x2c] sm:$0xf]
      %v1218 = vld [vmem:[%s347 + $0x30] sm:$0x3]
      %s1219 = scalar_lea.vmem %s373, 24
      %v1220 = vld [vmem:[%s1219] sm:$0xf]
      %v1232 = vunpack.c.l.b16 %v1208
      %v1233 = vunpack.c.l.b16 %v1209
      %v1234 = vunpack.c.l.b16 %v1210
      %v1235 = vunpack.c.l.b16 %v1211
      %v1236 = vunpack.c.l.b16 %v1212
      %v1237 = vunpack.c.l.b16 %v1213
      %v1238 = vunpack.c.l.b16 %v1214
      %v1239 = vunpack.c.l.b16 %v1215
      %v1240 = vunpack.c.l.b16 %v1216
      %v1241 = vunpack.c.l.b16 %v1217
      %v1242 = vunpack.c.l.b16 %v1218
      %v1243 = vpack.c.b16 %v1233, %v1232
      %v1244 = vpack.c.b16 %v1235, %v1234
      %v1245 = vpack.c.b16 %v1237, %v1236
      %v1246 = vpack.c.b16 %v1239, %v1238
      %v1247 = vpack.c.b16 %v1241, %v1240
      %v1248 = vpack.c.b16 %v1242, %v1242
      %v1249 = vrot.slane %v1243, 2
      %v1250 = vrot.slane %v1244, 2
      %v1251 = vsel %vm1095, %v1249, %v1250
      %v1252 = vrot.slane %v1245, 2
      %v1253 = vsel %vm1095, %v1250, %v1252
      %v1254 = vrot.slane %v1246, 2
      %v1255 = vsel %vm1095, %v1252, %v1254
      %v1256 = vrot.slane %v1247, 2
      %v1257 = vsel %vm1095, %v1254, %v1256
      %v1258 = vrot.slane %v1248, 2
      %v1259 = vsel %vm1095, %v1256, %v1258
      %v1261 = vsel %vm477, %v1251, 0
      %v1264 = vsel %vm477, %v1253, 0
      %v1267 = vsel %vm477, %v1255, 0
      %v1270 = vsel %vm477, %v1257, 0
      %v1273 = vsel %vm477, %v1259, 0
      %v1276 = vsel %vm493, %v1220, 0
      %1278 = vmatprep.subr.bf16.mxu0 0
      %1279 = vmatpush1.bf16.msra.mxu0 0
      %1280 = vmatprep.subr.bf16.mxu0 0
      %1281 = vmatpush1.bf16.msra.mxu0 0
      %1282 = vmatprep.subr.bf16.mxu0 0
      %1283 = vmatpush1.bf16.msra.mxu0 0
      %1284 = vmatprep.subr.bf16.mxu0 0
      %1285 = vmatpush1.bf16.msra.mxu0 0
      %1286 = vmatprep.subr.bf16.mxu0 0
      %1287 = vmatpush1.bf16.msra.mxu0 0
      %1288 = vmatprep.subr.bf16.mxu0 0
      %1289 = vmatpush1.bf16.msra.mxu0 0
      %1290 = vmatprep.subr.bf16.mxu0 0
      %1291 = vmatpush1.bf16.msra.mxu0 0
      %1292 = vmatprep.subr.bf16.mxu0 0
      %1293 = vmatpush1.bf16.msra.mxu0 %v1276
      %1294 = vmatprep.subr.bf16.mxu0 0
      %1295 = vmatpush2.bf16.msra.mxu0 0
      %1296 = vmatprep.subr.bf16.mxu0 0
      %1297 = vmatpush2.bf16.msra.mxu0 0
      %1298 = vmatprep.subr.bf16.mxu0 0
      %1299 = vmatpush2.bf16.msra.mxu0 0
      %1300 = vmatprep.subr.bf16.mxu0 0
      %1301 = vmatpush2.bf16.msra.mxu0 0
      %1302 = vmatprep.subr.bf16.mxu0 0
      %1303 = vmatpush2.bf16.msra.mxu0 0
      %1304 = vmatprep.subr.bf16.mxu0 0
      %1305 = vmatpush2.bf16.msra.mxu0 0
      %1306 = vmatprep.subr.bf16.mxu0 0
      %1307 = vmatpush2.bf16.msra.mxu0 0
      %1308 = vmatprep.subr.bf16.mxu0 0
      %1309 = vmatpush2.bf16.msra.mxu0 0
      %1310 = vmatprep.mubr.bf16.mxu0 0
      %1311 = vmatmul.mubr.bf16.gmra.mxu0 %v1261
      %v1312 = vpop.f32.mrf.mxu0
      %v1313 = vadd.f32 0.0, %v1312
      %v1314 = vpop.f32.mrf.mxu0
      %v1315 = vpop.f32.mrf.mxu0
      %v1316 = vadd.f32 0.0, %v1315
      %v1317 = vpop.f32.mrf.mxu0
      %1318 = vmatprep.mubr.bf16.mxu0 0
      %1319 = vmatmul.mubr.bf16.gmra.mxu0 %v1264
      %v1320 = vpop.f32.mrf.mxu0
      %v1321 = vadd.f32 0.0, %v1320
      %v1322 = vpop.f32.mrf.mxu0
      %v1323 = vpop.f32.mrf.mxu0
      %v1324 = vadd.f32 0.0, %v1323
      %v1325 = vpop.f32.mrf.mxu0
      %1326 = vmatprep.mubr.bf16.mxu0 0
      %1327 = vmatmul.mubr.bf16.gmra.mxu0 %v1267
      %v1328 = vpop.f32.mrf.mxu0
      %v1329 = vadd.f32 0.0, %v1328
      %v1330 = vpop.f32.mrf.mxu0
      %v1331 = vpop.f32.mrf.mxu0
      %v1332 = vadd.f32 0.0, %v1331
      %v1333 = vpop.f32.mrf.mxu0
      %1334 = vmatprep.mubr.bf16.mxu0 0
      %1335 = vmatmul.mubr.bf16.gmra.mxu0 %v1270
      %v1336 = vpop.f32.mrf.mxu0
      %v1337 = vadd.f32 0.0, %v1336
      %v1338 = vpop.f32.mrf.mxu0
      %v1339 = vpop.f32.mrf.mxu0
      %v1340 = vadd.f32 0.0, %v1339
      %v1341 = vpop.f32.mrf.mxu0
      %1342 = vmatprep.mubr.bf16.mxu0 0
      %1343 = vmatmul.mubr.bf16.gmra.mxu0 %v1273
      %v1344 = vpop.f32.mrf.mxu0
      %v1345 = vadd.f32 0.0, %v1344
      %v1346 = vpop.f32.mrf.mxu0
      %v1347 = vpop.f32.mrf.mxu0
      %v1348 = vadd.f32 0.0, %v1347
      %v1349 = vpop.f32.mrf.mxu0
      %1350 = vdwg.mxu0
      %v1351 = vadd.f32 %v1198, %v1313
      %v1352 = vadd.f32 %v1199, %v1316
      %v1353 = vadd.f32 %v1200, %v1321
      %v1354 = vadd.f32 %v1201, %v1324
      %v1355 = vadd.f32 %v1202, %v1329
      %v1356 = vadd.f32 %v1203, %v1332
      %v1357 = vadd.f32 %v1204, %v1337
      %v1358 = vadd.f32 %v1205, %v1340
      %v1359 = vadd.f32 %v1206, %v1345
      %v1360 = vadd.f32 %v1207, %v1348
      %v1361 = vld [vmem:[%s347 + $0x30] sm:$0x7]
      %s1362 = scalar_lea.vmem %s373, 28
      %v1363 = vld [vmem:[%s1362] sm:$0xf]
      %v1365 = vunpack.c.l.b16 %v1361
      %v1366 = vpack.c.b16 %v1365, %v1365
      %vm1367 = vsmask.f32 5376
      %v1369 = vshrl.u32 %v1243, 16
      %v1371 = vrot.slane %v1369, 2
      %v1372 = vshll.u32 %v1243, 16
      %v1374 = vrot.slane %v1372, 3
      %v1375 = vor.u32 %v1371, %v1374
      %v1377 = vshrl.u32 %v1244, 16
      %v1379 = vrot.slane %v1377, 2
      %v1380 = vshll.u32 %v1244, 16
      %v1382 = vrot.slane %v1380, 3
      %v1383 = vor.u32 %v1379, %v1382
      %v1384 = vsel %vm1367, %v1375, %v1383
      %v1386 = vshrl.u32 %v1245, 16
      %v1388 = vrot.slane %v1386, 2
      %v1389 = vshll.u32 %v1245, 16
      %v1391 = vrot.slane %v1389, 3
      %v1392 = vor.u32 %v1388, %v1391
      %v1393 = vsel %vm1367, %v1383, %v1392
      %v1395 = vshrl.u32 %v1246, 16
      %v1397 = vrot.slane %v1395, 2
      %v1398 = vshll.u32 %v1246, 16
      %v1400 = vrot.slane %v1398, 3
      %v1401 = vor.u32 %v1397, %v1400
      %v1402 = vsel %vm1367, %v1392, %v1401
      %v1404 = vshrl.u32 %v1247, 16
      %v1406 = vrot.slane %v1404, 2
      %v1407 = vshll.u32 %v1247, 16
      %v1409 = vrot.slane %v1407, 3
      %v1410 = vor.u32 %v1406, %v1409
      %v1411 = vsel %vm1367, %v1401, %v1410
      %v1413 = vshrl.u32 %v1366, 16
      %v1415 = vrot.slane %v1413, 2
      %v1416 = vshll.u32 %v1366, 16
      %v1418 = vrot.slane %v1416, 3
      %v1419 = vor.u32 %v1415, %v1418
      %v1420 = vsel %vm1367, %v1410, %v1419
      %v1422 = vsel %vm477, %v1384, 0
      %v1425 = vsel %vm477, %v1393, 0
      %v1428 = vsel %vm477, %v1402, 0
      %v1431 = vsel %vm477, %v1411, 0
      %v1434 = vsel %vm477, %v1420, 0
      %v1437 = vsel %vm493, %v1363, 0
      %1439 = vmatprep.subr.bf16.mxu0 0
      %1440 = vmatpush1.bf16.msra.mxu0 0
      %1441 = vmatprep.subr.bf16.mxu0 0
      %1442 = vmatpush1.bf16.msra.mxu0 0
      %1443 = vmatprep.subr.bf16.mxu0 0
      %1444 = vmatpush1.bf16.msra.mxu0 0
      %1445 = vmatprep.subr.bf16.mxu0 0
      %1446 = vmatpush1.bf16.msra.mxu0 0
      %1447 = vmatprep.subr.bf16.mxu0 0
      %1448 = vmatpush1.bf16.msra.mxu0 0
      %1449 = vmatprep.subr.bf16.mxu0 0
      %1450 = vmatpush1.bf16.msra.mxu0 0
      %1451 = vmatprep.subr.bf16.mxu0 0
      %1452 = vmatpush1.bf16.msra.mxu0 0
      %1453 = vmatprep.subr.bf16.mxu0 0
      %1454 = vmatpush1.bf16.msra.mxu0 %v1437
      %1455 = vmatprep.subr.bf16.mxu0 0
      %1456 = vmatpush2.bf16.msra.mxu0 0
      %1457 = vmatprep.subr.bf16.mxu0 0
      %1458 = vmatpush2.bf16.msra.mxu0 0
      %1459 = vmatprep.subr.bf16.mxu0 0
      %1460 = vmatpush2.bf16.msra.mxu0 0
      %1461 = vmatprep.subr.bf16.mxu0 0
      %1462 = vmatpush2.bf16.msra.mxu0 0
      %1463 = vmatprep.subr.bf16.mxu0 0
      %1464 = vmatpush2.bf16.msra.mxu0 0
      %1465 = vmatprep.subr.bf16.mxu0 0
      %1466 = vmatpush2.bf16.msra.mxu0 0
      %1467 = vmatprep.subr.bf16.mxu0 0
      %1468 = vmatpush2.bf16.msra.mxu0 0
      %1469 = vmatprep.subr.bf16.mxu0 0
      %1470 = vmatpush2.bf16.msra.mxu0 0
      %1471 = vmatprep.mubr.bf16.mxu0 0
      %1472 = vmatmul.mubr.bf16.gmra.mxu0 %v1422
      %v1473 = vpop.f32.mrf.mxu0
      %v1474 = vadd.f32 0.0, %v1473
      %v1475 = vpop.f32.mrf.mxu0
      %v1476 = vpop.f32.mrf.mxu0
      %v1477 = vadd.f32 0.0, %v1476
      %v1478 = vpop.f32.mrf.mxu0
      %1479 = vmatprep.mubr.bf16.mxu0 0
      %1480 = vmatmul.mubr.bf16.gmra.mxu0 %v1425
      %v1481 = vpop.f32.mrf.mxu0
      %v1482 = vadd.f32 0.0, %v1481
      %v1483 = vpop.f32.mrf.mxu0
      %v1484 = vpop.f32.mrf.mxu0
      %v1485 = vadd.f32 0.0, %v1484
      %v1486 = vpop.f32.mrf.mxu0
      %1487 = vmatprep.mubr.bf16.mxu0 0
      %1488 = vmatmul.mubr.bf16.gmra.mxu0 %v1428
      %v1489 = vpop.f32.mrf.mxu0
      %v1490 = vadd.f32 0.0, %v1489
      %v1491 = vpop.f32.mrf.mxu0
      %v1492 = vpop.f32.mrf.mxu0
      %v1493 = vadd.f32 0.0, %v1492
      %v1494 = vpop.f32.mrf.mxu0
      %1495 = vmatprep.mubr.bf16.mxu0 0
      %1496 = vmatmul.mubr.bf16.gmra.mxu0 %v1431
      %v1497 = vpop.f32.mrf.mxu0
      %v1498 = vadd.f32 0.0, %v1497
      %v1499 = vpop.f32.mrf.mxu0
      %v1500 = vpop.f32.mrf.mxu0
      %v1501 = vadd.f32 0.0, %v1500
      %v1502 = vpop.f32.mrf.mxu0
      %1503 = vmatprep.mubr.bf16.mxu0 0
      %1504 = vmatmul.mubr.bf16.gmra.mxu0 %v1434
      %v1505 = vpop.f32.mrf.mxu0
      %v1506 = vadd.f32 0.0, %v1505
      %v1507 = vpop.f32.mrf.mxu0
      %v1508 = vpop.f32.mrf.mxu0
      %v1509 = vadd.f32 0.0, %v1508
      %v1510 = vpop.f32.mrf.mxu0
      %1511 = vdwg.mxu0
      %v1512 = vadd.f32 %v1351, %v1474
      %v1513 = vadd.f32 %v1352, %v1477
      %v1514 = vadd.f32 %v1353, %v1482
      %v1515 = vadd.f32 %v1354, %v1485
      %v1516 = vadd.f32 %v1355, %v1490
      %v1517 = vadd.f32 %v1356, %v1493
      %v1518 = vadd.f32 %v1357, %v1498
      %v1519 = vadd.f32 %v1358, %v1501
      %v1520 = vadd.f32 %v1359, %v1506
      %v1521 = vadd.f32 %v1360, %v1509
      %v1522 = vld [vmem:[%s347 + $0x8] sm:$0x8]
      %s1523 = scalar_lea.vmem %s373, 32
      %v1524 = vld [vmem:[%s1523] sm:$0xf]
      %v1526 = vunpack.c.l.b16 %v1522
      %v1527 = vpack.c.b16 %v1233, %v1526
      %vm1528 = vcmask 1044480
      %v1529 = vrot.slane %v1527, 3
      %v1530 = vrot.slane %v1244, 3
      %v1531 = vsel %vm1528, %v1529, %v1530
      %v1532 = vrot.slane %v1245, 3
      %v1533 = vsel %vm1528, %v1530, %v1532
      %v1534 = vrot.slane %v1246, 3
      %v1535 = vsel %vm1528, %v1532, %v1534
      %v1536 = vrot.slane %v1247, 3
      %v1537 = vsel %vm1528, %v1534, %v1536
      %v1538 = vrot.slane %v1366, 3
      %v1539 = vsel %vm1528, %v1536, %v1538
      %v1541 = vsel %vm477, %v1531, 0
      %v1544 = vsel %vm477, %v1533, 0
      %v1547 = vsel %vm477, %v1535, 0
      %v1550 = vsel %vm477, %v1537, 0
      %v1553 = vsel %vm477, %v1539, 0
      %v1556 = vsel %vm493, %v1524, 0
      %1558 = vmatprep.subr.bf16.mxu0 0
      %1559 = vmatpush1.bf16.msra.mxu0 0
      %1560 = vmatprep.subr.bf16.mxu0 0
      %1561 = vmatpush1.bf16.msra.mxu0 0
      %1562 = vmatprep.subr.bf16.mxu0 0
      %1563 = vmatpush1.bf16.msra.mxu0 0
      %1564 = vmatprep.subr.bf16.mxu0 0
      %1565 = vmatpush1.bf16.msra.mxu0 0
      %1566 = vmatprep.subr.bf16.mxu0 0
      %1567 = vmatpush1.bf16.msra.mxu0 0
      %1568 = vmatprep.subr.bf16.mxu0 0
      %1569 = vmatpush1.bf16.msra.mxu0 0
      %1570 = vmatprep.subr.bf16.mxu0 0
      %1571 = vmatpush1.bf16.msra.mxu0 0
      %1572 = vmatprep.subr.bf16.mxu0 0
      %1573 = vmatpush1.bf16.msra.mxu0 %v1556
      %1574 = vmatprep.subr.bf16.mxu0 0
      %1575 = vmatpush2.bf16.msra.mxu0 0
      %1576 = vmatprep.subr.bf16.mxu0 0
      %1577 = vmatpush2.bf16.msra.mxu0 0
      %1578 = vmatprep.subr.bf16.mxu0 0
      %1579 = vmatpush2.bf16.msra.mxu0 0
      %1580 = vmatprep.subr.bf16.mxu0 0
      %1581 = vmatpush2.bf16.msra.mxu0 0
      %1582 = vmatprep.subr.bf16.mxu0 0
      %1583 = vmatpush2.bf16.msra.mxu0 0
      %1584 = vmatprep.subr.bf16.mxu0 0
      %1585 = vmatpush2.bf16.msra.mxu0 0
      %1586 = vmatprep.subr.bf16.mxu0 0
      %1587 = vmatpush2.bf16.msra.mxu0 0
      %1588 = vmatprep.subr.bf16.mxu0 0
      %1589 = vmatpush2.bf16.msra.mxu0 0
      %1590 = vmatprep.mubr.bf16.mxu0 0
      %1591 = vmatmul.mubr.bf16.gmra.mxu0 %v1541
      %v1592 = vpop.f32.mrf.mxu0
      %v1593 = vadd.f32 0.0, %v1592
      %v1594 = vpop.f32.mrf.mxu0
      %v1595 = vpop.f32.mrf.mxu0
      %v1596 = vadd.f32 0.0, %v1595
      %v1597 = vpop.f32.mrf.mxu0
      %1598 = vmatprep.mubr.bf16.mxu0 0
      %1599 = vmatmul.mubr.bf16.gmra.mxu0 %v1544
      %v1600 = vpop.f32.mrf.mxu0
      %v1601 = vadd.f32 0.0, %v1600
      %v1602 = vpop.f32.mrf.mxu0
      %v1603 = vpop.f32.mrf.mxu0
      %v1604 = vadd.f32 0.0, %v1603
      %v1605 = vpop.f32.mrf.mxu0
      %1606 = vmatprep.mubr.bf16.mxu0 0
      %1607 = vmatmul.mubr.bf16.gmra.mxu0 %v1547
      %v1608 = vpop.f32.mrf.mxu0
      %v1609 = vadd.f32 0.0, %v1608
      %v1610 = vpop.f32.mrf.mxu0
      %v1611 = vpop.f32.mrf.mxu0
      %v1612 = vadd.f32 0.0, %v1611
      %v1613 = vpop.f32.mrf.mxu0
      %1614 = vmatprep.mubr.bf16.mxu0 0
      %1615 = vmatmul.mubr.bf16.gmra.mxu0 %v1550
      %v1616 = vpop.f32.mrf.mxu0
      %v1617 = vadd.f32 0.0, %v1616
      %v1618 = vpop.f32.mrf.mxu0
      %v1619 = vpop.f32.mrf.mxu0
      %v1620 = vadd.f32 0.0, %v1619
      %v1621 = vpop.f32.mrf.mxu0
      %1622 = vmatprep.mubr.bf16.mxu0 0
      %1623 = vmatmul.mubr.bf16.gmra.mxu0 %v1553
      %v1624 = vpop.f32.mrf.mxu0
      %v1625 = vadd.f32 0.0, %v1624
      %v1626 = vpop.f32.mrf.mxu0
      %v1627 = vpop.f32.mrf.mxu0
      %v1628 = vadd.f32 0.0, %v1627
      %v1629 = vpop.f32.mrf.mxu0
      %1630 = vdwg.mxu0
      %v1631 = vadd.f32 %v1512, %v1593
      %v1632 = vadd.f32 %v1513, %v1596
      %v1633 = vadd.f32 %v1514, %v1601
      %v1634 = vadd.f32 %v1515, %v1604
      %v1635 = vadd.f32 %v1516, %v1609
      %v1636 = vadd.f32 %v1517, %v1612
      %v1637 = vadd.f32 %v1518, %v1617
      %v1638 = vadd.f32 %v1519, %v1620
      %v1639 = vadd.f32 %v1520, %v1625
      %v1640 = vadd.f32 %v1521, %v1628
      %v1641 = vld [vmem:[%s357] sm:$0xf]
      %v1642 = vld [vmem:[%s357 + $0x4] sm:$0xf]
      %v1643 = vld [vmem:[%s357 + $0x8] sm:$0xf]
      %v1644 = vld [vmem:[%s357 + $0xc] sm:$0xf]
      %v1645 = vld [vmem:[%s357 + $0x10] sm:$0xf]
      %v1646 = vld [vmem:[%s357 + $0x14] sm:$0xf]
      %v1647 = vld [vmem:[%s357 + $0x18] sm:$0xf]
      %v1648 = vld [vmem:[%s357 + $0x1c] sm:$0xf]
      %v1649 = vld [vmem:[%s357 + $0x20] sm:$0xf]
      %v1650 = vld [vmem:[%s357 + $0x24] sm:$0xf]
      %s1651 = scalar_lea.vmem %s373, 36
      %v1652 = vld [vmem:[%s1651] sm:$0xf]
      %v1663 = vunpack.c.l.b16 %v1641
      %v1664 = vunpack.c.l.b16 %v1642
      %v1665 = vunpack.c.l.b16 %v1643
      %v1666 = vunpack.c.l.b16 %v1644
      %v1667 = vunpack.c.l.b16 %v1645
      %v1668 = vunpack.c.l.b16 %v1646
      %v1669 = vunpack.c.l.b16 %v1647
      %v1670 = vunpack.c.l.b16 %v1648
      %v1671 = vunpack.c.l.b16 %v1649
      %v1672 = vunpack.c.l.b16 %v1650
      %v1673 = vpack.c.b16 %v1664, %v1663
      %v1674 = vpack.c.b16 %v1666, %v1665
      %v1675 = vpack.c.b16 %v1668, %v1667
      %v1676 = vpack.c.b16 %v1670, %v1669
      %v1677 = vpack.c.b16 %v1672, %v1671
      %v1679 = vsel %vm477, %v1673, 0
      %v1682 = vsel %vm477, %v1674, 0
      %v1685 = vsel %vm477, %v1675, 0
      %v1688 = vsel %vm477, %v1676, 0
      %v1691 = vsel %vm477, %v1677, 0
      %v1694 = vsel %vm493, %v1652, 0
      %1696 = vmatprep.subr.bf16.mxu0 0
      %1697 = vmatpush1.bf16.msra.mxu0 0
      %1698 = vmatprep.subr.bf16.mxu0 0
      %1699 = vmatpush1.bf16.msra.mxu0 0
      %1700 = vmatprep.subr.bf16.mxu0 0
      %1701 = vmatpush1.bf16.msra.mxu0 0
      %1702 = vmatprep.subr.bf16.mxu0 0
      %1703 = vmatpush1.bf16.msra.mxu0 0
      %1704 = vmatprep.subr.bf16.mxu0 0
      %1705 = vmatpush1.bf16.msra.mxu0 0
      %1706 = vmatprep.subr.bf16.mxu0 0
      %1707 = vmatpush1.bf16.msra.mxu0 0
      %1708 = vmatprep.subr.bf16.mxu0 0
      %1709 = vmatpush1.bf16.msra.mxu0 0
      %1710 = vmatprep.subr.bf16.mxu0 0
      %1711 = vmatpush1.bf16.msra.mxu0 %v1694
      %1712 = vmatprep.subr.bf16.mxu0 0
      %1713 = vmatpush2.bf16.msra.mxu0 0
      %1714 = vmatprep.subr.bf16.mxu0 0
      %1715 = vmatpush2.bf16.msra.mxu0 0
      %1716 = vmatprep.subr.bf16.mxu0 0
      %1717 = vmatpush2.bf16.msra.mxu0 0
      %1718 = vmatprep.subr.bf16.mxu0 0
      %1719 = vmatpush2.bf16.msra.mxu0 0
      %1720 = vmatprep.subr.bf16.mxu0 0
      %1721 = vmatpush2.bf16.msra.mxu0 0
      %1722 = vmatprep.subr.bf16.mxu0 0
      %1723 = vmatpush2.bf16.msra.mxu0 0
      %1724 = vmatprep.subr.bf16.mxu0 0
      %1725 = vmatpush2.bf16.msra.mxu0 0
      %1726 = vmatprep.subr.bf16.mxu0 0
      %1727 = vmatpush2.bf16.msra.mxu0 0
      %1728 = vmatprep.mubr.bf16.mxu0 0
      %1729 = vmatmul.mubr.bf16.gmra.mxu0 %v1679
      %v1730 = vpop.f32.mrf.mxu0
      %v1731 = vadd.f32 0.0, %v1730
      %v1732 = vpop.f32.mrf.mxu0
      %v1733 = vpop.f32.mrf.mxu0
      %v1734 = vadd.f32 0.0, %v1733
      %v1735 = vpop.f32.mrf.mxu0
      %1736 = vmatprep.mubr.bf16.mxu0 0
      %1737 = vmatmul.mubr.bf16.gmra.mxu0 %v1682
      %v1738 = vpop.f32.mrf.mxu0
      %v1739 = vadd.f32 0.0, %v1738
      %v1740 = vpop.f32.mrf.mxu0
      %v1741 = vpop.f32.mrf.mxu0
      %v1742 = vadd.f32 0.0, %v1741
      %v1743 = vpop.f32.mrf.mxu0
      %1744 = vmatprep.mubr.bf16.mxu0 0
      %1745 = vmatmul.mubr.bf16.gmra.mxu0 %v1685
      %v1746 = vpop.f32.mrf.mxu0
      %v1747 = vadd.f32 0.0, %v1746
      %v1748 = vpop.f32.mrf.mxu0
      %v1749 = vpop.f32.mrf.mxu0
      %v1750 = vadd.f32 0.0, %v1749
      %v1751 = vpop.f32.mrf.mxu0
      %1752 = vmatprep.mubr.bf16.mxu0 0
      %1753 = vmatmul.mubr.bf16.gmra.mxu0 %v1688
      %v1754 = vpop.f32.mrf.mxu0
      %v1755 = vadd.f32 0.0, %v1754
      %v1756 = vpop.f32.mrf.mxu0
      %v1757 = vpop.f32.mrf.mxu0
      %v1758 = vadd.f32 0.0, %v1757
      %v1759 = vpop.f32.mrf.mxu0
      %1760 = vmatprep.mubr.bf16.mxu0 0
      %1761 = vmatmul.mubr.bf16.gmra.mxu0 %v1691
      %v1762 = vpop.f32.mrf.mxu0
      %v1763 = vadd.f32 0.0, %v1762
      %v1764 = vpop.f32.mrf.mxu0
      %v1765 = vpop.f32.mrf.mxu0
      %v1766 = vadd.f32 0.0, %v1765
      %v1767 = vpop.f32.mrf.mxu0
      %1768 = vdwg.mxu0
      %v1769 = vadd.f32 %v1631, %v1731
      %v1770 = vadd.f32 %v1632, %v1734
      %v1771 = vadd.f32 %v1633, %v1739
      %v1772 = vadd.f32 %v1634, %v1742
      %v1773 = vadd.f32 %v1635, %v1747
      %v1774 = vadd.f32 %v1636, %v1750
      %v1775 = vadd.f32 %v1637, %v1755
      %v1776 = vadd.f32 %v1638, %v1758
      %v1777 = vadd.f32 %v1639, %v1763
      %v1778 = vadd.f32 %v1640, %v1766
      %v1779 = vld [vmem:[%s357] sm:$0xf]
      %v1780 = vld [vmem:[%s357 + $0x4] sm:$0xf]
      %v1781 = vld [vmem:[%s357 + $0x8] sm:$0xf]
      %v1782 = vld [vmem:[%s357 + $0xc] sm:$0xf]
      %v1783 = vld [vmem:[%s357 + $0x10] sm:$0xf]
      %v1784 = vld [vmem:[%s357 + $0x14] sm:$0xf]
      %v1785 = vld [vmem:[%s357 + $0x18] sm:$0xf]
      %v1786 = vld [vmem:[%s357 + $0x1c] sm:$0xf]
      %v1787 = vld [vmem:[%s357 + $0x20] sm:$0xf]
      %v1788 = vld [vmem:[%s357 + $0x24] sm:$0xf]
      %v1789 = vld [vmem:[%s357 + $0x28] sm:$0x1]
      %s1790 = scalar_lea.vmem %s373, 40
      %v1791 = vld [vmem:[%s1790] sm:$0xf]
      %v1803 = vunpack.c.l.b16 %v1779
      %v1804 = vunpack.c.l.b16 %v1780
      %v1805 = vunpack.c.l.b16 %v1781
      %v1806 = vunpack.c.l.b16 %v1782
      %v1807 = vunpack.c.l.b16 %v1783
      %v1808 = vunpack.c.l.b16 %v1784
      %v1809 = vunpack.c.l.b16 %v1785
      %v1810 = vunpack.c.l.b16 %v1786
      %v1811 = vunpack.c.l.b16 %v1787
      %v1812 = vunpack.c.l.b16 %v1788
      %v1813 = vunpack.c.l.b16 %v1789
      %v1814 = vpack.c.b16 %v1804, %v1803
      %v1815 = vpack.c.b16 %v1806, %v1805
      %v1816 = vpack.c.b16 %v1808, %v1807
      %v1817 = vpack.c.b16 %v1810, %v1809
      %v1818 = vpack.c.b16 %v1812, %v1811
      %v1819 = vpack.c.b16 %v1813, %v1813
      %v1821 = vshrl.u32 %v1814, 16
      %v1823 = vshll.u32 %v1814, 16
      %v1825 = vrot.slane %v1823, 1
      %v1826 = vor.u32 %v1821, %v1825
      %v1828 = vshll.u32 %v1815, 16
      %v1830 = vrot.slane %v1828, 1
      %v1831 = vsel %vm432, %v1826, %v1830
      %v1832 = vshrl.u32 %v1815, 16
      %v1834 = vor.u32 %v1832, %v1830
      %v1836 = vshll.u32 %v1816, 16
      %v1838 = vrot.slane %v1836, 1
      %v1839 = vsel %vm432, %v1834, %v1838
      %v1840 = vshrl.u32 %v1816, 16
      %v1842 = vor.u32 %v1840, %v1838
      %v1844 = vshll.u32 %v1817, 16
      %v1846 = vrot.slane %v1844, 1
      %v1847 = vsel %vm432, %v1842, %v1846
      %v1848 = vshrl.u32 %v1817, 16
      %v1850 = vor.u32 %v1848, %v1846
      %v1852 = vshll.u32 %v1818, 16
      %v1854 = vrot.slane %v1852, 1
      %v1855 = vsel %vm432, %v1850, %v1854
      %v1856 = vshrl.u32 %v1818, 16
      %v1858 = vor.u32 %v1856, %v1854
      %v1860 = vshll.u32 %v1819, 16
      %v1862 = vrot.slane %v1860, 1
      %v1863 = vsel %vm432, %v1858, %v1862
      %v1865 = vsel %vm477, %v1831, 0
      %v1868 = vsel %vm477, %v1839, 0
      %v1871 = vsel %vm477, %v1847, 0
      %v1874 = vsel %vm477, %v1855, 0
      %v1877 = vsel %vm477, %v1863, 0
      %v1880 = vsel %vm493, %v1791, 0
      %1882 = vmatprep.subr.bf16.mxu0 0
      %1883 = vmatpush1.bf16.msra.mxu0 0
      %1884 = vmatprep.subr.bf16.mxu0 0
      %1885 = vmatpush1.bf16.msra.mxu0 0
      %1886 = vmatprep.subr.bf16.mxu0 0
      %1887 = vmatpush1.bf16.msra.mxu0 0
      %1888 = vmatprep.subr.bf16.mxu0 0
      %1889 = vmatpush1.bf16.msra.mxu0 0
      %1890 = vmatprep.subr.bf16.mxu0 0
      %1891 = vmatpush1.bf16.msra.mxu0 0
      %1892 = vmatprep.subr.bf16.mxu0 0
      %1893 = vmatpush1.bf16.msra.mxu0 0
      %1894 = vmatprep.subr.bf16.mxu0 0
      %1895 = vmatpush1.bf16.msra.mxu0 0
      %1896 = vmatprep.subr.bf16.mxu0 0
      %1897 = vmatpush1.bf16.msra.mxu0 %v1880
      %1898 = vmatprep.subr.bf16.mxu0 0
      %1899 = vmatpush2.bf16.msra.mxu0 0
      %1900 = vmatprep.subr.bf16.mxu0 0
      %1901 = vmatpush2.bf16.msra.mxu0 0
      %1902 = vmatprep.subr.bf16.mxu0 0
      %1903 = vmatpush2.bf16.msra.mxu0 0
      %1904 = vmatprep.subr.bf16.mxu0 0
      %1905 = vmatpush2.bf16.msra.mxu0 0
      %1906 = vmatprep.subr.bf16.mxu0 0
      %1907 = vmatpush2.bf16.msra.mxu0 0
      %1908 = vmatprep.subr.bf16.mxu0 0
      %1909 = vmatpush2.bf16.msra.mxu0 0
      %1910 = vmatprep.subr.bf16.mxu0 0
      %1911 = vmatpush2.bf16.msra.mxu0 0
      %1912 = vmatprep.subr.bf16.mxu0 0
      %1913 = vmatpush2.bf16.msra.mxu0 0
      %1914 = vmatprep.mubr.bf16.mxu0 0
      %1915 = vmatmul.mubr.bf16.gmra.mxu0 %v1865
      %v1916 = vpop.f32.mrf.mxu0
      %v1917 = vadd.f32 0.0, %v1916
      %v1918 = vpop.f32.mrf.mxu0
      %v1919 = vpop.f32.mrf.mxu0
      %v1920 = vadd.f32 0.0, %v1919
      %v1921 = vpop.f32.mrf.mxu0
      %1922 = vmatprep.mubr.bf16.mxu0 0
      %1923 = vmatmul.mubr.bf16.gmra.mxu0 %v1868
      %v1924 = vpop.f32.mrf.mxu0
      %v1925 = vadd.f32 0.0, %v1924
      %v1926 = vpop.f32.mrf.mxu0
      %v1927 = vpop.f32.mrf.mxu0
      %v1928 = vadd.f32 0.0, %v1927
      %v1929 = vpop.f32.mrf.mxu0
      %1930 = vmatprep.mubr.bf16.mxu0 0
      %1931 = vmatmul.mubr.bf16.gmra.mxu0 %v1871
      %v1932 = vpop.f32.mrf.mxu0
      %v1933 = vadd.f32 0.0, %v1932
      %v1934 = vpop.f32.mrf.mxu0
      %v1935 = vpop.f32.mrf.mxu0
      %v1936 = vadd.f32 0.0, %v1935
      %v1937 = vpop.f32.mrf.mxu0
      %1938 = vmatprep.mubr.bf16.mxu0 0
      %1939 = vmatmul.mubr.bf16.gmra.mxu0 %v1874
      %v1940 = vpop.f32.mrf.mxu0
      %v1941 = vadd.f32 0.0, %v1940
      %v1942 = vpop.f32.mrf.mxu0
      %v1943 = vpop.f32.mrf.mxu0
      %v1944 = vadd.f32 0.0, %v1943
      %v1945 = vpop.f32.mrf.mxu0
      %1946 = vmatprep.mubr.bf16.mxu0 0
      %1947 = vmatmul.mubr.bf16.gmra.mxu0 %v1877
      %v1948 = vpop.f32.mrf.mxu0
      %v1949 = vadd.f32 0.0, %v1948
      %v1950 = vpop.f32.mrf.mxu0
      %v1951 = vpop.f32.mrf.mxu0
      %v1952 = vadd.f32 0.0, %v1951
      %v1953 = vpop.f32.mrf.mxu0
      %1954 = vdwg.mxu0
      %v1955 = vadd.f32 %v1769, %v1917
      %v1956 = vadd.f32 %v1770, %v1920
      %v1957 = vadd.f32 %v1771, %v1925
      %v1958 = vadd.f32 %v1772, %v1928
      %v1959 = vadd.f32 %v1773, %v1933
      %v1960 = vadd.f32 %v1774, %v1936
      %v1961 = vadd.f32 %v1775, %v1941
      %v1962 = vadd.f32 %v1776, %v1944
      %v1963 = vadd.f32 %v1777, %v1949
      %v1964 = vadd.f32 %v1778, %v1952
      %v1965 = vld [vmem:[%s357] sm:$0xe]
      %s1966 = scalar_lea.vmem %s373, 44
      %v1967 = vld [vmem:[%s1966] sm:$0xf]
      %v1969 = vunpack.c.l.b16 %v1965
      %v1970 = vpack.c.b16 %v1804, %v1969
      %v1971 = vrot.slane %v1970, 1
      %v1972 = vrot.slane %v1815, 1
      %v1973 = vsel %vm662, %v1971, %v1972
      %v1974 = vrot.slane %v1816, 1
      %v1975 = vsel %vm662, %v1972, %v1974
      %v1976 = vrot.slane %v1817, 1
      %v1977 = vsel %vm662, %v1974, %v1976
      %v1978 = vrot.slane %v1818, 1
      %v1979 = vsel %vm662, %v1976, %v1978
      %v1980 = vrot.slane %v1819, 1
      %v1981 = vsel %vm662, %v1978, %v1980
      %v1983 = vsel %vm477, %v1973, 0
      %v1986 = vsel %vm477, %v1975, 0
      %v1989 = vsel %vm477, %v1977, 0
      %v1992 = vsel %vm477, %v1979, 0
      %v1995 = vsel %vm477, %v1981, 0
      %v1998 = vsel %vm493, %v1967, 0
      %2000 = vmatprep.subr.bf16.mxu0 0
      %2001 = vmatpush1.bf16.msra.mxu0 0
      %2002 = vmatprep.subr.bf16.mxu0 0
      %2003 = vmatpush1.bf16.msra.mxu0 0
      %2004 = vmatprep.subr.bf16.mxu0 0
      %2005 = vmatpush1.bf16.msra.mxu0 0
      %2006 = vmatprep.subr.bf16.mxu0 0
      %2007 = vmatpush1.bf16.msra.mxu0 0
      %2008 = vmatprep.subr.bf16.mxu0 0
      %2009 = vmatpush1.bf16.msra.mxu0 0
      %2010 = vmatprep.subr.bf16.mxu0 0
      %2011 = vmatpush1.bf16.msra.mxu0 0
      %2012 = vmatprep.subr.bf16.mxu0 0
      %2013 = vmatpush1.bf16.msra.mxu0 0
      %2014 = vmatprep.subr.bf16.mxu0 0
      %2015 = vmatpush1.bf16.msra.mxu0 %v1998
      %2016 = vmatprep.subr.bf16.mxu0 0
      %2017 = vmatpush2.bf16.msra.mxu0 0
      %2018 = vmatprep.subr.bf16.mxu0 0
      %2019 = vmatpush2.bf16.msra.mxu0 0
      %2020 = vmatprep.subr.bf16.mxu0 0
      %2021 = vmatpush2.bf16.msra.mxu0 0
      %2022 = vmatprep.subr.bf16.mxu0 0
      %2023 = vmatpush2.bf16.msra.mxu0 0
      %2024 = vmatprep.subr.bf16.mxu0 0
      %2025 = vmatpush2.bf16.msra.mxu0 0
      %2026 = vmatprep.subr.bf16.mxu0 0
      %2027 = vmatpush2.bf16.msra.mxu0 0
      %2028 = vmatprep.subr.bf16.mxu0 0
      %2029 = vmatpush2.bf16.msra.mxu0 0
      %2030 = vmatprep.subr.bf16.mxu0 0
      %2031 = vmatpush2.bf16.msra.mxu0 0
      %2032 = vmatprep.mubr.bf16.mxu0 0
      %2033 = vmatmul.mubr.bf16.gmra.mxu0 %v1983
      %v2034 = vpop.f32.mrf.mxu0
      %v2035 = vadd.f32 0.0, %v2034
      %v2036 = vpop.f32.mrf.mxu0
      %v2037 = vpop.f32.mrf.mxu0
      %v2038 = vadd.f32 0.0, %v2037
      %v2039 = vpop.f32.mrf.mxu0
      %2040 = vmatprep.mubr.bf16.mxu0 0
      %2041 = vmatmul.mubr.bf16.gmra.mxu0 %v1986
      %v2042 = vpop.f32.mrf.mxu0
      %v2043 = vadd.f32 0.0, %v2042
      %v2044 = vpop.f32.mrf.mxu0
      %v2045 = vpop.f32.mrf.mxu0
      %v2046 = vadd.f32 0.0, %v2045
      %v2047 = vpop.f32.mrf.mxu0
      %2048 = vmatprep.mubr.bf16.mxu0 0
      %2049 = vmatmul.mubr.bf16.gmra.mxu0 %v1989
      %v2050 = vpop.f32.mrf.mxu0
      %v2051 = vadd.f32 0.0, %v2050
      %v2052 = vpop.f32.mrf.mxu0
      %v2053 = vpop.f32.mrf.mxu0
      %v2054 = vadd.f32 0.0, %v2053
      %v2055 = vpop.f32.mrf.mxu0
      %2056 = vmatprep.mubr.bf16.mxu0 0
      %2057 = vmatmul.mubr.bf16.gmra.mxu0 %v1992
      %v2058 = vpop.f32.mrf.mxu0
      %v2059 = vadd.f32 0.0, %v2058
      %v2060 = vpop.f32.mrf.mxu0
      %v2061 = vpop.f32.mrf.mxu0
      %v2062 = vadd.f32 0.0, %v2061
      %v2063 = vpop.f32.mrf.mxu0
      %2064 = vmatprep.mubr.bf16.mxu0 0
      %2065 = vmatmul.mubr.bf16.gmra.mxu0 %v1995
      %v2066 = vpop.f32.mrf.mxu0
      %v2067 = vadd.f32 0.0, %v2066
      %v2068 = vpop.f32.mrf.mxu0
      %v2069 = vpop.f32.mrf.mxu0
      %v2070 = vadd.f32 0.0, %v2069
      %v2071 = vpop.f32.mrf.mxu0
      %2072 = vdwg.mxu0
      %v2073 = vadd.f32 %v1955, %v2035
      %v2074 = vadd.f32 %v1956, %v2038
      %v2075 = vadd.f32 %v1957, %v2043
      %v2076 = vadd.f32 %v1958, %v2046
      %v2077 = vadd.f32 %v1959, %v2051
      %v2078 = vadd.f32 %v1960, %v2054
      %v2079 = vadd.f32 %v1961, %v2059
      %v2080 = vadd.f32 %v1962, %v2062
      %v2081 = vadd.f32 %v1963, %v2067
      %v2082 = vadd.f32 %v1964, %v2070
      %v2083 = vld [vmem:[%s357 + $0x4] sm:$0xe]
      %v2084 = vld [vmem:[%s357 + $0x8] sm:$0xf]
      %v2085 = vld [vmem:[%s357 + $0xc] sm:$0xf]
      %v2086 = vld [vmem:[%s357 + $0x10] sm:$0xf]
      %v2087 = vld [vmem:[%s357 + $0x14] sm:$0xf]
      %v2088 = vld [vmem:[%s357 + $0x18] sm:$0xf]
      %v2089 = vld [vmem:[%s357 + $0x1c] sm:$0xf]
      %v2090 = vld [vmem:[%s357 + $0x20] sm:$0xf]
      %v2091 = vld [vmem:[%s357 + $0x24] sm:$0xf]
      %v2092 = vld [vmem:[%s357 + $0x28] sm:$0xf]
      %v2093 = vld [vmem:[%s357 + $0x2c] sm:$0x1]
      %s2094 = scalar_lea.vmem %s373, 48
      %v2095 = vld [vmem:[%s2094] sm:$0xf]
      %v2107 = vunpack.c.l.b16 %v2083
      %v2108 = vunpack.c.l.b16 %v2084
      %v2109 = vunpack.c.l.b16 %v2085
      %v2110 = vunpack.c.l.b16 %v2086
      %v2111 = vunpack.c.l.b16 %v2087
      %v2112 = vunpack.c.l.b16 %v2088
      %v2113 = vunpack.c.l.b16 %v2089
      %v2114 = vunpack.c.l.b16 %v2090
      %v2115 = vunpack.c.l.b16 %v2091
      %v2116 = vunpack.c.l.b16 %v2092
      %v2117 = vunpack.c.l.b16 %v2093
      %v2118 = vpack.c.b16 %v2108, %v2107
      %v2119 = vpack.c.b16 %v2110, %v2109
      %v2120 = vpack.c.b16 %v2112, %v2111
      %v2121 = vpack.c.b16 %v2114, %v2113
      %v2122 = vpack.c.b16 %v2116, %v2115
      %v2123 = vpack.c.b16 %v2117, %v2117
      %v2124 = vrot.slane %v2118, 1
      %v2125 = vrot.slane %v2119, 1
      %v2126 = vsel %vm662, %v2124, %v2125
      %v2127 = vrot.slane %v2120, 1
      %v2128 = vsel %vm662, %v2125, %v2127
      %v2129 = vrot.slane %v2121, 1
      %v2130 = vsel %vm662, %v2127, %v2129
      %v2131 = vrot.slane %v2122, 1
      %v2132 = vsel %vm662, %v2129, %v2131
      %v2133 = vrot.slane %v2123, 1
      %v2134 = vsel %vm662, %v2131, %v2133
      %v2136 = vsel %vm477, %v2126, 0
      %v2139 = vsel %vm477, %v2128, 0
      %v2142 = vsel %vm477, %v2130, 0
      %v2145 = vsel %vm477, %v2132, 0
      %v2148 = vsel %vm477, %v2134, 0
      %v2151 = vsel %vm493, %v2095, 0
      %2153 = vmatprep.subr.bf16.mxu0 0
      %2154 = vmatpush1.bf16.msra.mxu0 0
      %2155 = vmatprep.subr.bf16.mxu0 0
      %2156 = vmatpush1.bf16.msra.mxu0 0
      %2157 = vmatprep.subr.bf16.mxu0 0
      %2158 = vmatpush1.bf16.msra.mxu0 0
      %2159 = vmatprep.subr.bf16.mxu0 0
      %2160 = vmatpush1.bf16.msra.mxu0 0
      %2161 = vmatprep.subr.bf16.mxu0 0
      %2162 = vmatpush1.bf16.msra.mxu0 0
      %2163 = vmatprep.subr.bf16.mxu0 0
      %2164 = vmatpush1.bf16.msra.mxu0 0
      %2165 = vmatprep.subr.bf16.mxu0 0
      %2166 = vmatpush1.bf16.msra.mxu0 0
      %2167 = vmatprep.subr.bf16.mxu0 0
      %2168 = vmatpush1.bf16.msra.mxu0 %v2151
      %2169 = vmatprep.subr.bf16.mxu0 0
      %2170 = vmatpush2.bf16.msra.mxu0 0
      %2171 = vmatprep.subr.bf16.mxu0 0
      %2172 = vmatpush2.bf16.msra.mxu0 0
      %2173 = vmatprep.subr.bf16.mxu0 0
      %2174 = vmatpush2.bf16.msra.mxu0 0
      %2175 = vmatprep.subr.bf16.mxu0 0
      %2176 = vmatpush2.bf16.msra.mxu0 0
      %2177 = vmatprep.subr.bf16.mxu0 0
      %2178 = vmatpush2.bf16.msra.mxu0 0
      %2179 = vmatprep.subr.bf16.mxu0 0
      %2180 = vmatpush2.bf16.msra.mxu0 0
      %2181 = vmatprep.subr.bf16.mxu0 0
      %2182 = vmatpush2.bf16.msra.mxu0 0
      %2183 = vmatprep.subr.bf16.mxu0 0
      %2184 = vmatpush2.bf16.msra.mxu0 0
      %2185 = vmatprep.mubr.bf16.mxu0 0
      %2186 = vmatmul.mubr.bf16.gmra.mxu0 %v2136
      %v2187 = vpop.f32.mrf.mxu0
      %v2188 = vadd.f32 0.0, %v2187
      %v2189 = vpop.f32.mrf.mxu0
      %v2190 = vpop.f32.mrf.mxu0
      %v2191 = vadd.f32 0.0, %v2190
      %v2192 = vpop.f32.mrf.mxu0
      %2193 = vmatprep.mubr.bf16.mxu0 0
      %2194 = vmatmul.mubr.bf16.gmra.mxu0 %v2139
      %v2195 = vpop.f32.mrf.mxu0
      %v2196 = vadd.f32 0.0, %v2195
      %v2197 = vpop.f32.mrf.mxu0
      %v2198 = vpop.f32.mrf.mxu0
      %v2199 = vadd.f32 0.0, %v2198
      %v2200 = vpop.f32.mrf.mxu0
      %2201 = vmatprep.mubr.bf16.mxu0 0
      %2202 = vmatmul.mubr.bf16.gmra.mxu0 %v2142
      %v2203 = vpop.f32.mrf.mxu0
      %v2204 = vadd.f32 0.0, %v2203
      %v2205 = vpop.f32.mrf.mxu0
      %v2206 = vpop.f32.mrf.mxu0
      %v2207 = vadd.f32 0.0, %v2206
      %v2208 = vpop.f32.mrf.mxu0
      %2209 = vmatprep.mubr.bf16.mxu0 0
      %2210 = vmatmul.mubr.bf16.gmra.mxu0 %v2145
      %v2211 = vpop.f32.mrf.mxu0
      %v2212 = vadd.f32 0.0, %v2211
      %v2213 = vpop.f32.mrf.mxu0
      %v2214 = vpop.f32.mrf.mxu0
      %v2215 = vadd.f32 0.0, %v2214
      %v2216 = vpop.f32.mrf.mxu0
      %2217 = vmatprep.mubr.bf16.mxu0 0
      %2218 = vmatmul.mubr.bf16.gmra.mxu0 %v2148
      %v2219 = vpop.f32.mrf.mxu0
      %v2220 = vadd.f32 0.0, %v2219
      %v2221 = vpop.f32.mrf.mxu0
      %v2222 = vpop.f32.mrf.mxu0
      %v2223 = vadd.f32 0.0, %v2222
      %v2224 = vpop.f32.mrf.mxu0
      %2225 = vdwg.mxu0
      %v2226 = vadd.f32 %v2073, %v2188
      %v2227 = vadd.f32 %v2074, %v2191
      %v2228 = vadd.f32 %v2075, %v2196
      %v2229 = vadd.f32 %v2076, %v2199
      %v2230 = vadd.f32 %v2077, %v2204
      %v2231 = vadd.f32 %v2078, %v2207
      %v2232 = vadd.f32 %v2079, %v2212
      %v2233 = vadd.f32 %v2080, %v2215
      %v2234 = vadd.f32 %v2081, %v2220
      %v2235 = vadd.f32 %v2082, %v2223
      %v2236 = vld [vmem:[%s357 + $0x2c] sm:$0x3]
      %s2237 = scalar_lea.vmem %s373, 52
      %v2238 = vld [vmem:[%s2237] sm:$0xf]
      %v2240 = vunpack.c.l.b16 %v2236
      %v2241 = vpack.c.b16 %v2240, %v2240
      %v2243 = vshrl.u32 %v2118, 16
      %v2245 = vrot.slane %v2243, 1
      %v2246 = vshll.u32 %v2118, 16
      %v2248 = vrot.slane %v2246, 2
      %v2249 = vor.u32 %v2245, %v2248
      %v2251 = vshrl.u32 %v2119, 16
      %v2253 = vrot.slane %v2251, 1
      %v2254 = vshll.u32 %v2119, 16
      %v2256 = vrot.slane %v2254, 2
      %v2257 = vor.u32 %v2253, %v2256
      %v2258 = vsel %vm934, %v2249, %v2257
      %v2260 = vshrl.u32 %v2120, 16
      %v2262 = vrot.slane %v2260, 1
      %v2263 = vshll.u32 %v2120, 16
      %v2265 = vrot.slane %v2263, 2
      %v2266 = vor.u32 %v2262, %v2265
      %v2267 = vsel %vm934, %v2257, %v2266
      %v2269 = vshrl.u32 %v2121, 16
      %v2271 = vrot.slane %v2269, 1
      %v2272 = vshll.u32 %v2121, 16
      %v2274 = vrot.slane %v2272, 2
      %v2275 = vor.u32 %v2271, %v2274
      %v2276 = vsel %vm934, %v2266, %v2275
      %v2278 = vshrl.u32 %v2122, 16
      %v2280 = vrot.slane %v2278, 1
      %v2281 = vshll.u32 %v2122, 16
      %v2283 = vrot.slane %v2281, 2
      %v2284 = vor.u32 %v2280, %v2283
      %v2285 = vsel %vm934, %v2275, %v2284
      %v2287 = vshrl.u32 %v2241, 16
      %v2289 = vrot.slane %v2287, 1
      %v2290 = vshll.u32 %v2241, 16
      %v2292 = vrot.slane %v2290, 2
      %v2293 = vor.u32 %v2289, %v2292
      %v2294 = vsel %vm934, %v2284, %v2293
      %v2296 = vsel %vm477, %v2258, 0
      %v2299 = vsel %vm477, %v2267, 0
      %v2302 = vsel %vm477, %v2276, 0
      %v2305 = vsel %vm477, %v2285, 0
      %v2308 = vsel %vm477, %v2294, 0
      %v2311 = vsel %vm493, %v2238, 0
      %2313 = vmatprep.subr.bf16.mxu0 0
      %2314 = vmatpush1.bf16.msra.mxu0 0
      %2315 = vmatprep.subr.bf16.mxu0 0
      %2316 = vmatpush1.bf16.msra.mxu0 0
      %2317 = vmatprep.subr.bf16.mxu0 0
      %2318 = vmatpush1.bf16.msra.mxu0 0
      %2319 = vmatprep.subr.bf16.mxu0 0
      %2320 = vmatpush1.bf16.msra.mxu0 0
      %2321 = vmatprep.subr.bf16.mxu0 0
      %2322 = vmatpush1.bf16.msra.mxu0 0
      %2323 = vmatprep.subr.bf16.mxu0 0
      %2324 = vmatpush1.bf16.msra.mxu0 0
      %2325 = vmatprep.subr.bf16.mxu0 0
      %2326 = vmatpush1.bf16.msra.mxu0 0
      %2327 = vmatprep.subr.bf16.mxu0 0
      %2328 = vmatpush1.bf16.msra.mxu0 %v2311
      %2329 = vmatprep.subr.bf16.mxu0 0
      %2330 = vmatpush2.bf16.msra.mxu0 0
      %2331 = vmatprep.subr.bf16.mxu0 0
      %2332 = vmatpush2.bf16.msra.mxu0 0
      %2333 = vmatprep.subr.bf16.mxu0 0
      %2334 = vmatpush2.bf16.msra.mxu0 0
      %2335 = vmatprep.subr.bf16.mxu0 0
      %2336 = vmatpush2.bf16.msra.mxu0 0
      %2337 = vmatprep.subr.bf16.mxu0 0
      %2338 = vmatpush2.bf16.msra.mxu0 0
      %2339 = vmatprep.subr.bf16.mxu0 0
      %2340 = vmatpush2.bf16.msra.mxu0 0
      %2341 = vmatprep.subr.bf16.mxu0 0
      %2342 = vmatpush2.bf16.msra.mxu0 0
      %2343 = vmatprep.subr.bf16.mxu0 0
      %2344 = vmatpush2.bf16.msra.mxu0 0
      %2345 = vmatprep.mubr.bf16.mxu0 0
      %2346 = vmatmul.mubr.bf16.gmra.mxu0 %v2296
      %v2347 = vpop.f32.mrf.mxu0
      %v2348 = vadd.f32 0.0, %v2347
      %v2349 = vpop.f32.mrf.mxu0
      %v2350 = vpop.f32.mrf.mxu0
      %v2351 = vadd.f32 0.0, %v2350
      %v2352 = vpop.f32.mrf.mxu0
      %2353 = vmatprep.mubr.bf16.mxu0 0
      %2354 = vmatmul.mubr.bf16.gmra.mxu0 %v2299
      %v2355 = vpop.f32.mrf.mxu0
      %v2356 = vadd.f32 0.0, %v2355
      %v2357 = vpop.f32.mrf.mxu0
      %v2358 = vpop.f32.mrf.mxu0
      %v2359 = vadd.f32 0.0, %v2358
      %v2360 = vpop.f32.mrf.mxu0
      %2361 = vmatprep.mubr.bf16.mxu0 0
      %2362 = vmatmul.mubr.bf16.gmra.mxu0 %v2302
      %v2363 = vpop.f32.mrf.mxu0
      %v2364 = vadd.f32 0.0, %v2363
      %v2365 = vpop.f32.mrf.mxu0
      %v2366 = vpop.f32.mrf.mxu0
      %v2367 = vadd.f32 0.0, %v2366
      %v2368 = vpop.f32.mrf.mxu0
      %2369 = vmatprep.mubr.bf16.mxu0 0
      %2370 = vmatmul.mubr.bf16.gmra.mxu0 %v2305
      %v2371 = vpop.f32.mrf.mxu0
      %v2372 = vadd.f32 0.0, %v2371
      %v2373 = vpop.f32.mrf.mxu0
      %v2374 = vpop.f32.mrf.mxu0
      %v2375 = vadd.f32 0.0, %v2374
      %v2376 = vpop.f32.mrf.mxu0
      %2377 = vmatprep.mubr.bf16.mxu0 0
      %2378 = vmatmul.mubr.bf16.gmra.mxu0 %v2308
      %v2379 = vpop.f32.mrf.mxu0
      %v2380 = vadd.f32 0.0, %v2379
      %v2381 = vpop.f32.mrf.mxu0
      %v2382 = vpop.f32.mrf.mxu0
      %v2383 = vadd.f32 0.0, %v2382
      %v2384 = vpop.f32.mrf.mxu0
      %2385 = vdwg.mxu0
      %v2386 = vadd.f32 %v2226, %v2348
      %v2387 = vadd.f32 %v2227, %v2351
      %v2388 = vadd.f32 %v2228, %v2356
      %v2389 = vadd.f32 %v2229, %v2359
      %v2390 = vadd.f32 %v2230, %v2364
      %v2391 = vadd.f32 %v2231, %v2367
      %v2392 = vadd.f32 %v2232, %v2372
      %v2393 = vadd.f32 %v2233, %v2375
      %v2394 = vadd.f32 %v2234, %v2380
      %v2395 = vadd.f32 %v2235, %v2383
      %v2396 = vld [vmem:[%s357 + $0x4] sm:$0xc]
      %s2397 = scalar_lea.vmem %s373, 56
      %v2398 = vld [vmem:[%s2397] sm:$0xf]
      %v2400 = vunpack.c.l.b16 %v2396
      %v2401 = vpack.c.b16 %v2108, %v2400
      %v2402 = vrot.slane %v2401, 2
      %v2403 = vrot.slane %v2119, 2
      %v2404 = vsel %vm1095, %v2402, %v2403
      %v2405 = vrot.slane %v2120, 2
      %v2406 = vsel %vm1095, %v2403, %v2405
      %v2407 = vrot.slane %v2121, 2
      %v2408 = vsel %vm1095, %v2405, %v2407
      %v2409 = vrot.slane %v2122, 2
      %v2410 = vsel %vm1095, %v2407, %v2409
      %v2411 = vrot.slane %v2241, 2
      %v2412 = vsel %vm1095, %v2409, %v2411
      %v2414 = vsel %vm477, %v2404, 0
      %v2417 = vsel %vm477, %v2406, 0
      %v2420 = vsel %vm477, %v2408, 0
      %v2423 = vsel %vm477, %v2410, 0
      %v2426 = vsel %vm477, %v2412, 0
      %v2429 = vsel %vm493, %v2398, 0
      %2431 = vmatprep.subr.bf16.mxu0 0
      %2432 = vmatpush1.bf16.msra.mxu0 0
      %2433 = vmatprep.subr.bf16.mxu0 0
      %2434 = vmatpush1.bf16.msra.mxu0 0
      %2435 = vmatprep.subr.bf16.mxu0 0
      %2436 = vmatpush1.bf16.msra.mxu0 0
      %2437 = vmatprep.subr.bf16.mxu0 0
      %2438 = vmatpush1.bf16.msra.mxu0 0
      %2439 = vmatprep.subr.bf16.mxu0 0
      %2440 = vmatpush1.bf16.msra.mxu0 0
      %2441 = vmatprep.subr.bf16.mxu0 0
      %2442 = vmatpush1.bf16.msra.mxu0 0
      %2443 = vmatprep.subr.bf16.mxu0 0
      %2444 = vmatpush1.bf16.msra.mxu0 0
      %2445 = vmatprep.subr.bf16.mxu0 0
      %2446 = vmatpush1.bf16.msra.mxu0 %v2429
      %2447 = vmatprep.subr.bf16.mxu0 0
      %2448 = vmatpush2.bf16.msra.mxu0 0
      %2449 = vmatprep.subr.bf16.mxu0 0
      %2450 = vmatpush2.bf16.msra.mxu0 0
      %2451 = vmatprep.subr.bf16.mxu0 0
      %2452 = vmatpush2.bf16.msra.mxu0 0
      %2453 = vmatprep.subr.bf16.mxu0 0
      %2454 = vmatpush2.bf16.msra.mxu0 0
      %2455 = vmatprep.subr.bf16.mxu0 0
      %2456 = vmatpush2.bf16.msra.mxu0 0
      %2457 = vmatprep.subr.bf16.mxu0 0
      %2458 = vmatpush2.bf16.msra.mxu0 0
      %2459 = vmatprep.subr.bf16.mxu0 0
      %2460 = vmatpush2.bf16.msra.mxu0 0
      %2461 = vmatprep.subr.bf16.mxu0 0
      %2462 = vmatpush2.bf16.msra.mxu0 0
      %2463 = vmatprep.mubr.bf16.mxu0 0
      %2464 = vmatmul.mubr.bf16.gmra.mxu0 %v2414
      %v2465 = vpop.f32.mrf.mxu0
      %v2466 = vadd.f32 0.0, %v2465
      %v2467 = vpop.f32.mrf.mxu0
      %v2468 = vpop.f32.mrf.mxu0
      %v2469 = vadd.f32 0.0, %v2468
      %v2470 = vpop.f32.mrf.mxu0
      %2471 = vmatprep.mubr.bf16.mxu0 0
      %2472 = vmatmul.mubr.bf16.gmra.mxu0 %v2417
      %v2473 = vpop.f32.mrf.mxu0
      %v2474 = vadd.f32 0.0, %v2473
      %v2475 = vpop.f32.mrf.mxu0
      %v2476 = vpop.f32.mrf.mxu0
      %v2477 = vadd.f32 0.0, %v2476
      %v2478 = vpop.f32.mrf.mxu0
      %2479 = vmatprep.mubr.bf16.mxu0 0
      %2480 = vmatmul.mubr.bf16.gmra.mxu0 %v2420
      %v2481 = vpop.f32.mrf.mxu0
      %v2482 = vadd.f32 0.0, %v2481
      %v2483 = vpop.f32.mrf.mxu0
      %v2484 = vpop.f32.mrf.mxu0
      %v2485 = vadd.f32 0.0, %v2484
      %v2486 = vpop.f32.mrf.mxu0
      %2487 = vmatprep.mubr.bf16.mxu0 0
      %2488 = vmatmul.mubr.bf16.gmra.mxu0 %v2423
      %v2489 = vpop.f32.mrf.mxu0
      %v2490 = vadd.f32 0.0, %v2489
      %v2491 = vpop.f32.mrf.mxu0
      %v2492 = vpop.f32.mrf.mxu0
      %v2493 = vadd.f32 0.0, %v2492
      %v2494 = vpop.f32.mrf.mxu0
      %2495 = vmatprep.mubr.bf16.mxu0 0
      %2496 = vmatmul.mubr.bf16.gmra.mxu0 %v2426
      %v2497 = vpop.f32.mrf.mxu0
      %v2498 = vadd.f32 0.0, %v2497
      %v2499 = vpop.f32.mrf.mxu0
      %v2500 = vpop.f32.mrf.mxu0
      %v2501 = vadd.f32 0.0, %v2500
      %v2502 = vpop.f32.mrf.mxu0
      %2503 = vdwg.mxu0
      %v2504 = vadd.f32 %v2386, %v2466
      %v2505 = vadd.f32 %v2387, %v2469
      %v2506 = vadd.f32 %v2388, %v2474
      %v2507 = vadd.f32 %v2389, %v2477
      %v2508 = vadd.f32 %v2390, %v2482
      %v2509 = vadd.f32 %v2391, %v2485
      %v2510 = vadd.f32 %v2392, %v2490
      %v2511 = vadd.f32 %v2393, %v2493
      %v2512 = vadd.f32 %v2394, %v2498
      %v2513 = vadd.f32 %v2395, %v2501
      %v2514 = vld [vmem:[%s357 + $0x8] sm:$0xc]
      %v2515 = vld [vmem:[%s357 + $0xc] sm:$0xf]
      %v2516 = vld [vmem:[%s357 + $0x10] sm:$0xf]
      %v2517 = vld [vmem:[%s357 + $0x14] sm:$0xf]
      %v2518 = vld [vmem:[%s357 + $0x18] sm:$0xf]
      %v2519 = vld [vmem:[%s357 + $0x1c] sm:$0xf]
      %v2520 = vld [vmem:[%s357 + $0x20] sm:$0xf]
      %v2521 = vld [vmem:[%s357 + $0x24] sm:$0xf]
      %v2522 = vld [vmem:[%s357 + $0x28] sm:$0xf]
      %v2523 = vld [vmem:[%s357 + $0x2c] sm:$0xf]
      %v2524 = vld [vmem:[%s357 + $0x30] sm:$0x3]
      %s2525 = scalar_lea.vmem %s373, 60
      %v2526 = vld [vmem:[%s2525] sm:$0xf]
      %v2538 = vunpack.c.l.b16 %v2514
      %v2539 = vunpack.c.l.b16 %v2515
      %v2540 = vunpack.c.l.b16 %v2516
      %v2541 = vunpack.c.l.b16 %v2517
      %v2542 = vunpack.c.l.b16 %v2518
      %v2543 = vunpack.c.l.b16 %v2519
      %v2544 = vunpack.c.l.b16 %v2520
      %v2545 = vunpack.c.l.b16 %v2521
      %v2546 = vunpack.c.l.b16 %v2522
      %v2547 = vunpack.c.l.b16 %v2523
      %v2548 = vunpack.c.l.b16 %v2524
      %v2549 = vpack.c.b16 %v2539, %v2538
      %v2550 = vpack.c.b16 %v2541, %v2540
      %v2551 = vpack.c.b16 %v2543, %v2542
      %v2552 = vpack.c.b16 %v2545, %v2544
      %v2553 = vpack.c.b16 %v2547, %v2546
      %v2554 = vpack.c.b16 %v2548, %v2548
      %v2555 = vrot.slane %v2549, 2
      %v2556 = vrot.slane %v2550, 2
      %v2557 = vsel %vm1095, %v2555, %v2556
      %v2558 = vrot.slane %v2551, 2
      %v2559 = vsel %vm1095, %v2556, %v2558
      %v2560 = vrot.slane %v2552, 2
      %v2561 = vsel %vm1095, %v2558, %v2560
      %v2562 = vrot.slane %v2553, 2
      %v2563 = vsel %vm1095, %v2560, %v2562
      %v2564 = vrot.slane %v2554, 2
      %v2565 = vsel %vm1095, %v2562, %v2564
      %v2567 = vsel %vm477, %v2557, 0
      %v2570 = vsel %vm477, %v2559, 0
      %v2573 = vsel %vm477, %v2561, 0
      %v2576 = vsel %vm477, %v2563, 0
      %v2579 = vsel %vm477, %v2565, 0
      %v2582 = vsel %vm493, %v2526, 0
      %2584 = vmatprep.subr.bf16.mxu0 0
      %2585 = vmatpush1.bf16.msra.mxu0 0
      %2586 = vmatprep.subr.bf16.mxu0 0
      %2587 = vmatpush1.bf16.msra.mxu0 0
      %2588 = vmatprep.subr.bf16.mxu0 0
      %2589 = vmatpush1.bf16.msra.mxu0 0
      %2590 = vmatprep.subr.bf16.mxu0 0
      %2591 = vmatpush1.bf16.msra.mxu0 0
      %2592 = vmatprep.subr.bf16.mxu0 0
      %2593 = vmatpush1.bf16.msra.mxu0 0
      %2594 = vmatprep.subr.bf16.mxu0 0
      %2595 = vmatpush1.bf16.msra.mxu0 0
      %2596 = vmatprep.subr.bf16.mxu0 0
      %2597 = vmatpush1.bf16.msra.mxu0 0
      %2598 = vmatprep.subr.bf16.mxu0 0
      %2599 = vmatpush1.bf16.msra.mxu0 %v2582
      %2600 = vmatprep.subr.bf16.mxu0 0
      %2601 = vmatpush2.bf16.msra.mxu0 0
      %2602 = vmatprep.subr.bf16.mxu0 0
      %2603 = vmatpush2.bf16.msra.mxu0 0
      %2604 = vmatprep.subr.bf16.mxu0 0
      %2605 = vmatpush2.bf16.msra.mxu0 0
      %2606 = vmatprep.subr.bf16.mxu0 0
      %2607 = vmatpush2.bf16.msra.mxu0 0
      %2608 = vmatprep.subr.bf16.mxu0 0
      %2609 = vmatpush2.bf16.msra.mxu0 0
      %2610 = vmatprep.subr.bf16.mxu0 0
      %2611 = vmatpush2.bf16.msra.mxu0 0
      %2612 = vmatprep.subr.bf16.mxu0 0
      %2613 = vmatpush2.bf16.msra.mxu0 0
      %2614 = vmatprep.subr.bf16.mxu0 0
      %2615 = vmatpush2.bf16.msra.mxu0 0
      %2616 = vmatprep.mubr.bf16.mxu0 0
      %2617 = vmatmul.mubr.bf16.gmra.mxu0 %v2567
      %v2618 = vpop.f32.mrf.mxu0
      %v2619 = vadd.f32 0.0, %v2618
      %v2620 = vpop.f32.mrf.mxu0
      %v2621 = vpop.f32.mrf.mxu0
      %v2622 = vadd.f32 0.0, %v2621
      %v2623 = vpop.f32.mrf.mxu0
      %2624 = vmatprep.mubr.bf16.mxu0 0
      %2625 = vmatmul.mubr.bf16.gmra.mxu0 %v2570
      %v2626 = vpop.f32.mrf.mxu0
      %v2627 = vadd.f32 0.0, %v2626
      %v2628 = vpop.f32.mrf.mxu0
      %v2629 = vpop.f32.mrf.mxu0
      %v2630 = vadd.f32 0.0, %v2629
      %v2631 = vpop.f32.mrf.mxu0
      %2632 = vmatprep.mubr.bf16.mxu0 0
      %2633 = vmatmul.mubr.bf16.gmra.mxu0 %v2573
      %v2634 = vpop.f32.mrf.mxu0
      %v2635 = vadd.f32 0.0, %v2634
      %v2636 = vpop.f32.mrf.mxu0
      %v2637 = vpop.f32.mrf.mxu0
      %v2638 = vadd.f32 0.0, %v2637
      %v2639 = vpop.f32.mrf.mxu0
      %2640 = vmatprep.mubr.bf16.mxu0 0
      %2641 = vmatmul.mubr.bf16.gmra.mxu0 %v2576
      %v2642 = vpop.f32.mrf.mxu0
      %v2643 = vadd.f32 0.0, %v2642
      %v2644 = vpop.f32.mrf.mxu0
      %v2645 = vpop.f32.mrf.mxu0
      %v2646 = vadd.f32 0.0, %v2645
      %v2647 = vpop.f32.mrf.mxu0
      %2648 = vmatprep.mubr.bf16.mxu0 0
      %2649 = vmatmul.mubr.bf16.gmra.mxu0 %v2579
      %v2650 = vpop.f32.mrf.mxu0
      %v2651 = vadd.f32 0.0, %v2650
      %v2652 = vpop.f32.mrf.mxu0
      %v2653 = vpop.f32.mrf.mxu0
      %v2654 = vadd.f32 0.0, %v2653
      %v2655 = vpop.f32.mrf.mxu0
      %2656 = vdwg.mxu0
      %v2657 = vadd.f32 %v2504, %v2619
      %v2658 = vadd.f32 %v2505, %v2622
      %v2659 = vadd.f32 %v2506, %v2627
      %v2660 = vadd.f32 %v2507, %v2630
      %v2661 = vadd.f32 %v2508, %v2635
      %v2662 = vadd.f32 %v2509, %v2638
      %v2663 = vadd.f32 %v2510, %v2643
      %v2664 = vadd.f32 %v2511, %v2646
      %v2665 = vadd.f32 %v2512, %v2651
      %v2666 = vadd.f32 %v2513, %v2654
      %v2667 = vld [vmem:[%s357 + $0x30] sm:$0x7]
      %s2668 = scalar_lea.vmem %s373, 64
      %v2669 = vld [vmem:[%s2668] sm:$0xf]
      %v2671 = vunpack.c.l.b16 %v2667
      %v2672 = vpack.c.b16 %v2671, %v2671
      %v2674 = vshrl.u32 %v2549, 16
      %v2676 = vrot.slane %v2674, 2
      %v2677 = vshll.u32 %v2549, 16
      %v2679 = vrot.slane %v2677, 3
      %v2680 = vor.u32 %v2676, %v2679
      %v2682 = vshrl.u32 %v2550, 16
      %v2684 = vrot.slane %v2682, 2
      %v2685 = vshll.u32 %v2550, 16
      %v2687 = vrot.slane %v2685, 3
      %v2688 = vor.u32 %v2684, %v2687
      %v2689 = vsel %vm1367, %v2680, %v2688
      %v2691 = vshrl.u32 %v2551, 16
      %v2693 = vrot.slane %v2691, 2
      %v2694 = vshll.u32 %v2551, 16
      %v2696 = vrot.slane %v2694, 3
      %v2697 = vor.u32 %v2693, %v2696
      %v2698 = vsel %vm1367, %v2688, %v2697
      %v2700 = vshrl.u32 %v2552, 16
      %v2702 = vrot.slane %v2700, 2
      %v2703 = vshll.u32 %v2552, 16
      %v2705 = vrot.slane %v2703, 3
      %v2706 = vor.u32 %v2702, %v2705
      %v2707 = vsel %vm1367, %v2697, %v2706
      %v2709 = vshrl.u32 %v2553, 16
      %v2711 = vrot.slane %v2709, 2
      %v2712 = vshll.u32 %v2553, 16
      %v2714 = vrot.slane %v2712, 3
      %v2715 = vor.u32 %v2711, %v2714
      %v2716 = vsel %vm1367, %v2706, %v2715
      %v2718 = vshrl.u32 %v2672, 16
      %v2720 = vrot.slane %v2718, 2
      %v2721 = vshll.u32 %v2672, 16
      %v2723 = vrot.slane %v2721, 3
      %v2724 = vor.u32 %v2720, %v2723
      %v2725 = vsel %vm1367, %v2715, %v2724
      %v2727 = vsel %vm477, %v2689, 0
      %v2730 = vsel %vm477, %v2698, 0
      %v2733 = vsel %vm477, %v2707, 0
      %v2736 = vsel %vm477, %v2716, 0
      %v2739 = vsel %vm477, %v2725, 0
      %v2742 = vsel %vm493, %v2669, 0
      %2744 = vmatprep.subr.bf16.mxu0 0
      %2745 = vmatpush1.bf16.msra.mxu0 0
      %2746 = vmatprep.subr.bf16.mxu0 0
      %2747 = vmatpush1.bf16.msra.mxu0 0
      %2748 = vmatprep.subr.bf16.mxu0 0
      %2749 = vmatpush1.bf16.msra.mxu0 0
      %2750 = vmatprep.subr.bf16.mxu0 0
      %2751 = vmatpush1.bf16.msra.mxu0 0
      %2752 = vmatprep.subr.bf16.mxu0 0
      %2753 = vmatpush1.bf16.msra.mxu0 0
      %2754 = vmatprep.subr.bf16.mxu0 0
      %2755 = vmatpush1.bf16.msra.mxu0 0
      %2756 = vmatprep.subr.bf16.mxu0 0
      %2757 = vmatpush1.bf16.msra.mxu0 0
      %2758 = vmatprep.subr.bf16.mxu0 0
      %2759 = vmatpush1.bf16.msra.mxu0 %v2742
      %2760 = vmatprep.subr.bf16.mxu0 0
      %2761 = vmatpush2.bf16.msra.mxu0 0
      %2762 = vmatprep.subr.bf16.mxu0 0
      %2763 = vmatpush2.bf16.msra.mxu0 0
      %2764 = vmatprep.subr.bf16.mxu0 0
      %2765 = vmatpush2.bf16.msra.mxu0 0
      %2766 = vmatprep.subr.bf16.mxu0 0
      %2767 = vmatpush2.bf16.msra.mxu0 0
      %2768 = vmatprep.subr.bf16.mxu0 0
      %2769 = vmatpush2.bf16.msra.mxu0 0
      %2770 = vmatprep.subr.bf16.mxu0 0
      %2771 = vmatpush2.bf16.msra.mxu0 0
      %2772 = vmatprep.subr.bf16.mxu0 0
      %2773 = vmatpush2.bf16.msra.mxu0 0
      %2774 = vmatprep.subr.bf16.mxu0 0
      %2775 = vmatpush2.bf16.msra.mxu0 0
      %2776 = vmatprep.mubr.bf16.mxu0 0
      %2777 = vmatmul.mubr.bf16.gmra.mxu0 %v2727
      %v2778 = vpop.f32.mrf.mxu0
      %v2779 = vadd.f32 0.0, %v2778
      %v2780 = vpop.f32.mrf.mxu0
      %v2781 = vpop.f32.mrf.mxu0
      %v2782 = vadd.f32 0.0, %v2781
      %v2783 = vpop.f32.mrf.mxu0
      %2784 = vmatprep.mubr.bf16.mxu0 0
      %2785 = vmatmul.mubr.bf16.gmra.mxu0 %v2730
      %v2786 = vpop.f32.mrf.mxu0
      %v2787 = vadd.f32 0.0, %v2786
      %v2788 = vpop.f32.mrf.mxu0
      %v2789 = vpop.f32.mrf.mxu0
      %v2790 = vadd.f32 0.0, %v2789
      %v2791 = vpop.f32.mrf.mxu0
      %2792 = vmatprep.mubr.bf16.mxu0 0
      %2793 = vmatmul.mubr.bf16.gmra.mxu0 %v2733
      %v2794 = vpop.f32.mrf.mxu0
      %v2795 = vadd.f32 0.0, %v2794
      %v2796 = vpop.f32.mrf.mxu0
      %v2797 = vpop.f32.mrf.mxu0
      %v2798 = vadd.f32 0.0, %v2797
      %v2799 = vpop.f32.mrf.mxu0
      %2800 = vmatprep.mubr.bf16.mxu0 0
      %2801 = vmatmul.mubr.bf16.gmra.mxu0 %v2736
      %v2802 = vpop.f32.mrf.mxu0
      %v2803 = vadd.f32 0.0, %v2802
      %v2804 = vpop.f32.mrf.mxu0
      %v2805 = vpop.f32.mrf.mxu0
      %v2806 = vadd.f32 0.0, %v2805
      %v2807 = vpop.f32.mrf.mxu0
      %2808 = vmatprep.mubr.bf16.mxu0 0
      %2809 = vmatmul.mubr.bf16.gmra.mxu0 %v2739
      %v2810 = vpop.f32.mrf.mxu0
      %v2811 = vadd.f32 0.0, %v2810
      %v2812 = vpop.f32.mrf.mxu0
      %v2813 = vpop.f32.mrf.mxu0
      %v2814 = vadd.f32 0.0, %v2813
      %v2815 = vpop.f32.mrf.mxu0
      %2816 = vdwg.mxu0
      %v2817 = vadd.f32 %v2657, %v2779
      %v2818 = vadd.f32 %v2658, %v2782
      %v2819 = vadd.f32 %v2659, %v2787
      %v2820 = vadd.f32 %v2660, %v2790
      %v2821 = vadd.f32 %v2661, %v2795
      %v2822 = vadd.f32 %v2662, %v2798
      %v2823 = vadd.f32 %v2663, %v2803
      %v2824 = vadd.f32 %v2664, %v2806
      %v2825 = vadd.f32 %v2665, %v2811
      %v2826 = vadd.f32 %v2666, %v2814
      %v2827 = vld [vmem:[%s357 + $0x8] sm:$0x8]
      %s2828 = scalar_lea.vmem %s373, 68
      %v2829 = vld [vmem:[%s2828] sm:$0xf]
      %v2831 = vunpack.c.l.b16 %v2827
      %v2832 = vpack.c.b16 %v2539, %v2831
      %v2833 = vrot.slane %v2832, 3
      %v2834 = vrot.slane %v2550, 3
      %v2835 = vsel %vm1528, %v2833, %v2834
      %v2836 = vrot.slane %v2551, 3
      %v2837 = vsel %vm1528, %v2834, %v2836
      %v2838 = vrot.slane %v2552, 3
      %v2839 = vsel %vm1528, %v2836, %v2838
      %v2840 = vrot.slane %v2553, 3
      %v2841 = vsel %vm1528, %v2838, %v2840
      %v2842 = vrot.slane %v2672, 3
      %v2843 = vsel %vm1528, %v2840, %v2842
      %v2845 = vsel %vm477, %v2835, 0
      %v2848 = vsel %vm477, %v2837, 0
      %v2851 = vsel %vm477, %v2839, 0
      %v2854 = vsel %vm477, %v2841, 0
      %v2857 = vsel %vm477, %v2843, 0
      %v2860 = vsel %vm493, %v2829, 0
      %2862 = vmatprep.subr.bf16.mxu0 0
      %2863 = vmatpush1.bf16.msra.mxu0 0
      %2864 = vmatprep.subr.bf16.mxu0 0
      %2865 = vmatpush1.bf16.msra.mxu0 0
      %2866 = vmatprep.subr.bf16.mxu0 0
      %2867 = vmatpush1.bf16.msra.mxu0 0
      %2868 = vmatprep.subr.bf16.mxu0 0
      %2869 = vmatpush1.bf16.msra.mxu0 0
      %2870 = vmatprep.subr.bf16.mxu0 0
      %2871 = vmatpush1.bf16.msra.mxu0 0
      %2872 = vmatprep.subr.bf16.mxu0 0
      %2873 = vmatpush1.bf16.msra.mxu0 0
      %2874 = vmatprep.subr.bf16.mxu0 0
      %2875 = vmatpush1.bf16.msra.mxu0 0
      %2876 = vmatprep.subr.bf16.mxu0 0
      %2877 = vmatpush1.bf16.msra.mxu0 %v2860
      %2878 = vmatprep.subr.bf16.mxu0 0
      %2879 = vmatpush2.bf16.msra.mxu0 0
      %2880 = vmatprep.subr.bf16.mxu0 0
      %2881 = vmatpush2.bf16.msra.mxu0 0
      %2882 = vmatprep.subr.bf16.mxu0 0
      %2883 = vmatpush2.bf16.msra.mxu0 0
      %2884 = vmatprep.subr.bf16.mxu0 0
      %2885 = vmatpush2.bf16.msra.mxu0 0
      %2886 = vmatprep.subr.bf16.mxu0 0
      %2887 = vmatpush2.bf16.msra.mxu0 0
      %2888 = vmatprep.subr.bf16.mxu0 0
      %2889 = vmatpush2.bf16.msra.mxu0 0
      %2890 = vmatprep.subr.bf16.mxu0 0
      %2891 = vmatpush2.bf16.msra.mxu0 0
      %2892 = vmatprep.subr.bf16.mxu0 0
      %2893 = vmatpush2.bf16.msra.mxu0 0
      %2894 = vmatprep.mubr.bf16.mxu0 0
      %2895 = vmatmul.mubr.bf16.gmra.mxu0 %v2845
      %v2896 = vpop.f32.mrf.mxu0
      %v2897 = vadd.f32 0.0, %v2896
      %v2898 = vpop.f32.mrf.mxu0
      %v2899 = vpop.f32.mrf.mxu0
      %v2900 = vadd.f32 0.0, %v2899
      %v2901 = vpop.f32.mrf.mxu0
      %2902 = vmatprep.mubr.bf16.mxu0 0
      %2903 = vmatmul.mubr.bf16.gmra.mxu0 %v2848
      %v2904 = vpop.f32.mrf.mxu0
      %v2905 = vadd.f32 0.0, %v2904
      %v2906 = vpop.f32.mrf.mxu0
      %v2907 = vpop.f32.mrf.mxu0
      %v2908 = vadd.f32 0.0, %v2907
      %v2909 = vpop.f32.mrf.mxu0
      %2910 = vmatprep.mubr.bf16.mxu0 0
      %2911 = vmatmul.mubr.bf16.gmra.mxu0 %v2851
      %v2912 = vpop.f32.mrf.mxu0
      %v2913 = vadd.f32 0.0, %v2912
      %v2914 = vpop.f32.mrf.mxu0
      %v2915 = vpop.f32.mrf.mxu0
      %v2916 = vadd.f32 0.0, %v2915
      %v2917 = vpop.f32.mrf.mxu0
      %2918 = vmatprep.mubr.bf16.mxu0 0
      %2919 = vmatmul.mubr.bf16.gmra.mxu0 %v2854
      %v2920 = vpop.f32.mrf.mxu0
      %v2921 = vadd.f32 0.0, %v2920
      %v2922 = vpop.f32.mrf.mxu0
      %v2923 = vpop.f32.mrf.mxu0
      %v2924 = vadd.f32 0.0, %v2923
      %v2925 = vpop.f32.mrf.mxu0
      %2926 = vmatprep.mubr.bf16.mxu0 0
      %2927 = vmatmul.mubr.bf16.gmra.mxu0 %v2857
      %v2928 = vpop.f32.mrf.mxu0
      %v2929 = vadd.f32 0.0, %v2928
      %v2930 = vpop.f32.mrf.mxu0
      %v2931 = vpop.f32.mrf.mxu0
      %v2932 = vadd.f32 0.0, %v2931
      %v2933 = vpop.f32.mrf.mxu0
      %2934 = vdwg.mxu0
      %v2935 = vadd.f32 %v2817, %v2897
      %v2936 = vadd.f32 %v2818, %v2900
      %v2937 = vadd.f32 %v2819, %v2905
      %v2938 = vadd.f32 %v2820, %v2908
      %v2939 = vadd.f32 %v2821, %v2913
      %v2940 = vadd.f32 %v2822, %v2916
      %v2941 = vadd.f32 %v2823, %v2921
      %v2942 = vadd.f32 %v2824, %v2924
      %v2943 = vadd.f32 %v2825, %v2929
      %v2944 = vadd.f32 %v2826, %v2932
      %v2945 = vld [vmem:[%s368] sm:$0xf]
      %v2946 = vld [vmem:[%s368 + $0x4] sm:$0xf]
      %v2947 = vld [vmem:[%s368 + $0x8] sm:$0xf]
      %v2948 = vld [vmem:[%s368 + $0xc] sm:$0xf]
      %v2949 = vld [vmem:[%s368 + $0x10] sm:$0xf]
      %v2950 = vld [vmem:[%s368 + $0x14] sm:$0xf]
      %v2951 = vld [vmem:[%s368 + $0x18] sm:$0xf]
      %v2952 = vld [vmem:[%s368 + $0x1c] sm:$0xf]
      %v2953 = vld [vmem:[%s368 + $0x20] sm:$0xf]
      %v2954 = vld [vmem:[%s368 + $0x24] sm:$0xf]
      %s2955 = scalar_lea.vmem %s373, 72
      %v2956 = vld [vmem:[%s2955] sm:$0xf]
      %v2967 = vunpack.c.l.b16 %v2945
      %v2968 = vunpack.c.l.b16 %v2946
      %v2969 = vunpack.c.l.b16 %v2947
      %v2970 = vunpack.c.l.b16 %v2948
      %v2971 = vunpack.c.l.b16 %v2949
      %v2972 = vunpack.c.l.b16 %v2950
      %v2973 = vunpack.c.l.b16 %v2951
      %v2974 = vunpack.c.l.b16 %v2952
      %v2975 = vunpack.c.l.b16 %v2953
      %v2976 = vunpack.c.l.b16 %v2954
      %v2977 = vpack.c.b16 %v2968, %v2967
      %v2978 = vpack.c.b16 %v2970, %v2969
      %v2979 = vpack.c.b16 %v2972, %v2971
      %v2980 = vpack.c.b16 %v2974, %v2973
      %v2981 = vpack.c.b16 %v2976, %v2975
      %v2983 = vsel %vm477, %v2977, 0
      %v2986 = vsel %vm477, %v2978, 0
      %v2989 = vsel %vm477, %v2979, 0
      %v2992 = vsel %vm477, %v2980, 0
      %v2995 = vsel %vm477, %v2981, 0
      %v2998 = vsel %vm493, %v2956, 0
      %3000 = vmatprep.subr.bf16.mxu0 0
      %3001 = vmatpush1.bf16.msra.mxu0 0
      %3002 = vmatprep.subr.bf16.mxu0 0
      %3003 = vmatpush1.bf16.msra.mxu0 0
      %3004 = vmatprep.subr.bf16.mxu0 0
      %3005 = vmatpush1.bf16.msra.mxu0 0
      %3006 = vmatprep.subr.bf16.mxu0 0
      %3007 = vmatpush1.bf16.msra.mxu0 0
      %3008 = vmatprep.subr.bf16.mxu0 0
      %3009 = vmatpush1.bf16.msra.mxu0 0
      %3010 = vmatprep.subr.bf16.mxu0 0
      %3011 = vmatpush1.bf16.msra.mxu0 0
      %3012 = vmatprep.subr.bf16.mxu0 0
      %3013 = vmatpush1.bf16.msra.mxu0 0
      %3014 = vmatprep.subr.bf16.mxu0 0
      %3015 = vmatpush1.bf16.msra.mxu0 %v2998
      %3016 = vmatprep.subr.bf16.mxu0 0
      %3017 = vmatpush2.bf16.msra.mxu0 0
      %3018 = vmatprep.subr.bf16.mxu0 0
      %3019 = vmatpush2.bf16.msra.mxu0 0
      %3020 = vmatprep.subr.bf16.mxu0 0
      %3021 = vmatpush2.bf16.msra.mxu0 0
      %3022 = vmatprep.subr.bf16.mxu0 0
      %3023 = vmatpush2.bf16.msra.mxu0 0
      %3024 = vmatprep.subr.bf16.mxu0 0
      %3025 = vmatpush2.bf16.msra.mxu0 0
      %3026 = vmatprep.subr.bf16.mxu0 0
      %3027 = vmatpush2.bf16.msra.mxu0 0
      %3028 = vmatprep.subr.bf16.mxu0 0
      %3029 = vmatpush2.bf16.msra.mxu0 0
      %3030 = vmatprep.subr.bf16.mxu0 0
      %3031 = vmatpush2.bf16.msra.mxu0 0
      %3032 = vmatprep.mubr.bf16.mxu0 0
      %3033 = vmatmul.mubr.bf16.gmra.mxu0 %v2983
      %v3034 = vpop.f32.mrf.mxu0
      %v3035 = vadd.f32 0.0, %v3034
      %v3036 = vpop.f32.mrf.mxu0
      %v3037 = vpop.f32.mrf.mxu0
      %v3038 = vadd.f32 0.0, %v3037
      %v3039 = vpop.f32.mrf.mxu0
      %3040 = vmatprep.mubr.bf16.mxu0 0
      %3041 = vmatmul.mubr.bf16.gmra.mxu0 %v2986
      %v3042 = vpop.f32.mrf.mxu0
      %v3043 = vadd.f32 0.0, %v3042
      %v3044 = vpop.f32.mrf.mxu0
      %v3045 = vpop.f32.mrf.mxu0
      %v3046 = vadd.f32 0.0, %v3045
      %v3047 = vpop.f32.mrf.mxu0
      %3048 = vmatprep.mubr.bf16.mxu0 0
      %3049 = vmatmul.mubr.bf16.gmra.mxu0 %v2989
      %v3050 = vpop.f32.mrf.mxu0
      %v3051 = vadd.f32 0.0, %v3050
      %v3052 = vpop.f32.mrf.mxu0
      %v3053 = vpop.f32.mrf.mxu0
      %v3054 = vadd.f32 0.0, %v3053
      %v3055 = vpop.f32.mrf.mxu0
      %3056 = vmatprep.mubr.bf16.mxu0 0
      %3057 = vmatmul.mubr.bf16.gmra.mxu0 %v2992
      %v3058 = vpop.f32.mrf.mxu0
      %v3059 = vadd.f32 0.0, %v3058
      %v3060 = vpop.f32.mrf.mxu0
      %v3061 = vpop.f32.mrf.mxu0
      %v3062 = vadd.f32 0.0, %v3061
      %v3063 = vpop.f32.mrf.mxu0
      %3064 = vmatprep.mubr.bf16.mxu0 0
      %3065 = vmatmul.mubr.bf16.gmra.mxu0 %v2995
      %v3066 = vpop.f32.mrf.mxu0
      %v3067 = vadd.f32 0.0, %v3066
      %v3068 = vpop.f32.mrf.mxu0
      %v3069 = vpop.f32.mrf.mxu0
      %v3070 = vadd.f32 0.0, %v3069
      %v3071 = vpop.f32.mrf.mxu0
      %3072 = vdwg.mxu0
      %v3073 = vadd.f32 %v2935, %v3035
      %v3074 = vadd.f32 %v2936, %v3038
      %v3075 = vadd.f32 %v2937, %v3043
      %v3076 = vadd.f32 %v2938, %v3046
      %v3077 = vadd.f32 %v2939, %v3051
      %v3078 = vadd.f32 %v2940, %v3054
      %v3079 = vadd.f32 %v2941, %v3059
      %v3080 = vadd.f32 %v2942, %v3062
      %v3081 = vadd.f32 %v2943, %v3067
      %v3082 = vadd.f32 %v2944, %v3070
      %v3083 = vld [vmem:[%s368] sm:$0xf]
      %v3084 = vld [vmem:[%s368 + $0x4] sm:$0xf]
      %v3085 = vld [vmem:[%s368 + $0x8] sm:$0xf]
      %v3086 = vld [vmem:[%s368 + $0xc] sm:$0xf]
      %v3087 = vld [vmem:[%s368 + $0x10] sm:$0xf]
      %v3088 = vld [vmem:[%s368 + $0x14] sm:$0xf]
      %v3089 = vld [vmem:[%s368 + $0x18] sm:$0xf]
      %v3090 = vld [vmem:[%s368 + $0x1c] sm:$0xf]
      %v3091 = vld [vmem:[%s368 + $0x20] sm:$0xf]
      %v3092 = vld [vmem:[%s368 + $0x24] sm:$0xf]
      %v3093 = vld [vmem:[%s368 + $0x28] sm:$0x1]
      %s3094 = scalar_lea.vmem %s373, 76
      %v3095 = vld [vmem:[%s3094] sm:$0xf]
      %v3107 = vunpack.c.l.b16 %v3083
      %v3108 = vunpack.c.l.b16 %v3084
      %v3109 = vunpack.c.l.b16 %v3085
      %v3110 = vunpack.c.l.b16 %v3086
      %v3111 = vunpack.c.l.b16 %v3087
      %v3112 = vunpack.c.l.b16 %v3088
      %v3113 = vunpack.c.l.b16 %v3089
      %v3114 = vunpack.c.l.b16 %v3090
      %v3115 = vunpack.c.l.b16 %v3091
      %v3116 = vunpack.c.l.b16 %v3092
      %v3117 = vunpack.c.l.b16 %v3093
      %v3118 = vpack.c.b16 %v3108, %v3107
      %v3119 = vpack.c.b16 %v3110, %v3109
      %v3120 = vpack.c.b16 %v3112, %v3111
      %v3121 = vpack.c.b16 %v3114, %v3113
      %v3122 = vpack.c.b16 %v3116, %v3115
      %v3123 = vpack.c.b16 %v3117, %v3117
      %v3125 = vshrl.u32 %v3118, 16
      %v3127 = vshll.u32 %v3118, 16
      %v3129 = vrot.slane %v3127, 1
      %v3130 = vor.u32 %v3125, %v3129
      %v3132 = vshll.u32 %v3119, 16
      %v3134 = vrot.slane %v3132, 1
      %v3135 = vsel %vm432, %v3130, %v3134
      %v3136 = vshrl.u32 %v3119, 16
      %v3138 = vor.u32 %v3136, %v3134
      %v3140 = vshll.u32 %v3120, 16
      %v3142 = vrot.slane %v3140, 1
      %v3143 = vsel %vm432, %v3138, %v3142
      %v3144 = vshrl.u32 %v3120, 16
      %v3146 = vor.u32 %v3144, %v3142
      %v3148 = vshll.u32 %v3121, 16
      %v3150 = vrot.slane %v3148, 1
      %v3151 = vsel %vm432, %v3146, %v3150
      %v3152 = vshrl.u32 %v3121, 16
      %v3154 = vor.u32 %v3152, %v3150
      %v3156 = vshll.u32 %v3122, 16
      %v3158 = vrot.slane %v3156, 1
      %v3159 = vsel %vm432, %v3154, %v3158
      %v3160 = vshrl.u32 %v3122, 16
      %v3162 = vor.u32 %v3160, %v3158
      %v3164 = vshll.u32 %v3123, 16
      %v3166 = vrot.slane %v3164, 1
      %v3167 = vsel %vm432, %v3162, %v3166
      %v3169 = vsel %vm477, %v3135, 0
      %v3172 = vsel %vm477, %v3143, 0
      %v3175 = vsel %vm477, %v3151, 0
      %v3178 = vsel %vm477, %v3159, 0
      %v3181 = vsel %vm477, %v3167, 0
      %v3184 = vsel %vm493, %v3095, 0
      %3186 = vmatprep.subr.bf16.mxu0 0
      %3187 = vmatpush1.bf16.msra.mxu0 0
      %3188 = vmatprep.subr.bf16.mxu0 0
      %3189 = vmatpush1.bf16.msra.mxu0 0
      %3190 = vmatprep.subr.bf16.mxu0 0
      %3191 = vmatpush1.bf16.msra.mxu0 0
      %3192 = vmatprep.subr.bf16.mxu0 0
      %3193 = vmatpush1.bf16.msra.mxu0 0
      %3194 = vmatprep.subr.bf16.mxu0 0
      %3195 = vmatpush1.bf16.msra.mxu0 0
      %3196 = vmatprep.subr.bf16.mxu0 0
      %3197 = vmatpush1.bf16.msra.mxu0 0
      %3198 = vmatprep.subr.bf16.mxu0 0
      %3199 = vmatpush1.bf16.msra.mxu0 0
      %3200 = vmatprep.subr.bf16.mxu0 0
      %3201 = vmatpush1.bf16.msra.mxu0 %v3184
      %3202 = vmatprep.subr.bf16.mxu0 0
      %3203 = vmatpush2.bf16.msra.mxu0 0
      %3204 = vmatprep.subr.bf16.mxu0 0
      %3205 = vmatpush2.bf16.msra.mxu0 0
      %3206 = vmatprep.subr.bf16.mxu0 0
      %3207 = vmatpush2.bf16.msra.mxu0 0
      %3208 = vmatprep.subr.bf16.mxu0 0
      %3209 = vmatpush2.bf16.msra.mxu0 0
      %3210 = vmatprep.subr.bf16.mxu0 0
      %3211 = vmatpush2.bf16.msra.mxu0 0
      %3212 = vmatprep.subr.bf16.mxu0 0
      %3213 = vmatpush2.bf16.msra.mxu0 0
      %3214 = vmatprep.subr.bf16.mxu0 0
      %3215 = vmatpush2.bf16.msra.mxu0 0
      %3216 = vmatprep.subr.bf16.mxu0 0
      %3217 = vmatpush2.bf16.msra.mxu0 0
      %3218 = vmatprep.mubr.bf16.mxu0 0
      %3219 = vmatmul.mubr.bf16.gmra.mxu0 %v3169
      %v3220 = vpop.f32.mrf.mxu0
      %v3221 = vadd.f32 0.0, %v3220
      %v3222 = vpop.f32.mrf.mxu0
      %v3223 = vpop.f32.mrf.mxu0
      %v3224 = vadd.f32 0.0, %v3223
      %v3225 = vpop.f32.mrf.mxu0
      %3226 = vmatprep.mubr.bf16.mxu0 0
      %3227 = vmatmul.mubr.bf16.gmra.mxu0 %v3172
      %v3228 = vpop.f32.mrf.mxu0
      %v3229 = vadd.f32 0.0, %v3228
      %v3230 = vpop.f32.mrf.mxu0
      %v3231 = vpop.f32.mrf.mxu0
      %v3232 = vadd.f32 0.0, %v3231
      %v3233 = vpop.f32.mrf.mxu0
      %3234 = vmatprep.mubr.bf16.mxu0 0
      %3235 = vmatmul.mubr.bf16.gmra.mxu0 %v3175
      %v3236 = vpop.f32.mrf.mxu0
      %v3237 = vadd.f32 0.0, %v3236
      %v3238 = vpop.f32.mrf.mxu0
      %v3239 = vpop.f32.mrf.mxu0
      %v3240 = vadd.f32 0.0, %v3239
      %v3241 = vpop.f32.mrf.mxu0
      %3242 = vmatprep.mubr.bf16.mxu0 0
      %3243 = vmatmul.mubr.bf16.gmra.mxu0 %v3178
      %v3244 = vpop.f32.mrf.mxu0
      %v3245 = vadd.f32 0.0, %v3244
      %v3246 = vpop.f32.mrf.mxu0
      %v3247 = vpop.f32.mrf.mxu0
      %v3248 = vadd.f32 0.0, %v3247
      %v3249 = vpop.f32.mrf.mxu0
      %3250 = vmatprep.mubr.bf16.mxu0 0
      %3251 = vmatmul.mubr.bf16.gmra.mxu0 %v3181
      %v3252 = vpop.f32.mrf.mxu0
      %v3253 = vadd.f32 0.0, %v3252
      %v3254 = vpop.f32.mrf.mxu0
      %v3255 = vpop.f32.mrf.mxu0
      %v3256 = vadd.f32 0.0, %v3255
      %v3257 = vpop.f32.mrf.mxu0
      %3258 = vdwg.mxu0
      %v3259 = vadd.f32 %v3073, %v3221
      %v3260 = vadd.f32 %v3074, %v3224
      %v3261 = vadd.f32 %v3075, %v3229
      %v3262 = vadd.f32 %v3076, %v3232
      %v3263 = vadd.f32 %v3077, %v3237
      %v3264 = vadd.f32 %v3078, %v3240
      %v3265 = vadd.f32 %v3079, %v3245
      %v3266 = vadd.f32 %v3080, %v3248
      %v3267 = vadd.f32 %v3081, %v3253
      %v3268 = vadd.f32 %v3082, %v3256
      %v3269 = vld [vmem:[%s368] sm:$0xe]
      %s3270 = scalar_lea.vmem %s373, 80
      %v3271 = vld [vmem:[%s3270] sm:$0xf]
      %v3273 = vunpack.c.l.b16 %v3269
      %v3274 = vpack.c.b16 %v3108, %v3273
      %v3275 = vrot.slane %v3274, 1
      %v3276 = vrot.slane %v3119, 1
      %v3277 = vsel %vm662, %v3275, %v3276
      %v3278 = vrot.slane %v3120, 1
      %v3279 = vsel %vm662, %v3276, %v3278
      %v3280 = vrot.slane %v3121, 1
      %v3281 = vsel %vm662, %v3278, %v3280
      %v3282 = vrot.slane %v3122, 1
      %v3283 = vsel %vm662, %v3280, %v3282
      %v3284 = vrot.slane %v3123, 1
      %v3285 = vsel %vm662, %v3282, %v3284
      %v3287 = vsel %vm477, %v3277, 0
      %v3290 = vsel %vm477, %v3279, 0
      %v3293 = vsel %vm477, %v3281, 0
      %v3296 = vsel %vm477, %v3283, 0
      %v3299 = vsel %vm477, %v3285, 0
      %v3302 = vsel %vm493, %v3271, 0
      %3304 = vmatprep.subr.bf16.mxu0 0
      %3305 = vmatpush1.bf16.msra.mxu0 0
      %3306 = vmatprep.subr.bf16.mxu0 0
      %3307 = vmatpush1.bf16.msra.mxu0 0
      %3308 = vmatprep.subr.bf16.mxu0 0
      %3309 = vmatpush1.bf16.msra.mxu0 0
      %3310 = vmatprep.subr.bf16.mxu0 0
      %3311 = vmatpush1.bf16.msra.mxu0 0
      %3312 = vmatprep.subr.bf16.mxu0 0
      %3313 = vmatpush1.bf16.msra.mxu0 0
      %3314 = vmatprep.subr.bf16.mxu0 0
      %3315 = vmatpush1.bf16.msra.mxu0 0
      %3316 = vmatprep.subr.bf16.mxu0 0
      %3317 = vmatpush1.bf16.msra.mxu0 0
      %3318 = vmatprep.subr.bf16.mxu0 0
      %3319 = vmatpush1.bf16.msra.mxu0 %v3302
      %3320 = vmatprep.subr.bf16.mxu0 0
      %3321 = vmatpush2.bf16.msra.mxu0 0
      %3322 = vmatprep.subr.bf16.mxu0 0
      %3323 = vmatpush2.bf16.msra.mxu0 0
      %3324 = vmatprep.subr.bf16.mxu0 0
      %3325 = vmatpush2.bf16.msra.mxu0 0
      %3326 = vmatprep.subr.bf16.mxu0 0
      %3327 = vmatpush2.bf16.msra.mxu0 0
      %3328 = vmatprep.subr.bf16.mxu0 0
      %3329 = vmatpush2.bf16.msra.mxu0 0
      %3330 = vmatprep.subr.bf16.mxu0 0
      %3331 = vmatpush2.bf16.msra.mxu0 0
      %3332 = vmatprep.subr.bf16.mxu0 0
      %3333 = vmatpush2.bf16.msra.mxu0 0
      %3334 = vmatprep.subr.bf16.mxu0 0
      %3335 = vmatpush2.bf16.msra.mxu0 0
      %3336 = vmatprep.mubr.bf16.mxu0 0
      %3337 = vmatmul.mubr.bf16.gmra.mxu0 %v3287
      %v3338 = vpop.f32.mrf.mxu0
      %v3339 = vadd.f32 0.0, %v3338
      %v3340 = vpop.f32.mrf.mxu0
      %v3341 = vpop.f32.mrf.mxu0
      %v3342 = vadd.f32 0.0, %v3341
      %v3343 = vpop.f32.mrf.mxu0
      %3344 = vmatprep.mubr.bf16.mxu0 0
      %3345 = vmatmul.mubr.bf16.gmra.mxu0 %v3290
      %v3346 = vpop.f32.mrf.mxu0
      %v3347 = vadd.f32 0.0, %v3346
      %v3348 = vpop.f32.mrf.mxu0
      %v3349 = vpop.f32.mrf.mxu0
      %v3350 = vadd.f32 0.0, %v3349
      %v3351 = vpop.f32.mrf.mxu0
      %3352 = vmatprep.mubr.bf16.mxu0 0
      %3353 = vmatmul.mubr.bf16.gmra.mxu0 %v3293
      %v3354 = vpop.f32.mrf.mxu0
      %v3355 = vadd.f32 0.0, %v3354
      %v3356 = vpop.f32.mrf.mxu0
      %v3357 = vpop.f32.mrf.mxu0
      %v3358 = vadd.f32 0.0, %v3357
      %v3359 = vpop.f32.mrf.mxu0
      %3360 = vmatprep.mubr.bf16.mxu0 0
      %3361 = vmatmul.mubr.bf16.gmra.mxu0 %v3296
      %v3362 = vpop.f32.mrf.mxu0
      %v3363 = vadd.f32 0.0, %v3362
      %v3364 = vpop.f32.mrf.mxu0
      %v3365 = vpop.f32.mrf.mxu0
      %v3366 = vadd.f32 0.0, %v3365
      %v3367 = vpop.f32.mrf.mxu0
      %3368 = vmatprep.mubr.bf16.mxu0 0
      %3369 = vmatmul.mubr.bf16.gmra.mxu0 %v3299
      %v3370 = vpop.f32.mrf.mxu0
      %v3371 = vadd.f32 0.0, %v3370
      %v3372 = vpop.f32.mrf.mxu0
      %v3373 = vpop.f32.mrf.mxu0
      %v3374 = vadd.f32 0.0, %v3373
      %v3375 = vpop.f32.mrf.mxu0
      %3376 = vdwg.mxu0
      %v3377 = vadd.f32 %v3259, %v3339
      %v3378 = vadd.f32 %v3260, %v3342
      %v3379 = vadd.f32 %v3261, %v3347
      %v3380 = vadd.f32 %v3262, %v3350
      %v3381 = vadd.f32 %v3263, %v3355
      %v3382 = vadd.f32 %v3264, %v3358
      %v3383 = vadd.f32 %v3265, %v3363
      %v3384 = vadd.f32 %v3266, %v3366
      %v3385 = vadd.f32 %v3267, %v3371
      %v3386 = vadd.f32 %v3268, %v3374
      %v3387 = vld [vmem:[%s368 + $0x4] sm:$0xe]
      %v3388 = vld [vmem:[%s368 + $0x8] sm:$0xf]
      %v3389 = vld [vmem:[%s368 + $0xc] sm:$0xf]
      %v3390 = vld [vmem:[%s368 + $0x10] sm:$0xf]
      %v3391 = vld [vmem:[%s368 + $0x14] sm:$0xf]
      %v3392 = vld [vmem:[%s368 + $0x18] sm:$0xf]
      %v3393 = vld [vmem:[%s368 + $0x1c] sm:$0xf]
      %v3394 = vld [vmem:[%s368 + $0x20] sm:$0xf]
      %v3395 = vld [vmem:[%s368 + $0x24] sm:$0xf]
      %v3396 = vld [vmem:[%s368 + $0x28] sm:$0xf]
      %v3397 = vld [vmem:[%s368 + $0x2c] sm:$0x1]
      %s3398 = scalar_lea.vmem %s373, 84
      %v3399 = vld [vmem:[%s3398] sm:$0xf]
      %v3411 = vunpack.c.l.b16 %v3387
      %v3412 = vunpack.c.l.b16 %v3388
      %v3413 = vunpack.c.l.b16 %v3389
      %v3414 = vunpack.c.l.b16 %v3390
      %v3415 = vunpack.c.l.b16 %v3391
      %v3416 = vunpack.c.l.b16 %v3392
      %v3417 = vunpack.c.l.b16 %v3393
      %v3418 = vunpack.c.l.b16 %v3394
      %v3419 = vunpack.c.l.b16 %v3395
      %v3420 = vunpack.c.l.b16 %v3396
      %v3421 = vunpack.c.l.b16 %v3397
      %v3422 = vpack.c.b16 %v3412, %v3411
      %v3423 = vpack.c.b16 %v3414, %v3413
      %v3424 = vpack.c.b16 %v3416, %v3415
      %v3425 = vpack.c.b16 %v3418, %v3417
      %v3426 = vpack.c.b16 %v3420, %v3419
      %v3427 = vpack.c.b16 %v3421, %v3421
      %v3428 = vrot.slane %v3422, 1
      %v3429 = vrot.slane %v3423, 1
      %v3430 = vsel %vm662, %v3428, %v3429
      %v3431 = vrot.slane %v3424, 1
      %v3432 = vsel %vm662, %v3429, %v3431
      %v3433 = vrot.slane %v3425, 1
      %v3434 = vsel %vm662, %v3431, %v3433
      %v3435 = vrot.slane %v3426, 1
      %v3436 = vsel %vm662, %v3433, %v3435
      %v3437 = vrot.slane %v3427, 1
      %v3438 = vsel %vm662, %v3435, %v3437
      %v3440 = vsel %vm477, %v3430, 0
      %v3443 = vsel %vm477, %v3432, 0
      %v3446 = vsel %vm477, %v3434, 0
      %v3449 = vsel %vm477, %v3436, 0
      %v3452 = vsel %vm477, %v3438, 0
      %v3455 = vsel %vm493, %v3399, 0
      %3457 = vmatprep.subr.bf16.mxu0 0
      %3458 = vmatpush1.bf16.msra.mxu0 0
      %3459 = vmatprep.subr.bf16.mxu0 0
      %3460 = vmatpush1.bf16.msra.mxu0 0
      %3461 = vmatprep.subr.bf16.mxu0 0
      %3462 = vmatpush1.bf16.msra.mxu0 0
      %3463 = vmatprep.subr.bf16.mxu0 0
      %3464 = vmatpush1.bf16.msra.mxu0 0
      %3465 = vmatprep.subr.bf16.mxu0 0
      %3466 = vmatpush1.bf16.msra.mxu0 0
      %3467 = vmatprep.subr.bf16.mxu0 0
      %3468 = vmatpush1.bf16.msra.mxu0 0
      %3469 = vmatprep.subr.bf16.mxu0 0
      %3470 = vmatpush1.bf16.msra.mxu0 0
      %3471 = vmatprep.subr.bf16.mxu0 0
      %3472 = vmatpush1.bf16.msra.mxu0 %v3455
      %3473 = vmatprep.subr.bf16.mxu0 0
      %3474 = vmatpush2.bf16.msra.mxu0 0
      %3475 = vmatprep.subr.bf16.mxu0 0
      %3476 = vmatpush2.bf16.msra.mxu0 0
      %3477 = vmatprep.subr.bf16.mxu0 0
      %3478 = vmatpush2.bf16.msra.mxu0 0
      %3479 = vmatprep.subr.bf16.mxu0 0
      %3480 = vmatpush2.bf16.msra.mxu0 0
      %3481 = vmatprep.subr.bf16.mxu0 0
      %3482 = vmatpush2.bf16.msra.mxu0 0
      %3483 = vmatprep.subr.bf16.mxu0 0
      %3484 = vmatpush2.bf16.msra.mxu0 0
      %3485 = vmatprep.subr.bf16.mxu0 0
      %3486 = vmatpush2.bf16.msra.mxu0 0
      %3487 = vmatprep.subr.bf16.mxu0 0
      %3488 = vmatpush2.bf16.msra.mxu0 0
      %3489 = vmatprep.mubr.bf16.mxu0 0
      %3490 = vmatmul.mubr.bf16.gmra.mxu0 %v3440
      %v3491 = vpop.f32.mrf.mxu0
      %v3492 = vadd.f32 0.0, %v3491
      %v3493 = vpop.f32.mrf.mxu0
      %v3494 = vpop.f32.mrf.mxu0
      %v3495 = vadd.f32 0.0, %v3494
      %v3496 = vpop.f32.mrf.mxu0
      %3497 = vmatprep.mubr.bf16.mxu0 0
      %3498 = vmatmul.mubr.bf16.gmra.mxu0 %v3443
      %v3499 = vpop.f32.mrf.mxu0
      %v3500 = vadd.f32 0.0, %v3499
      %v3501 = vpop.f32.mrf.mxu0
      %v3502 = vpop.f32.mrf.mxu0
      %v3503 = vadd.f32 0.0, %v3502
      %v3504 = vpop.f32.mrf.mxu0
      %3505 = vmatprep.mubr.bf16.mxu0 0
      %3506 = vmatmul.mubr.bf16.gmra.mxu0 %v3446
      %v3507 = vpop.f32.mrf.mxu0
      %v3508 = vadd.f32 0.0, %v3507
      %v3509 = vpop.f32.mrf.mxu0
      %v3510 = vpop.f32.mrf.mxu0
      %v3511 = vadd.f32 0.0, %v3510
      %v3512 = vpop.f32.mrf.mxu0
      %3513 = vmatprep.mubr.bf16.mxu0 0
      %3514 = vmatmul.mubr.bf16.gmra.mxu0 %v3449
      %v3515 = vpop.f32.mrf.mxu0
      %v3516 = vadd.f32 0.0, %v3515
      %v3517 = vpop.f32.mrf.mxu0
      %v3518 = vpop.f32.mrf.mxu0
      %v3519 = vadd.f32 0.0, %v3518
      %v3520 = vpop.f32.mrf.mxu0
      %3521 = vmatprep.mubr.bf16.mxu0 0
      %3522 = vmatmul.mubr.bf16.gmra.mxu0 %v3452
      %v3523 = vpop.f32.mrf.mxu0
      %v3524 = vadd.f32 0.0, %v3523
      %v3525 = vpop.f32.mrf.mxu0
      %v3526 = vpop.f32.mrf.mxu0
      %v3527 = vadd.f32 0.0, %v3526
      %v3528 = vpop.f32.mrf.mxu0
      %3529 = vdwg.mxu0
      %v3530 = vadd.f32 %v3377, %v3492
      %v3531 = vadd.f32 %v3378, %v3495
      %v3532 = vadd.f32 %v3379, %v3500
      %v3533 = vadd.f32 %v3380, %v3503
      %v3534 = vadd.f32 %v3381, %v3508
      %v3535 = vadd.f32 %v3382, %v3511
      %v3536 = vadd.f32 %v3383, %v3516
      %v3537 = vadd.f32 %v3384, %v3519
      %v3538 = vadd.f32 %v3385, %v3524
      %v3539 = vadd.f32 %v3386, %v3527
      %v3540 = vld [vmem:[%s368 + $0x2c] sm:$0x3]
      %s3541 = scalar_lea.vmem %s373, 88
      %v3542 = vld [vmem:[%s3541] sm:$0xf]
      %v3544 = vunpack.c.l.b16 %v3540
      %v3545 = vpack.c.b16 %v3544, %v3544
      %v3547 = vshrl.u32 %v3422, 16
      %v3549 = vrot.slane %v3547, 1
      %v3550 = vshll.u32 %v3422, 16
      %v3552 = vrot.slane %v3550, 2
      %v3553 = vor.u32 %v3549, %v3552
      %v3555 = vshrl.u32 %v3423, 16
      %v3557 = vrot.slane %v3555, 1
      %v3558 = vshll.u32 %v3423, 16
      %v3560 = vrot.slane %v3558, 2
      %v3561 = vor.u32 %v3557, %v3560
      %v3562 = vsel %vm934, %v3553, %v3561
      %v3564 = vshrl.u32 %v3424, 16
      %v3566 = vrot.slane %v3564, 1
      %v3567 = vshll.u32 %v3424, 16
      %v3569 = vrot.slane %v3567, 2
      %v3570 = vor.u32 %v3566, %v3569
      %v3571 = vsel %vm934, %v3561, %v3570
      %v3573 = vshrl.u32 %v3425, 16
      %v3575 = vrot.slane %v3573, 1
      %v3576 = vshll.u32 %v3425, 16
      %v3578 = vrot.slane %v3576, 2
      %v3579 = vor.u32 %v3575, %v3578
      %v3580 = vsel %vm934, %v3570, %v3579
      %v3582 = vshrl.u32 %v3426, 16
      %v3584 = vrot.slane %v3582, 1
      %v3585 = vshll.u32 %v3426, 16
      %v3587 = vrot.slane %v3585, 2
      %v3588 = vor.u32 %v3584, %v3587
      %v3589 = vsel %vm934, %v3579, %v3588
      %v3591 = vshrl.u32 %v3545, 16
      %v3593 = vrot.slane %v3591, 1
      %v3594 = vshll.u32 %v3545, 16
      %v3596 = vrot.slane %v3594, 2
      %v3597 = vor.u32 %v3593, %v3596
      %v3598 = vsel %vm934, %v3588, %v3597
      %v3600 = vsel %vm477, %v3562, 0
      %v3603 = vsel %vm477, %v3571, 0
      %v3606 = vsel %vm477, %v3580, 0
      %v3609 = vsel %vm477, %v3589, 0
      %v3612 = vsel %vm477, %v3598, 0
      %v3615 = vsel %vm493, %v3542, 0
      %3617 = vmatprep.subr.bf16.mxu0 0
      %3618 = vmatpush1.bf16.msra.mxu0 0
      %3619 = vmatprep.subr.bf16.mxu0 0
      %3620 = vmatpush1.bf16.msra.mxu0 0
      %3621 = vmatprep.subr.bf16.mxu0 0
      %3622 = vmatpush1.bf16.msra.mxu0 0
      %3623 = vmatprep.subr.bf16.mxu0 0
      %3624 = vmatpush1.bf16.msra.mxu0 0
      %3625 = vmatprep.subr.bf16.mxu0 0
      %3626 = vmatpush1.bf16.msra.mxu0 0
      %3627 = vmatprep.subr.bf16.mxu0 0
      %3628 = vmatpush1.bf16.msra.mxu0 0
      %3629 = vmatprep.subr.bf16.mxu0 0
      %3630 = vmatpush1.bf16.msra.mxu0 0
      %3631 = vmatprep.subr.bf16.mxu0 0
      %3632 = vmatpush1.bf16.msra.mxu0 %v3615
      %3633 = vmatprep.subr.bf16.mxu0 0
      %3634 = vmatpush2.bf16.msra.mxu0 0
      %3635 = vmatprep.subr.bf16.mxu0 0
      %3636 = vmatpush2.bf16.msra.mxu0 0
      %3637 = vmatprep.subr.bf16.mxu0 0
      %3638 = vmatpush2.bf16.msra.mxu0 0
      %3639 = vmatprep.subr.bf16.mxu0 0
      %3640 = vmatpush2.bf16.msra.mxu0 0
      %3641 = vmatprep.subr.bf16.mxu0 0
      %3642 = vmatpush2.bf16.msra.mxu0 0
      %3643 = vmatprep.subr.bf16.mxu0 0
      %3644 = vmatpush2.bf16.msra.mxu0 0
      %3645 = vmatprep.subr.bf16.mxu0 0
      %3646 = vmatpush2.bf16.msra.mxu0 0
      %3647 = vmatprep.subr.bf16.mxu0 0
      %3648 = vmatpush2.bf16.msra.mxu0 0
      %3649 = vmatprep.mubr.bf16.mxu0 0
      %3650 = vmatmul.mubr.bf16.gmra.mxu0 %v3600
      %v3651 = vpop.f32.mrf.mxu0
      %v3652 = vadd.f32 0.0, %v3651
      %v3653 = vpop.f32.mrf.mxu0
      %v3654 = vpop.f32.mrf.mxu0
      %v3655 = vadd.f32 0.0, %v3654
      %v3656 = vpop.f32.mrf.mxu0
      %3657 = vmatprep.mubr.bf16.mxu0 0
      %3658 = vmatmul.mubr.bf16.gmra.mxu0 %v3603
      %v3659 = vpop.f32.mrf.mxu0
      %v3660 = vadd.f32 0.0, %v3659
      %v3661 = vpop.f32.mrf.mxu0
      %v3662 = vpop.f32.mrf.mxu0
      %v3663 = vadd.f32 0.0, %v3662
      %v3664 = vpop.f32.mrf.mxu0
      %3665 = vmatprep.mubr.bf16.mxu0 0
      %3666 = vmatmul.mubr.bf16.gmra.mxu0 %v3606
      %v3667 = vpop.f32.mrf.mxu0
      %v3668 = vadd.f32 0.0, %v3667
      %v3669 = vpop.f32.mrf.mxu0
      %v3670 = vpop.f32.mrf.mxu0
      %v3671 = vadd.f32 0.0, %v3670
      %v3672 = vpop.f32.mrf.mxu0
      %3673 = vmatprep.mubr.bf16.mxu0 0
      %3674 = vmatmul.mubr.bf16.gmra.mxu0 %v3609
      %v3675 = vpop.f32.mrf.mxu0
      %v3676 = vadd.f32 0.0, %v3675
      %v3677 = vpop.f32.mrf.mxu0
      %v3678 = vpop.f32.mrf.mxu0
      %v3679 = vadd.f32 0.0, %v3678
      %v3680 = vpop.f32.mrf.mxu0
      %3681 = vmatprep.mubr.bf16.mxu0 0
      %3682 = vmatmul.mubr.bf16.gmra.mxu0 %v3612
      %v3683 = vpop.f32.mrf.mxu0
      %v3684 = vadd.f32 0.0, %v3683
      %v3685 = vpop.f32.mrf.mxu0
      %v3686 = vpop.f32.mrf.mxu0
      %v3687 = vadd.f32 0.0, %v3686
      %v3688 = vpop.f32.mrf.mxu0
      %3689 = vdwg.mxu0
      %v3690 = vadd.f32 %v3530, %v3652
      %v3691 = vadd.f32 %v3531, %v3655
      %v3692 = vadd.f32 %v3532, %v3660
      %v3693 = vadd.f32 %v3533, %v3663
      %v3694 = vadd.f32 %v3534, %v3668
      %v3695 = vadd.f32 %v3535, %v3671
      %v3696 = vadd.f32 %v3536, %v3676
      %v3697 = vadd.f32 %v3537, %v3679
      %v3698 = vadd.f32 %v3538, %v3684
      %v3699 = vadd.f32 %v3539, %v3687
      %v3700 = vld [vmem:[%s368 + $0x4] sm:$0xc]
      %s3701 = scalar_lea.vmem %s373, 92
      %v3702 = vld [vmem:[%s3701] sm:$0xf]
      %v3704 = vunpack.c.l.b16 %v3700
      %v3705 = vpack.c.b16 %v3412, %v3704
      %v3706 = vrot.slane %v3705, 2
      %v3707 = vrot.slane %v3423, 2
      %v3708 = vsel %vm1095, %v3706, %v3707
      %v3709 = vrot.slane %v3424, 2
      %v3710 = vsel %vm1095, %v3707, %v3709
      %v3711 = vrot.slane %v3425, 2
      %v3712 = vsel %vm1095, %v3709, %v3711
      %v3713 = vrot.slane %v3426, 2
      %v3714 = vsel %vm1095, %v3711, %v3713
      %v3715 = vrot.slane %v3545, 2
      %v3716 = vsel %vm1095, %v3713, %v3715
      %v3718 = vsel %vm477, %v3708, 0
      %v3721 = vsel %vm477, %v3710, 0
      %v3724 = vsel %vm477, %v3712, 0
      %v3727 = vsel %vm477, %v3714, 0
      %v3730 = vsel %vm477, %v3716, 0
      %v3733 = vsel %vm493, %v3702, 0
      %3735 = vmatprep.subr.bf16.mxu0 0
      %3736 = vmatpush1.bf16.msra.mxu0 0
      %3737 = vmatprep.subr.bf16.mxu0 0
      %3738 = vmatpush1.bf16.msra.mxu0 0
      %3739 = vmatprep.subr.bf16.mxu0 0
      %3740 = vmatpush1.bf16.msra.mxu0 0
      %3741 = vmatprep.subr.bf16.mxu0 0
      %3742 = vmatpush1.bf16.msra.mxu0 0
      %3743 = vmatprep.subr.bf16.mxu0 0
      %3744 = vmatpush1.bf16.msra.mxu0 0
      %3745 = vmatprep.subr.bf16.mxu0 0
      %3746 = vmatpush1.bf16.msra.mxu0 0
      %3747 = vmatprep.subr.bf16.mxu0 0
      %3748 = vmatpush1.bf16.msra.mxu0 0
      %3749 = vmatprep.subr.bf16.mxu0 0
      %3750 = vmatpush1.bf16.msra.mxu0 %v3733
      %3751 = vmatprep.subr.bf16.mxu0 0
      %3752 = vmatpush2.bf16.msra.mxu0 0
      %3753 = vmatprep.subr.bf16.mxu0 0
      %3754 = vmatpush2.bf16.msra.mxu0 0
      %3755 = vmatprep.subr.bf16.mxu0 0
      %3756 = vmatpush2.bf16.msra.mxu0 0
      %3757 = vmatprep.subr.bf16.mxu0 0
      %3758 = vmatpush2.bf16.msra.mxu0 0
      %3759 = vmatprep.subr.bf16.mxu0 0
      %3760 = vmatpush2.bf16.msra.mxu0 0
      %3761 = vmatprep.subr.bf16.mxu0 0
      %3762 = vmatpush2.bf16.msra.mxu0 0
      %3763 = vmatprep.subr.bf16.mxu0 0
      %3764 = vmatpush2.bf16.msra.mxu0 0
      %3765 = vmatprep.subr.bf16.mxu0 0
      %3766 = vmatpush2.bf16.msra.mxu0 0
      %3767 = vmatprep.mubr.bf16.mxu0 0
      %3768 = vmatmul.mubr.bf16.gmra.mxu0 %v3718
      %v3769 = vpop.f32.mrf.mxu0
      %v3770 = vadd.f32 0.0, %v3769
      %v3771 = vpop.f32.mrf.mxu0
      %v3772 = vpop.f32.mrf.mxu0
      %v3773 = vadd.f32 0.0, %v3772
      %v3774 = vpop.f32.mrf.mxu0
      %3775 = vmatprep.mubr.bf16.mxu0 0
      %3776 = vmatmul.mubr.bf16.gmra.mxu0 %v3721
      %v3777 = vpop.f32.mrf.mxu0
      %v3778 = vadd.f32 0.0, %v3777
      %v3779 = vpop.f32.mrf.mxu0
      %v3780 = vpop.f32.mrf.mxu0
      %v3781 = vadd.f32 0.0, %v3780
      %v3782 = vpop.f32.mrf.mxu0
      %3783 = vmatprep.mubr.bf16.mxu0 0
      %3784 = vmatmul.mubr.bf16.gmra.mxu0 %v3724
      %v3785 = vpop.f32.mrf.mxu0
      %v3786 = vadd.f32 0.0, %v3785
      %v3787 = vpop.f32.mrf.mxu0
      %v3788 = vpop.f32.mrf.mxu0
      %v3789 = vadd.f32 0.0, %v3788
      %v3790 = vpop.f32.mrf.mxu0
      %3791 = vmatprep.mubr.bf16.mxu0 0
      %3792 = vmatmul.mubr.bf16.gmra.mxu0 %v3727
      %v3793 = vpop.f32.mrf.mxu0
      %v3794 = vadd.f32 0.0, %v3793
      %v3795 = vpop.f32.mrf.mxu0
      %v3796 = vpop.f32.mrf.mxu0
      %v3797 = vadd.f32 0.0, %v3796
      %v3798 = vpop.f32.mrf.mxu0
      %3799 = vmatprep.mubr.bf16.mxu0 0
      %3800 = vmatmul.mubr.bf16.gmra.mxu0 %v3730
      %v3801 = vpop.f32.mrf.mxu0
      %v3802 = vadd.f32 0.0, %v3801
      %v3803 = vpop.f32.mrf.mxu0
      %v3804 = vpop.f32.mrf.mxu0
      %v3805 = vadd.f32 0.0, %v3804
      %v3806 = vpop.f32.mrf.mxu0
      %3807 = vdwg.mxu0
      %v3808 = vadd.f32 %v3690, %v3770
      %v3809 = vadd.f32 %v3691, %v3773
      %v3810 = vadd.f32 %v3692, %v3778
      %v3811 = vadd.f32 %v3693, %v3781
      %v3812 = vadd.f32 %v3694, %v3786
      %v3813 = vadd.f32 %v3695, %v3789
      %v3814 = vadd.f32 %v3696, %v3794
      %v3815 = vadd.f32 %v3697, %v3797
      %v3816 = vadd.f32 %v3698, %v3802
      %v3817 = vadd.f32 %v3699, %v3805
      %v3818 = vld [vmem:[%s368 + $0x8] sm:$0xc]
      %v3819 = vld [vmem:[%s368 + $0xc] sm:$0xf]
      %v3820 = vld [vmem:[%s368 + $0x10] sm:$0xf]
      %v3821 = vld [vmem:[%s368 + $0x14] sm:$0xf]
      %v3822 = vld [vmem:[%s368 + $0x18] sm:$0xf]
      %v3823 = vld [vmem:[%s368 + $0x1c] sm:$0xf]
      %v3824 = vld [vmem:[%s368 + $0x20] sm:$0xf]
      %v3825 = vld [vmem:[%s368 + $0x24] sm:$0xf]
      %v3826 = vld [vmem:[%s368 + $0x28] sm:$0xf]
      %v3827 = vld [vmem:[%s368 + $0x2c] sm:$0xf]
      %v3828 = vld [vmem:[%s368 + $0x30] sm:$0x3]
      %s3829 = scalar_lea.vmem %s373, 96
      %v3830 = vld [vmem:[%s3829] sm:$0xf]
      %v3842 = vunpack.c.l.b16 %v3818
      %v3843 = vunpack.c.l.b16 %v3819
      %v3844 = vunpack.c.l.b16 %v3820
      %v3845 = vunpack.c.l.b16 %v3821
      %v3846 = vunpack.c.l.b16 %v3822
      %v3847 = vunpack.c.l.b16 %v3823
      %v3848 = vunpack.c.l.b16 %v3824
      %v3849 = vunpack.c.l.b16 %v3825
      %v3850 = vunpack.c.l.b16 %v3826
      %v3851 = vunpack.c.l.b16 %v3827
      %v3852 = vunpack.c.l.b16 %v3828
      %v3853 = vpack.c.b16 %v3843, %v3842
      %v3854 = vpack.c.b16 %v3845, %v3844
      %v3855 = vpack.c.b16 %v3847, %v3846
      %v3856 = vpack.c.b16 %v3849, %v3848
      %v3857 = vpack.c.b16 %v3851, %v3850
      %v3858 = vpack.c.b16 %v3852, %v3852
      %v3859 = vrot.slane %v3853, 2
      %v3860 = vrot.slane %v3854, 2
      %v3861 = vsel %vm1095, %v3859, %v3860
      %v3862 = vrot.slane %v3855, 2
      %v3863 = vsel %vm1095, %v3860, %v3862
      %v3864 = vrot.slane %v3856, 2
      %v3865 = vsel %vm1095, %v3862, %v3864
      %v3866 = vrot.slane %v3857, 2
      %v3867 = vsel %vm1095, %v3864, %v3866
      %v3868 = vrot.slane %v3858, 2
      %v3869 = vsel %vm1095, %v3866, %v3868
      %v3871 = vsel %vm477, %v3861, 0
      %v3874 = vsel %vm477, %v3863, 0
      %v3877 = vsel %vm477, %v3865, 0
      %v3880 = vsel %vm477, %v3867, 0
      %v3883 = vsel %vm477, %v3869, 0
      %v3886 = vsel %vm493, %v3830, 0
      %3888 = vmatprep.subr.bf16.mxu0 0
      %3889 = vmatpush1.bf16.msra.mxu0 0
      %3890 = vmatprep.subr.bf16.mxu0 0
      %3891 = vmatpush1.bf16.msra.mxu0 0
      %3892 = vmatprep.subr.bf16.mxu0 0
      %3893 = vmatpush1.bf16.msra.mxu0 0
      %3894 = vmatprep.subr.bf16.mxu0 0
      %3895 = vmatpush1.bf16.msra.mxu0 0
      %3896 = vmatprep.subr.bf16.mxu0 0
      %3897 = vmatpush1.bf16.msra.mxu0 0
      %3898 = vmatprep.subr.bf16.mxu0 0
      %3899 = vmatpush1.bf16.msra.mxu0 0
      %3900 = vmatprep.subr.bf16.mxu0 0
      %3901 = vmatpush1.bf16.msra.mxu0 0
      %3902 = vmatprep.subr.bf16.mxu0 0
      %3903 = vmatpush1.bf16.msra.mxu0 %v3886
      %3904 = vmatprep.subr.bf16.mxu0 0
      %3905 = vmatpush2.bf16.msra.mxu0 0
      %3906 = vmatprep.subr.bf16.mxu0 0
      %3907 = vmatpush2.bf16.msra.mxu0 0
      %3908 = vmatprep.subr.bf16.mxu0 0
      %3909 = vmatpush2.bf16.msra.mxu0 0
      %3910 = vmatprep.subr.bf16.mxu0 0
      %3911 = vmatpush2.bf16.msra.mxu0 0
      %3912 = vmatprep.subr.bf16.mxu0 0
      %3913 = vmatpush2.bf16.msra.mxu0 0
      %3914 = vmatprep.subr.bf16.mxu0 0
      %3915 = vmatpush2.bf16.msra.mxu0 0
      %3916 = vmatprep.subr.bf16.mxu0 0
      %3917 = vmatpush2.bf16.msra.mxu0 0
      %3918 = vmatprep.subr.bf16.mxu0 0
      %3919 = vmatpush2.bf16.msra.mxu0 0
      %3920 = vmatprep.mubr.bf16.mxu0 0
      %3921 = vmatmul.mubr.bf16.gmra.mxu0 %v3871
      %v3922 = vpop.f32.mrf.mxu0
      %v3923 = vadd.f32 0.0, %v3922
      %v3924 = vpop.f32.mrf.mxu0
      %v3925 = vpop.f32.mrf.mxu0
      %v3926 = vadd.f32 0.0, %v3925
      %v3927 = vpop.f32.mrf.mxu0
      %3928 = vmatprep.mubr.bf16.mxu0 0
      %3929 = vmatmul.mubr.bf16.gmra.mxu0 %v3874
      %v3930 = vpop.f32.mrf.mxu0
      %v3931 = vadd.f32 0.0, %v3930
      %v3932 = vpop.f32.mrf.mxu0
      %v3933 = vpop.f32.mrf.mxu0
      %v3934 = vadd.f32 0.0, %v3933
      %v3935 = vpop.f32.mrf.mxu0
      %3936 = vmatprep.mubr.bf16.mxu0 0
      %3937 = vmatmul.mubr.bf16.gmra.mxu0 %v3877
      %v3938 = vpop.f32.mrf.mxu0
      %v3939 = vadd.f32 0.0, %v3938
      %v3940 = vpop.f32.mrf.mxu0
      %v3941 = vpop.f32.mrf.mxu0
      %v3942 = vadd.f32 0.0, %v3941
      %v3943 = vpop.f32.mrf.mxu0
      %3944 = vmatprep.mubr.bf16.mxu0 0
      %3945 = vmatmul.mubr.bf16.gmra.mxu0 %v3880
      %v3946 = vpop.f32.mrf.mxu0
      %v3947 = vadd.f32 0.0, %v3946
      %v3948 = vpop.f32.mrf.mxu0
      %v3949 = vpop.f32.mrf.mxu0
      %v3950 = vadd.f32 0.0, %v3949
      %v3951 = vpop.f32.mrf.mxu0
      %3952 = vmatprep.mubr.bf16.mxu0 0
      %3953 = vmatmul.mubr.bf16.gmra.mxu0 %v3883
      %v3954 = vpop.f32.mrf.mxu0
      %v3955 = vadd.f32 0.0, %v3954
      %v3956 = vpop.f32.mrf.mxu0
      %v3957 = vpop.f32.mrf.mxu0
      %v3958 = vadd.f32 0.0, %v3957
      %v3959 = vpop.f32.mrf.mxu0
      %3960 = vdwg.mxu0
      %v3961 = vadd.f32 %v3808, %v3923
      %v3962 = vadd.f32 %v3809, %v3926
      %v3963 = vadd.f32 %v3810, %v3931
      %v3964 = vadd.f32 %v3811, %v3934
      %v3965 = vadd.f32 %v3812, %v3939
      %v3966 = vadd.f32 %v3813, %v3942
      %v3967 = vadd.f32 %v3814, %v3947
      %v3968 = vadd.f32 %v3815, %v3950
      %v3969 = vadd.f32 %v3816, %v3955
      %v3970 = vadd.f32 %v3817, %v3958
      %v3971 = vld [vmem:[%s368 + $0x30] sm:$0x7]
      %s3972 = scalar_lea.vmem %s373, 100
      %v3973 = vld [vmem:[%s3972] sm:$0xf]
      %v3975 = vunpack.c.l.b16 %v3971
      %v3976 = vpack.c.b16 %v3975, %v3975
      %v3978 = vshrl.u32 %v3853, 16
      %v3980 = vrot.slane %v3978, 2
      %v3981 = vshll.u32 %v3853, 16
      %v3983 = vrot.slane %v3981, 3
      %v3984 = vor.u32 %v3980, %v3983
      %v3986 = vshrl.u32 %v3854, 16
      %v3988 = vrot.slane %v3986, 2
      %v3989 = vshll.u32 %v3854, 16
      %v3991 = vrot.slane %v3989, 3
      %v3992 = vor.u32 %v3988, %v3991
      %v3993 = vsel %vm1367, %v3984, %v3992
      %v3995 = vshrl.u32 %v3855, 16
      %v3997 = vrot.slane %v3995, 2
      %v3998 = vshll.u32 %v3855, 16
      %v4000 = vrot.slane %v3998, 3
      %v4001 = vor.u32 %v3997, %v4000
      %v4002 = vsel %vm1367, %v3992, %v4001
      %v4004 = vshrl.u32 %v3856, 16
      %v4006 = vrot.slane %v4004, 2
      %v4007 = vshll.u32 %v3856, 16
      %v4009 = vrot.slane %v4007, 3
      %v4010 = vor.u32 %v4006, %v4009
      %v4011 = vsel %vm1367, %v4001, %v4010
      %v4013 = vshrl.u32 %v3857, 16
      %v4015 = vrot.slane %v4013, 2
      %v4016 = vshll.u32 %v3857, 16
      %v4018 = vrot.slane %v4016, 3
      %v4019 = vor.u32 %v4015, %v4018
      %v4020 = vsel %vm1367, %v4010, %v4019
      %v4022 = vshrl.u32 %v3976, 16
      %v4024 = vrot.slane %v4022, 2
      %v4025 = vshll.u32 %v3976, 16
      %v4027 = vrot.slane %v4025, 3
      %v4028 = vor.u32 %v4024, %v4027
      %v4029 = vsel %vm1367, %v4019, %v4028
      %v4031 = vsel %vm477, %v3993, 0
      %v4034 = vsel %vm477, %v4002, 0
      %v4037 = vsel %vm477, %v4011, 0
      %v4040 = vsel %vm477, %v4020, 0
      %v4043 = vsel %vm477, %v4029, 0
      %v4046 = vsel %vm493, %v3973, 0
      %4048 = vmatprep.subr.bf16.mxu0 0
      %4049 = vmatpush1.bf16.msra.mxu0 0
      %4050 = vmatprep.subr.bf16.mxu0 0
      %4051 = vmatpush1.bf16.msra.mxu0 0
      %4052 = vmatprep.subr.bf16.mxu0 0
      %4053 = vmatpush1.bf16.msra.mxu0 0
      %4054 = vmatprep.subr.bf16.mxu0 0
      %4055 = vmatpush1.bf16.msra.mxu0 0
      %4056 = vmatprep.subr.bf16.mxu0 0
      %4057 = vmatpush1.bf16.msra.mxu0 0
      %4058 = vmatprep.subr.bf16.mxu0 0
      %4059 = vmatpush1.bf16.msra.mxu0 0
      %4060 = vmatprep.subr.bf16.mxu0 0
      %4061 = vmatpush1.bf16.msra.mxu0 0
      %4062 = vmatprep.subr.bf16.mxu0 0
      %4063 = vmatpush1.bf16.msra.mxu0 %v4046
      %4064 = vmatprep.subr.bf16.mxu0 0
      %4065 = vmatpush2.bf16.msra.mxu0 0
      %4066 = vmatprep.subr.bf16.mxu0 0
      %4067 = vmatpush2.bf16.msra.mxu0 0
      %4068 = vmatprep.subr.bf16.mxu0 0
      %4069 = vmatpush2.bf16.msra.mxu0 0
      %4070 = vmatprep.subr.bf16.mxu0 0
      %4071 = vmatpush2.bf16.msra.mxu0 0
      %4072 = vmatprep.subr.bf16.mxu0 0
      %4073 = vmatpush2.bf16.msra.mxu0 0
      %4074 = vmatprep.subr.bf16.mxu0 0
      %4075 = vmatpush2.bf16.msra.mxu0 0
      %4076 = vmatprep.subr.bf16.mxu0 0
      %4077 = vmatpush2.bf16.msra.mxu0 0
      %4078 = vmatprep.subr.bf16.mxu0 0
      %4079 = vmatpush2.bf16.msra.mxu0 0
      %4080 = vmatprep.mubr.bf16.mxu0 0
      %4081 = vmatmul.mubr.bf16.gmra.mxu0 %v4031
      %v4082 = vpop.f32.mrf.mxu0
      %v4083 = vadd.f32 0.0, %v4082
      %v4084 = vpop.f32.mrf.mxu0
      %v4085 = vpop.f32.mrf.mxu0
      %v4086 = vadd.f32 0.0, %v4085
      %v4087 = vpop.f32.mrf.mxu0
      %4088 = vmatprep.mubr.bf16.mxu0 0
      %4089 = vmatmul.mubr.bf16.gmra.mxu0 %v4034
      %v4090 = vpop.f32.mrf.mxu0
      %v4091 = vadd.f32 0.0, %v4090
      %v4092 = vpop.f32.mrf.mxu0
      %v4093 = vpop.f32.mrf.mxu0
      %v4094 = vadd.f32 0.0, %v4093
      %v4095 = vpop.f32.mrf.mxu0
      %4096 = vmatprep.mubr.bf16.mxu0 0
      %4097 = vmatmul.mubr.bf16.gmra.mxu0 %v4037
      %v4098 = vpop.f32.mrf.mxu0
      %v4099 = vadd.f32 0.0, %v4098
      %v4100 = vpop.f32.mrf.mxu0
      %v4101 = vpop.f32.mrf.mxu0
      %v4102 = vadd.f32 0.0, %v4101
      %v4103 = vpop.f32.mrf.mxu0
      %4104 = vmatprep.mubr.bf16.mxu0 0
      %4105 = vmatmul.mubr.bf16.gmra.mxu0 %v4040
      %v4106 = vpop.f32.mrf.mxu0
      %v4107 = vadd.f32 0.0, %v4106
      %v4108 = vpop.f32.mrf.mxu0
      %v4109 = vpop.f32.mrf.mxu0
      %v4110 = vadd.f32 0.0, %v4109
      %v4111 = vpop.f32.mrf.mxu0
      %4112 = vmatprep.mubr.bf16.mxu0 0
      %4113 = vmatmul.mubr.bf16.gmra.mxu0 %v4043
      %v4114 = vpop.f32.mrf.mxu0
      %v4115 = vadd.f32 0.0, %v4114
      %v4116 = vpop.f32.mrf.mxu0
      %v4117 = vpop.f32.mrf.mxu0
      %v4118 = vadd.f32 0.0, %v4117
      %v4119 = vpop.f32.mrf.mxu0
      %4120 = vdwg.mxu0
      %v4121 = vadd.f32 %v3961, %v4083
      %v4122 = vadd.f32 %v3962, %v4086
      %v4123 = vadd.f32 %v3963, %v4091
      %v4124 = vadd.f32 %v3964, %v4094
      %v4125 = vadd.f32 %v3965, %v4099
      %v4126 = vadd.f32 %v3966, %v4102
      %v4127 = vadd.f32 %v3967, %v4107
      %v4128 = vadd.f32 %v3968, %v4110
      %v4129 = vadd.f32 %v3969, %v4115
      %v4130 = vadd.f32 %v3970, %v4118
      %v4131 = vld [vmem:[%s368 + $0x8] sm:$0x8]
      %s4132 = scalar_lea.vmem %s373, 104
      %v4133 = vld [vmem:[%s4132] sm:$0xf]
      %v4135 = vunpack.c.l.b16 %v4131
      %v4136 = vpack.c.b16 %v3843, %v4135
      %v4137 = vrot.slane %v4136, 3
      %v4138 = vrot.slane %v3854, 3
      %v4139 = vsel %vm1528, %v4137, %v4138
      %v4140 = vrot.slane %v3855, 3
      %v4141 = vsel %vm1528, %v4138, %v4140
      %v4142 = vrot.slane %v3856, 3
      %v4143 = vsel %vm1528, %v4140, %v4142
      %v4144 = vrot.slane %v3857, 3
      %v4145 = vsel %vm1528, %v4142, %v4144
      %v4146 = vrot.slane %v3976, 3
      %v4147 = vsel %vm1528, %v4144, %v4146
      %v4149 = vsel %vm477, %v4139, 0
      %v4152 = vsel %vm477, %v4141, 0
      %v4155 = vsel %vm477, %v4143, 0
      %v4158 = vsel %vm477, %v4145, 0
      %v4161 = vsel %vm477, %v4147, 0
      %v4164 = vsel %vm493, %v4133, 0
      %4166 = vmatprep.subr.bf16.mxu0 0
      %4167 = vmatpush1.bf16.msra.mxu0 0
      %4168 = vmatprep.subr.bf16.mxu0 0
      %4169 = vmatpush1.bf16.msra.mxu0 0
      %4170 = vmatprep.subr.bf16.mxu0 0
      %4171 = vmatpush1.bf16.msra.mxu0 0
      %4172 = vmatprep.subr.bf16.mxu0 0
      %4173 = vmatpush1.bf16.msra.mxu0 0
      %4174 = vmatprep.subr.bf16.mxu0 0
      %4175 = vmatpush1.bf16.msra.mxu0 0
      %4176 = vmatprep.subr.bf16.mxu0 0
      %4177 = vmatpush1.bf16.msra.mxu0 0
      %4178 = vmatprep.subr.bf16.mxu0 0
      %4179 = vmatpush1.bf16.msra.mxu0 0
      %4180 = vmatprep.subr.bf16.mxu0 0
      %4181 = vmatpush1.bf16.msra.mxu0 %v4164
      %4182 = vmatprep.subr.bf16.mxu0 0
      %4183 = vmatpush2.bf16.msra.mxu0 0
      %4184 = vmatprep.subr.bf16.mxu0 0
      %4185 = vmatpush2.bf16.msra.mxu0 0
      %4186 = vmatprep.subr.bf16.mxu0 0
      %4187 = vmatpush2.bf16.msra.mxu0 0
      %4188 = vmatprep.subr.bf16.mxu0 0
      %4189 = vmatpush2.bf16.msra.mxu0 0
      %4190 = vmatprep.subr.bf16.mxu0 0
      %4191 = vmatpush2.bf16.msra.mxu0 0
      %4192 = vmatprep.subr.bf16.mxu0 0
      %4193 = vmatpush2.bf16.msra.mxu0 0
      %4194 = vmatprep.subr.bf16.mxu0 0
      %4195 = vmatpush2.bf16.msra.mxu0 0
      %4196 = vmatprep.subr.bf16.mxu0 0
      %4197 = vmatpush2.bf16.msra.mxu0 0
      %4198 = vmatprep.mubr.bf16.mxu0 0
      %4199 = vmatmul.mubr.bf16.gmra.mxu0 %v4149
      %v4200 = vpop.f32.mrf.mxu0
      %v4201 = vadd.f32 0.0, %v4200
      %v4202 = vpop.f32.mrf.mxu0
      %v4203 = vpop.f32.mrf.mxu0
      %v4204 = vadd.f32 0.0, %v4203
      %v4205 = vpop.f32.mrf.mxu0
      %4206 = vmatprep.mubr.bf16.mxu0 0
      %4207 = vmatmul.mubr.bf16.gmra.mxu0 %v4152
      %v4208 = vpop.f32.mrf.mxu0
      %v4209 = vadd.f32 0.0, %v4208
      %v4210 = vpop.f32.mrf.mxu0
      %v4211 = vpop.f32.mrf.mxu0
      %v4212 = vadd.f32 0.0, %v4211
      %v4213 = vpop.f32.mrf.mxu0
      %4214 = vmatprep.mubr.bf16.mxu0 0
      %4215 = vmatmul.mubr.bf16.gmra.mxu0 %v4155
      %v4216 = vpop.f32.mrf.mxu0
      %v4217 = vadd.f32 0.0, %v4216
      %v4218 = vpop.f32.mrf.mxu0
      %v4219 = vpop.f32.mrf.mxu0
      %v4220 = vadd.f32 0.0, %v4219
      %v4221 = vpop.f32.mrf.mxu0
      %4222 = vmatprep.mubr.bf16.mxu0 0
      %4223 = vmatmul.mubr.bf16.gmra.mxu0 %v4158
      %v4224 = vpop.f32.mrf.mxu0
      %v4225 = vadd.f32 0.0, %v4224
      %v4226 = vpop.f32.mrf.mxu0
      %v4227 = vpop.f32.mrf.mxu0
      %v4228 = vadd.f32 0.0, %v4227
      %v4229 = vpop.f32.mrf.mxu0
      %4230 = vmatprep.mubr.bf16.mxu0 0
      %4231 = vmatmul.mubr.bf16.gmra.mxu0 %v4161
      %v4232 = vpop.f32.mrf.mxu0
      %v4233 = vadd.f32 0.0, %v4232
      %v4234 = vpop.f32.mrf.mxu0
      %v4235 = vpop.f32.mrf.mxu0
      %v4236 = vadd.f32 0.0, %v4235
      %v4237 = vpop.f32.mrf.mxu0
      %4238 = vdwg.mxu0
      %v4239 = vadd.f32 %v4121, %v4201
      %v4240 = vadd.f32 %v4122, %v4204
      %v4241 = vadd.f32 %v4123, %v4209
      %v4242 = vadd.f32 %v4124, %v4212
      %v4243 = vadd.f32 %v4125, %v4217
      %v4244 = vadd.f32 %v4126, %v4220
      %v4245 = vadd.f32 %v4127, %v4225
      %v4246 = vadd.f32 %v4128, %v4228
      %v4247 = vadd.f32 %v4129, %v4233
      %v4248 = vadd.f32 %v4130, %v4236
      %v4249 = vld [vmem:[%s376] sm:$0x1]
      %v4251 = vlaneseq
      %v4252 = vshrl.u32 %v4251, 7
      %v4253 = vsub.s32 0, %v4252
      %v4254 = vrot.slane %v4249, %v4253
      %v4256 = vadd.f32 %v4239, %v4254
      %v4257 = vadd.f32 %v4240, %v4254
      %v4258 = vadd.f32 %v4241, %v4254
      %v4259 = vadd.f32 %v4242, %v4254
      %v4260 = vadd.f32 %v4243, %v4254
      %v4261 = vadd.f32 %v4244, %v4254
      %v4262 = vadd.f32 %v4245, %v4254
      %v4263 = vadd.f32 %v4246, %v4254
      %v4264 = vadd.f32 %v4247, %v4254
      %v4265 = vadd.f32 %v4248, %v4254
      %v4266 = vmax.f32 %v4256, 0.0
      %v4267 = vmax.f32 %v4257, 0.0
      %v4268 = vmax.f32 %v4258, 0.0
      %v4269 = vmax.f32 %v4259, 0.0
      %v4270 = vmax.f32 %v4260, 0.0
      %v4271 = vmax.f32 %v4261, 0.0
      %v4272 = vmax.f32 %v4262, 0.0
      %v4273 = vmax.f32 %v4263, 0.0
      %v4274 = vmax.f32 %v4264, 0.0
      %v4275 = vmax.f32 %v4265, 0.0
      %v4276 = vpack.c.bf16 %v4267, %v4266
      %v4277 = vpack.c.bf16 %v4269, %v4268
      %v4278 = vpack.c.bf16 %v4271, %v4270
      %v4279 = vpack.c.bf16 %v4273, %v4272
      %v4280 = vpack.c.bf16 %v4275, %v4274
      %v4286 = vunpack.c.l.b16 %v4276
      %v4287 = vunpack.c.h.b16 %v4276
      %v4288 = vunpack.c.l.b16 %v4277
      %v4289 = vunpack.c.h.b16 %v4277
      %v4290 = vunpack.c.l.b16 %v4278
      %v4291 = vunpack.c.h.b16 %v4278
      %v4292 = vunpack.c.l.b16 %v4279
      %v4293 = vunpack.c.h.b16 %v4279
      %v4294 = vunpack.c.l.b16 %v4280
      %v4295 = vunpack.c.h.b16 %v4280
      %v4296 = vpack.c.b16 %v4286, %v4286
      %v4297 = vpack.c.b16 %v4287, %v4287
      %v4298 = vpack.c.b16 %v4288, %v4288
      %v4299 = vpack.c.b16 %v4289, %v4289
      %v4300 = vpack.c.b16 %v4290, %v4290
      %v4301 = vpack.c.b16 %v4291, %v4291
      %v4302 = vpack.c.b16 %v4292, %v4292
      %v4303 = vpack.c.b16 %v4293, %v4293
      %v4304 = vpack.c.b16 %v4294, %v4294
      %v4305 = vpack.c.b16 %v4295, %v4295
      %vm4316 = vcmask 60416
      %4317 = vst.msk [vmem:[%s388] sm:$0xf] %vm4316, %v4296
      %4318 = vst.msk [vmem:[%s388 + $0x4] sm:$0xf] %vm4316, %v4297
      %4319 = vst.msk [vmem:[%s388 + $0x8] sm:$0xf] %vm4316, %v4298
      %4320 = vst.msk [vmem:[%s388 + $0xc] sm:$0xf] %vm4316, %v4299
      %4321 = vst.msk [vmem:[%s388 + $0x10] sm:$0xf] %vm4316, %v4300
      %4322 = vst.msk [vmem:[%s388 + $0x14] sm:$0xf] %vm4316, %v4301
      %4323 = vst.msk [vmem:[%s388 + $0x18] sm:$0xf] %vm4316, %v4302
      %4324 = vst.msk [vmem:[%s388 + $0x1c] sm:$0xf] %vm4316, %v4303
      %4325 = vst.msk [vmem:[%s388 + $0x20] sm:$0xf] %vm4316, %v4304
      %4326 = vst.msk [vmem:[%s388 + $0x24] sm:$0xf] %vm4316, %v4305
      %p4327 = scmp.lt.s32.totalorder %s21, 1
      %s4328 = scalar_select %p4327, %s21, 1
      %p4329 = scmp.lt.s32.totalorder %s23, 3
      %s4330 = scalar_select %p4329, %s23, 3
      %p4331 = scmp.lt.s32.totalorder %s22, 0
      %s4332 = scalar_select %p4331, %s22, 0
      %s4333 = smul.addr %s4330, 10
      %s4334 = sadd.s32 %s4332, %s4333
      %s4335 = smul.addr %s4328, 40
      %s4336 = sadd.s32 %s4334, %s4335
      %s4337 = smul.addr %s4336, 4
      %s4338 = scalar_lea.vmem %s5, %s4337
      // Predicated region
      $region41: #{basic_block3d_forward.2} parent=39 // pred_check
        %p4339 = pneg %p197
      $region42: #{basic_block3d_forward.2} parent=39 // pred_check_branch
        %4341 = sbr.rel (%p4339) target = $region44
      $region43: #{basic_block3d_forward.2} parent=39 // pred_region
        _
      $region44: #{basic_block3d_forward.2} parent=39 // pred_fallthru
        _
    $region40: #{basic_block3d_forward.2} parent=5 // pred_fallthru
      _
    %p4342 = scmp.le.s32.totalorder 2, %s11
    // Predicated region
    $region45: #{basic_block3d_forward.2} parent=5 // pred_check
      %p4343 = pneg %p4342
    $region46: #{basic_block3d_forward.2} parent=5 // pred_check_branch
      %4345 = sbr.rel (%p4343) target = $region48
    $region47: #{basic_block3d_forward.2} parent=5 // pred_region
      %s4346 = ssub.s32 %s11, 2
      // Predicated region
      $region49: #{basic_block3d_forward.2} parent=47 // pred_check
        %p4347 = pneg %p203
      $region50: #{basic_block3d_forward.2} parent=47 // pred_check_branch
        %4349 = sbr.rel (%p4347) target = $region52
      $region51: #{basic_block3d_forward.2} parent=47 // pred_region
        %p4350 = scmp.lt.s32.totalorder %s24, 1
        %s4351 = scalar_select %p4350, %s24, 1
        %p4352 = scmp.lt.s32.totalorder %s26, 3
        %s4353 = scalar_select %p4352, %s26, 3
        %p4354 = scmp.lt.s32.totalorder %s25, 0
        %s4355 = scalar_select %p4354, %s25, 0
        %s4356 = smul.addr %s4353, 10
        %s4357 = sadd.s32 %s4355, %s4356
        %s4358 = smul.addr %s4351, 40
        %s4359 = sadd.s32 %s4357, %s4358
        %s4360 = smul.addr %s4359, 4
        %s4361 = scalar_lea.vmem %s5, %s4360
      $region52: #{basic_block3d_forward.2} parent=47 // pred_fallthru
        _
    $region48: #{basic_block3d_forward.2} parent=5 // pred_fallthru
      _
  $region6: #{basic_block3d_forward.2} parent=0 // loop_footer
    %s15 = sadd.s32 1, %s11
  $region7: #{basic_block3d_forward.2} parent=0 // loop_footer_branch
    %10 = sbr.rel target = $region3
  $region8: #{basic_block3d_forward.2} parent=0 // loop_exit
    _

// kernel: basic_block3d_forward.3
$region0: #{basic_block3d_forward.3}
  #allocation0 [shape = 'u32[]', space=smem, size = 0x4, offset = 0x4, fixed_abs, tag = 'smem constant byte address 0x4 - core index']
  #allocation1 [shape = 'u32[144,128]{1,0:T(1,128)}', space=vmem, size = 0x12000, scoped, tag = 'internal scratch']
  %s0 = inlined_call_operand.vmem [shape: bf16[2,6,110,8], index: 0, kind: input, shape index: {}, may-alias: {0,1,2}]
  %s1 = inlined_call_operand.vmem [shape: bf16[2,6,110,8], index: 1, kind: input, shape index: {}, may-alias: {0,1,2}]
  %s2 = inlined_call_operand.vmem [shape: bf16[2,6,110,8], index: 2, kind: input, shape index: {}, may-alias: {0,1,2}]
  %s3 = inlined_call_operand.vmem [shape: bf16[2,6,110,8], index: 3, kind: input, shape index: {}]
  %s4 = inlined_call_operand.vmem [shape: bf16[27,8,8], index: 4, kind: input, shape index: {}]
  %s5 = inlined_call_operand.vmem [shape: f32[1,8], index: 5, kind: input, shape index: {}]
  %s6 = inlined_call_operand.vmem [shape: f32[2,4,80,8], index: 6, kind: output, shape index: {}]
  %s7 = sld [smem:[#allocation0]]
  $region57: #{basic_block3d_forward.3} parent=0
    _
  %s9 = ssub.s32 1, %s7
  %s10 = scalar_select 0, %s9, %s7
  loop: start=0, step=1, limit=10
  $region2: #{basic_block3d_forward.3} parent=0 // loop_pre_header
    _
  $region3: #{basic_block3d_forward.3} parent=0 // loop_header
    %s12 = sphi 0, %s16
    %p13 = scmp.ge.s32.totalorder %s12, 10
    %s19 = sphi 0, %s38
    %s20 = sphi 0, %s34
    %s21 = sphi 0, %s30
    %s22 = sphi 0, %s19
    %s23 = sphi 0, %s20
    %s24 = sphi 0, %s21
    %s25 = sphi 0, %s22
    %s26 = sphi 0, %s23
    %s27 = sphi 0, %s24
    %s43 = sphi 0, %s45
    %s46 = sphi 0, %s43
    %s47 = sphi 0, %s46
    %s63 = sphi 0, %s47
    %s73 = sphi 0, %s75
    %s76 = sphi 0, %s73
    %s77 = sphi 0, %s76
    %s93 = sphi 0, %s77
    %s103 = sphi 0, %s105
    %s106 = sphi 0, %s103
    %s107 = sphi 0, %s106
    %s123 = sphi 0, %s107
    %s135 = sphi 0, %s137
    %s138 = sphi 0, %s135
    %s139 = sphi 0, %s138
    %s155 = sphi 0, %s139
    %s161 = sphi 0, %s163
    %s164 = sphi 0, %s161
    %s165 = sphi 0, %s164
    %s181 = sphi 0, %s165
    %s187 = sphi 0, %s189
    %s190 = sphi 0, %s187
    %s191 = sphi 0, %s190
    %s207 = sphi 0, %s191
    %s217 = sphi 0, %s219
    %s220 = sphi 0, %s217
    %s221 = sphi 0, %s220
    %s237 = sphi 0, %s221
  $region4: #{basic_block3d_forward.3} parent=0 // loop_header_branch
    %15 = sbr.rel (%p13) target = $region8
  $region5: #{basic_block3d_forward.3} parent=0 // loop_body
    %s17 = ssub.s32 %s12, 1
    %s18 = ssub.s32 %s12, 2
    %s28 = sadd.s32 1, %s21
    %p29 = scmp.ge.s32.totalorder %s28, 4
    %s30 = scalar_select %p29, 0, %s28
    %s31 = sadd.s32 1, %s20
    %s32 = scalar_select %p29, %s31, %s20
    %p33 = scmp.ge.s32.totalorder %s32, 1
    %s34 = scalar_select %p33, 0, %s32
    %s35 = sadd.s32 1, %s19
    %s36 = scalar_select %p33, %s35, %s19
    %p37 = scmp.ge.s32.totalorder %s36, 2
    %s38 = scalar_select %p37, 0, %s36
    %s39 = ssub.s32 %s19, %s38
    %s40 = ssub.s32 %s21, %s30
    %s41 = sor.u32 %s39, %s40
    %p42 = scmp.eq.s32.totalorder %s41, 0
    %s44 = sadd.s32 %s43, 1
    %s45 = scalar_select %p42, %s43, %s44
    %p48 = pneg %p42
    %p49 = scmp.eq.s32.totalorder %s12, 7
    %p50 = por %p48, %p49
    %p51 = scmp.ne.s32.totalorder %s43, %s46
    %p52 = scmp.eq.s32.totalorder %s12, 0
    %p53 = por %p51, %p52
    %p54 = scmp.ne.s32.totalorder %s43, %s46
    %p55 = scmp.eq.s32.totalorder %s17, 7
    %p56 = por %p54, %p55
    %p57 = scmp.ne.s32.totalorder %s46, %s47
    %p58 = scmp.eq.s32.totalorder %s17, 0
    %p59 = por %p57, %p58
    %p60 = scmp.ne.s32.totalorder %s46, %s47
    %p61 = scmp.eq.s32.totalorder %s18, 7
    %p62 = por %p60, %p61
    %p64 = scmp.ne.s32.totalorder %s47, %s63
    %p65 = scmp.eq.s32.totalorder %s18, 0
    %p66 = por %p64, %p65
    %s67 = sadd.s32 %s21, 1
    %s68 = sadd.s32 %s30, 1
    %s69 = ssub.s32 %s19, %s38
    %s70 = ssub.s32 %s67, %s68
    %s71 = sor.u32 %s69, %s70
    %p72 = scmp.eq.s32.totalorder %s71, 0
    %s74 = sadd.s32 %s73, 1
    %s75 = scalar_select %p72, %s73, %s74
    %p78 = pneg %p72
    %p79 = scmp.eq.s32.totalorder %s12, 7
    %p80 = por %p78, %p79
    %p81 = scmp.ne.s32.totalorder %s73, %s76
    %p82 = scmp.eq.s32.totalorder %s12, 0
    %p83 = por %p81, %p82
    %p84 = scmp.ne.s32.totalorder %s73, %s76
    %p85 = scmp.eq.s32.totalorder %s17, 7
    %p86 = por %p84, %p85
    %p87 = scmp.ne.s32.totalorder %s76, %s77
    %p88 = scmp.eq.s32.totalorder %s17, 0
    %p89 = por %p87, %p88
    %p90 = scmp.ne.s32.totalorder %s76, %s77
    %p91 = scmp.eq.s32.totalorder %s18, 7
    %p92 = por %p90, %p91
    %p94 = scmp.ne.s32.totalorder %s77, %s93
    %p95 = scmp.eq.s32.totalorder %s18, 0
    %p96 = por %p94, %p95
    %s97 = sadd.s32 %s21, 2
    %s98 = sadd.s32 %s30, 2
    %s99 = ssub.s32 %s19, %s38
    %s100 = ssub.s32 %s97, %s98
    %s101 = sor.u32 %s99, %s100
    %p102 = scmp.eq.s32.totalorder %s101, 0
    %s104 = sadd.s32 %s103, 1
    %s105 = scalar_select %p102, %s103, %s104
    %p108 = pneg %p102
    %p109 = scmp.eq.s32.totalorder %s12, 7
    %p110 = por %p108, %p109
    %p111 = scmp.ne.s32.totalorder %s103, %s106
    %p112 = scmp.eq.s32.totalorder %s12, 0
    %p113 = por %p111, %p112
    %p114 = scmp.ne.s32.totalorder %s103, %s106
    %p115 = scmp.eq.s32.totalorder %s17, 7
    %p116 = por %p114, %p115
    %p117 = scmp.ne.s32.totalorder %s106, %s107
    %p118 = scmp.eq.s32.totalorder %s17, 0
    %p119 = por %p117, %p118
    %p120 = scmp.ne.s32.totalorder %s106, %s107
    %p121 = scmp.eq.s32.totalorder %s18, 7
    %p122 = por %p120, %p121
    %p124 = scmp.ne.s32.totalorder %s107, %s123
    %p125 = scmp.eq.s32.totalorder %s18, 0
    %p126 = por %p124, %p125
    %s127 = sadd.s32 %s21, 1
    %s128 = sadd.s32 %s30, 1
    %s129 = ssub.s32 %s19, %s38
    %s130 = ssub.s32 %s127, %s128
    %s131 = sor.u32 %s129, %s130
    %s132 = ssub.s32 %s20, %s34
    %s133 = sor.u32 %s131, %s132
    %p134 = scmp.eq.s32.totalorder %s133, 0
    %s136 = sadd.s32 %s135, 1
    %s137 = scalar_select %p134, %s135, %s136
    %p140 = pneg %p134
    %p141 = scmp.eq.s32.totalorder %s12, 7
    %p142 = por %p140, %p141
    %p143 = scmp.ne.s32.totalorder %s135, %s138
    %p144 = scmp.eq.s32.totalorder %s12, 0
    %p145 = por %p143, %p144
    %p146 = scmp.ne.s32.totalorder %s135, %s138
    %p147 = scmp.eq.s32.totalorder %s17, 7
    %p148 = por %p146, %p147
    %p149 = scmp.ne.s32.totalorder %s138, %s139
    %p150 = scmp.eq.s32.totalorder %s17, 0
    %p151 = por %p149, %p150
    %p152 = scmp.ne.s32.totalorder %s138, %s139
    %p153 = scmp.eq.s32.totalorder %s18, 7
    %p154 = por %p152, %p153
    %p156 = scmp.ne.s32.totalorder %s139, %s155
    %p157 = scmp.eq.s32.totalorder %s18, 0
    %p158 = por %p156, %p157
    %s159 = ssub.s32 %s20, %s34
    %p160 = scmp.eq.s32.totalorder %s159, 0
    %s162 = sadd.s32 %s161, 1
    %s163 = scalar_select %p160, %s161, %s162
    %p166 = pneg %p160
    %p167 = scmp.eq.s32.totalorder %s12, 7
    %p168 = por %p166, %p167
    %p169 = scmp.ne.s32.totalorder %s161, %s164
    %p170 = scmp.eq.s32.totalorder %s12, 0
    %p171 = por %p169, %p170
    %p172 = scmp.ne.s32.totalorder %s161, %s164
    %p173 = scmp.eq.s32.totalorder %s17, 7
    %p174 = por %p172, %p173
    %p175 = scmp.ne.s32.totalorder %s164, %s165
    %p176 = scmp.eq.s32.totalorder %s17, 0
    %p177 = por %p175, %p176
    %p178 = scmp.ne.s32.totalorder %s164, %s165
    %p179 = scmp.eq.s32.totalorder %s18, 7
    %p180 = por %p178, %p179
    %p182 = scmp.ne.s32.totalorder %s165, %s181
    %p183 = scmp.eq.s32.totalorder %s18, 0
    %p184 = por %p182, %p183
    %s185 = ssub.s32 %s20, %s34
    %p186 = scmp.eq.s32.totalorder %s185, 0
    %s188 = sadd.s32 %s187, 1
    %s189 = scalar_select %p186, %s187, %s188
    %p192 = pneg %p186
    %p193 = scmp.eq.s32.totalorder %s12, 7
    %p194 = por %p192, %p193
    %p195 = scmp.ne.s32.totalorder %s187, %s190
    %p196 = scmp.eq.s32.totalorder %s12, 0
    %p197 = por %p195, %p196
    %p198 = scmp.ne.s32.totalorder %s187, %s190
    %p199 = scmp.eq.s32.totalorder %s17, 7
    %p200 = por %p198, %p199
    %p201 = scmp.ne.s32.totalorder %s190, %s191
    %p202 = scmp.eq.s32.totalorder %s17, 0
    %p203 = por %p201, %p202
    %p204 = scmp.ne.s32.totalorder %s190, %s191
    %p205 = scmp.eq.s32.totalorder %s18, 7
    %p206 = por %p204, %p205
    %p208 = scmp.ne.s32.totalorder %s191, %s207
    %p209 = scmp.eq.s32.totalorder %s18, 0
    %p210 = por %p208, %p209
    %s211 = ssub.s32 %s19, %s38
    %s212 = ssub.s32 %s21, %s30
    %s213 = sor.u32 %s211, %s212
    %s214 = ssub.s32 %s20, %s34
    %s215 = sor.u32 %s213, %s214
    %p216 = scmp.eq.s32.totalorder %s215, 0
    %s218 = sadd.s32 %s217, 1
    %s219 = scalar_select %p216, %s217, %s218
    %p222 = pneg %p216
    %p223 = scmp.eq.s32.totalorder %s12, 7
    %p224 = por %p222, %p223
    %p225 = scmp.ne.s32.totalorder %s217, %s220
    %p226 = scmp.eq.s32.totalorder %s12, 0
    %p227 = por %p225, %p226
    %p228 = scmp.ne.s32.totalorder %s217, %s220
    %p229 = scmp.eq.s32.totalorder %s17, 7
    %p230 = por %p228, %p229
    %p231 = scmp.ne.s32.totalorder %s220, %s221
    %p232 = scmp.eq.s32.totalorder %s17, 0
    %p233 = por %p231, %p232
    %p234 = scmp.ne.s32.totalorder %s220, %s221
    %p235 = scmp.eq.s32.totalorder %s18, 7
    %p236 = por %p234, %p235
    %p238 = scmp.ne.s32.totalorder %s221, %s237
    %p239 = scmp.eq.s32.totalorder %s18, 0
    %p240 = por %p238, %p239
    %p241 = scmp.le.s32.totalorder 1, %s12
    %p242 = scmp.lt.s32.totalorder %s12, 9
    %p243 = pnand %p241, %p242
    %p244 = pneg %p243
    // Predicated region
    $region9: #{basic_block3d_forward.3} parent=5 // pred_check
      _
    $region10: #{basic_block3d_forward.3} parent=5 // pred_check_branch
      %246 = sbr.rel (%p243) target = $region12
    $region11: #{basic_block3d_forward.3} parent=5 // pred_region
      %s247 = ssub.s32 %s12, 1
      // Predicated region
      $region13: #{basic_block3d_forward.3} parent=11 // pred_check
        %p248 = pneg %p177
      $region14: #{basic_block3d_forward.3} parent=11 // pred_check_branch
        %250 = sbr.rel (%p248) target = $region16
      $region15: #{basic_block3d_forward.3} parent=11 // pred_region
        %p251 = scmp.lt.s32.totalorder %s23, 0
        %s252 = scalar_select %p251, %s23, 0
        %s253 = smul.addr %s252, 4
        %s254 = scalar_lea.vmem %s4, %s253
      $region16: #{basic_block3d_forward.3} parent=11 // pred_fallthru
        _
      // Predicated region
      $region17: #{basic_block3d_forward.3} parent=11 // pred_check
        %p255 = pneg %p203
      $region18: #{basic_block3d_forward.3} parent=11 // pred_check_branch
        %257 = sbr.rel (%p255) target = $region20
      $region19: #{basic_block3d_forward.3} parent=11 // pred_region
        %p258 = scmp.lt.s32.totalorder %s23, 0
        %s259 = scalar_select %p258, %s23, 0
        %s260 = scalar_lea.vmem %s5, %s259
      $region20: #{basic_block3d_forward.3} parent=11 // pred_fallthru
        _
    $region12: #{basic_block3d_forward.3} parent=5 // pred_fallthru
      _
    %p261 = scmp.lt.s32.totalorder %s12, 8
    // Predicated region
    $region21: #{basic_block3d_forward.3} parent=5 // pred_check
      %p262 = pneg %p261
    $region22: #{basic_block3d_forward.3} parent=5 // pred_check_branch
      %264 = sbr.rel (%p262) target = $region24
    $region23: #{basic_block3d_forward.3} parent=5 // pred_region
      // Predicated region
      $region25: #{basic_block3d_forward.3} parent=23 // pred_check
        %p265 = pneg %p53
      $region26: #{basic_block3d_forward.3} parent=23 // pred_check_branch
        %267 = sbr.rel (%p265) target = $region28
      $region27: #{basic_block3d_forward.3} parent=23 // pred_region
        %p268 = scmp.lt.s32.totalorder %s19, 1
        %s269 = scalar_select %p268, %s19, 1
        %p270 = scmp.lt.s32.totalorder %s21, 5
        %s271 = scalar_select %p270, %s21, 5
        %s272 = smul.addr %s271, 14
        %s273 = smul.addr %s269, 84
        %s274 = sadd.s32 %s272, %s273
        %s275 = smul.addr %s274, 4
        %s276 = scalar_lea.vmem %s0, %s275
      $region28: #{basic_block3d_forward.3} parent=23 // pred_fallthru
        _
      // Predicated region
      $region29: #{basic_block3d_forward.3} parent=23 // pred_check
        %p277 = pneg %p83
      $region30: #{basic_block3d_forward.3} parent=23 // pred_check_branch
        %279 = sbr.rel (%p277) target = $region32
      $region31: #{basic_block3d_forward.3} parent=23 // pred_region
        %s280 = sadd.s32 %s21, 1
        %p281 = scmp.lt.s32.totalorder %s19, 1
        %s282 = scalar_select %p281, %s19, 1
        %p283 = scmp.lt.s32.totalorder %s280, 5
        %s284 = scalar_select %p283, %s280, 5
        %s285 = smul.addr %s284, 14
        %s286 = smul.addr %s282, 84
        %s287 = sadd.s32 %s285, %s286
        %s288 = smul.addr %s287, 4
        %s289 = scalar_lea.vmem %s1, %s288
        %s290 = sadd.s32 %s21, 1
      $region32: #{basic_block3d_forward.3} parent=23 // pred_fallthru
        _
      // Predicated region
      $region33: #{basic_block3d_forward.3} parent=23 // pred_check
        %p291 = pneg %p113
      $region34: #{basic_block3d_forward.3} parent=23 // pred_check_branch
        %293 = sbr.rel (%p291) target = $region36
      $region35: #{basic_block3d_forward.3} parent=23 // pred_region
        %s294 = sadd.s32 %s21, 2
        %p295 = scmp.lt.s32.totalorder %s19, 1
        %s296 = scalar_select %p295, %s19, 1
        %p297 = scmp.lt.s32.totalorder %s294, 5
        %s298 = scalar_select %p297, %s294, 5
        %s299 = smul.addr %s298, 14
        %s300 = smul.addr %s296, 84
        %s301 = sadd.s32 %s299, %s300
        %s302 = smul.addr %s301, 4
        %s303 = scalar_lea.vmem %s2, %s302
        %s304 = sadd.s32 %s21, 2
      $region36: #{basic_block3d_forward.3} parent=23 // pred_fallthru
        _
      // Predicated region
      $region37: #{basic_block3d_forward.3} parent=23 // pred_check
        %p305 = pneg %p145
      $region38: #{basic_block3d_forward.3} parent=23 // pred_check_branch
        %307 = sbr.rel (%p305) target = $region40
      $region39: #{basic_block3d_forward.3} parent=23 // pred_region
        %s308 = sadd.s32 %s21, 1
        %p309 = scmp.lt.s32.totalorder %s19, 1
        %s310 = scalar_select %p309, %s19, 1
        %p311 = scmp.lt.s32.totalorder %s308, 5
        %s312 = scalar_select %p311, %s308, 5
        %p313 = scmp.lt.s32.totalorder %s20, 0
        %s314 = scalar_select %p313, %s20, 0
        %s315 = smul.addr %s312, 14
        %s316 = sadd.s32 %s314, %s315
        %s317 = smul.addr %s310, 84
        %s318 = sadd.s32 %s316, %s317
        %s319 = smul.addr %s318, 4
        %s320 = scalar_lea.vmem %s3, %s319
        %s321 = sadd.s32 %s21, 1
      $region40: #{basic_block3d_forward.3} parent=23 // pred_fallthru
        _
    $region24: #{basic_block3d_forward.3} parent=5 // pred_fallthru
      _
    %p322 = scmp.le.s32.totalorder 1, %s12
    %p323 = scmp.lt.s32.totalorder %s12, 9
    %p324 = pnand %p322, %p323
    %p325 = pneg %p324
    // Predicated region
    $region41: #{basic_block3d_forward.3} parent=5 // pred_check
      _
    $region42: #{basic_block3d_forward.3} parent=5 // pred_check_branch
      %327 = sbr.rel (%p324) target = $region44
    $region43: #{basic_block3d_forward.3} parent=5 // pred_region
      %s328 = ssub.s32 %s12, 1
      %p329 = scmp.lt.s32.totalorder %s22, 1
      %s330 = scalar_select %p329, %s22, 1
      %p331 = scmp.lt.s32.totalorder %s24, 5
      %s332 = scalar_select %p331, %s24, 5
      %s333 = smul.addr %s332, 14
      %s334 = smul.addr %s330, 84
      %s335 = sadd.s32 %s333, %s334
      %s336 = smul.addr %s335, 4
      %s337 = scalar_lea.vmem %s0, %s336
      %p338 = pneg %p59
      %p339 = pneg %p56
      %s340 = sadd.s32 %s24, 1
      %p341 = scmp.lt.s32.totalorder %s22, 1
      %s342 = scalar_select %p341, %s22, 1
      %p343 = scmp.lt.s32.totalorder %s340, 5
      %s344 = scalar_select %p343, %s340, 5
      %s345 = smul.addr %s344, 14
      %s346 = smul.addr %s342, 84
      %s347 = sadd.s32 %s345, %s346
      %s348 = smul.addr %s347, 4
      %s349 = scalar_lea.vmem %s1, %s348
      %p350 = pneg %p89
      %p351 = pneg %p86
      %s352 = sadd.s32 %s24, 2
      %p353 = scmp.lt.s32.totalorder %s22, 1
      %s354 = scalar_select %p353, %s22, 1
      %p355 = scmp.lt.s32.totalorder %s352, 5
      %s356 = scalar_select %p355, %s352, 5
      %s357 = smul.addr %s356, 14
      %s358 = smul.addr %s354, 84
      %s359 = sadd.s32 %s357, %s358
      %s360 = smul.addr %s359, 4
      %s361 = scalar_lea.vmem %s2, %s360
      %p362 = pneg %p119
      %p363 = pneg %p116
      %s364 = sadd.s32 %s24, 1
      %p365 = scmp.lt.s32.totalorder %s22, 1
      %s366 = scalar_select %p365, %s22, 1
      %p367 = scmp.lt.s32.totalorder %s364, 5
      %s368 = scalar_select %p367, %s364, 5
      %p369 = scmp.lt.s32.totalorder %s23, 0
      %s370 = scalar_select %p369, %s23, 0
      %s371 = smul.addr %s368, 14
      %s372 = sadd.s32 %s370, %s371
      %s373 = smul.addr %s366, 84
      %s374 = sadd.s32 %s372, %s373
      %s375 = smul.addr %s374, 4
      %s376 = scalar_lea.vmem %s3, %s375
      %p377 = pneg %p151
      %p378 = pneg %p148
      %p379 = scmp.lt.s32.totalorder %s23, 0
      %s380 = scalar_select %p379, %s23, 0
      %s381 = smul.addr %s380, 4
      %s382 = scalar_lea.vmem %s4, %s381
      %p383 = pneg %p177
      %p384 = pneg %p174
      %p385 = scmp.lt.s32.totalorder %s23, 0
      %s386 = scalar_select %p385, %s23, 0
      %s387 = scalar_lea.vmem %s5, %s386
      %p388 = pneg %p203
      %p389 = pneg %p200
      %p390 = pneg %p233
      %p391 = pneg %p230
      %p392 = scmp.lt.s32.totalorder %s22, 1
      %s393 = scalar_select %p392, %s22, 1
      %p394 = scmp.lt.s32.totalorder %s24, 3
      %s395 = scalar_select %p394, %s24, 3
      %p396 = scmp.lt.s32.totalorder %s23, 0
      %s397 = scalar_select %p396, %s23, 0
      %s398 = smul.addr %s395, 10
      %s399 = sadd.s32 %s397, %s398
      %s400 = smul.addr %s393, 40
      %s401 = sadd.s32 %s399, %s400
      %s402 = smul.addr %s401, 8
      %s403 = scalar_lea.vmem %s6, %s402
      %p404 = scmp.lt.s32.totalorder %s22, 1
      %s405 = scalar_select %p404, %s22, 1
      %p406 = scmp.lt.s32.totalorder %s24, 5
      %s407 = scalar_select %p406, %s24, 5
      %s408 = smul.addr %s407, 14
      %s409 = smul.addr %s405, 84
      %s410 = sadd.s32 %s408, %s409
      %s411 = smul.addr %s410, 4
      %s412 = scalar_lea.vmem %s0, %s411
      %s413 = sadd.s32 %s24, 1
      %p414 = scmp.lt.s32.totalorder %s22, 1
      %s415 = scalar_select %p414, %s22, 1
      %p416 = scmp.lt.s32.totalorder %s413, 5
      %s417 = scalar_select %p416, %s413, 5
      %s418 = smul.addr %s417, 14
      %s419 = smul.addr %s415, 84
      %s420 = sadd.s32 %s418, %s419
      %s421 = smul.addr %s420, 4
      %s422 = scalar_lea.vmem %s1, %s421
      %s423 = sadd.s32 %s24, 1
      %s424 = sadd.s32 %s24, 2
      %p425 = scmp.lt.s32.totalorder %s22, 1
      %s426 = scalar_select %p425, %s22, 1
      %p427 = scmp.lt.s32.totalorder %s424, 5
      %s428 = scalar_select %p427, %s424, 5
      %s429 = smul.addr %s428, 14
      %s430 = smul.addr %s426, 84
      %s431 = sadd.s32 %s429, %s430
      %s432 = smul.addr %s431, 4
      %s433 = scalar_lea.vmem %s2, %s432
      %s434 = sadd.s32 %s24, 2
      %s435 = sadd.s32 %s24, 1
      %p436 = scmp.lt.s32.totalorder %s22, 1
      %s437 = scalar_select %p436, %s22, 1
      %p438 = scmp.lt.s32.totalorder %s435, 5
      %s439 = scalar_select %p438, %s435, 5
      %p440 = scmp.lt.s32.totalorder %s23, 0
      %s441 = scalar_select %p440, %s23, 0
      %s442 = smul.addr %s439, 14
      %s443 = sadd.s32 %s441, %s442
      %s444 = smul.addr %s437, 84
      %s445 = sadd.s32 %s443, %s444
      %s446 = smul.addr %s445, 4
      %s447 = scalar_lea.vmem %s3, %s446
      %s448 = sadd.s32 %s24, 1
      %p449 = scmp.lt.s32.totalorder %s23, 0
      %s450 = scalar_select %p449, %s23, 0
      %s451 = smul.addr %s450, 4
      %s452 = scalar_lea.vmem %s4, %s451
      %p453 = scmp.lt.s32.totalorder %s23, 0
      %s454 = scalar_select %p453, %s23, 0
      %s455 = scalar_lea.vmem %s5, %s454
      %p456 = scmp.lt.s32.totalorder %s22, 1
      %s457 = scalar_select %p456, %s22, 1
      %p458 = scmp.lt.s32.totalorder %s24, 3
      %s459 = scalar_select %p458, %s24, 3
      %p460 = scmp.lt.s32.totalorder %s23, 0
      %s461 = scalar_select %p460, %s23, 0
      %s462 = smul.addr %s459, 10
      %s463 = sadd.s32 %s461, %s462
      %s464 = smul.addr %s457, 40
      %s465 = sadd.s32 %s463, %s464
      %s466 = smul.addr %s465, 8
      %s467 = scalar_lea.vmem %s6, %s466
      %v469 = vld [vmem:[%s412] sm:$0xf]
      %v470 = vld [vmem:[%s412 + $0x4] sm:$0xf]
      %v471 = vld [vmem:[%s412 + $0x8] sm:$0xf]
      %v472 = vld [vmem:[%s412 + $0xc] sm:$0xf]
      %v473 = vld [vmem:[%s412 + $0x10] sm:$0xf]
      %v474 = vld [vmem:[%s412 + $0x14] sm:$0xf]
      %v475 = vld [vmem:[%s412 + $0x18] sm:$0xf]
      %v476 = vld [vmem:[%s412 + $0x1c] sm:$0xf]
      %v477 = vld [vmem:[%s412 + $0x20] sm:$0xf]
      %v478 = vld [vmem:[%s412 + $0x24] sm:$0xf]
      %v479 = vld [vmem:[%s452] sm:$0xf]
      %v480 = vld [vmem:[%s412 + $0x28] sm:$0x1]
      %s481 = scalar_lea.vmem %s452, 4
      %v482 = vld [vmem:[%s481] sm:$0xf]
      %v494 = vunpack.c.l.b16 %v469
      %v495 = vunpack.c.l.b16 %v470
      %v496 = vunpack.c.l.b16 %v471
      %v497 = vunpack.c.l.b16 %v472
      %v498 = vunpack.c.l.b16 %v473
      %v499 = vunpack.c.l.b16 %v474
      %v500 = vunpack.c.l.b16 %v475
      %v501 = vunpack.c.l.b16 %v476
      %v502 = vunpack.c.l.b16 %v477
      %v503 = vunpack.c.l.b16 %v478
      %v504 = vunpack.c.l.b16 %v480
      %v505 = vpack.c.b16 %v495, %v494
      %v506 = vpack.c.b16 %v497, %v496
      %v507 = vpack.c.b16 %v499, %v498
      %v508 = vpack.c.b16 %v501, %v500
      %v509 = vpack.c.b16 %v503, %v502
      %v510 = vpack.c.b16 %v504, %v504
      %vm511 = vsmask.f32 7424
      %v513 = vshrl.u32 %v505, 16
      %v515 = vshll.u32 %v505, 16
      %v517 = vrot.slane %v515, 1
      %v518 = vor.u32 %v513, %v517
      %v520 = vshll.u32 %v506, 16
      %v522 = vrot.slane %v520, 1
      %v523 = vsel %vm511, %v518, %v522
      %v524 = vshrl.u32 %v506, 16
      %v526 = vor.u32 %v524, %v522
      %v528 = vshll.u32 %v507, 16
      %v530 = vrot.slane %v528, 1
      %v531 = vsel %vm511, %v526, %v530
      %v532 = vshrl.u32 %v507, 16
      %v534 = vor.u32 %v532, %v530
      %v536 = vshll.u32 %v508, 16
      %v538 = vrot.slane %v536, 1
      %v539 = vsel %vm511, %v534, %v538
      %v540 = vshrl.u32 %v508, 16
      %v542 = vor.u32 %v540, %v538
      %v544 = vshll.u32 %v509, 16
      %v546 = vrot.slane %v544, 1
      %v547 = vsel %vm511, %v542, %v546
      %v548 = vshrl.u32 %v509, 16
      %v550 = vor.u32 %v548, %v546
      %v552 = vshll.u32 %v510, 16
      %v554 = vrot.slane %v552, 1
      %v555 = vsel %vm511, %v550, %v554
      %vm556 = vcmask 64512
      %v558 = vsel %vm556, %v523, 0
      %v561 = vsel %vm556, %v531, 0
      %v564 = vsel %vm556, %v539, 0
      %v567 = vsel %vm556, %v547, 0
      %v570 = vsel %vm556, %v555, 0
      %vm572 = vcmask 1043456
      %v574 = vsel %vm572, %v482, 0
      %576 = vmatprep.subr.bf16.mxu0 0
      %577 = vmatpush1.bf16.msra.mxu0 0
      %578 = vmatprep.subr.bf16.mxu0 0
      %579 = vmatpush1.bf16.msra.mxu0 0
      %580 = vmatprep.subr.bf16.mxu0 0
      %581 = vmatpush1.bf16.msra.mxu0 0
      %582 = vmatprep.subr.bf16.mxu0 0
      %583 = vmatpush1.bf16.msra.mxu0 0
      %584 = vmatprep.subr.bf16.mxu0 0
      %585 = vmatpush1.bf16.msra.mxu0 0
      %586 = vmatprep.subr.bf16.mxu0 0
      %587 = vmatpush1.bf16.msra.mxu0 0
      %588 = vmatprep.subr.bf16.mxu0 0
      %589 = vmatpush1.bf16.msra.mxu0 0
      %590 = vmatprep.subr.bf16.mxu0 0
      %591 = vmatpush1.bf16.msra.mxu0 %v574
      %592 = vmatprep.subr.bf16.mxu0 0
      %593 = vmatpush2.bf16.msra.mxu0 0
      %594 = vmatprep.subr.bf16.mxu0 0
      %595 = vmatpush2.bf16.msra.mxu0 0
      %596 = vmatprep.subr.bf16.mxu0 0
      %597 = vmatpush2.bf16.msra.mxu0 0
      %598 = vmatprep.subr.bf16.mxu0 0
      %599 = vmatpush2.bf16.msra.mxu0 0
      %600 = vmatprep.subr.bf16.mxu0 0
      %601 = vmatpush2.bf16.msra.mxu0 0
      %602 = vmatprep.subr.bf16.mxu0 0
      %603 = vmatpush2.bf16.msra.mxu0 0
      %604 = vmatprep.subr.bf16.mxu0 0
      %605 = vmatpush2.bf16.msra.mxu0 0
      %606 = vmatprep.subr.bf16.mxu0 0
      %607 = vmatpush2.bf16.msra.mxu0 0
      %608 = vmatprep.mubr.bf16.mxu0 0
      %609 = vmatmul.mubr.bf16.gmra.mxu0 %v558
      %v610 = vpop.f32.mrf.mxu0
      %v611 = vadd.f32 0.0, %v610
      %v612 = vpop.f32.mrf.mxu0
      %v613 = vpop.f32.mrf.mxu0
      %v614 = vadd.f32 0.0, %v613
      %v615 = vpop.f32.mrf.mxu0
      %616 = vmatprep.mubr.bf16.mxu0 0
      %617 = vmatmul.mubr.bf16.gmra.mxu0 %v561
      %v618 = vpop.f32.mrf.mxu0
      %v619 = vadd.f32 0.0, %v618
      %v620 = vpop.f32.mrf.mxu0
      %v621 = vpop.f32.mrf.mxu0
      %v622 = vadd.f32 0.0, %v621
      %v623 = vpop.f32.mrf.mxu0
      %624 = vmatprep.mubr.bf16.mxu0 0
      %625 = vmatmul.mubr.bf16.gmra.mxu0 %v564
      %v626 = vpop.f32.mrf.mxu0
      %v627 = vadd.f32 0.0, %v626
      %v628 = vpop.f32.mrf.mxu0
      %v629 = vpop.f32.mrf.mxu0
      %v630 = vadd.f32 0.0, %v629
      %v631 = vpop.f32.mrf.mxu0
      %632 = vmatprep.mubr.bf16.mxu0 0
      %633 = vmatmul.mubr.bf16.gmra.mxu0 %v567
      %v634 = vpop.f32.mrf.mxu0
      %v635 = vadd.f32 0.0, %v634
      %v636 = vpop.f32.mrf.mxu0
      %v637 = vpop.f32.mrf.mxu0
      %v638 = vadd.f32 0.0, %v637
      %v639 = vpop.f32.mrf.mxu0
      %640 = vmatprep.mubr.bf16.mxu0 0
      %641 = vmatmul.mubr.bf16.gmra.mxu0 %v570
      %v642 = vpop.f32.mrf.mxu0
      %v643 = vadd.f32 0.0, %v642
      %v644 = vpop.f32.mrf.mxu0
      %v645 = vpop.f32.mrf.mxu0
      %v646 = vadd.f32 0.0, %v645
      %v647 = vpop.f32.mrf.mxu0
      %648 = vdwg.mxu0
      %v649 = vsel %vm556, %v505, 0
      %v651 = vsel %vm556, %v506, 0
      %v653 = vsel %vm556, %v507, 0
      %v655 = vsel %vm556, %v508, 0
      %v657 = vsel %vm556, %v509, 0
      %v660 = vsel %vm572, %v479, 0
      %662 = vmatprep.subr.bf16.mxu0 0
      %663 = vmatpush1.bf16.msra.mxu0 0
      %664 = vmatprep.subr.bf16.mxu0 0
      %665 = vmatpush1.bf16.msra.mxu0 0
      %666 = vmatprep.subr.bf16.mxu0 0
      %667 = vmatpush1.bf16.msra.mxu0 0
      %668 = vmatprep.subr.bf16.mxu0 0
      %669 = vmatpush1.bf16.msra.mxu0 0
      %670 = vmatprep.subr.bf16.mxu0 0
      %671 = vmatpush1.bf16.msra.mxu0 0
      %672 = vmatprep.subr.bf16.mxu0 0
      %673 = vmatpush1.bf16.msra.mxu0 0
      %674 = vmatprep.subr.bf16.mxu0 0
      %675 = vmatpush1.bf16.msra.mxu0 0
      %676 = vmatprep.subr.bf16.mxu0 0
      %677 = vmatpush1.bf16.msra.mxu0 %v660
      %678 = vmatprep.subr.bf16.mxu0 0
      %679 = vmatpush2.bf16.msra.mxu0 0
      %680 = vmatprep.subr.bf16.mxu0 0
      %681 = vmatpush2.bf16.msra.mxu0 0
      %682 = vmatprep.subr.bf16.mxu0 0
      %683 = vmatpush2.bf16.msra.mxu0 0
      %684 = vmatprep.subr.bf16.mxu0 0
      %685 = vmatpush2.bf16.msra.mxu0 0
      %686 = vmatprep.subr.bf16.mxu0 0
      %687 = vmatpush2.bf16.msra.mxu0 0
      %688 = vmatprep.subr.bf16.mxu0 0
      %689 = vmatpush2.bf16.msra.mxu0 0
      %690 = vmatprep.subr.bf16.mxu0 0
      %691 = vmatpush2.bf16.msra.mxu0 0
      %692 = vmatprep.subr.bf16.mxu0 0
      %693 = vmatpush2.bf16.msra.mxu0 0
      %694 = vmatprep.mubr.bf16.mxu0 0
      %695 = vmatmul.mubr.bf16.gmra.mxu0 %v649
      %v696 = vpop.f32.mrf.mxu0
      %v697 = vadd.f32 %v611, %v696
      %v698 = vpop.f32.mrf.mxu0
      %v699 = vpop.f32.mrf.mxu0
      %v700 = vadd.f32 %v614, %v699
      %v701 = vpop.f32.mrf.mxu0
      %702 = vmatprep.mubr.bf16.mxu0 0
      %703 = vmatmul.mubr.bf16.gmra.mxu0 %v651
      %v704 = vpop.f32.mrf.mxu0
      %v705 = vadd.f32 %v619, %v704
      %v706 = vpop.f32.mrf.mxu0
      %v707 = vpop.f32.mrf.mxu0
      %v708 = vadd.f32 %v622, %v707
      %v709 = vpop.f32.mrf.mxu0
      %710 = vmatprep.mubr.bf16.mxu0 0
      %711 = vmatmul.mubr.bf16.gmra.mxu0 %v653
      %v712 = vpop.f32.mrf.mxu0
      %v713 = vadd.f32 %v627, %v712
      %v714 = vpop.f32.mrf.mxu0
      %v715 = vpop.f32.mrf.mxu0
      %v716 = vadd.f32 %v630, %v715
      %v717 = vpop.f32.mrf.mxu0
      %718 = vmatprep.mubr.bf16.mxu0 0
      %719 = vmatmul.mubr.bf16.gmra.mxu0 %v655
      %v720 = vpop.f32.mrf.mxu0
      %v721 = vadd.f32 %v635, %v720
      %v722 = vpop.f32.mrf.mxu0
      %v723 = vpop.f32.mrf.mxu0
      %v724 = vadd.f32 %v638, %v723
      %v725 = vpop.f32.mrf.mxu0
      %726 = vmatprep.mubr.bf16.mxu0 0
      %727 = vmatmul.mubr.bf16.gmra.mxu0 %v657
      %v728 = vpop.f32.mrf.mxu0
      %v729 = vadd.f32 %v643, %v728
      %v730 = vpop.f32.mrf.mxu0
      %v731 = vpop.f32.mrf.mxu0
      %v732 = vadd.f32 %v646, %v731
      %v733 = vpop.f32.mrf.mxu0
      %734 = vdwg.mxu0
      %v735 = vld [vmem:[%s412] sm:$0xe]
      %s736 = scalar_lea.vmem %s452, 8
      %v737 = vld [vmem:[%s736] sm:$0xf]
      %v739 = vunpack.c.l.b16 %v735
      %v740 = vpack.c.b16 %v495, %v739
      %vm741 = vcmask 1046528
      %v742 = vrot.slane %v740, 1
      %v743 = vrot.slane %v506, 1
      %v744 = vsel %vm741, %v742, %v743
      %v745 = vrot.slane %v507, 1
      %v746 = vsel %vm741, %v743, %v745
      %v747 = vrot.slane %v508, 1
      %v748 = vsel %vm741, %v745, %v747
      %v749 = vrot.slane %v509, 1
      %v750 = vsel %vm741, %v747, %v749
      %v751 = vrot.slane %v510, 1
      %v752 = vsel %vm741, %v749, %v751
      %v754 = vsel %vm556, %v744, 0
      %v757 = vsel %vm556, %v746, 0
      %v760 = vsel %vm556, %v748, 0
      %v763 = vsel %vm556, %v750, 0
      %v766 = vsel %vm556, %v752, 0
      %v769 = vsel %vm572, %v737, 0
      %771 = vmatprep.subr.bf16.mxu0 0
      %772 = vmatpush1.bf16.msra.mxu0 0
      %773 = vmatprep.subr.bf16.mxu0 0
      %774 = vmatpush1.bf16.msra.mxu0 0
      %775 = vmatprep.subr.bf16.mxu0 0
      %776 = vmatpush1.bf16.msra.mxu0 0
      %777 = vmatprep.subr.bf16.mxu0 0
      %778 = vmatpush1.bf16.msra.mxu0 0
      %779 = vmatprep.subr.bf16.mxu0 0
      %780 = vmatpush1.bf16.msra.mxu0 0
      %781 = vmatprep.subr.bf16.mxu0 0
      %782 = vmatpush1.bf16.msra.mxu0 0
      %783 = vmatprep.subr.bf16.mxu0 0
      %784 = vmatpush1.bf16.msra.mxu0 0
      %785 = vmatprep.subr.bf16.mxu0 0
      %786 = vmatpush1.bf16.msra.mxu0 %v769
      %787 = vmatprep.subr.bf16.mxu0 0
      %788 = vmatpush2.bf16.msra.mxu0 0
      %789 = vmatprep.subr.bf16.mxu0 0
      %790 = vmatpush2.bf16.msra.mxu0 0
      %791 = vmatprep.subr.bf16.mxu0 0
      %792 = vmatpush2.bf16.msra.mxu0 0
      %793 = vmatprep.subr.bf16.mxu0 0
      %794 = vmatpush2.bf16.msra.mxu0 0
      %795 = vmatprep.subr.bf16.mxu0 0
      %796 = vmatpush2.bf16.msra.mxu0 0
      %797 = vmatprep.subr.bf16.mxu0 0
      %798 = vmatpush2.bf16.msra.mxu0 0
      %799 = vmatprep.subr.bf16.mxu0 0
      %800 = vmatpush2.bf16.msra.mxu0 0
      %801 = vmatprep.subr.bf16.mxu0 0
      %802 = vmatpush2.bf16.msra.mxu0 0
      %803 = vmatprep.mubr.bf16.mxu0 0
      %804 = vmatmul.mubr.bf16.gmra.mxu0 %v754
      %v805 = vpop.f32.mrf.mxu0
      %v806 = vadd.f32 0.0, %v805
      %v807 = vpop.f32.mrf.mxu0
      %v808 = vpop.f32.mrf.mxu0
      %v809 = vadd.f32 0.0, %v808
      %v810 = vpop.f32.mrf.mxu0
      %811 = vmatprep.mubr.bf16.mxu0 0
      %812 = vmatmul.mubr.bf16.gmra.mxu0 %v757
      %v813 = vpop.f32.mrf.mxu0
      %v814 = vadd.f32 0.0, %v813
      %v815 = vpop.f32.mrf.mxu0
      %v816 = vpop.f32.mrf.mxu0
      %v817 = vadd.f32 0.0, %v816
      %v818 = vpop.f32.mrf.mxu0
      %819 = vmatprep.mubr.bf16.mxu0 0
      %820 = vmatmul.mubr.bf16.gmra.mxu0 %v760
      %v821 = vpop.f32.mrf.mxu0
      %v822 = vadd.f32 0.0, %v821
      %v823 = vpop.f32.mrf.mxu0
      %v824 = vpop.f32.mrf.mxu0
      %v825 = vadd.f32 0.0, %v824
      %v826 = vpop.f32.mrf.mxu0
      %827 = vmatprep.mubr.bf16.mxu0 0
      %828 = vmatmul.mubr.bf16.gmra.mxu0 %v763
      %v829 = vpop.f32.mrf.mxu0
      %v830 = vadd.f32 0.0, %v829
      %v831 = vpop.f32.mrf.mxu0
      %v832 = vpop.f32.mrf.mxu0
      %v833 = vadd.f32 0.0, %v832
      %v834 = vpop.f32.mrf.mxu0
      %835 = vmatprep.mubr.bf16.mxu0 0
      %836 = vmatmul.mubr.bf16.gmra.mxu0 %v766
      %v837 = vpop.f32.mrf.mxu0
      %v838 = vadd.f32 0.0, %v837
      %v839 = vpop.f32.mrf.mxu0
      %v840 = vpop.f32.mrf.mxu0
      %v841 = vadd.f32 0.0, %v840
      %v842 = vpop.f32.mrf.mxu0
      %843 = vdwg.mxu0
      %v844 = vadd.f32 %v697, %v806
      %v845 = vadd.f32 %v700, %v809
      %v846 = vadd.f32 %v705, %v814
      %v847 = vadd.f32 %v708, %v817
      %v848 = vadd.f32 %v713, %v822
      %v849 = vadd.f32 %v716, %v825
      %v850 = vadd.f32 %v721, %v830
      %v851 = vadd.f32 %v724, %v833
      %v852 = vadd.f32 %v729, %v838
      %v853 = vadd.f32 %v732, %v841
      %v854 = vld [vmem:[%s412 + $0x4] sm:$0xe]
      %v855 = vld [vmem:[%s412 + $0x8] sm:$0xf]
      %v856 = vld [vmem:[%s412 + $0xc] sm:$0xf]
      %v857 = vld [vmem:[%s412 + $0x10] sm:$0xf]
      %v858 = vld [vmem:[%s412 + $0x14] sm:$0xf]
      %v859 = vld [vmem:[%s412 + $0x18] sm:$0xf]
      %v860 = vld [vmem:[%s412 + $0x1c] sm:$0xf]
      %v861 = vld [vmem:[%s412 + $0x20] sm:$0xf]
      %v862 = vld [vmem:[%s412 + $0x24] sm:$0xf]
      %v863 = vld [vmem:[%s412 + $0x28] sm:$0xf]
      %v864 = vld [vmem:[%s412 + $0x2c] sm:$0x1]
      %s865 = scalar_lea.vmem %s452, 12
      %v866 = vld [vmem:[%s865] sm:$0xf]
      %v878 = vunpack.c.l.b16 %v854
      %v879 = vunpack.c.l.b16 %v855
      %v880 = vunpack.c.l.b16 %v856
      %v881 = vunpack.c.l.b16 %v857
      %v882 = vunpack.c.l.b16 %v858
      %v883 = vunpack.c.l.b16 %v859
      %v884 = vunpack.c.l.b16 %v860
      %v885 = vunpack.c.l.b16 %v861
      %v886 = vunpack.c.l.b16 %v862
      %v887 = vunpack.c.l.b16 %v863
      %v888 = vunpack.c.l.b16 %v864
      %v889 = vpack.c.b16 %v879, %v878
      %v890 = vpack.c.b16 %v881, %v880
      %v891 = vpack.c.b16 %v883, %v882
      %v892 = vpack.c.b16 %v885, %v884
      %v893 = vpack.c.b16 %v887, %v886
      %v894 = vpack.c.b16 %v888, %v888
      %v895 = vrot.slane %v889, 1
      %v896 = vrot.slane %v890, 1
      %v897 = vsel %vm741, %v895, %v896
      %v898 = vrot.slane %v891, 1
      %v899 = vsel %vm741, %v896, %v898
      %v900 = vrot.slane %v892, 1
      %v901 = vsel %vm741, %v898, %v900
      %v902 = vrot.slane %v893, 1
      %v903 = vsel %vm741, %v900, %v902
      %v904 = vrot.slane %v894, 1
      %v905 = vsel %vm741, %v902, %v904
      %v907 = vsel %vm556, %v897, 0
      %v910 = vsel %vm556, %v899, 0
      %v913 = vsel %vm556, %v901, 0
      %v916 = vsel %vm556, %v903, 0
      %v919 = vsel %vm556, %v905, 0
      %v922 = vsel %vm572, %v866, 0
      %924 = vmatprep.subr.bf16.mxu0 0
      %925 = vmatpush1.bf16.msra.mxu0 0
      %926 = vmatprep.subr.bf16.mxu0 0
      %927 = vmatpush1.bf16.msra.mxu0 0
      %928 = vmatprep.subr.bf16.mxu0 0
      %929 = vmatpush1.bf16.msra.mxu0 0
      %930 = vmatprep.subr.bf16.mxu0 0
      %931 = vmatpush1.bf16.msra.mxu0 0
      %932 = vmatprep.subr.bf16.mxu0 0
      %933 = vmatpush1.bf16.msra.mxu0 0
      %934 = vmatprep.subr.bf16.mxu0 0
      %935 = vmatpush1.bf16.msra.mxu0 0
      %936 = vmatprep.subr.bf16.mxu0 0
      %937 = vmatpush1.bf16.msra.mxu0 0
      %938 = vmatprep.subr.bf16.mxu0 0
      %939 = vmatpush1.bf16.msra.mxu0 %v922
      %940 = vmatprep.subr.bf16.mxu0 0
      %941 = vmatpush2.bf16.msra.mxu0 0
      %942 = vmatprep.subr.bf16.mxu0 0
      %943 = vmatpush2.bf16.msra.mxu0 0
      %944 = vmatprep.subr.bf16.mxu0 0
      %945 = vmatpush2.bf16.msra.mxu0 0
      %946 = vmatprep.subr.bf16.mxu0 0
      %947 = vmatpush2.bf16.msra.mxu0 0
      %948 = vmatprep.subr.bf16.mxu0 0
      %949 = vmatpush2.bf16.msra.mxu0 0
      %950 = vmatprep.subr.bf16.mxu0 0
      %951 = vmatpush2.bf16.msra.mxu0 0
      %952 = vmatprep.subr.bf16.mxu0 0
      %953 = vmatpush2.bf16.msra.mxu0 0
      %954 = vmatprep.subr.bf16.mxu0 0
      %955 = vmatpush2.bf16.msra.mxu0 0
      %956 = vmatprep.mubr.bf16.mxu0 0
      %957 = vmatmul.mubr.bf16.gmra.mxu0 %v907
      %v958 = vpop.f32.mrf.mxu0
      %v959 = vadd.f32 0.0, %v958
      %v960 = vpop.f32.mrf.mxu0
      %v961 = vpop.f32.mrf.mxu0
      %v962 = vadd.f32 0.0, %v961
      %v963 = vpop.f32.mrf.mxu0
      %964 = vmatprep.mubr.bf16.mxu0 0
      %965 = vmatmul.mubr.bf16.gmra.mxu0 %v910
      %v966 = vpop.f32.mrf.mxu0
      %v967 = vadd.f32 0.0, %v966
      %v968 = vpop.f32.mrf.mxu0
      %v969 = vpop.f32.mrf.mxu0
      %v970 = vadd.f32 0.0, %v969
      %v971 = vpop.f32.mrf.mxu0
      %972 = vmatprep.mubr.bf16.mxu0 0
      %973 = vmatmul.mubr.bf16.gmra.mxu0 %v913
      %v974 = vpop.f32.mrf.mxu0
      %v975 = vadd.f32 0.0, %v974
      %v976 = vpop.f32.mrf.mxu0
      %v977 = vpop.f32.mrf.mxu0
      %v978 = vadd.f32 0.0, %v977
      %v979 = vpop.f32.mrf.mxu0
      %980 = vmatprep.mubr.bf16.mxu0 0
      %981 = vmatmul.mubr.bf16.gmra.mxu0 %v916
      %v982 = vpop.f32.mrf.mxu0
      %v983 = vadd.f32 0.0, %v982
      %v984 = vpop.f32.mrf.mxu0
      %v985 = vpop.f32.mrf.mxu0
      %v986 = vadd.f32 0.0, %v985
      %v987 = vpop.f32.mrf.mxu0
      %988 = vmatprep.mubr.bf16.mxu0 0
      %989 = vmatmul.mubr.bf16.gmra.mxu0 %v919
      %v990 = vpop.f32.mrf.mxu0
      %v991 = vadd.f32 0.0, %v990
      %v992 = vpop.f32.mrf.mxu0
      %v993 = vpop.f32.mrf.mxu0
      %v994 = vadd.f32 0.0, %v993
      %v995 = vpop.f32.mrf.mxu0
      %996 = vdwg.mxu0
      %v997 = vadd.f32 %v844, %v959
      %v998 = vadd.f32 %v845, %v962
      %v999 = vadd.f32 %v846, %v967
      %v1000 = vadd.f32 %v847, %v970
      %v1001 = vadd.f32 %v848, %v975
      %v1002 = vadd.f32 %v849, %v978
      %v1003 = vadd.f32 %v850, %v983
      %v1004 = vadd.f32 %v851, %v986
      %v1005 = vadd.f32 %v852, %v991
      %v1006 = vadd.f32 %v853, %v994
      %v1007 = vld [vmem:[%s412 + $0x2c] sm:$0x3]
      %s1008 = scalar_lea.vmem %s452, 16
      %v1009 = vld [vmem:[%s1008] sm:$0xf]
      %v1011 = vunpack.c.l.b16 %v1007
      %v1012 = vpack.c.b16 %v1011, %v1011
      %vm1013 = vsmask.f32 6400
      %v1015 = vshrl.u32 %v889, 16
      %v1017 = vrot.slane %v1015, 1
      %v1018 = vshll.u32 %v889, 16
      %v1020 = vrot.slane %v1018, 2
      %v1021 = vor.u32 %v1017, %v1020
      %v1023 = vshrl.u32 %v890, 16
      %v1025 = vrot.slane %v1023, 1
      %v1026 = vshll.u32 %v890, 16
      %v1028 = vrot.slane %v1026, 2
      %v1029 = vor.u32 %v1025, %v1028
      %v1030 = vsel %vm1013, %v1021, %v1029
      %v1032 = vshrl.u32 %v891, 16
      %v1034 = vrot.slane %v1032, 1
      %v1035 = vshll.u32 %v891, 16
      %v1037 = vrot.slane %v1035, 2
      %v1038 = vor.u32 %v1034, %v1037
      %v1039 = vsel %vm1013, %v1029, %v1038
      %v1041 = vshrl.u32 %v892, 16
      %v1043 = vrot.slane %v1041, 1
      %v1044 = vshll.u32 %v892, 16
      %v1046 = vrot.slane %v1044, 2
      %v1047 = vor.u32 %v1043, %v1046
      %v1048 = vsel %vm1013, %v1038, %v1047
      %v1050 = vshrl.u32 %v893, 16
      %v1052 = vrot.slane %v1050, 1
      %v1053 = vshll.u32 %v893, 16
      %v1055 = vrot.slane %v1053, 2
      %v1056 = vor.u32 %v1052, %v1055
      %v1057 = vsel %vm1013, %v1047, %v1056
      %v1059 = vshrl.u32 %v1012, 16
      %v1061 = vrot.slane %v1059, 1
      %v1062 = vshll.u32 %v1012, 16
      %v1064 = vrot.slane %v1062, 2
      %v1065 = vor.u32 %v1061, %v1064
      %v1066 = vsel %vm1013, %v1056, %v1065
      %v1068 = vsel %vm556, %v1030, 0
      %v1071 = vsel %vm556, %v1039, 0
      %v1074 = vsel %vm556, %v1048, 0
      %v1077 = vsel %vm556, %v1057, 0
      %v1080 = vsel %vm556, %v1066, 0
      %v1083 = vsel %vm572, %v1009, 0
      %1085 = vmatprep.subr.bf16.mxu0 0
      %1086 = vmatpush1.bf16.msra.mxu0 0
      %1087 = vmatprep.subr.bf16.mxu0 0
      %1088 = vmatpush1.bf16.msra.mxu0 0
      %1089 = vmatprep.subr.bf16.mxu0 0
      %1090 = vmatpush1.bf16.msra.mxu0 0
      %1091 = vmatprep.subr.bf16.mxu0 0
      %1092 = vmatpush1.bf16.msra.mxu0 0
      %1093 = vmatprep.subr.bf16.mxu0 0
      %1094 = vmatpush1.bf16.msra.mxu0 0
      %1095 = vmatprep.subr.bf16.mxu0 0
      %1096 = vmatpush1.bf16.msra.mxu0 0
      %1097 = vmatprep.subr.bf16.mxu0 0
      %1098 = vmatpush1.bf16.msra.mxu0 0
      %1099 = vmatprep.subr.bf16.mxu0 0
      %1100 = vmatpush1.bf16.msra.mxu0 %v1083
      %1101 = vmatprep.subr.bf16.mxu0 0
      %1102 = vmatpush2.bf16.msra.mxu0 0
      %1103 = vmatprep.subr.bf16.mxu0 0
      %1104 = vmatpush2.bf16.msra.mxu0 0
      %1105 = vmatprep.subr.bf16.mxu0 0
      %1106 = vmatpush2.bf16.msra.mxu0 0
      %1107 = vmatprep.subr.bf16.mxu0 0
      %1108 = vmatpush2.bf16.msra.mxu0 0
      %1109 = vmatprep.subr.bf16.mxu0 0
      %1110 = vmatpush2.bf16.msra.mxu0 0
      %1111 = vmatprep.subr.bf16.mxu0 0
      %1112 = vmatpush2.bf16.msra.mxu0 0
      %1113 = vmatprep.subr.bf16.mxu0 0
      %1114 = vmatpush2.bf16.msra.mxu0 0
      %1115 = vmatprep.subr.bf16.mxu0 0
      %1116 = vmatpush2.bf16.msra.mxu0 0
      %1117 = vmatprep.mubr.bf16.mxu0 0
      %1118 = vmatmul.mubr.bf16.gmra.mxu0 %v1068
      %v1119 = vpop.f32.mrf.mxu0
      %v1120 = vadd.f32 0.0, %v1119
      %v1121 = vpop.f32.mrf.mxu0
      %v1122 = vpop.f32.mrf.mxu0
      %v1123 = vadd.f32 0.0, %v1122
      %v1124 = vpop.f32.mrf.mxu0
      %1125 = vmatprep.mubr.bf16.mxu0 0
      %1126 = vmatmul.mubr.bf16.gmra.mxu0 %v1071
      %v1127 = vpop.f32.mrf.mxu0
      %v1128 = vadd.f32 0.0, %v1127
      %v1129 = vpop.f32.mrf.mxu0
      %v1130 = vpop.f32.mrf.mxu0
      %v1131 = vadd.f32 0.0, %v1130
      %v1132 = vpop.f32.mrf.mxu0
      %1133 = vmatprep.mubr.bf16.mxu0 0
      %1134 = vmatmul.mubr.bf16.gmra.mxu0 %v1074
      %v1135 = vpop.f32.mrf.mxu0
      %v1136 = vadd.f32 0.0, %v1135
      %v1137 = vpop.f32.mrf.mxu0
      %v1138 = vpop.f32.mrf.mxu0
      %v1139 = vadd.f32 0.0, %v1138
      %v1140 = vpop.f32.mrf.mxu0
      %1141 = vmatprep.mubr.bf16.mxu0 0
      %1142 = vmatmul.mubr.bf16.gmra.mxu0 %v1077
      %v1143 = vpop.f32.mrf.mxu0
      %v1144 = vadd.f32 0.0, %v1143
      %v1145 = vpop.f32.mrf.mxu0
      %v1146 = vpop.f32.mrf.mxu0
      %v1147 = vadd.f32 0.0, %v1146
      %v1148 = vpop.f32.mrf.mxu0
      %1149 = vmatprep.mubr.bf16.mxu0 0
      %1150 = vmatmul.mubr.bf16.gmra.mxu0 %v1080
      %v1151 = vpop.f32.mrf.mxu0
      %v1152 = vadd.f32 0.0, %v1151
      %v1153 = vpop.f32.mrf.mxu0
      %v1154 = vpop.f32.mrf.mxu0
      %v1155 = vadd.f32 0.0, %v1154
      %v1156 = vpop.f32.mrf.mxu0
      %1157 = vdwg.mxu0
      %v1158 = vadd.f32 %v997, %v1120
      %v1159 = vadd.f32 %v998, %v1123
      %v1160 = vadd.f32 %v999, %v1128
      %v1161 = vadd.f32 %v1000, %v1131
      %v1162 = vadd.f32 %v1001, %v1136
      %v1163 = vadd.f32 %v1002, %v1139
      %v1164 = vadd.f32 %v1003, %v1144
      %v1165 = vadd.f32 %v1004, %v1147
      %v1166 = vadd.f32 %v1005, %v1152
      %v1167 = vadd.f32 %v1006, %v1155
      %v1168 = vld [vmem:[%s412 + $0x4] sm:$0xc]
      %s1169 = scalar_lea.vmem %s452, 20
      %v1170 = vld [vmem:[%s1169] sm:$0xf]
      %v1172 = vunpack.c.l.b16 %v1168
      %v1173 = vpack.c.b16 %v879, %v1172
      %vm1174 = vcmask 1045504
      %v1175 = vrot.slane %v1173, 2
      %v1176 = vrot.slane %v890, 2
      %v1177 = vsel %vm1174, %v1175, %v1176
      %v1178 = vrot.slane %v891, 2
      %v1179 = vsel %vm1174, %v1176, %v1178
      %v1180 = vrot.slane %v892, 2
      %v1181 = vsel %vm1174, %v1178, %v1180
      %v1182 = vrot.slane %v893, 2
      %v1183 = vsel %vm1174, %v1180, %v1182
      %v1184 = vrot.slane %v1012, 2
      %v1185 = vsel %vm1174, %v1182, %v1184
      %v1187 = vsel %vm556, %v1177, 0
      %v1190 = vsel %vm556, %v1179, 0
      %v1193 = vsel %vm556, %v1181, 0
      %v1196 = vsel %vm556, %v1183, 0
      %v1199 = vsel %vm556, %v1185, 0
      %v1202 = vsel %vm572, %v1170, 0
      %1204 = vmatprep.subr.bf16.mxu0 0
      %1205 = vmatpush1.bf16.msra.mxu0 0
      %1206 = vmatprep.subr.bf16.mxu0 0
      %1207 = vmatpush1.bf16.msra.mxu0 0
      %1208 = vmatprep.subr.bf16.mxu0 0
      %1209 = vmatpush1.bf16.msra.mxu0 0
      %1210 = vmatprep.subr.bf16.mxu0 0
      %1211 = vmatpush1.bf16.msra.mxu0 0
      %1212 = vmatprep.subr.bf16.mxu0 0
      %1213 = vmatpush1.bf16.msra.mxu0 0
      %1214 = vmatprep.subr.bf16.mxu0 0
      %1215 = vmatpush1.bf16.msra.mxu0 0
      %1216 = vmatprep.subr.bf16.mxu0 0
      %1217 = vmatpush1.bf16.msra.mxu0 0
      %1218 = vmatprep.subr.bf16.mxu0 0
      %1219 = vmatpush1.bf16.msra.mxu0 %v1202
      %1220 = vmatprep.subr.bf16.mxu0 0
      %1221 = vmatpush2.bf16.msra.mxu0 0
      %1222 = vmatprep.subr.bf16.mxu0 0
      %1223 = vmatpush2.bf16.msra.mxu0 0
      %1224 = vmatprep.subr.bf16.mxu0 0
      %1225 = vmatpush2.bf16.msra.mxu0 0
      %1226 = vmatprep.subr.bf16.mxu0 0
      %1227 = vmatpush2.bf16.msra.mxu0 0
      %1228 = vmatprep.subr.bf16.mxu0 0
      %1229 = vmatpush2.bf16.msra.mxu0 0
      %1230 = vmatprep.subr.bf16.mxu0 0
      %1231 = vmatpush2.bf16.msra.mxu0 0
      %1232 = vmatprep.subr.bf16.mxu0 0
      %1233 = vmatpush2.bf16.msra.mxu0 0
      %1234 = vmatprep.subr.bf16.mxu0 0
      %1235 = vmatpush2.bf16.msra.mxu0 0
      %1236 = vmatprep.mubr.bf16.mxu0 0
      %1237 = vmatmul.mubr.bf16.gmra.mxu0 %v1187
      %v1238 = vpop.f32.mrf.mxu0
      %v1239 = vadd.f32 0.0, %v1238
      %v1240 = vpop.f32.mrf.mxu0
      %v1241 = vpop.f32.mrf.mxu0
      %v1242 = vadd.f32 0.0, %v1241
      %v1243 = vpop.f32.mrf.mxu0
      %1244 = vmatprep.mubr.bf16.mxu0 0
      %1245 = vmatmul.mubr.bf16.gmra.mxu0 %v1190
      %v1246 = vpop.f32.mrf.mxu0
      %v1247 = vadd.f32 0.0, %v1246
      %v1248 = vpop.f32.mrf.mxu0
      %v1249 = vpop.f32.mrf.mxu0
      %v1250 = vadd.f32 0.0, %v1249
      %v1251 = vpop.f32.mrf.mxu0
      %1252 = vmatprep.mubr.bf16.mxu0 0
      %1253 = vmatmul.mubr.bf16.gmra.mxu0 %v1193
      %v1254 = vpop.f32.mrf.mxu0
      %v1255 = vadd.f32 0.0, %v1254
      %v1256 = vpop.f32.mrf.mxu0
      %v1257 = vpop.f32.mrf.mxu0
      %v1258 = vadd.f32 0.0, %v1257
      %v1259 = vpop.f32.mrf.mxu0
      %1260 = vmatprep.mubr.bf16.mxu0 0
      %1261 = vmatmul.mubr.bf16.gmra.mxu0 %v1196
      %v1262 = vpop.f32.mrf.mxu0
      %v1263 = vadd.f32 0.0, %v1262
      %v1264 = vpop.f32.mrf.mxu0
      %v1265 = vpop.f32.mrf.mxu0
      %v1266 = vadd.f32 0.0, %v1265
      %v1267 = vpop.f32.mrf.mxu0
      %1268 = vmatprep.mubr.bf16.mxu0 0
      %1269 = vmatmul.mubr.bf16.gmra.mxu0 %v1199
      %v1270 = vpop.f32.mrf.mxu0
      %v1271 = vadd.f32 0.0, %v1270
      %v1272 = vpop.f32.mrf.mxu0
      %v1273 = vpop.f32.mrf.mxu0
      %v1274 = vadd.f32 0.0, %v1273
      %v1275 = vpop.f32.mrf.mxu0
      %1276 = vdwg.mxu0
      %v1277 = vadd.f32 %v1158, %v1239
      %v1278 = vadd.f32 %v1159, %v1242
      %v1279 = vadd.f32 %v1160, %v1247
      %v1280 = vadd.f32 %v1161, %v1250
      %v1281 = vadd.f32 %v1162, %v1255
      %v1282 = vadd.f32 %v1163, %v1258
      %v1283 = vadd.f32 %v1164, %v1263
      %v1284 = vadd.f32 %v1165, %v1266
      %v1285 = vadd.f32 %v1166, %v1271
      %v1286 = vadd.f32 %v1167, %v1274
      %v1287 = vld [vmem:[%s412 + $0x8] sm:$0xc]
      %v1288 = vld [vmem:[%s412 + $0xc] sm:$0xf]
      %v1289 = vld [vmem:[%s412 + $0x10] sm:$0xf]
      %v1290 = vld [vmem:[%s412 + $0x14] sm:$0xf]
      %v1291 = vld [vmem:[%s412 + $0x18] sm:$0xf]
      %v1292 = vld [vmem:[%s412 + $0x1c] sm:$0xf]
      %v1293 = vld [vmem:[%s412 + $0x20] sm:$0xf]
      %v1294 = vld [vmem:[%s412 + $0x24] sm:$0xf]
      %v1295 = vld [vmem:[%s412 + $0x28] sm:$0xf]
      %v1296 = vld [vmem:[%s412 + $0x2c] sm:$0xf]
      %v1297 = vld [vmem:[%s412 + $0x30] sm:$0x3]
      %s1298 = scalar_lea.vmem %s452, 24
      %v1299 = vld [vmem:[%s1298] sm:$0xf]
      %v1311 = vunpack.c.l.b16 %v1287
      %v1312 = vunpack.c.l.b16 %v1288
      %v1313 = vunpack.c.l.b16 %v1289
      %v1314 = vunpack.c.l.b16 %v1290
      %v1315 = vunpack.c.l.b16 %v1291
      %v1316 = vunpack.c.l.b16 %v1292
      %v1317 = vunpack.c.l.b16 %v1293
      %v1318 = vunpack.c.l.b16 %v1294
      %v1319 = vunpack.c.l.b16 %v1295
      %v1320 = vunpack.c.l.b16 %v1296
      %v1321 = vunpack.c.l.b16 %v1297
      %v1322 = vpack.c.b16 %v1312, %v1311
      %v1323 = vpack.c.b16 %v1314, %v1313
      %v1324 = vpack.c.b16 %v1316, %v1315
      %v1325 = vpack.c.b16 %v1318, %v1317
      %v1326 = vpack.c.b16 %v1320, %v1319
      %v1327 = vpack.c.b16 %v1321, %v1321
      %v1328 = vrot.slane %v1322, 2
      %v1329 = vrot.slane %v1323, 2
      %v1330 = vsel %vm1174, %v1328, %v1329
      %v1331 = vrot.slane %v1324, 2
      %v1332 = vsel %vm1174, %v1329, %v1331
      %v1333 = vrot.slane %v1325, 2
      %v1334 = vsel %vm1174, %v1331, %v1333
      %v1335 = vrot.slane %v1326, 2
      %v1336 = vsel %vm1174, %v1333, %v1335
      %v1337 = vrot.slane %v1327, 2
      %v1338 = vsel %vm1174, %v1335, %v1337
      %v1340 = vsel %vm556, %v1330, 0
      %v1343 = vsel %vm556, %v1332, 0
      %v1346 = vsel %vm556, %v1334, 0
      %v1349 = vsel %vm556, %v1336, 0
      %v1352 = vsel %vm556, %v1338, 0
      %v1355 = vsel %vm572, %v1299, 0
      %1357 = vmatprep.subr.bf16.mxu0 0
      %1358 = vmatpush1.bf16.msra.mxu0 0
      %1359 = vmatprep.subr.bf16.mxu0 0
      %1360 = vmatpush1.bf16.msra.mxu0 0
      %1361 = vmatprep.subr.bf16.mxu0 0
      %1362 = vmatpush1.bf16.msra.mxu0 0
      %1363 = vmatprep.subr.bf16.mxu0 0
      %1364 = vmatpush1.bf16.msra.mxu0 0
      %1365 = vmatprep.subr.bf16.mxu0 0
      %1366 = vmatpush1.bf16.msra.mxu0 0
      %1367 = vmatprep.subr.bf16.mxu0 0
      %1368 = vmatpush1.bf16.msra.mxu0 0
      %1369 = vmatprep.subr.bf16.mxu0 0
      %1370 = vmatpush1.bf16.msra.mxu0 0
      %1371 = vmatprep.subr.bf16.mxu0 0
      %1372 = vmatpush1.bf16.msra.mxu0 %v1355
      %1373 = vmatprep.subr.bf16.mxu0 0
      %1374 = vmatpush2.bf16.msra.mxu0 0
      %1375 = vmatprep.subr.bf16.mxu0 0
      %1376 = vmatpush2.bf16.msra.mxu0 0
      %1377 = vmatprep.subr.bf16.mxu0 0
      %1378 = vmatpush2.bf16.msra.mxu0 0
      %1379 = vmatprep.subr.bf16.mxu0 0
      %1380 = vmatpush2.bf16.msra.mxu0 0
      %1381 = vmatprep.subr.bf16.mxu0 0
      %1382 = vmatpush2.bf16.msra.mxu0 0
      %1383 = vmatprep.subr.bf16.mxu0 0
      %1384 = vmatpush2.bf16.msra.mxu0 0
      %1385 = vmatprep.subr.bf16.mxu0 0
      %1386 = vmatpush2.bf16.msra.mxu0 0
      %1387 = vmatprep.subr.bf16.mxu0 0
      %1388 = vmatpush2.bf16.msra.mxu0 0
      %1389 = vmatprep.mubr.bf16.mxu0 0
      %1390 = vmatmul.mubr.bf16.gmra.mxu0 %v1340
      %v1391 = vpop.f32.mrf.mxu0
      %v1392 = vadd.f32 0.0, %v1391
      %v1393 = vpop.f32.mrf.mxu0
      %v1394 = vpop.f32.mrf.mxu0
      %v1395 = vadd.f32 0.0, %v1394
      %v1396 = vpop.f32.mrf.mxu0
      %1397 = vmatprep.mubr.bf16.mxu0 0
      %1398 = vmatmul.mubr.bf16.gmra.mxu0 %v1343
      %v1399 = vpop.f32.mrf.mxu0
      %v1400 = vadd.f32 0.0, %v1399
      %v1401 = vpop.f32.mrf.mxu0
      %v1402 = vpop.f32.mrf.mxu0
      %v1403 = vadd.f32 0.0, %v1402
      %v1404 = vpop.f32.mrf.mxu0
      %1405 = vmatprep.mubr.bf16.mxu0 0
      %1406 = vmatmul.mubr.bf16.gmra.mxu0 %v1346
      %v1407 = vpop.f32.mrf.mxu0
      %v1408 = vadd.f32 0.0, %v1407
      %v1409 = vpop.f32.mrf.mxu0
      %v1410 = vpop.f32.mrf.mxu0
      %v1411 = vadd.f32 0.0, %v1410
      %v1412 = vpop.f32.mrf.mxu0
      %1413 = vmatprep.mubr.bf16.mxu0 0
      %1414 = vmatmul.mubr.bf16.gmra.mxu0 %v1349
      %v1415 = vpop.f32.mrf.mxu0
      %v1416 = vadd.f32 0.0, %v1415
      %v1417 = vpop.f32.mrf.mxu0
      %v1418 = vpop.f32.mrf.mxu0
      %v1419 = vadd.f32 0.0, %v1418
      %v1420 = vpop.f32.mrf.mxu0
      %1421 = vmatprep.mubr.bf16.mxu0 0
      %1422 = vmatmul.mubr.bf16.gmra.mxu0 %v1352
      %v1423 = vpop.f32.mrf.mxu0
      %v1424 = vadd.f32 0.0, %v1423
      %v1425 = vpop.f32.mrf.mxu0
      %v1426 = vpop.f32.mrf.mxu0
      %v1427 = vadd.f32 0.0, %v1426
      %v1428 = vpop.f32.mrf.mxu0
      %1429 = vdwg.mxu0
      %v1430 = vadd.f32 %v1277, %v1392
      %v1431 = vadd.f32 %v1278, %v1395
      %v1432 = vadd.f32 %v1279, %v1400
      %v1433 = vadd.f32 %v1280, %v1403
      %v1434 = vadd.f32 %v1281, %v1408
      %v1435 = vadd.f32 %v1282, %v1411
      %v1436 = vadd.f32 %v1283, %v1416
      %v1437 = vadd.f32 %v1284, %v1419
      %v1438 = vadd.f32 %v1285, %v1424
      %v1439 = vadd.f32 %v1286, %v1427
      %v1440 = vld [vmem:[%s412 + $0x30] sm:$0x7]
      %s1441 = scalar_lea.vmem %s452, 28
      %v1442 = vld [vmem:[%s1441] sm:$0xf]
      %v1444 = vunpack.c.l.b16 %v1440
      %v1445 = vpack.c.b16 %v1444, %v1444
      %vm1446 = vsmask.f32 5376
      %v1448 = vshrl.u32 %v1322, 16
      %v1450 = vrot.slane %v1448, 2
      %v1451 = vshll.u32 %v1322, 16
      %v1453 = vrot.slane %v1451, 3
      %v1454 = vor.u32 %v1450, %v1453
      %v1456 = vshrl.u32 %v1323, 16
      %v1458 = vrot.slane %v1456, 2
      %v1459 = vshll.u32 %v1323, 16
      %v1461 = vrot.slane %v1459, 3
      %v1462 = vor.u32 %v1458, %v1461
      %v1463 = vsel %vm1446, %v1454, %v1462
      %v1465 = vshrl.u32 %v1324, 16
      %v1467 = vrot.slane %v1465, 2
      %v1468 = vshll.u32 %v1324, 16
      %v1470 = vrot.slane %v1468, 3
      %v1471 = vor.u32 %v1467, %v1470
      %v1472 = vsel %vm1446, %v1462, %v1471
      %v1474 = vshrl.u32 %v1325, 16
      %v1476 = vrot.slane %v1474, 2
      %v1477 = vshll.u32 %v1325, 16
      %v1479 = vrot.slane %v1477, 3
      %v1480 = vor.u32 %v1476, %v1479
      %v1481 = vsel %vm1446, %v1471, %v1480
      %v1483 = vshrl.u32 %v1326, 16
      %v1485 = vrot.slane %v1483, 2
      %v1486 = vshll.u32 %v1326, 16
      %v1488 = vrot.slane %v1486, 3
      %v1489 = vor.u32 %v1485, %v1488
      %v1490 = vsel %vm1446, %v1480, %v1489
      %v1492 = vshrl.u32 %v1445, 16
      %v1494 = vrot.slane %v1492, 2
      %v1495 = vshll.u32 %v1445, 16
      %v1497 = vrot.slane %v1495, 3
      %v1498 = vor.u32 %v1494, %v1497
      %v1499 = vsel %vm1446, %v1489, %v1498
      %v1501 = vsel %vm556, %v1463, 0
      %v1504 = vsel %vm556, %v1472, 0
      %v1507 = vsel %vm556, %v1481, 0
      %v1510 = vsel %vm556, %v1490, 0
      %v1513 = vsel %vm556, %v1499, 0
      %v1516 = vsel %vm572, %v1442, 0
      %1518 = vmatprep.subr.bf16.mxu0 0
      %1519 = vmatpush1.bf16.msra.mxu0 0
      %1520 = vmatprep.subr.bf16.mxu0 0
      %1521 = vmatpush1.bf16.msra.mxu0 0
      %1522 = vmatprep.subr.bf16.mxu0 0
      %1523 = vmatpush1.bf16.msra.mxu0 0
      %1524 = vmatprep.subr.bf16.mxu0 0
      %1525 = vmatpush1.bf16.msra.mxu0 0
      %1526 = vmatprep.subr.bf16.mxu0 0
      %1527 = vmatpush1.bf16.msra.mxu0 0
      %1528 = vmatprep.subr.bf16.mxu0 0
      %1529 = vmatpush1.bf16.msra.mxu0 0
      %1530 = vmatprep.subr.bf16.mxu0 0
      %1531 = vmatpush1.bf16.msra.mxu0 0
      %1532 = vmatprep.subr.bf16.mxu0 0
      %1533 = vmatpush1.bf16.msra.mxu0 %v1516
      %1534 = vmatprep.subr.bf16.mxu0 0
      %1535 = vmatpush2.bf16.msra.mxu0 0
      %1536 = vmatprep.subr.bf16.mxu0 0
      %1537 = vmatpush2.bf16.msra.mxu0 0
      %1538 = vmatprep.subr.bf16.mxu0 0
      %1539 = vmatpush2.bf16.msra.mxu0 0
      %1540 = vmatprep.subr.bf16.mxu0 0
      %1541 = vmatpush2.bf16.msra.mxu0 0
      %1542 = vmatprep.subr.bf16.mxu0 0
      %1543 = vmatpush2.bf16.msra.mxu0 0
      %1544 = vmatprep.subr.bf16.mxu0 0
      %1545 = vmatpush2.bf16.msra.mxu0 0
      %1546 = vmatprep.subr.bf16.mxu0 0
      %1547 = vmatpush2.bf16.msra.mxu0 0
      %1548 = vmatprep.subr.bf16.mxu0 0
      %1549 = vmatpush2.bf16.msra.mxu0 0
      %1550 = vmatprep.mubr.bf16.mxu0 0
      %1551 = vmatmul.mubr.bf16.gmra.mxu0 %v1501
      %v1552 = vpop.f32.mrf.mxu0
      %v1553 = vadd.f32 0.0, %v1552
      %v1554 = vpop.f32.mrf.mxu0
      %v1555 = vpop.f32.mrf.mxu0
      %v1556 = vadd.f32 0.0, %v1555
      %v1557 = vpop.f32.mrf.mxu0
      %1558 = vmatprep.mubr.bf16.mxu0 0
      %1559 = vmatmul.mubr.bf16.gmra.mxu0 %v1504
      %v1560 = vpop.f32.mrf.mxu0
      %v1561 = vadd.f32 0.0, %v1560
      %v1562 = vpop.f32.mrf.mxu0
      %v1563 = vpop.f32.mrf.mxu0
      %v1564 = vadd.f32 0.0, %v1563
      %v1565 = vpop.f32.mrf.mxu0
      %1566 = vmatprep.mubr.bf16.mxu0 0
      %1567 = vmatmul.mubr.bf16.gmra.mxu0 %v1507
      %v1568 = vpop.f32.mrf.mxu0
      %v1569 = vadd.f32 0.0, %v1568
      %v1570 = vpop.f32.mrf.mxu0
      %v1571 = vpop.f32.mrf.mxu0
      %v1572 = vadd.f32 0.0, %v1571
      %v1573 = vpop.f32.mrf.mxu0
      %1574 = vmatprep.mubr.bf16.mxu0 0
      %1575 = vmatmul.mubr.bf16.gmra.mxu0 %v1510
      %v1576 = vpop.f32.mrf.mxu0
      %v1577 = vadd.f32 0.0, %v1576
      %v1578 = vpop.f32.mrf.mxu0
      %v1579 = vpop.f32.mrf.mxu0
      %v1580 = vadd.f32 0.0, %v1579
      %v1581 = vpop.f32.mrf.mxu0
      %1582 = vmatprep.mubr.bf16.mxu0 0
      %1583 = vmatmul.mubr.bf16.gmra.mxu0 %v1513
      %v1584 = vpop.f32.mrf.mxu0
      %v1585 = vadd.f32 0.0, %v1584
      %v1586 = vpop.f32.mrf.mxu0
      %v1587 = vpop.f32.mrf.mxu0
      %v1588 = vadd.f32 0.0, %v1587
      %v1589 = vpop.f32.mrf.mxu0
      %1590 = vdwg.mxu0
      %v1591 = vadd.f32 %v1430, %v1553
      %v1592 = vadd.f32 %v1431, %v1556
      %v1593 = vadd.f32 %v1432, %v1561
      %v1594 = vadd.f32 %v1433, %v1564
      %v1595 = vadd.f32 %v1434, %v1569
      %v1596 = vadd.f32 %v1435, %v1572
      %v1597 = vadd.f32 %v1436, %v1577
      %v1598 = vadd.f32 %v1437, %v1580
      %v1599 = vadd.f32 %v1438, %v1585
      %v1600 = vadd.f32 %v1439, %v1588
      %v1601 = vld [vmem:[%s412 + $0x8] sm:$0x8]
      %s1602 = scalar_lea.vmem %s452, 32
      %v1603 = vld [vmem:[%s1602] sm:$0xf]
      %v1605 = vunpack.c.l.b16 %v1601
      %v1606 = vpack.c.b16 %v1312, %v1605
      %vm1607 = vcmask 1044480
      %v1608 = vrot.slane %v1606, 3
      %v1609 = vrot.slane %v1323, 3
      %v1610 = vsel %vm1607, %v1608, %v1609
      %v1611 = vrot.slane %v1324, 3
      %v1612 = vsel %vm1607, %v1609, %v1611
      %v1613 = vrot.slane %v1325, 3
      %v1614 = vsel %vm1607, %v1611, %v1613
      %v1615 = vrot.slane %v1326, 3
      %v1616 = vsel %vm1607, %v1613, %v1615
      %v1617 = vrot.slane %v1445, 3
      %v1618 = vsel %vm1607, %v1615, %v1617
      %v1620 = vsel %vm556, %v1610, 0
      %v1623 = vsel %vm556, %v1612, 0
      %v1626 = vsel %vm556, %v1614, 0
      %v1629 = vsel %vm556, %v1616, 0
      %v1632 = vsel %vm556, %v1618, 0
      %v1635 = vsel %vm572, %v1603, 0
      %1637 = vmatprep.subr.bf16.mxu0 0
      %1638 = vmatpush1.bf16.msra.mxu0 0
      %1639 = vmatprep.subr.bf16.mxu0 0
      %1640 = vmatpush1.bf16.msra.mxu0 0
      %1641 = vmatprep.subr.bf16.mxu0 0
      %1642 = vmatpush1.bf16.msra.mxu0 0
      %1643 = vmatprep.subr.bf16.mxu0 0
      %1644 = vmatpush1.bf16.msra.mxu0 0
      %1645 = vmatprep.subr.bf16.mxu0 0
      %1646 = vmatpush1.bf16.msra.mxu0 0
      %1647 = vmatprep.subr.bf16.mxu0 0
      %1648 = vmatpush1.bf16.msra.mxu0 0
      %1649 = vmatprep.subr.bf16.mxu0 0
      %1650 = vmatpush1.bf16.msra.mxu0 0
      %1651 = vmatprep.subr.bf16.mxu0 0
      %1652 = vmatpush1.bf16.msra.mxu0 %v1635
      %1653 = vmatprep.subr.bf16.mxu0 0
      %1654 = vmatpush2.bf16.msra.mxu0 0
      %1655 = vmatprep.subr.bf16.mxu0 0
      %1656 = vmatpush2.bf16.msra.mxu0 0
      %1657 = vmatprep.subr.bf16.mxu0 0
      %1658 = vmatpush2.bf16.msra.mxu0 0
      %1659 = vmatprep.subr.bf16.mxu0 0
      %1660 = vmatpush2.bf16.msra.mxu0 0
      %1661 = vmatprep.subr.bf16.mxu0 0
      %1662 = vmatpush2.bf16.msra.mxu0 0
      %1663 = vmatprep.subr.bf16.mxu0 0
      %1664 = vmatpush2.bf16.msra.mxu0 0
      %1665 = vmatprep.subr.bf16.mxu0 0
      %1666 = vmatpush2.bf16.msra.mxu0 0
      %1667 = vmatprep.subr.bf16.mxu0 0
      %1668 = vmatpush2.bf16.msra.mxu0 0
      %1669 = vmatprep.mubr.bf16.mxu0 0
      %1670 = vmatmul.mubr.bf16.gmra.mxu0 %v1620
      %v1671 = vpop.f32.mrf.mxu0
      %v1672 = vadd.f32 0.0, %v1671
      %v1673 = vpop.f32.mrf.mxu0
      %v1674 = vpop.f32.mrf.mxu0
      %v1675 = vadd.f32 0.0, %v1674
      %v1676 = vpop.f32.mrf.mxu0
      %1677 = vmatprep.mubr.bf16.mxu0 0
      %1678 = vmatmul.mubr.bf16.gmra.mxu0 %v1623
      %v1679 = vpop.f32.mrf.mxu0
      %v1680 = vadd.f32 0.0, %v1679
      %v1681 = vpop.f32.mrf.mxu0
      %v1682 = vpop.f32.mrf.mxu0
      %v1683 = vadd.f32 0.0, %v1682
      %v1684 = vpop.f32.mrf.mxu0
      %1685 = vmatprep.mubr.bf16.mxu0 0
      %1686 = vmatmul.mubr.bf16.gmra.mxu0 %v1626
      %v1687 = vpop.f32.mrf.mxu0
      %v1688 = vadd.f32 0.0, %v1687
      %v1689 = vpop.f32.mrf.mxu0
      %v1690 = vpop.f32.mrf.mxu0
      %v1691 = vadd.f32 0.0, %v1690
      %v1692 = vpop.f32.mrf.mxu0
      %1693 = vmatprep.mubr.bf16.mxu0 0
      %1694 = vmatmul.mubr.bf16.gmra.mxu0 %v1629
      %v1695 = vpop.f32.mrf.mxu0
      %v1696 = vadd.f32 0.0, %v1695
      %v1697 = vpop.f32.mrf.mxu0
      %v1698 = vpop.f32.mrf.mxu0
      %v1699 = vadd.f32 0.0, %v1698
      %v1700 = vpop.f32.mrf.mxu0
      %1701 = vmatprep.mubr.bf16.mxu0 0
      %1702 = vmatmul.mubr.bf16.gmra.mxu0 %v1632
      %v1703 = vpop.f32.mrf.mxu0
      %v1704 = vadd.f32 0.0, %v1703
      %v1705 = vpop.f32.mrf.mxu0
      %v1706 = vpop.f32.mrf.mxu0
      %v1707 = vadd.f32 0.0, %v1706
      %v1708 = vpop.f32.mrf.mxu0
      %1709 = vdwg.mxu0
      %v1710 = vadd.f32 %v1591, %v1672
      %v1711 = vadd.f32 %v1592, %v1675
      %v1712 = vadd.f32 %v1593, %v1680
      %v1713 = vadd.f32 %v1594, %v1683
      %v1714 = vadd.f32 %v1595, %v1688
      %v1715 = vadd.f32 %v1596, %v1691
      %v1716 = vadd.f32 %v1597, %v1696
      %v1717 = vadd.f32 %v1598, %v1699
      %v1718 = vadd.f32 %v1599, %v1704
      %v1719 = vadd.f32 %v1600, %v1707
      %v1720 = vld [vmem:[%s422] sm:$0xf]
      %v1721 = vld [vmem:[%s422 + $0x4] sm:$0xf]
      %v1722 = vld [vmem:[%s422 + $0x8] sm:$0xf]
      %v1723 = vld [vmem:[%s422 + $0xc] sm:$0xf]
      %v1724 = vld [vmem:[%s422 + $0x10] sm:$0xf]
      %v1725 = vld [vmem:[%s422 + $0x14] sm:$0xf]
      %v1726 = vld [vmem:[%s422 + $0x18] sm:$0xf]
      %v1727 = vld [vmem:[%s422 + $0x1c] sm:$0xf]
      %v1728 = vld [vmem:[%s422 + $0x20] sm:$0xf]
      %v1729 = vld [vmem:[%s422 + $0x24] sm:$0xf]
      %s1730 = scalar_lea.vmem %s452, 36
      %v1731 = vld [vmem:[%s1730] sm:$0xf]
      %v1742 = vunpack.c.l.b16 %v1720
      %v1743 = vunpack.c.l.b16 %v1721
      %v1744 = vunpack.c.l.b16 %v1722
      %v1745 = vunpack.c.l.b16 %v1723
      %v1746 = vunpack.c.l.b16 %v1724
      %v1747 = vunpack.c.l.b16 %v1725
      %v1748 = vunpack.c.l.b16 %v1726
      %v1749 = vunpack.c.l.b16 %v1727
      %v1750 = vunpack.c.l.b16 %v1728
      %v1751 = vunpack.c.l.b16 %v1729
      %v1752 = vpack.c.b16 %v1743, %v1742
      %v1753 = vpack.c.b16 %v1745, %v1744
      %v1754 = vpack.c.b16 %v1747, %v1746
      %v1755 = vpack.c.b16 %v1749, %v1748
      %v1756 = vpack.c.b16 %v1751, %v1750
      %v1758 = vsel %vm556, %v1752, 0
      %v1761 = vsel %vm556, %v1753, 0
      %v1764 = vsel %vm556, %v1754, 0
      %v1767 = vsel %vm556, %v1755, 0
      %v1770 = vsel %vm556, %v1756, 0
      %v1773 = vsel %vm572, %v1731, 0
      %1775 = vmatprep.subr.bf16.mxu0 0
      %1776 = vmatpush1.bf16.msra.mxu0 0
      %1777 = vmatprep.subr.bf16.mxu0 0
      %1778 = vmatpush1.bf16.msra.mxu0 0
      %1779 = vmatprep.subr.bf16.mxu0 0
      %1780 = vmatpush1.bf16.msra.mxu0 0
      %1781 = vmatprep.subr.bf16.mxu0 0
      %1782 = vmatpush1.bf16.msra.mxu0 0
      %1783 = vmatprep.subr.bf16.mxu0 0
      %1784 = vmatpush1.bf16.msra.mxu0 0
      %1785 = vmatprep.subr.bf16.mxu0 0
      %1786 = vmatpush1.bf16.msra.mxu0 0
      %1787 = vmatprep.subr.bf16.mxu0 0
      %1788 = vmatpush1.bf16.msra.mxu0 0
      %1789 = vmatprep.subr.bf16.mxu0 0
      %1790 = vmatpush1.bf16.msra.mxu0 %v1773
      %1791 = vmatprep.subr.bf16.mxu0 0
      %1792 = vmatpush2.bf16.msra.mxu0 0
      %1793 = vmatprep.subr.bf16.mxu0 0
      %1794 = vmatpush2.bf16.msra.mxu0 0
      %1795 = vmatprep.subr.bf16.mxu0 0
      %1796 = vmatpush2.bf16.msra.mxu0 0
      %1797 = vmatprep.subr.bf16.mxu0 0
      %1798 = vmatpush2.bf16.msra.mxu0 0
      %1799 = vmatprep.subr.bf16.mxu0 0
      %1800 = vmatpush2.bf16.msra.mxu0 0
      %1801 = vmatprep.subr.bf16.mxu0 0
      %1802 = vmatpush2.bf16.msra.mxu0 0
      %1803 = vmatprep.subr.bf16.mxu0 0
      %1804 = vmatpush2.bf16.msra.mxu0 0
      %1805 = vmatprep.subr.bf16.mxu0 0
      %1806 = vmatpush2.bf16.msra.mxu0 0
      %1807 = vmatprep.mubr.bf16.mxu0 0
      %1808 = vmatmul.mubr.bf16.gmra.mxu0 %v1758
      %v1809 = vpop.f32.mrf.mxu0
      %v1810 = vadd.f32 0.0, %v1809
      %v1811 = vpop.f32.mrf.mxu0
      %v1812 = vpop.f32.mrf.mxu0
      %v1813 = vadd.f32 0.0, %v1812
      %v1814 = vpop.f32.mrf.mxu0
      %1815 = vmatprep.mubr.bf16.mxu0 0
      %1816 = vmatmul.mubr.bf16.gmra.mxu0 %v1761
      %v1817 = vpop.f32.mrf.mxu0
      %v1818 = vadd.f32 0.0, %v1817
      %v1819 = vpop.f32.mrf.mxu0
      %v1820 = vpop.f32.mrf.mxu0
      %v1821 = vadd.f32 0.0, %v1820
      %v1822 = vpop.f32.mrf.mxu0
      %1823 = vmatprep.mubr.bf16.mxu0 0
      %1824 = vmatmul.mubr.bf16.gmra.mxu0 %v1764
      %v1825 = vpop.f32.mrf.mxu0
      %v1826 = vadd.f32 0.0, %v1825
      %v1827 = vpop.f32.mrf.mxu0
      %v1828 = vpop.f32.mrf.mxu0
      %v1829 = vadd.f32 0.0, %v1828
      %v1830 = vpop.f32.mrf.mxu0
      %1831 = vmatprep.mubr.bf16.mxu0 0
      %1832 = vmatmul.mubr.bf16.gmra.mxu0 %v1767
      %v1833 = vpop.f32.mrf.mxu0
      %v1834 = vadd.f32 0.0, %v1833
      %v1835 = vpop.f32.mrf.mxu0
      %v1836 = vpop.f32.mrf.mxu0
      %v1837 = vadd.f32 0.0, %v1836
      %v1838 = vpop.f32.mrf.mxu0
      %1839 = vmatprep.mubr.bf16.mxu0 0
      %1840 = vmatmul.mubr.bf16.gmra.mxu0 %v1770
      %v1841 = vpop.f32.mrf.mxu0
      %v1842 = vadd.f32 0.0, %v1841
      %v1843 = vpop.f32.mrf.mxu0
      %v1844 = vpop.f32.mrf.mxu0
      %v1845 = vadd.f32 0.0, %v1844
      %v1846 = vpop.f32.mrf.mxu0
      %1847 = vdwg.mxu0
      %v1848 = vadd.f32 %v1710, %v1810
      %v1849 = vadd.f32 %v1711, %v1813
      %v1850 = vadd.f32 %v1712, %v1818
      %v1851 = vadd.f32 %v1713, %v1821
      %v1852 = vadd.f32 %v1714, %v1826
      %v1853 = vadd.f32 %v1715, %v1829
      %v1854 = vadd.f32 %v1716, %v1834
      %v1855 = vadd.f32 %v1717, %v1837
      %v1856 = vadd.f32 %v1718, %v1842
      %v1857 = vadd.f32 %v1719, %v1845
      %v1858 = vld [vmem:[%s422] sm:$0xf]
      %v1859 = vld [vmem:[%s422 + $0x4] sm:$0xf]
      %v1860 = vld [vmem:[%s422 + $0x8] sm:$0xf]
      %v1861 = vld [vmem:[%s422 + $0xc] sm:$0xf]
      %v1862 = vld [vmem:[%s422 + $0x10] sm:$0xf]
      %v1863 = vld [vmem:[%s422 + $0x14] sm:$0xf]
      %v1864 = vld [vmem:[%s422 + $0x18] sm:$0xf]
      %v1865 = vld [vmem:[%s422 + $0x1c] sm:$0xf]
      %v1866 = vld [vmem:[%s422 + $0x20] sm:$0xf]
      %v1867 = vld [vmem:[%s422 + $0x24] sm:$0xf]
      %v1868 = vld [vmem:[%s422 + $0x28] sm:$0x1]
      %s1869 = scalar_lea.vmem %s452, 40
      %v1870 = vld [vmem:[%s1869] sm:$0xf]
      %v1882 = vunpack.c.l.b16 %v1858
      %v1883 = vunpack.c.l.b16 %v1859
      %v1884 = vunpack.c.l.b16 %v1860
      %v1885 = vunpack.c.l.b16 %v1861
      %v1886 = vunpack.c.l.b16 %v1862
      %v1887 = vunpack.c.l.b16 %v1863
      %v1888 = vunpack.c.l.b16 %v1864
      %v1889 = vunpack.c.l.b16 %v1865
      %v1890 = vunpack.c.l.b16 %v1866
      %v1891 = vunpack.c.l.b16 %v1867
      %v1892 = vunpack.c.l.b16 %v1868
      %v1893 = vpack.c.b16 %v1883, %v1882
      %v1894 = vpack.c.b16 %v1885, %v1884
      %v1895 = vpack.c.b16 %v1887, %v1886
      %v1896 = vpack.c.b16 %v1889, %v1888
      %v1897 = vpack.c.b16 %v1891, %v1890
      %v1898 = vpack.c.b16 %v1892, %v1892
      %v1900 = vshrl.u32 %v1893, 16
      %v1902 = vshll.u32 %v1893, 16
      %v1904 = vrot.slane %v1902, 1
      %v1905 = vor.u32 %v1900, %v1904
      %v1907 = vshll.u32 %v1894, 16
      %v1909 = vrot.slane %v1907, 1
      %v1910 = vsel %vm511, %v1905, %v1909
      %v1911 = vshrl.u32 %v1894, 16
      %v1913 = vor.u32 %v1911, %v1909
      %v1915 = vshll.u32 %v1895, 16
      %v1917 = vrot.slane %v1915, 1
      %v1918 = vsel %vm511, %v1913, %v1917
      %v1919 = vshrl.u32 %v1895, 16
      %v1921 = vor.u32 %v1919, %v1917
      %v1923 = vshll.u32 %v1896, 16
      %v1925 = vrot.slane %v1923, 1
      %v1926 = vsel %vm511, %v1921, %v1925
      %v1927 = vshrl.u32 %v1896, 16
      %v1929 = vor.u32 %v1927, %v1925
      %v1931 = vshll.u32 %v1897, 16
      %v1933 = vrot.slane %v1931, 1
      %v1934 = vsel %vm511, %v1929, %v1933
      %v1935 = vshrl.u32 %v1897, 16
      %v1937 = vor.u32 %v1935, %v1933
      %v1939 = vshll.u32 %v1898, 16
      %v1941 = vrot.slane %v1939, 1
      %v1942 = vsel %vm511, %v1937, %v1941
      %v1944 = vsel %vm556, %v1910, 0
      %v1947 = vsel %vm556, %v1918, 0
      %v1950 = vsel %vm556, %v1926, 0
      %v1953 = vsel %vm556, %v1934, 0
      %v1956 = vsel %vm556, %v1942, 0
      %v1959 = vsel %vm572, %v1870, 0
      %1961 = vmatprep.subr.bf16.mxu0 0
      %1962 = vmatpush1.bf16.msra.mxu0 0
      %1963 = vmatprep.subr.bf16.mxu0 0
      %1964 = vmatpush1.bf16.msra.mxu0 0
      %1965 = vmatprep.subr.bf16.mxu0 0
      %1966 = vmatpush1.bf16.msra.mxu0 0
      %1967 = vmatprep.subr.bf16.mxu0 0
      %1968 = vmatpush1.bf16.msra.mxu0 0
      %1969 = vmatprep.subr.bf16.mxu0 0
      %1970 = vmatpush1.bf16.msra.mxu0 0
      %1971 = vmatprep.subr.bf16.mxu0 0
      %1972 = vmatpush1.bf16.msra.mxu0 0
      %1973 = vmatprep.subr.bf16.mxu0 0
      %1974 = vmatpush1.bf16.msra.mxu0 0
      %1975 = vmatprep.subr.bf16.mxu0 0
      %1976 = vmatpush1.bf16.msra.mxu0 %v1959
      %1977 = vmatprep.subr.bf16.mxu0 0
      %1978 = vmatpush2.bf16.msra.mxu0 0
      %1979 = vmatprep.subr.bf16.mxu0 0
      %1980 = vmatpush2.bf16.msra.mxu0 0
      %1981 = vmatprep.subr.bf16.mxu0 0
      %1982 = vmatpush2.bf16.msra.mxu0 0
      %1983 = vmatprep.subr.bf16.mxu0 0
      %1984 = vmatpush2.bf16.msra.mxu0 0
      %1985 = vmatprep.subr.bf16.mxu0 0
      %1986 = vmatpush2.bf16.msra.mxu0 0
      %1987 = vmatprep.subr.bf16.mxu0 0
      %1988 = vmatpush2.bf16.msra.mxu0 0
      %1989 = vmatprep.subr.bf16.mxu0 0
      %1990 = vmatpush2.bf16.msra.mxu0 0
      %1991 = vmatprep.subr.bf16.mxu0 0
      %1992 = vmatpush2.bf16.msra.mxu0 0
      %1993 = vmatprep.mubr.bf16.mxu0 0
      %1994 = vmatmul.mubr.bf16.gmra.mxu0 %v1944
      %v1995 = vpop.f32.mrf.mxu0
      %v1996 = vadd.f32 0.0, %v1995
      %v1997 = vpop.f32.mrf.mxu0
      %v1998 = vpop.f32.mrf.mxu0
      %v1999 = vadd.f32 0.0, %v1998
      %v2000 = vpop.f32.mrf.mxu0
      %2001 = vmatprep.mubr.bf16.mxu0 0
      %2002 = vmatmul.mubr.bf16.gmra.mxu0 %v1947
      %v2003 = vpop.f32.mrf.mxu0
      %v2004 = vadd.f32 0.0, %v2003
      %v2005 = vpop.f32.mrf.mxu0
      %v2006 = vpop.f32.mrf.mxu0
      %v2007 = vadd.f32 0.0, %v2006
      %v2008 = vpop.f32.mrf.mxu0
      %2009 = vmatprep.mubr.bf16.mxu0 0
      %2010 = vmatmul.mubr.bf16.gmra.mxu0 %v1950
      %v2011 = vpop.f32.mrf.mxu0
      %v2012 = vadd.f32 0.0, %v2011
      %v2013 = vpop.f32.mrf.mxu0
      %v2014 = vpop.f32.mrf.mxu0
      %v2015 = vadd.f32 0.0, %v2014
      %v2016 = vpop.f32.mrf.mxu0
      %2017 = vmatprep.mubr.bf16.mxu0 0
      %2018 = vmatmul.mubr.bf16.gmra.mxu0 %v1953
      %v2019 = vpop.f32.mrf.mxu0
      %v2020 = vadd.f32 0.0, %v2019
      %v2021 = vpop.f32.mrf.mxu0
      %v2022 = vpop.f32.mrf.mxu0
      %v2023 = vadd.f32 0.0, %v2022
      %v2024 = vpop.f32.mrf.mxu0
      %2025 = vmatprep.mubr.bf16.mxu0 0
      %2026 = vmatmul.mubr.bf16.gmra.mxu0 %v1956
      %v2027 = vpop.f32.mrf.mxu0
      %v2028 = vadd.f32 0.0, %v2027
      %v2029 = vpop.f32.mrf.mxu0
      %v2030 = vpop.f32.mrf.mxu0
      %v2031 = vadd.f32 0.0, %v2030
      %v2032 = vpop.f32.mrf.mxu0
      %2033 = vdwg.mxu0
      %v2034 = vadd.f32 %v1848, %v1996
      %v2035 = vadd.f32 %v1849, %v1999
      %v2036 = vadd.f32 %v1850, %v2004
      %v2037 = vadd.f32 %v1851, %v2007
      %v2038 = vadd.f32 %v1852, %v2012
      %v2039 = vadd.f32 %v1853, %v2015
      %v2040 = vadd.f32 %v1854, %v2020
      %v2041 = vadd.f32 %v1855, %v2023
      %v2042 = vadd.f32 %v1856, %v2028
      %v2043 = vadd.f32 %v1857, %v2031
      %v2044 = vld [vmem:[%s422] sm:$0xe]
      %s2045 = scalar_lea.vmem %s452, 44
      %v2046 = vld [vmem:[%s2045] sm:$0xf]
      %v2048 = vunpack.c.l.b16 %v2044
      %v2049 = vpack.c.b16 %v1883, %v2048
      %v2050 = vrot.slane %v2049, 1
      %v2051 = vrot.slane %v1894, 1
      %v2052 = vsel %vm741, %v2050, %v2051
      %v2053 = vrot.slane %v1895, 1
      %v2054 = vsel %vm741, %v2051, %v2053
      %v2055 = vrot.slane %v1896, 1
      %v2056 = vsel %vm741, %v2053, %v2055
      %v2057 = vrot.slane %v1897, 1
      %v2058 = vsel %vm741, %v2055, %v2057
      %v2059 = vrot.slane %v1898, 1
      %v2060 = vsel %vm741, %v2057, %v2059
      %v2062 = vsel %vm556, %v2052, 0
      %v2065 = vsel %vm556, %v2054, 0
      %v2068 = vsel %vm556, %v2056, 0
      %v2071 = vsel %vm556, %v2058, 0
      %v2074 = vsel %vm556, %v2060, 0
      %v2077 = vsel %vm572, %v2046, 0
      %2079 = vmatprep.subr.bf16.mxu0 0
      %2080 = vmatpush1.bf16.msra.mxu0 0
      %2081 = vmatprep.subr.bf16.mxu0 0
      %2082 = vmatpush1.bf16.msra.mxu0 0
      %2083 = vmatprep.subr.bf16.mxu0 0
      %2084 = vmatpush1.bf16.msra.mxu0 0
      %2085 = vmatprep.subr.bf16.mxu0 0
      %2086 = vmatpush1.bf16.msra.mxu0 0
      %2087 = vmatprep.subr.bf16.mxu0 0
      %2088 = vmatpush1.bf16.msra.mxu0 0
      %2089 = vmatprep.subr.bf16.mxu0 0
      %2090 = vmatpush1.bf16.msra.mxu0 0
      %2091 = vmatprep.subr.bf16.mxu0 0
      %2092 = vmatpush1.bf16.msra.mxu0 0
      %2093 = vmatprep.subr.bf16.mxu0 0
      %2094 = vmatpush1.bf16.msra.mxu0 %v2077
      %2095 = vmatprep.subr.bf16.mxu0 0
      %2096 = vmatpush2.bf16.msra.mxu0 0
      %2097 = vmatprep.subr.bf16.mxu0 0
      %2098 = vmatpush2.bf16.msra.mxu0 0
      %2099 = vmatprep.subr.bf16.mxu0 0
      %2100 = vmatpush2.bf16.msra.mxu0 0
      %2101 = vmatprep.subr.bf16.mxu0 0
      %2102 = vmatpush2.bf16.msra.mxu0 0
      %2103 = vmatprep.subr.bf16.mxu0 0
      %2104 = vmatpush2.bf16.msra.mxu0 0
      %2105 = vmatprep.subr.bf16.mxu0 0
      %2106 = vmatpush2.bf16.msra.mxu0 0
      %2107 = vmatprep.subr.bf16.mxu0 0
      %2108 = vmatpush2.bf16.msra.mxu0 0
      %2109 = vmatprep.subr.bf16.mxu0 0
      %2110 = vmatpush2.bf16.msra.mxu0 0
      %2111 = vmatprep.mubr.bf16.mxu0 0
      %2112 = vmatmul.mubr.bf16.gmra.mxu0 %v2062
      %v2113 = vpop.f32.mrf.mxu0
      %v2114 = vadd.f32 0.0, %v2113
      %v2115 = vpop.f32.mrf.mxu0
      %v2116 = vpop.f32.mrf.mxu0
      %v2117 = vadd.f32 0.0, %v2116
      %v2118 = vpop.f32.mrf.mxu0
      %2119 = vmatprep.mubr.bf16.mxu0 0
      %2120 = vmatmul.mubr.bf16.gmra.mxu0 %v2065
      %v2121 = vpop.f32.mrf.mxu0
      %v2122 = vadd.f32 0.0, %v2121
      %v2123 = vpop.f32.mrf.mxu0
      %v2124 = vpop.f32.mrf.mxu0
      %v2125 = vadd.f32 0.0, %v2124
      %v2126 = vpop.f32.mrf.mxu0
      %2127 = vmatprep.mubr.bf16.mxu0 0
      %2128 = vmatmul.mubr.bf16.gmra.mxu0 %v2068
      %v2129 = vpop.f32.mrf.mxu0
      %v2130 = vadd.f32 0.0, %v2129
      %v2131 = vpop.f32.mrf.mxu0
      %v2132 = vpop.f32.mrf.mxu0
      %v2133 = vadd.f32 0.0, %v2132
      %v2134 = vpop.f32.mrf.mxu0
      %2135 = vmatprep.mubr.bf16.mxu0 0
      %2136 = vmatmul.mubr.bf16.gmra.mxu0 %v2071
      %v2137 = vpop.f32.mrf.mxu0
      %v2138 = vadd.f32 0.0, %v2137
      %v2139 = vpop.f32.mrf.mxu0
      %v2140 = vpop.f32.mrf.mxu0
      %v2141 = vadd.f32 0.0, %v2140
      %v2142 = vpop.f32.mrf.mxu0
      %2143 = vmatprep.mubr.bf16.mxu0 0
      %2144 = vmatmul.mubr.bf16.gmra.mxu0 %v2074
      %v2145 = vpop.f32.mrf.mxu0
      %v2146 = vadd.f32 0.0, %v2145
      %v2147 = vpop.f32.mrf.mxu0
      %v2148 = vpop.f32.mrf.mxu0
      %v2149 = vadd.f32 0.0, %v2148
      %v2150 = vpop.f32.mrf.mxu0
      %2151 = vdwg.mxu0
      %v2152 = vadd.f32 %v2034, %v2114
      %v2153 = vadd.f32 %v2035, %v2117
      %v2154 = vadd.f32 %v2036, %v2122
      %v2155 = vadd.f32 %v2037, %v2125
      %v2156 = vadd.f32 %v2038, %v2130
      %v2157 = vadd.f32 %v2039, %v2133
      %v2158 = vadd.f32 %v2040, %v2138
      %v2159 = vadd.f32 %v2041, %v2141
      %v2160 = vadd.f32 %v2042, %v2146
      %v2161 = vadd.f32 %v2043, %v2149
      %v2162 = vld [vmem:[%s422 + $0x4] sm:$0xe]
      %v2163 = vld [vmem:[%s422 + $0x8] sm:$0xf]
      %v2164 = vld [vmem:[%s422 + $0xc] sm:$0xf]
      %v2165 = vld [vmem:[%s422 + $0x10] sm:$0xf]
      %v2166 = vld [vmem:[%s422 + $0x14] sm:$0xf]
      %v2167 = vld [vmem:[%s422 + $0x18] sm:$0xf]
      %v2168 = vld [vmem:[%s422 + $0x1c] sm:$0xf]
      %v2169 = vld [vmem:[%s422 + $0x20] sm:$0xf]
      %v2170 = vld [vmem:[%s422 + $0x24] sm:$0xf]
      %v2171 = vld [vmem:[%s422 + $0x28] sm:$0xf]
      %v2172 = vld [vmem:[%s422 + $0x2c] sm:$0x1]
      %s2173 = scalar_lea.vmem %s452, 48
      %v2174 = vld [vmem:[%s2173] sm:$0xf]
      %v2186 = vunpack.c.l.b16 %v2162
      %v2187 = vunpack.c.l.b16 %v2163
      %v2188 = vunpack.c.l.b16 %v2164
      %v2189 = vunpack.c.l.b16 %v2165
      %v2190 = vunpack.c.l.b16 %v2166
      %v2191 = vunpack.c.l.b16 %v2167
      %v2192 = vunpack.c.l.b16 %v2168
      %v2193 = vunpack.c.l.b16 %v2169
      %v2194 = vunpack.c.l.b16 %v2170
      %v2195 = vunpack.c.l.b16 %v2171
      %v2196 = vunpack.c.l.b16 %v2172
      %v2197 = vpack.c.b16 %v2187, %v2186
      %v2198 = vpack.c.b16 %v2189, %v2188
      %v2199 = vpack.c.b16 %v2191, %v2190
      %v2200 = vpack.c.b16 %v2193, %v2192
      %v2201 = vpack.c.b16 %v2195, %v2194
      %v2202 = vpack.c.b16 %v2196, %v2196
      %v2203 = vrot.slane %v2197, 1
      %v2204 = vrot.slane %v2198, 1
      %v2205 = vsel %vm741, %v2203, %v2204
      %v2206 = vrot.slane %v2199, 1
      %v2207 = vsel %vm741, %v2204, %v2206
      %v2208 = vrot.slane %v2200, 1
      %v2209 = vsel %vm741, %v2206, %v2208
      %v2210 = vrot.slane %v2201, 1
      %v2211 = vsel %vm741, %v2208, %v2210
      %v2212 = vrot.slane %v2202, 1
      %v2213 = vsel %vm741, %v2210, %v2212
      %v2215 = vsel %vm556, %v2205, 0
      %v2218 = vsel %vm556, %v2207, 0
      %v2221 = vsel %vm556, %v2209, 0
      %v2224 = vsel %vm556, %v2211, 0
      %v2227 = vsel %vm556, %v2213, 0
      %v2230 = vsel %vm572, %v2174, 0
      %2232 = vmatprep.subr.bf16.mxu0 0
      %2233 = vmatpush1.bf16.msra.mxu0 0
      %2234 = vmatprep.subr.bf16.mxu0 0
      %2235 = vmatpush1.bf16.msra.mxu0 0
      %2236 = vmatprep.subr.bf16.mxu0 0
      %2237 = vmatpush1.bf16.msra.mxu0 0
      %2238 = vmatprep.subr.bf16.mxu0 0
      %2239 = vmatpush1.bf16.msra.mxu0 0
      %2240 = vmatprep.subr.bf16.mxu0 0
      %2241 = vmatpush1.bf16.msra.mxu0 0
      %2242 = vmatprep.subr.bf16.mxu0 0
      %2243 = vmatpush1.bf16.msra.mxu0 0
      %2244 = vmatprep.subr.bf16.mxu0 0
      %2245 = vmatpush1.bf16.msra.mxu0 0
      %2246 = vmatprep.subr.bf16.mxu0 0
      %2247 = vmatpush1.bf16.msra.mxu0 %v2230
      %2248 = vmatprep.subr.bf16.mxu0 0
      %2249 = vmatpush2.bf16.msra.mxu0 0
      %2250 = vmatprep.subr.bf16.mxu0 0
      %2251 = vmatpush2.bf16.msra.mxu0 0
      %2252 = vmatprep.subr.bf16.mxu0 0
      %2253 = vmatpush2.bf16.msra.mxu0 0
      %2254 = vmatprep.subr.bf16.mxu0 0
      %2255 = vmatpush2.bf16.msra.mxu0 0
      %2256 = vmatprep.subr.bf16.mxu0 0
      %2257 = vmatpush2.bf16.msra.mxu0 0
      %2258 = vmatprep.subr.bf16.mxu0 0
      %2259 = vmatpush2.bf16.msra.mxu0 0
      %2260 = vmatprep.subr.bf16.mxu0 0
      %2261 = vmatpush2.bf16.msra.mxu0 0
      %2262 = vmatprep.subr.bf16.mxu0 0
      %2263 = vmatpush2.bf16.msra.mxu0 0
      %2264 = vmatprep.mubr.bf16.mxu0 0
      %2265 = vmatmul.mubr.bf16.gmra.mxu0 %v2215
      %v2266 = vpop.f32.mrf.mxu0
      %v2267 = vadd.f32 0.0, %v2266
      %v2268 = vpop.f32.mrf.mxu0
      %v2269 = vpop.f32.mrf.mxu0
      %v2270 = vadd.f32 0.0, %v2269
      %v2271 = vpop.f32.mrf.mxu0
      %2272 = vmatprep.mubr.bf16.mxu0 0
      %2273 = vmatmul.mubr.bf16.gmra.mxu0 %v2218
      %v2274 = vpop.f32.mrf.mxu0
      %v2275 = vadd.f32 0.0, %v2274
      %v2276 = vpop.f32.mrf.mxu0
      %v2277 = vpop.f32.mrf.mxu0
      %v2278 = vadd.f32 0.0, %v2277
      %v2279 = vpop.f32.mrf.mxu0
      %2280 = vmatprep.mubr.bf16.mxu0 0
      %2281 = vmatmul.mubr.bf16.gmra.mxu0 %v2221
      %v2282 = vpop.f32.mrf.mxu0
      %v2283 = vadd.f32 0.0, %v2282
      %v2284 = vpop.f32.mrf.mxu0
      %v2285 = vpop.f32.mrf.mxu0
      %v2286 = vadd.f32 0.0, %v2285
      %v2287 = vpop.f32.mrf.mxu0
      %2288 = vmatprep.mubr.bf16.mxu0 0
      %2289 = vmatmul.mubr.bf16.gmra.mxu0 %v2224
      %v2290 = vpop.f32.mrf.mxu0
      %v2291 = vadd.f32 0.0, %v2290
      %v2292 = vpop.f32.mrf.mxu0
      %v2293 = vpop.f32.mrf.mxu0
      %v2294 = vadd.f32 0.0, %v2293
      %v2295 = vpop.f32.mrf.mxu0
      %2296 = vmatprep.mubr.bf16.mxu0 0
      %2297 = vmatmul.mubr.bf16.gmra.mxu0 %v2227
      %v2298 = vpop.f32.mrf.mxu0
      %v2299 = vadd.f32 0.0, %v2298
      %v2300 = vpop.f32.mrf.mxu0
      %v2301 = vpop.f32.mrf.mxu0
      %v2302 = vadd.f32 0.0, %v2301
      %v2303 = vpop.f32.mrf.mxu0
      %2304 = vdwg.mxu0
      %v2305 = vadd.f32 %v2152, %v2267
      %v2306 = vadd.f32 %v2153, %v2270
      %v2307 = vadd.f32 %v2154, %v2275
      %v2308 = vadd.f32 %v2155, %v2278
      %v2309 = vadd.f32 %v2156, %v2283
      %v2310 = vadd.f32 %v2157, %v2286
      %v2311 = vadd.f32 %v2158, %v2291
      %v2312 = vadd.f32 %v2159, %v2294
      %v2313 = vadd.f32 %v2160, %v2299
      %v2314 = vadd.f32 %v2161, %v2302
      %v2315 = vld [vmem:[%s422 + $0x2c] sm:$0x3]
      %s2316 = scalar_lea.vmem %s452, 52
      %v2317 = vld [vmem:[%s2316] sm:$0xf]
      %v2319 = vunpack.c.l.b16 %v2315
      %v2320 = vpack.c.b16 %v2319, %v2319
      %v2322 = vshrl.u32 %v2197, 16
      %v2324 = vrot.slane %v2322, 1
      %v2325 = vshll.u32 %v2197, 16
      %v2327 = vrot.slane %v2325, 2
      %v2328 = vor.u32 %v2324, %v2327
      %v2330 = vshrl.u32 %v2198, 16
      %v2332 = vrot.slane %v2330, 1
      %v2333 = vshll.u32 %v2198, 16
      %v2335 = vrot.slane %v2333, 2
      %v2336 = vor.u32 %v2332, %v2335
      %v2337 = vsel %vm1013, %v2328, %v2336
      %v2339 = vshrl.u32 %v2199, 16
      %v2341 = vrot.slane %v2339, 1
      %v2342 = vshll.u32 %v2199, 16
      %v2344 = vrot.slane %v2342, 2
      %v2345 = vor.u32 %v2341, %v2344
      %v2346 = vsel %vm1013, %v2336, %v2345
      %v2348 = vshrl.u32 %v2200, 16
      %v2350 = vrot.slane %v2348, 1
      %v2351 = vshll.u32 %v2200, 16
      %v2353 = vrot.slane %v2351, 2
      %v2354 = vor.u32 %v2350, %v2353
      %v2355 = vsel %vm1013, %v2345, %v2354
      %v2357 = vshrl.u32 %v2201, 16
      %v2359 = vrot.slane %v2357, 1
      %v2360 = vshll.u32 %v2201, 16
      %v2362 = vrot.slane %v2360, 2
      %v2363 = vor.u32 %v2359, %v2362
      %v2364 = vsel %vm1013, %v2354, %v2363
      %v2366 = vshrl.u32 %v2320, 16
      %v2368 = vrot.slane %v2366, 1
      %v2369 = vshll.u32 %v2320, 16
      %v2371 = vrot.slane %v2369, 2
      %v2372 = vor.u32 %v2368, %v2371
      %v2373 = vsel %vm1013, %v2363, %v2372
      %v2375 = vsel %vm556, %v2337, 0
      %v2378 = vsel %vm556, %v2346, 0
      %v2381 = vsel %vm556, %v2355, 0
      %v2384 = vsel %vm556, %v2364, 0
      %v2387 = vsel %vm556, %v2373, 0
      %v2390 = vsel %vm572, %v2317, 0
      %2392 = vmatprep.subr.bf16.mxu0 0
      %2393 = vmatpush1.bf16.msra.mxu0 0
      %2394 = vmatprep.subr.bf16.mxu0 0
      %2395 = vmatpush1.bf16.msra.mxu0 0
      %2396 = vmatprep.subr.bf16.mxu0 0
      %2397 = vmatpush1.bf16.msra.mxu0 0
      %2398 = vmatprep.subr.bf16.mxu0 0
      %2399 = vmatpush1.bf16.msra.mxu0 0
      %2400 = vmatprep.subr.bf16.mxu0 0
      %2401 = vmatpush1.bf16.msra.mxu0 0
      %2402 = vmatprep.subr.bf16.mxu0 0
      %2403 = vmatpush1.bf16.msra.mxu0 0
      %2404 = vmatprep.subr.bf16.mxu0 0
      %2405 = vmatpush1.bf16.msra.mxu0 0
      %2406 = vmatprep.subr.bf16.mxu0 0
      %2407 = vmatpush1.bf16.msra.mxu0 %v2390
      %2408 = vmatprep.subr.bf16.mxu0 0
      %2409 = vmatpush2.bf16.msra.mxu0 0
      %2410 = vmatprep.subr.bf16.mxu0 0
      %2411 = vmatpush2.bf16.msra.mxu0 0
      %2412 = vmatprep.subr.bf16.mxu0 0
      %2413 = vmatpush2.bf16.msra.mxu0 0
      %2414 = vmatprep.subr.bf16.mxu0 0
      %2415 = vmatpush2.bf16.msra.mxu0 0
      %2416 = vmatprep.subr.bf16.mxu0 0
      %2417 = vmatpush2.bf16.msra.mxu0 0
      %2418 = vmatprep.subr.bf16.mxu0 0
      %2419 = vmatpush2.bf16.msra.mxu0 0
      %2420 = vmatprep.subr.bf16.mxu0 0
      %2421 = vmatpush2.bf16.msra.mxu0 0
      %2422 = vmatprep.subr.bf16.mxu0 0
      %2423 = vmatpush2.bf16.msra.mxu0 0
      %2424 = vmatprep.mubr.bf16.mxu0 0
      %2425 = vmatmul.mubr.bf16.gmra.mxu0 %v2375
      %v2426 = vpop.f32.mrf.mxu0
      %v2427 = vadd.f32 0.0, %v2426
      %v2428 = vpop.f32.mrf.mxu0
      %v2429 = vpop.f32.mrf.mxu0
      %v2430 = vadd.f32 0.0, %v2429
      %v2431 = vpop.f32.mrf.mxu0
      %2432 = vmatprep.mubr.bf16.mxu0 0
      %2433 = vmatmul.mubr.bf16.gmra.mxu0 %v2378
      %v2434 = vpop.f32.mrf.mxu0
      %v2435 = vadd.f32 0.0, %v2434
      %v2436 = vpop.f32.mrf.mxu0
      %v2437 = vpop.f32.mrf.mxu0
      %v2438 = vadd.f32 0.0, %v2437
      %v2439 = vpop.f32.mrf.mxu0
      %2440 = vmatprep.mubr.bf16.mxu0 0
      %2441 = vmatmul.mubr.bf16.gmra.mxu0 %v2381
      %v2442 = vpop.f32.mrf.mxu0
      %v2443 = vadd.f32 0.0, %v2442
      %v2444 = vpop.f32.mrf.mxu0
      %v2445 = vpop.f32.mrf.mxu0
      %v2446 = vadd.f32 0.0, %v2445
      %v2447 = vpop.f32.mrf.mxu0
      %2448 = vmatprep.mubr.bf16.mxu0 0
      %2449 = vmatmul.mubr.bf16.gmra.mxu0 %v2384
      %v2450 = vpop.f32.mrf.mxu0
      %v2451 = vadd.f32 0.0, %v2450
      %v2452 = vpop.f32.mrf.mxu0
      %v2453 = vpop.f32.mrf.mxu0
      %v2454 = vadd.f32 0.0, %v2453
      %v2455 = vpop.f32.mrf.mxu0
      %2456 = vmatprep.mubr.bf16.mxu0 0
      %2457 = vmatmul.mubr.bf16.gmra.mxu0 %v2387
      %v2458 = vpop.f32.mrf.mxu0
      %v2459 = vadd.f32 0.0, %v2458
      %v2460 = vpop.f32.mrf.mxu0
      %v2461 = vpop.f32.mrf.mxu0
      %v2462 = vadd.f32 0.0, %v2461
      %v2463 = vpop.f32.mrf.mxu0
      %2464 = vdwg.mxu0
      %v2465 = vadd.f32 %v2305, %v2427
      %v2466 = vadd.f32 %v2306, %v2430
      %v2467 = vadd.f32 %v2307, %v2435
      %v2468 = vadd.f32 %v2308, %v2438
      %v2469 = vadd.f32 %v2309, %v2443
      %v2470 = vadd.f32 %v2310, %v2446
      %v2471 = vadd.f32 %v2311, %v2451
      %v2472 = vadd.f32 %v2312, %v2454
      %v2473 = vadd.f32 %v2313, %v2459
      %v2474 = vadd.f32 %v2314, %v2462
      %v2475 = vld [vmem:[%s422 + $0x4] sm:$0xc]
      %s2476 = scalar_lea.vmem %s452, 56
      %v2477 = vld [vmem:[%s2476] sm:$0xf]
      %v2479 = vunpack.c.l.b16 %v2475
      %v2480 = vpack.c.b16 %v2187, %v2479
      %v2481 = vrot.slane %v2480, 2
      %v2482 = vrot.slane %v2198, 2
      %v2483 = vsel %vm1174, %v2481, %v2482
      %v2484 = vrot.slane %v2199, 2
      %v2485 = vsel %vm1174, %v2482, %v2484
      %v2486 = vrot.slane %v2200, 2
      %v2487 = vsel %vm1174, %v2484, %v2486
      %v2488 = vrot.slane %v2201, 2
      %v2489 = vsel %vm1174, %v2486, %v2488
      %v2490 = vrot.slane %v2320, 2
      %v2491 = vsel %vm1174, %v2488, %v2490
      %v2493 = vsel %vm556, %v2483, 0
      %v2496 = vsel %vm556, %v2485, 0
      %v2499 = vsel %vm556, %v2487, 0
      %v2502 = vsel %vm556, %v2489, 0
      %v2505 = vsel %vm556, %v2491, 0
      %v2508 = vsel %vm572, %v2477, 0
      %2510 = vmatprep.subr.bf16.mxu0 0
      %2511 = vmatpush1.bf16.msra.mxu0 0
      %2512 = vmatprep.subr.bf16.mxu0 0
      %2513 = vmatpush1.bf16.msra.mxu0 0
      %2514 = vmatprep.subr.bf16.mxu0 0
      %2515 = vmatpush1.bf16.msra.mxu0 0
      %2516 = vmatprep.subr.bf16.mxu0 0
      %2517 = vmatpush1.bf16.msra.mxu0 0
      %2518 = vmatprep.subr.bf16.mxu0 0
      %2519 = vmatpush1.bf16.msra.mxu0 0
      %2520 = vmatprep.subr.bf16.mxu0 0
      %2521 = vmatpush1.bf16.msra.mxu0 0
      %2522 = vmatprep.subr.bf16.mxu0 0
      %2523 = vmatpush1.bf16.msra.mxu0 0
      %2524 = vmatprep.subr.bf16.mxu0 0
      %2525 = vmatpush1.bf16.msra.mxu0 %v2508
      %2526 = vmatprep.subr.bf16.mxu0 0
      %2527 = vmatpush2.bf16.msra.mxu0 0
      %2528 = vmatprep.subr.bf16.mxu0 0
      %2529 = vmatpush2.bf16.msra.mxu0 0
      %2530 = vmatprep.subr.bf16.mxu0 0
      %2531 = vmatpush2.bf16.msra.mxu0 0
      %2532 = vmatprep.subr.bf16.mxu0 0
      %2533 = vmatpush2.bf16.msra.mxu0 0
      %2534 = vmatprep.subr.bf16.mxu0 0
      %2535 = vmatpush2.bf16.msra.mxu0 0
      %2536 = vmatprep.subr.bf16.mxu0 0
      %2537 = vmatpush2.bf16.msra.mxu0 0
      %2538 = vmatprep.subr.bf16.mxu0 0
      %2539 = vmatpush2.bf16.msra.mxu0 0
      %2540 = vmatprep.subr.bf16.mxu0 0
      %2541 = vmatpush2.bf16.msra.mxu0 0
      %2542 = vmatprep.mubr.bf16.mxu0 0
      %2543 = vmatmul.mubr.bf16.gmra.mxu0 %v2493
      %v2544 = vpop.f32.mrf.mxu0
      %v2545 = vadd.f32 0.0, %v2544
      %v2546 = vpop.f32.mrf.mxu0
      %v2547 = vpop.f32.mrf.mxu0
      %v2548 = vadd.f32 0.0, %v2547
      %v2549 = vpop.f32.mrf.mxu0
      %2550 = vmatprep.mubr.bf16.mxu0 0
      %2551 = vmatmul.mubr.bf16.gmra.mxu0 %v2496
      %v2552 = vpop.f32.mrf.mxu0
      %v2553 = vadd.f32 0.0, %v2552
      %v2554 = vpop.f32.mrf.mxu0
      %v2555 = vpop.f32.mrf.mxu0
      %v2556 = vadd.f32 0.0, %v2555
      %v2557 = vpop.f32.mrf.mxu0
      %2558 = vmatprep.mubr.bf16.mxu0 0
      %2559 = vmatmul.mubr.bf16.gmra.mxu0 %v2499
      %v2560 = vpop.f32.mrf.mxu0
      %v2561 = vadd.f32 0.0, %v2560
      %v2562 = vpop.f32.mrf.mxu0
      %v2563 = vpop.f32.mrf.mxu0
      %v2564 = vadd.f32 0.0, %v2563
      %v2565 = vpop.f32.mrf.mxu0
      %2566 = vmatprep.mubr.bf16.mxu0 0
      %2567 = vmatmul.mubr.bf16.gmra.mxu0 %v2502
      %v2568 = vpop.f32.mrf.mxu0
      %v2569 = vadd.f32 0.0, %v2568
      %v2570 = vpop.f32.mrf.mxu0
      %v2571 = vpop.f32.mrf.mxu0
      %v2572 = vadd.f32 0.0, %v2571
      %v2573 = vpop.f32.mrf.mxu0
      %2574 = vmatprep.mubr.bf16.mxu0 0
      %2575 = vmatmul.mubr.bf16.gmra.mxu0 %v2505
      %v2576 = vpop.f32.mrf.mxu0
      %v2577 = vadd.f32 0.0, %v2576
      %v2578 = vpop.f32.mrf.mxu0
      %v2579 = vpop.f32.mrf.mxu0
      %v2580 = vadd.f32 0.0, %v2579
      %v2581 = vpop.f32.mrf.mxu0
      %2582 = vdwg.mxu0
      %v2583 = vadd.f32 %v2465, %v2545
      %v2584 = vadd.f32 %v2466, %v2548
      %v2585 = vadd.f32 %v2467, %v2553
      %v2586 = vadd.f32 %v2468, %v2556
      %v2587 = vadd.f32 %v2469, %v2561
      %v2588 = vadd.f32 %v2470, %v2564
      %v2589 = vadd.f32 %v2471, %v2569
      %v2590 = vadd.f32 %v2472, %v2572
      %v2591 = vadd.f32 %v2473, %v2577
      %v2592 = vadd.f32 %v2474, %v2580
      %v2593 = vld [vmem:[%s422 + $0x8] sm:$0xc]
      %v2594 = vld [vmem:[%s422 + $0xc] sm:$0xf]
      %v2595 = vld [vmem:[%s422 + $0x10] sm:$0xf]
      %v2596 = vld [vmem:[%s422 + $0x14] sm:$0xf]
      %v2597 = vld [vmem:[%s422 + $0x18] sm:$0xf]
      %v2598 = vld [vmem:[%s422 + $0x1c] sm:$0xf]
      %v2599 = vld [vmem:[%s422 + $0x20] sm:$0xf]
      %v2600 = vld [vmem:[%s422 + $0x24] sm:$0xf]
      %v2601 = vld [vmem:[%s422 + $0x28] sm:$0xf]
      %v2602 = vld [vmem:[%s422 + $0x2c] sm:$0xf]
      %v2603 = vld [vmem:[%s422 + $0x30] sm:$0x3]
      %s2604 = scalar_lea.vmem %s452, 60
      %v2605 = vld [vmem:[%s2604] sm:$0xf]
      %v2617 = vunpack.c.l.b16 %v2593
      %v2618 = vunpack.c.l.b16 %v2594
      %v2619 = vunpack.c.l.b16 %v2595
      %v2620 = vunpack.c.l.b16 %v2596
      %v2621 = vunpack.c.l.b16 %v2597
      %v2622 = vunpack.c.l.b16 %v2598
      %v2623 = vunpack.c.l.b16 %v2599
      %v2624 = vunpack.c.l.b16 %v2600
      %v2625 = vunpack.c.l.b16 %v2601
      %v2626 = vunpack.c.l.b16 %v2602
      %v2627 = vunpack.c.l.b16 %v2603
      %v2628 = vpack.c.b16 %v2618, %v2617
      %v2629 = vpack.c.b16 %v2620, %v2619
      %v2630 = vpack.c.b16 %v2622, %v2621
      %v2631 = vpack.c.b16 %v2624, %v2623
      %v2632 = vpack.c.b16 %v2626, %v2625
      %v2633 = vpack.c.b16 %v2627, %v2627
      %v2634 = vrot.slane %v2628, 2
      %v2635 = vrot.slane %v2629, 2
      %v2636 = vsel %vm1174, %v2634, %v2635
      %v2637 = vrot.slane %v2630, 2
      %v2638 = vsel %vm1174, %v2635, %v2637
      %v2639 = vrot.slane %v2631, 2
      %v2640 = vsel %vm1174, %v2637, %v2639
      %v2641 = vrot.slane %v2632, 2
      %v2642 = vsel %vm1174, %v2639, %v2641
      %v2643 = vrot.slane %v2633, 2
      %v2644 = vsel %vm1174, %v2641, %v2643
      %v2646 = vsel %vm556, %v2636, 0
      %v2649 = vsel %vm556, %v2638, 0
      %v2652 = vsel %vm556, %v2640, 0
      %v2655 = vsel %vm556, %v2642, 0
      %v2658 = vsel %vm556, %v2644, 0
      %v2661 = vsel %vm572, %v2605, 0
      %2663 = vmatprep.subr.bf16.mxu0 0
      %2664 = vmatpush1.bf16.msra.mxu0 0
      %2665 = vmatprep.subr.bf16.mxu0 0
      %2666 = vmatpush1.bf16.msra.mxu0 0
      %2667 = vmatprep.subr.bf16.mxu0 0
      %2668 = vmatpush1.bf16.msra.mxu0 0
      %2669 = vmatprep.subr.bf16.mxu0 0
      %2670 = vmatpush1.bf16.msra.mxu0 0
      %2671 = vmatprep.subr.bf16.mxu0 0
      %2672 = vmatpush1.bf16.msra.mxu0 0
      %2673 = vmatprep.subr.bf16.mxu0 0
      %2674 = vmatpush1.bf16.msra.mxu0 0
      %2675 = vmatprep.subr.bf16.mxu0 0
      %2676 = vmatpush1.bf16.msra.mxu0 0
      %2677 = vmatprep.subr.bf16.mxu0 0
      %2678 = vmatpush1.bf16.msra.mxu0 %v2661
      %2679 = vmatprep.subr.bf16.mxu0 0
      %2680 = vmatpush2.bf16.msra.mxu0 0
      %2681 = vmatprep.subr.bf16.mxu0 0
      %2682 = vmatpush2.bf16.msra.mxu0 0
      %2683 = vmatprep.subr.bf16.mxu0 0
      %2684 = vmatpush2.bf16.msra.mxu0 0
      %2685 = vmatprep.subr.bf16.mxu0 0
      %2686 = vmatpush2.bf16.msra.mxu0 0
      %2687 = vmatprep.subr.bf16.mxu0 0
      %2688 = vmatpush2.bf16.msra.mxu0 0
      %2689 = vmatprep.subr.bf16.mxu0 0
      %2690 = vmatpush2.bf16.msra.mxu0 0
      %2691 = vmatprep.subr.bf16.mxu0 0
      %2692 = vmatpush2.bf16.msra.mxu0 0
      %2693 = vmatprep.subr.bf16.mxu0 0
      %2694 = vmatpush2.bf16.msra.mxu0 0
      %2695 = vmatprep.mubr.bf16.mxu0 0
      %2696 = vmatmul.mubr.bf16.gmra.mxu0 %v2646
      %v2697 = vpop.f32.mrf.mxu0
      %v2698 = vadd.f32 0.0, %v2697
      %v2699 = vpop.f32.mrf.mxu0
      %v2700 = vpop.f32.mrf.mxu0
      %v2701 = vadd.f32 0.0, %v2700
      %v2702 = vpop.f32.mrf.mxu0
      %2703 = vmatprep.mubr.bf16.mxu0 0
      %2704 = vmatmul.mubr.bf16.gmra.mxu0 %v2649
      %v2705 = vpop.f32.mrf.mxu0
      %v2706 = vadd.f32 0.0, %v2705
      %v2707 = vpop.f32.mrf.mxu0
      %v2708 = vpop.f32.mrf.mxu0
      %v2709 = vadd.f32 0.0, %v2708
      %v2710 = vpop.f32.mrf.mxu0
      %2711 = vmatprep.mubr.bf16.mxu0 0
      %2712 = vmatmul.mubr.bf16.gmra.mxu0 %v2652
      %v2713 = vpop.f32.mrf.mxu0
      %v2714 = vadd.f32 0.0, %v2713
      %v2715 = vpop.f32.mrf.mxu0
      %v2716 = vpop.f32.mrf.mxu0
      %v2717 = vadd.f32 0.0, %v2716
      %v2718 = vpop.f32.mrf.mxu0
      %2719 = vmatprep.mubr.bf16.mxu0 0
      %2720 = vmatmul.mubr.bf16.gmra.mxu0 %v2655
      %v2721 = vpop.f32.mrf.mxu0
      %v2722 = vadd.f32 0.0, %v2721
      %v2723 = vpop.f32.mrf.mxu0
      %v2724 = vpop.f32.mrf.mxu0
      %v2725 = vadd.f32 0.0, %v2724
      %v2726 = vpop.f32.mrf.mxu0
      %2727 = vmatprep.mubr.bf16.mxu0 0
      %2728 = vmatmul.mubr.bf16.gmra.mxu0 %v2658
      %v2729 = vpop.f32.mrf.mxu0
      %v2730 = vadd.f32 0.0, %v2729
      %v2731 = vpop.f32.mrf.mxu0
      %v2732 = vpop.f32.mrf.mxu0
      %v2733 = vadd.f32 0.0, %v2732
      %v2734 = vpop.f32.mrf.mxu0
      %2735 = vdwg.mxu0
      %v2736 = vadd.f32 %v2583, %v2698
      %v2737 = vadd.f32 %v2584, %v2701
      %v2738 = vadd.f32 %v2585, %v2706
      %v2739 = vadd.f32 %v2586, %v2709
      %v2740 = vadd.f32 %v2587, %v2714
      %v2741 = vadd.f32 %v2588, %v2717
      %v2742 = vadd.f32 %v2589, %v2722
      %v2743 = vadd.f32 %v2590, %v2725
      %v2744 = vadd.f32 %v2591, %v2730
      %v2745 = vadd.f32 %v2592, %v2733
      %v2746 = vld [vmem:[%s422 + $0x30] sm:$0x7]
      %s2747 = scalar_lea.vmem %s452, 64
      %v2748 = vld [vmem:[%s2747] sm:$0xf]
      %v2750 = vunpack.c.l.b16 %v2746
      %v2751 = vpack.c.b16 %v2750, %v2750
      %v2753 = vshrl.u32 %v2628, 16
      %v2755 = vrot.slane %v2753, 2
      %v2756 = vshll.u32 %v2628, 16
      %v2758 = vrot.slane %v2756, 3
      %v2759 = vor.u32 %v2755, %v2758
      %v2761 = vshrl.u32 %v2629, 16
      %v2763 = vrot.slane %v2761, 2
      %v2764 = vshll.u32 %v2629, 16
      %v2766 = vrot.slane %v2764, 3
      %v2767 = vor.u32 %v2763, %v2766
      %v2768 = vsel %vm1446, %v2759, %v2767
      %v2770 = vshrl.u32 %v2630, 16
      %v2772 = vrot.slane %v2770, 2
      %v2773 = vshll.u32 %v2630, 16
      %v2775 = vrot.slane %v2773, 3
      %v2776 = vor.u32 %v2772, %v2775
      %v2777 = vsel %vm1446, %v2767, %v2776
      %v2779 = vshrl.u32 %v2631, 16
      %v2781 = vrot.slane %v2779, 2
      %v2782 = vshll.u32 %v2631, 16
      %v2784 = vrot.slane %v2782, 3
      %v2785 = vor.u32 %v2781, %v2784
      %v2786 = vsel %vm1446, %v2776, %v2785
      %v2788 = vshrl.u32 %v2632, 16
      %v2790 = vrot.slane %v2788, 2
      %v2791 = vshll.u32 %v2632, 16
      %v2793 = vrot.slane %v2791, 3
      %v2794 = vor.u32 %v2790, %v2793
      %v2795 = vsel %vm1446, %v2785, %v2794
      %v2797 = vshrl.u32 %v2751, 16
      %v2799 = vrot.slane %v2797, 2
      %v2800 = vshll.u32 %v2751, 16
      %v2802 = vrot.slane %v2800, 3
      %v2803 = vor.u32 %v2799, %v2802
      %v2804 = vsel %vm1446, %v2794, %v2803
      %v2806 = vsel %vm556, %v2768, 0
      %v2809 = vsel %vm556, %v2777, 0
      %v2812 = vsel %vm556, %v2786, 0
      %v2815 = vsel %vm556, %v2795, 0
      %v2818 = vsel %vm556, %v2804, 0
      %v2821 = vsel %vm572, %v2748, 0
      %2823 = vmatprep.subr.bf16.mxu0 0
      %2824 = vmatpush1.bf16.msra.mxu0 0
      %2825 = vmatprep.subr.bf16.mxu0 0
      %2826 = vmatpush1.bf16.msra.mxu0 0
      %2827 = vmatprep.subr.bf16.mxu0 0
      %2828 = vmatpush1.bf16.msra.mxu0 0
      %2829 = vmatprep.subr.bf16.mxu0 0
      %2830 = vmatpush1.bf16.msra.mxu0 0
      %2831 = vmatprep.subr.bf16.mxu0 0
      %2832 = vmatpush1.bf16.msra.mxu0 0
      %2833 = vmatprep.subr.bf16.mxu0 0
      %2834 = vmatpush1.bf16.msra.mxu0 0
      %2835 = vmatprep.subr.bf16.mxu0 0
      %2836 = vmatpush1.bf16.msra.mxu0 0
      %2837 = vmatprep.subr.bf16.mxu0 0
      %2838 = vmatpush1.bf16.msra.mxu0 %v2821
      %2839 = vmatprep.subr.bf16.mxu0 0
      %2840 = vmatpush2.bf16.msra.mxu0 0
      %2841 = vmatprep.subr.bf16.mxu0 0
      %2842 = vmatpush2.bf16.msra.mxu0 0
      %2843 = vmatprep.subr.bf16.mxu0 0
      %2844 = vmatpush2.bf16.msra.mxu0 0
      %2845 = vmatprep.subr.bf16.mxu0 0
      %2846 = vmatpush2.bf16.msra.mxu0 0
      %2847 = vmatprep.subr.bf16.mxu0 0
      %2848 = vmatpush2.bf16.msra.mxu0 0
      %2849 = vmatprep.subr.bf16.mxu0 0
      %2850 = vmatpush2.bf16.msra.mxu0 0
      %2851 = vmatprep.subr.bf16.mxu0 0
      %2852 = vmatpush2.bf16.msra.mxu0 0
      %2853 = vmatprep.subr.bf16.mxu0 0
      %2854 = vmatpush2.bf16.msra.mxu0 0
      %2855 = vmatprep.mubr.bf16.mxu0 0
      %2856 = vmatmul.mubr.bf16.gmra.mxu0 %v2806
      %v2857 = vpop.f32.mrf.mxu0
      %v2858 = vadd.f32 0.0, %v2857
      %v2859 = vpop.f32.mrf.mxu0
      %v2860 = vpop.f32.mrf.mxu0
      %v2861 = vadd.f32 0.0, %v2860
      %v2862 = vpop.f32.mrf.mxu0
      %2863 = vmatprep.mubr.bf16.mxu0 0
      %2864 = vmatmul.mubr.bf16.gmra.mxu0 %v2809
      %v2865 = vpop.f32.mrf.mxu0
      %v2866 = vadd.f32 0.0, %v2865
      %v2867 = vpop.f32.mrf.mxu0
      %v2868 = vpop.f32.mrf.mxu0
      %v2869 = vadd.f32 0.0, %v2868
      %v2870 = vpop.f32.mrf.mxu0
      %2871 = vmatprep.mubr.bf16.mxu0 0
      %2872 = vmatmul.mubr.bf16.gmra.mxu0 %v2812
      %v2873 = vpop.f32.mrf.mxu0
      %v2874 = vadd.f32 0.0, %v2873
      %v2875 = vpop.f32.mrf.mxu0
      %v2876 = vpop.f32.mrf.mxu0
      %v2877 = vadd.f32 0.0, %v2876
      %v2878 = vpop.f32.mrf.mxu0
      %2879 = vmatprep.mubr.bf16.mxu0 0
      %2880 = vmatmul.mubr.bf16.gmra.mxu0 %v2815
      %v2881 = vpop.f32.mrf.mxu0
      %v2882 = vadd.f32 0.0, %v2881
      %v2883 = vpop.f32.mrf.mxu0
      %v2884 = vpop.f32.mrf.mxu0
      %v2885 = vadd.f32 0.0, %v2884
      %v2886 = vpop.f32.mrf.mxu0
      %2887 = vmatprep.mubr.bf16.mxu0 0
      %2888 = vmatmul.mubr.bf16.gmra.mxu0 %v2818
      %v2889 = vpop.f32.mrf.mxu0
      %v2890 = vadd.f32 0.0, %v2889
      %v2891 = vpop.f32.mrf.mxu0
      %v2892 = vpop.f32.mrf.mxu0
      %v2893 = vadd.f32 0.0, %v2892
      %v2894 = vpop.f32.mrf.mxu0
      %2895 = vdwg.mxu0
      %v2896 = vadd.f32 %v2736, %v2858
      %v2897 = vadd.f32 %v2737, %v2861
      %v2898 = vadd.f32 %v2738, %v2866
      %v2899 = vadd.f32 %v2739, %v2869
      %v2900 = vadd.f32 %v2740, %v2874
      %v2901 = vadd.f32 %v2741, %v2877
      %v2902 = vadd.f32 %v2742, %v2882
      %v2903 = vadd.f32 %v2743, %v2885
      %v2904 = vadd.f32 %v2744, %v2890
      %v2905 = vadd.f32 %v2745, %v2893
      %v2906 = vld [vmem:[%s422 + $0x8] sm:$0x8]
      %s2907 = scalar_lea.vmem %s452, 68
      %v2908 = vld [vmem:[%s2907] sm:$0xf]
      %v2910 = vunpack.c.l.b16 %v2906
      %v2911 = vpack.c.b16 %v2618, %v2910
      %v2912 = vrot.slane %v2911, 3
      %v2913 = vrot.slane %v2629, 3
      %v2914 = vsel %vm1607, %v2912, %v2913
      %v2915 = vrot.slane %v2630, 3
      %v2916 = vsel %vm1607, %v2913, %v2915
      %v2917 = vrot.slane %v2631, 3
      %v2918 = vsel %vm1607, %v2915, %v2917
      %v2919 = vrot.slane %v2632, 3
      %v2920 = vsel %vm1607, %v2917, %v2919
      %v2921 = vrot.slane %v2751, 3
      %v2922 = vsel %vm1607, %v2919, %v2921
      %v2924 = vsel %vm556, %v2914, 0
      %v2927 = vsel %vm556, %v2916, 0
      %v2930 = vsel %vm556, %v2918, 0
      %v2933 = vsel %vm556, %v2920, 0
      %v2936 = vsel %vm556, %v2922, 0
      %v2939 = vsel %vm572, %v2908, 0
      %2941 = vmatprep.subr.bf16.mxu0 0
      %2942 = vmatpush1.bf16.msra.mxu0 0
      %2943 = vmatprep.subr.bf16.mxu0 0
      %2944 = vmatpush1.bf16.msra.mxu0 0
      %2945 = vmatprep.subr.bf16.mxu0 0
      %2946 = vmatpush1.bf16.msra.mxu0 0
      %2947 = vmatprep.subr.bf16.mxu0 0
      %2948 = vmatpush1.bf16.msra.mxu0 0
      %2949 = vmatprep.subr.bf16.mxu0 0
      %2950 = vmatpush1.bf16.msra.mxu0 0
      %2951 = vmatprep.subr.bf16.mxu0 0
      %2952 = vmatpush1.bf16.msra.mxu0 0
      %2953 = vmatprep.subr.bf16.mxu0 0
      %2954 = vmatpush1.bf16.msra.mxu0 0
      %2955 = vmatprep.subr.bf16.mxu0 0
      %2956 = vmatpush1.bf16.msra.mxu0 %v2939
      %2957 = vmatprep.subr.bf16.mxu0 0
      %2958 = vmatpush2.bf16.msra.mxu0 0
      %2959 = vmatprep.subr.bf16.mxu0 0
      %2960 = vmatpush2.bf16.msra.mxu0 0
      %2961 = vmatprep.subr.bf16.mxu0 0
      %2962 = vmatpush2.bf16.msra.mxu0 0
      %2963 = vmatprep.subr.bf16.mxu0 0
      %2964 = vmatpush2.bf16.msra.mxu0 0
      %2965 = vmatprep.subr.bf16.mxu0 0
      %2966 = vmatpush2.bf16.msra.mxu0 0
      %2967 = vmatprep.subr.bf16.mxu0 0
      %2968 = vmatpush2.bf16.msra.mxu0 0
      %2969 = vmatprep.subr.bf16.mxu0 0
      %2970 = vmatpush2.bf16.msra.mxu0 0
      %2971 = vmatprep.subr.bf16.mxu0 0
      %2972 = vmatpush2.bf16.msra.mxu0 0
      %2973 = vmatprep.mubr.bf16.mxu0 0
      %2974 = vmatmul.mubr.bf16.gmra.mxu0 %v2924
      %v2975 = vpop.f32.mrf.mxu0
      %v2976 = vadd.f32 0.0, %v2975
      %v2977 = vpop.f32.mrf.mxu0
      %v2978 = vpop.f32.mrf.mxu0
      %v2979 = vadd.f32 0.0, %v2978
      %v2980 = vpop.f32.mrf.mxu0
      %2981 = vmatprep.mubr.bf16.mxu0 0
      %2982 = vmatmul.mubr.bf16.gmra.mxu0 %v2927
      %v2983 = vpop.f32.mrf.mxu0
      %v2984 = vadd.f32 0.0, %v2983
      %v2985 = vpop.f32.mrf.mxu0
      %v2986 = vpop.f32.mrf.mxu0
      %v2987 = vadd.f32 0.0, %v2986
      %v2988 = vpop.f32.mrf.mxu0
      %2989 = vmatprep.mubr.bf16.mxu0 0
      %2990 = vmatmul.mubr.bf16.gmra.mxu0 %v2930
      %v2991 = vpop.f32.mrf.mxu0
      %v2992 = vadd.f32 0.0, %v2991
      %v2993 = vpop.f32.mrf.mxu0
      %v2994 = vpop.f32.mrf.mxu0
      %v2995 = vadd.f32 0.0, %v2994
      %v2996 = vpop.f32.mrf.mxu0
      %2997 = vmatprep.mubr.bf16.mxu0 0
      %2998 = vmatmul.mubr.bf16.gmra.mxu0 %v2933
      %v2999 = vpop.f32.mrf.mxu0
      %v3000 = vadd.f32 0.0, %v2999
      %v3001 = vpop.f32.mrf.mxu0
      %v3002 = vpop.f32.mrf.mxu0
      %v3003 = vadd.f32 0.0, %v3002
      %v3004 = vpop.f32.mrf.mxu0
      %3005 = vmatprep.mubr.bf16.mxu0 0
      %3006 = vmatmul.mubr.bf16.gmra.mxu0 %v2936
      %v3007 = vpop.f32.mrf.mxu0
      %v3008 = vadd.f32 0.0, %v3007
      %v3009 = vpop.f32.mrf.mxu0
      %v3010 = vpop.f32.mrf.mxu0
      %v3011 = vadd.f32 0.0, %v3010
      %v3012 = vpop.f32.mrf.mxu0
      %3013 = vdwg.mxu0
      %v3014 = vadd.f32 %v2896, %v2976
      %v3015 = vadd.f32 %v2897, %v2979
      %v3016 = vadd.f32 %v2898, %v2984
      %v3017 = vadd.f32 %v2899, %v2987
      %v3018 = vadd.f32 %v2900, %v2992
      %v3019 = vadd.f32 %v2901, %v2995
      %v3020 = vadd.f32 %v2902, %v3000
      %v3021 = vadd.f32 %v2903, %v3003
      %v3022 = vadd.f32 %v2904, %v3008
      %v3023 = vadd.f32 %v2905, %v3011
      %v3024 = vld [vmem:[%s433] sm:$0xf]
      %v3025 = vld [vmem:[%s433 + $0x4] sm:$0xf]
      %v3026 = vld [vmem:[%s433 + $0x8] sm:$0xf]
      %v3027 = vld [vmem:[%s433 + $0xc] sm:$0xf]
      %v3028 = vld [vmem:[%s433 + $0x10] sm:$0xf]
      %v3029 = vld [vmem:[%s433 + $0x14] sm:$0xf]
      %v3030 = vld [vmem:[%s433 + $0x18] sm:$0xf]
      %v3031 = vld [vmem:[%s433 + $0x1c] sm:$0xf]
      %v3032 = vld [vmem:[%s433 + $0x20] sm:$0xf]
      %v3033 = vld [vmem:[%s433 + $0x24] sm:$0xf]
      %s3034 = scalar_lea.vmem %s452, 72
      %v3035 = vld [vmem:[%s3034] sm:$0xf]
      %v3046 = vunpack.c.l.b16 %v3024
      %v3047 = vunpack.c.l.b16 %v3025
      %v3048 = vunpack.c.l.b16 %v3026
      %v3049 = vunpack.c.l.b16 %v3027
      %v3050 = vunpack.c.l.b16 %v3028
      %v3051 = vunpack.c.l.b16 %v3029
      %v3052 = vunpack.c.l.b16 %v3030
      %v3053 = vunpack.c.l.b16 %v3031
      %v3054 = vunpack.c.l.b16 %v3032
      %v3055 = vunpack.c.l.b16 %v3033
      %v3056 = vpack.c.b16 %v3047, %v3046
      %v3057 = vpack.c.b16 %v3049, %v3048
      %v3058 = vpack.c.b16 %v3051, %v3050
      %v3059 = vpack.c.b16 %v3053, %v3052
      %v3060 = vpack.c.b16 %v3055, %v3054
      %v3062 = vsel %vm556, %v3056, 0
      %v3065 = vsel %vm556, %v3057, 0
      %v3068 = vsel %vm556, %v3058, 0
      %v3071 = vsel %vm556, %v3059, 0
      %v3074 = vsel %vm556, %v3060, 0
      %v3077 = vsel %vm572, %v3035, 0
      %3079 = vmatprep.subr.bf16.mxu0 0
      %3080 = vmatpush1.bf16.msra.mxu0 0
      %3081 = vmatprep.subr.bf16.mxu0 0
      %3082 = vmatpush1.bf16.msra.mxu0 0
      %3083 = vmatprep.subr.bf16.mxu0 0
      %3084 = vmatpush1.bf16.msra.mxu0 0
      %3085 = vmatprep.subr.bf16.mxu0 0
      %3086 = vmatpush1.bf16.msra.mxu0 0
      %3087 = vmatprep.subr.bf16.mxu0 0
      %3088 = vmatpush1.bf16.msra.mxu0 0
      %3089 = vmatprep.subr.bf16.mxu0 0
      %3090 = vmatpush1.bf16.msra.mxu0 0
      %3091 = vmatprep.subr.bf16.mxu0 0
      %3092 = vmatpush1.bf16.msra.mxu0 0
      %3093 = vmatprep.subr.bf16.mxu0 0
      %3094 = vmatpush1.bf16.msra.mxu0 %v3077
      %3095 = vmatprep.subr.bf16.mxu0 0
      %3096 = vmatpush2.bf16.msra.mxu0 0
      %3097 = vmatprep.subr.bf16.mxu0 0
      %3098 = vmatpush2.bf16.msra.mxu0 0
      %3099 = vmatprep.subr.bf16.mxu0 0
      %3100 = vmatpush2.bf16.msra.mxu0 0
      %3101 = vmatprep.subr.bf16.mxu0 0
      %3102 = vmatpush2.bf16.msra.mxu0 0
      %3103 = vmatprep.subr.bf16.mxu0 0
      %3104 = vmatpush2.bf16.msra.mxu0 0
      %3105 = vmatprep.subr.bf16.mxu0 0
      %3106 = vmatpush2.bf16.msra.mxu0 0
      %3107 = vmatprep.subr.bf16.mxu0 0
      %3108 = vmatpush2.bf16.msra.mxu0 0
      %3109 = vmatprep.subr.bf16.mxu0 0
      %3110 = vmatpush2.bf16.msra.mxu0 0
      %3111 = vmatprep.mubr.bf16.mxu0 0
      %3112 = vmatmul.mubr.bf16.gmra.mxu0 %v3062
      %v3113 = vpop.f32.mrf.mxu0
      %v3114 = vadd.f32 0.0, %v3113
      %v3115 = vpop.f32.mrf.mxu0
      %v3116 = vpop.f32.mrf.mxu0
      %v3117 = vadd.f32 0.0, %v3116
      %v3118 = vpop.f32.mrf.mxu0
      %3119 = vmatprep.mubr.bf16.mxu0 0
      %3120 = vmatmul.mubr.bf16.gmra.mxu0 %v3065
      %v3121 = vpop.f32.mrf.mxu0
      %v3122 = vadd.f32 0.0, %v3121
      %v3123 = vpop.f32.mrf.mxu0
      %v3124 = vpop.f32.mrf.mxu0
      %v3125 = vadd.f32 0.0, %v3124
      %v3126 = vpop.f32.mrf.mxu0
      %3127 = vmatprep.mubr.bf16.mxu0 0
      %3128 = vmatmul.mubr.bf16.gmra.mxu0 %v3068
      %v3129 = vpop.f32.mrf.mxu0
      %v3130 = vadd.f32 0.0, %v3129
      %v3131 = vpop.f32.mrf.mxu0
      %v3132 = vpop.f32.mrf.mxu0
      %v3133 = vadd.f32 0.0, %v3132
      %v3134 = vpop.f32.mrf.mxu0
      %3135 = vmatprep.mubr.bf16.mxu0 0
      %3136 = vmatmul.mubr.bf16.gmra.mxu0 %v3071
      %v3137 = vpop.f32.mrf.mxu0
      %v3138 = vadd.f32 0.0, %v3137
      %v3139 = vpop.f32.mrf.mxu0
      %v3140 = vpop.f32.mrf.mxu0
      %v3141 = vadd.f32 0.0, %v3140
      %v3142 = vpop.f32.mrf.mxu0
      %3143 = vmatprep.mubr.bf16.mxu0 0
      %3144 = vmatmul.mubr.bf16.gmra.mxu0 %v3074
      %v3145 = vpop.f32.mrf.mxu0
      %v3146 = vadd.f32 0.0, %v3145
      %v3147 = vpop.f32.mrf.mxu0
      %v3148 = vpop.f32.mrf.mxu0
      %v3149 = vadd.f32 0.0, %v3148
      %v3150 = vpop.f32.mrf.mxu0
      %3151 = vdwg.mxu0
      %v3152 = vadd.f32 %v3014, %v3114
      %v3153 = vadd.f32 %v3015, %v3117
      %v3154 = vadd.f32 %v3016, %v3122
      %v3155 = vadd.f32 %v3017, %v3125
      %v3156 = vadd.f32 %v3018, %v3130
      %v3157 = vadd.f32 %v3019, %v3133
      %v3158 = vadd.f32 %v3020, %v3138
      %v3159 = vadd.f32 %v3021, %v3141
      %v3160 = vadd.f32 %v3022, %v3146
      %v3161 = vadd.f32 %v3023, %v3149
      %v3162 = vld [vmem:[%s433] sm:$0xf]
      %v3163 = vld [vmem:[%s433 + $0x4] sm:$0xf]
      %v3164 = vld [vmem:[%s433 + $0x8] sm:$0xf]
      %v3165 = vld [vmem:[%s433 + $0xc] sm:$0xf]
      %v3166 = vld [vmem:[%s433 + $0x10] sm:$0xf]
      %v3167 = vld [vmem:[%s433 + $0x14] sm:$0xf]
      %v3168 = vld [vmem:[%s433 + $0x18] sm:$0xf]
      %v3169 = vld [vmem:[%s433 + $0x1c] sm:$0xf]
      %v3170 = vld [vmem:[%s433 + $0x20] sm:$0xf]
      %v3171 = vld [vmem:[%s433 + $0x24] sm:$0xf]
      %v3172 = vld [vmem:[%s433 + $0x28] sm:$0x1]
      %s3173 = scalar_lea.vmem %s452, 76
      %v3174 = vld [vmem:[%s3173] sm:$0xf]
      %v3186 = vunpack.c.l.b16 %v3162
      %v3187 = vunpack.c.l.b16 %v3163
      %v3188 = vunpack.c.l.b16 %v3164
      %v3189 = vunpack.c.l.b16 %v3165
      %v3190 = vunpack.c.l.b16 %v3166
      %v3191 = vunpack.c.l.b16 %v3167
      %v3192 = vunpack.c.l.b16 %v3168
      %v3193 = vunpack.c.l.b16 %v3169
      %v3194 = vunpack.c.l.b16 %v3170
      %v3195 = vunpack.c.l.b16 %v3171
      %v3196 = vunpack.c.l.b16 %v3172
      %v3197 = vpack.c.b16 %v3187, %v3186
      %v3198 = vpack.c.b16 %v3189, %v3188
      %v3199 = vpack.c.b16 %v3191, %v3190
      %v3200 = vpack.c.b16 %v3193, %v3192
      %v3201 = vpack.c.b16 %v3195, %v3194
      %v3202 = vpack.c.b16 %v3196, %v3196
      %v3204 = vshrl.u32 %v3197, 16
      %v3206 = vshll.u32 %v3197, 16
      %v3208 = vrot.slane %v3206, 1
      %v3209 = vor.u32 %v3204, %v3208
      %v3211 = vshll.u32 %v3198, 16
      %v3213 = vrot.slane %v3211, 1
      %v3214 = vsel %vm511, %v3209, %v3213
      %v3215 = vshrl.u32 %v3198, 16
      %v3217 = vor.u32 %v3215, %v3213
      %v3219 = vshll.u32 %v3199, 16
      %v3221 = vrot.slane %v3219, 1
      %v3222 = vsel %vm511, %v3217, %v3221
      %v3223 = vshrl.u32 %v3199, 16
      %v3225 = vor.u32 %v3223, %v3221
      %v3227 = vshll.u32 %v3200, 16
      %v3229 = vrot.slane %v3227, 1
      %v3230 = vsel %vm511, %v3225, %v3229
      %v3231 = vshrl.u32 %v3200, 16
      %v3233 = vor.u32 %v3231, %v3229
      %v3235 = vshll.u32 %v3201, 16
      %v3237 = vrot.slane %v3235, 1
      %v3238 = vsel %vm511, %v3233, %v3237
      %v3239 = vshrl.u32 %v3201, 16
      %v3241 = vor.u32 %v3239, %v3237
      %v3243 = vshll.u32 %v3202, 16
      %v3245 = vrot.slane %v3243, 1
      %v3246 = vsel %vm511, %v3241, %v3245
      %v3248 = vsel %vm556, %v3214, 0
      %v3251 = vsel %vm556, %v3222, 0
      %v3254 = vsel %vm556, %v3230, 0
      %v3257 = vsel %vm556, %v3238, 0
      %v3260 = vsel %vm556, %v3246, 0
      %v3263 = vsel %vm572, %v3174, 0
      %3265 = vmatprep.subr.bf16.mxu0 0
      %3266 = vmatpush1.bf16.msra.mxu0 0
      %3267 = vmatprep.subr.bf16.mxu0 0
      %3268 = vmatpush1.bf16.msra.mxu0 0
      %3269 = vmatprep.subr.bf16.mxu0 0
      %3270 = vmatpush1.bf16.msra.mxu0 0
      %3271 = vmatprep.subr.bf16.mxu0 0
      %3272 = vmatpush1.bf16.msra.mxu0 0
      %3273 = vmatprep.subr.bf16.mxu0 0
      %3274 = vmatpush1.bf16.msra.mxu0 0
      %3275 = vmatprep.subr.bf16.mxu0 0
      %3276 = vmatpush1.bf16.msra.mxu0 0
      %3277 = vmatprep.subr.bf16.mxu0 0
      %3278 = vmatpush1.bf16.msra.mxu0 0
      %3279 = vmatprep.subr.bf16.mxu0 0
      %3280 = vmatpush1.bf16.msra.mxu0 %v3263
      %3281 = vmatprep.subr.bf16.mxu0 0
      %3282 = vmatpush2.bf16.msra.mxu0 0
      %3283 = vmatprep.subr.bf16.mxu0 0
      %3284 = vmatpush2.bf16.msra.mxu0 0
      %3285 = vmatprep.subr.bf16.mxu0 0
      %3286 = vmatpush2.bf16.msra.mxu0 0
      %3287 = vmatprep.subr.bf16.mxu0 0
      %3288 = vmatpush2.bf16.msra.mxu0 0
      %3289 = vmatprep.subr.bf16.mxu0 0
      %3290 = vmatpush2.bf16.msra.mxu0 0
      %3291 = vmatprep.subr.bf16.mxu0 0
      %3292 = vmatpush2.bf16.msra.mxu0 0
      %3293 = vmatprep.subr.bf16.mxu0 0
      %3294 = vmatpush2.bf16.msra.mxu0 0
      %3295 = vmatprep.subr.bf16.mxu0 0
      %3296 = vmatpush2.bf16.msra.mxu0 0
      %3297 = vmatprep.mubr.bf16.mxu0 0
      %3298 = vmatmul.mubr.bf16.gmra.mxu0 %v3248
      %v3299 = vpop.f32.mrf.mxu0
      %v3300 = vadd.f32 0.0, %v3299
      %v3301 = vpop.f32.mrf.mxu0
      %v3302 = vpop.f32.mrf.mxu0
      %v3303 = vadd.f32 0.0, %v3302
      %v3304 = vpop.f32.mrf.mxu0
      %3305 = vmatprep.mubr.bf16.mxu0 0
      %3306 = vmatmul.mubr.bf16.gmra.mxu0 %v3251
      %v3307 = vpop.f32.mrf.mxu0
      %v3308 = vadd.f32 0.0, %v3307
      %v3309 = vpop.f32.mrf.mxu0
      %v3310 = vpop.f32.mrf.mxu0
      %v3311 = vadd.f32 0.0, %v3310
      %v3312 = vpop.f32.mrf.mxu0
      %3313 = vmatprep.mubr.bf16.mxu0 0
      %3314 = vmatmul.mubr.bf16.gmra.mxu0 %v3254
      %v3315 = vpop.f32.mrf.mxu0
      %v3316 = vadd.f32 0.0, %v3315
      %v3317 = vpop.f32.mrf.mxu0
      %v3318 = vpop.f32.mrf.mxu0
      %v3319 = vadd.f32 0.0, %v3318
      %v3320 = vpop.f32.mrf.mxu0
      %3321 = vmatprep.mubr.bf16.mxu0 0
      %3322 = vmatmul.mubr.bf16.gmra.mxu0 %v3257
      %v3323 = vpop.f32.mrf.mxu0
      %v3324 = vadd.f32 0.0, %v3323
      %v3325 = vpop.f32.mrf.mxu0
      %v3326 = vpop.f32.mrf.mxu0
      %v3327 = vadd.f32 0.0, %v3326
      %v3328 = vpop.f32.mrf.mxu0
      %3329 = vmatprep.mubr.bf16.mxu0 0
      %3330 = vmatmul.mubr.bf16.gmra.mxu0 %v3260
      %v3331 = vpop.f32.mrf.mxu0
      %v3332 = vadd.f32 0.0, %v3331
      %v3333 = vpop.f32.mrf.mxu0
      %v3334 = vpop.f32.mrf.mxu0
      %v3335 = vadd.f32 0.0, %v3334
      %v3336 = vpop.f32.mrf.mxu0
      %3337 = vdwg.mxu0
      %v3338 = vadd.f32 %v3152, %v3300
      %v3339 = vadd.f32 %v3153, %v3303
      %v3340 = vadd.f32 %v3154, %v3308
      %v3341 = vadd.f32 %v3155, %v3311
      %v3342 = vadd.f32 %v3156, %v3316
      %v3343 = vadd.f32 %v3157, %v3319
      %v3344 = vadd.f32 %v3158, %v3324
      %v3345 = vadd.f32 %v3159, %v3327
      %v3346 = vadd.f32 %v3160, %v3332
      %v3347 = vadd.f32 %v3161, %v3335
      %v3348 = vld [vmem:[%s433] sm:$0xe]
      %s3349 = scalar_lea.vmem %s452, 80
      %v3350 = vld [vmem:[%s3349] sm:$0xf]
      %v3352 = vunpack.c.l.b16 %v3348
      %v3353 = vpack.c.b16 %v3187, %v3352
      %v3354 = vrot.slane %v3353, 1
      %v3355 = vrot.slane %v3198, 1
      %v3356 = vsel %vm741, %v3354, %v3355
      %v3357 = vrot.slane %v3199, 1
      %v3358 = vsel %vm741, %v3355, %v3357
      %v3359 = vrot.slane %v3200, 1
      %v3360 = vsel %vm741, %v3357, %v3359
      %v3361 = vrot.slane %v3201, 1
      %v3362 = vsel %vm741, %v3359, %v3361
      %v3363 = vrot.slane %v3202, 1
      %v3364 = vsel %vm741, %v3361, %v3363
      %v3366 = vsel %vm556, %v3356, 0
      %v3369 = vsel %vm556, %v3358, 0
      %v3372 = vsel %vm556, %v3360, 0
      %v3375 = vsel %vm556, %v3362, 0
      %v3378 = vsel %vm556, %v3364, 0
      %v3381 = vsel %vm572, %v3350, 0
      %3383 = vmatprep.subr.bf16.mxu0 0
      %3384 = vmatpush1.bf16.msra.mxu0 0
      %3385 = vmatprep.subr.bf16.mxu0 0
      %3386 = vmatpush1.bf16.msra.mxu0 0
      %3387 = vmatprep.subr.bf16.mxu0 0
      %3388 = vmatpush1.bf16.msra.mxu0 0
      %3389 = vmatprep.subr.bf16.mxu0 0
      %3390 = vmatpush1.bf16.msra.mxu0 0
      %3391 = vmatprep.subr.bf16.mxu0 0
      %3392 = vmatpush1.bf16.msra.mxu0 0
      %3393 = vmatprep.subr.bf16.mxu0 0
      %3394 = vmatpush1.bf16.msra.mxu0 0
      %3395 = vmatprep.subr.bf16.mxu0 0
      %3396 = vmatpush1.bf16.msra.mxu0 0
      %3397 = vmatprep.subr.bf16.mxu0 0
      %3398 = vmatpush1.bf16.msra.mxu0 %v3381
      %3399 = vmatprep.subr.bf16.mxu0 0
      %3400 = vmatpush2.bf16.msra.mxu0 0
      %3401 = vmatprep.subr.bf16.mxu0 0
      %3402 = vmatpush2.bf16.msra.mxu0 0
      %3403 = vmatprep.subr.bf16.mxu0 0
      %3404 = vmatpush2.bf16.msra.mxu0 0
      %3405 = vmatprep.subr.bf16.mxu0 0
      %3406 = vmatpush2.bf16.msra.mxu0 0
      %3407 = vmatprep.subr.bf16.mxu0 0
      %3408 = vmatpush2.bf16.msra.mxu0 0
      %3409 = vmatprep.subr.bf16.mxu0 0
      %3410 = vmatpush2.bf16.msra.mxu0 0
      %3411 = vmatprep.subr.bf16.mxu0 0
      %3412 = vmatpush2.bf16.msra.mxu0 0
      %3413 = vmatprep.subr.bf16.mxu0 0
      %3414 = vmatpush2.bf16.msra.mxu0 0
      %3415 = vmatprep.mubr.bf16.mxu0 0
      %3416 = vmatmul.mubr.bf16.gmra.mxu0 %v3366
      %v3417 = vpop.f32.mrf.mxu0
      %v3418 = vadd.f32 0.0, %v3417
      %v3419 = vpop.f32.mrf.mxu0
      %v3420 = vpop.f32.mrf.mxu0
      %v3421 = vadd.f32 0.0, %v3420
      %v3422 = vpop.f32.mrf.mxu0
      %3423 = vmatprep.mubr.bf16.mxu0 0
      %3424 = vmatmul.mubr.bf16.gmra.mxu0 %v3369
      %v3425 = vpop.f32.mrf.mxu0
      %v3426 = vadd.f32 0.0, %v3425
      %v3427 = vpop.f32.mrf.mxu0
      %v3428 = vpop.f32.mrf.mxu0
      %v3429 = vadd.f32 0.0, %v3428
      %v3430 = vpop.f32.mrf.mxu0
      %3431 = vmatprep.mubr.bf16.mxu0 0
      %3432 = vmatmul.mubr.bf16.gmra.mxu0 %v3372
      %v3433 = vpop.f32.mrf.mxu0
      %v3434 = vadd.f32 0.0, %v3433
      %v3435 = vpop.f32.mrf.mxu0
      %v3436 = vpop.f32.mrf.mxu0
      %v3437 = vadd.f32 0.0, %v3436
      %v3438 = vpop.f32.mrf.mxu0
      %3439 = vmatprep.mubr.bf16.mxu0 0
      %3440 = vmatmul.mubr.bf16.gmra.mxu0 %v3375
      %v3441 = vpop.f32.mrf.mxu0
      %v3442 = vadd.f32 0.0, %v3441
      %v3443 = vpop.f32.mrf.mxu0
      %v3444 = vpop.f32.mrf.mxu0
      %v3445 = vadd.f32 0.0, %v3444
      %v3446 = vpop.f32.mrf.mxu0
      %3447 = vmatprep.mubr.bf16.mxu0 0
      %3448 = vmatmul.mubr.bf16.gmra.mxu0 %v3378
      %v3449 = vpop.f32.mrf.mxu0
      %v3450 = vadd.f32 0.0, %v3449
      %v3451 = vpop.f32.mrf.mxu0
      %v3452 = vpop.f32.mrf.mxu0
      %v3453 = vadd.f32 0.0, %v3452
      %v3454 = vpop.f32.mrf.mxu0
      %3455 = vdwg.mxu0
      %v3456 = vadd.f32 %v3338, %v3418
      %v3457 = vadd.f32 %v3339, %v3421
      %v3458 = vadd.f32 %v3340, %v3426
      %v3459 = vadd.f32 %v3341, %v3429
      %v3460 = vadd.f32 %v3342, %v3434
      %v3461 = vadd.f32 %v3343, %v3437
      %v3462 = vadd.f32 %v3344, %v3442
      %v3463 = vadd.f32 %v3345, %v3445
      %v3464 = vadd.f32 %v3346, %v3450
      %v3465 = vadd.f32 %v3347, %v3453
      %v3466 = vld [vmem:[%s433 + $0x4] sm:$0xe]
      %v3467 = vld [vmem:[%s433 + $0x8] sm:$0xf]
      %v3468 = vld [vmem:[%s433 + $0xc] sm:$0xf]
      %v3469 = vld [vmem:[%s433 + $0x10] sm:$0xf]
      %v3470 = vld [vmem:[%s433 + $0x14] sm:$0xf]
      %v3471 = vld [vmem:[%s433 + $0x18] sm:$0xf]
      %v3472 = vld [vmem:[%s433 + $0x1c] sm:$0xf]
      %v3473 = vld [vmem:[%s433 + $0x20] sm:$0xf]
      %v3474 = vld [vmem:[%s433 + $0x24] sm:$0xf]
      %v3475 = vld [vmem:[%s433 + $0x28] sm:$0xf]
      %v3476 = vld [vmem:[%s433 + $0x2c] sm:$0x1]
      %s3477 = scalar_lea.vmem %s452, 84
      %v3478 = vld [vmem:[%s3477] sm:$0xf]
      %v3490 = vunpack.c.l.b16 %v3466
      %v3491 = vunpack.c.l.b16 %v3467
      %v3492 = vunpack.c.l.b16 %v3468
      %v3493 = vunpack.c.l.b16 %v3469
      %v3494 = vunpack.c.l.b16 %v3470
      %v3495 = vunpack.c.l.b16 %v3471
      %v3496 = vunpack.c.l.b16 %v3472
      %v3497 = vunpack.c.l.b16 %v3473
      %v3498 = vunpack.c.l.b16 %v3474
      %v3499 = vunpack.c.l.b16 %v3475
      %v3500 = vunpack.c.l.b16 %v3476
      %v3501 = vpack.c.b16 %v3491, %v3490
      %v3502 = vpack.c.b16 %v3493, %v3492
      %v3503 = vpack.c.b16 %v3495, %v3494
      %v3504 = vpack.c.b16 %v3497, %v3496
      %v3505 = vpack.c.b16 %v3499, %v3498
      %v3506 = vpack.c.b16 %v3500, %v3500
      %v3507 = vrot.slane %v3501, 1
      %v3508 = vrot.slane %v3502, 1
      %v3509 = vsel %vm741, %v3507, %v3508
      %v3510 = vrot.slane %v3503, 1
      %v3511 = vsel %vm741, %v3508, %v3510
      %v3512 = vrot.slane %v3504, 1
      %v3513 = vsel %vm741, %v3510, %v3512
      %v3514 = vrot.slane %v3505, 1
      %v3515 = vsel %vm741, %v3512, %v3514
      %v3516 = vrot.slane %v3506, 1
      %v3517 = vsel %vm741, %v3514, %v3516
      %v3519 = vsel %vm556, %v3509, 0
      %v3522 = vsel %vm556, %v3511, 0
      %v3525 = vsel %vm556, %v3513, 0
      %v3528 = vsel %vm556, %v3515, 0
      %v3531 = vsel %vm556, %v3517, 0
      %v3534 = vsel %vm572, %v3478, 0
      %3536 = vmatprep.subr.bf16.mxu0 0
      %3537 = vmatpush1.bf16.msra.mxu0 0
      %3538 = vmatprep.subr.bf16.mxu0 0
      %3539 = vmatpush1.bf16.msra.mxu0 0
      %3540 = vmatprep.subr.bf16.mxu0 0
      %3541 = vmatpush1.bf16.msra.mxu0 0
      %3542 = vmatprep.subr.bf16.mxu0 0
      %3543 = vmatpush1.bf16.msra.mxu0 0
      %3544 = vmatprep.subr.bf16.mxu0 0
      %3545 = vmatpush1.bf16.msra.mxu0 0
      %3546 = vmatprep.subr.bf16.mxu0 0
      %3547 = vmatpush1.bf16.msra.mxu0 0
      %3548 = vmatprep.subr.bf16.mxu0 0
      %3549 = vmatpush1.bf16.msra.mxu0 0
      %3550 = vmatprep.subr.bf16.mxu0 0
      %3551 = vmatpush1.bf16.msra.mxu0 %v3534
      %3552 = vmatprep.subr.bf16.mxu0 0
      %3553 = vmatpush2.bf16.msra.mxu0 0
      %3554 = vmatprep.subr.bf16.mxu0 0
      %3555 = vmatpush2.bf16.msra.mxu0 0
      %3556 = vmatprep.subr.bf16.mxu0 0
      %3557 = vmatpush2.bf16.msra.mxu0 0
      %3558 = vmatprep.subr.bf16.mxu0 0
      %3559 = vmatpush2.bf16.msra.mxu0 0
      %3560 = vmatprep.subr.bf16.mxu0 0
      %3561 = vmatpush2.bf16.msra.mxu0 0
      %3562 = vmatprep.subr.bf16.mxu0 0
      %3563 = vmatpush2.bf16.msra.mxu0 0
      %3564 = vmatprep.subr.bf16.mxu0 0
      %3565 = vmatpush2.bf16.msra.mxu0 0
      %3566 = vmatprep.subr.bf16.mxu0 0
      %3567 = vmatpush2.bf16.msra.mxu0 0
      %3568 = vmatprep.mubr.bf16.mxu0 0
      %3569 = vmatmul.mubr.bf16.gmra.mxu0 %v3519
      %v3570 = vpop.f32.mrf.mxu0
      %v3571 = vadd.f32 0.0, %v3570
      %v3572 = vpop.f32.mrf.mxu0
      %v3573 = vpop.f32.mrf.mxu0
      %v3574 = vadd.f32 0.0, %v3573
      %v3575 = vpop.f32.mrf.mxu0
      %3576 = vmatprep.mubr.bf16.mxu0 0
      %3577 = vmatmul.mubr.bf16.gmra.mxu0 %v3522
      %v3578 = vpop.f32.mrf.mxu0
      %v3579 = vadd.f32 0.0, %v3578
      %v3580 = vpop.f32.mrf.mxu0
      %v3581 = vpop.f32.mrf.mxu0
      %v3582 = vadd.f32 0.0, %v3581
      %v3583 = vpop.f32.mrf.mxu0
      %3584 = vmatprep.mubr.bf16.mxu0 0
      %3585 = vmatmul.mubr.bf16.gmra.mxu0 %v3525
      %v3586 = vpop.f32.mrf.mxu0
      %v3587 = vadd.f32 0.0, %v3586
      %v3588 = vpop.f32.mrf.mxu0
      %v3589 = vpop.f32.mrf.mxu0
      %v3590 = vadd.f32 0.0, %v3589
      %v3591 = vpop.f32.mrf.mxu0
      %3592 = vmatprep.mubr.bf16.mxu0 0
      %3593 = vmatmul.mubr.bf16.gmra.mxu0 %v3528
      %v3594 = vpop.f32.mrf.mxu0
      %v3595 = vadd.f32 0.0, %v3594
      %v3596 = vpop.f32.mrf.mxu0
      %v3597 = vpop.f32.mrf.mxu0
      %v3598 = vadd.f32 0.0, %v3597
      %v3599 = vpop.f32.mrf.mxu0
      %3600 = vmatprep.mubr.bf16.mxu0 0
      %3601 = vmatmul.mubr.bf16.gmra.mxu0 %v3531
      %v3602 = vpop.f32.mrf.mxu0
      %v3603 = vadd.f32 0.0, %v3602
      %v3604 = vpop.f32.mrf.mxu0
      %v3605 = vpop.f32.mrf.mxu0
      %v3606 = vadd.f32 0.0, %v3605
      %v3607 = vpop.f32.mrf.mxu0
      %3608 = vdwg.mxu0
      %v3609 = vadd.f32 %v3456, %v3571
      %v3610 = vadd.f32 %v3457, %v3574
      %v3611 = vadd.f32 %v3458, %v3579
      %v3612 = vadd.f32 %v3459, %v3582
      %v3613 = vadd.f32 %v3460, %v3587
      %v3614 = vadd.f32 %v3461, %v3590
      %v3615 = vadd.f32 %v3462, %v3595
      %v3616 = vadd.f32 %v3463, %v3598
      %v3617 = vadd.f32 %v3464, %v3603
      %v3618 = vadd.f32 %v3465, %v3606
      %v3619 = vld [vmem:[%s433 + $0x2c] sm:$0x3]
      %s3620 = scalar_lea.vmem %s452, 88
      %v3621 = vld [vmem:[%s3620] sm:$0xf]
      %v3623 = vunpack.c.l.b16 %v3619
      %v3624 = vpack.c.b16 %v3623, %v3623
      %v3626 = vshrl.u32 %v3501, 16
      %v3628 = vrot.slane %v3626, 1
      %v3629 = vshll.u32 %v3501, 16
      %v3631 = vrot.slane %v3629, 2
      %v3632 = vor.u32 %v3628, %v3631
      %v3634 = vshrl.u32 %v3502, 16
      %v3636 = vrot.slane %v3634, 1
      %v3637 = vshll.u32 %v3502, 16
      %v3639 = vrot.slane %v3637, 2
      %v3640 = vor.u32 %v3636, %v3639
      %v3641 = vsel %vm1013, %v3632, %v3640
      %v3643 = vshrl.u32 %v3503, 16
      %v3645 = vrot.slane %v3643, 1
      %v3646 = vshll.u32 %v3503, 16
      %v3648 = vrot.slane %v3646, 2
      %v3649 = vor.u32 %v3645, %v3648
      %v3650 = vsel %vm1013, %v3640, %v3649
      %v3652 = vshrl.u32 %v3504, 16
      %v3654 = vrot.slane %v3652, 1
      %v3655 = vshll.u32 %v3504, 16
      %v3657 = vrot.slane %v3655, 2
      %v3658 = vor.u32 %v3654, %v3657
      %v3659 = vsel %vm1013, %v3649, %v3658
      %v3661 = vshrl.u32 %v3505, 16
      %v3663 = vrot.slane %v3661, 1
      %v3664 = vshll.u32 %v3505, 16
      %v3666 = vrot.slane %v3664, 2
      %v3667 = vor.u32 %v3663, %v3666
      %v3668 = vsel %vm1013, %v3658, %v3667
      %v3670 = vshrl.u32 %v3624, 16
      %v3672 = vrot.slane %v3670, 1
      %v3673 = vshll.u32 %v3624, 16
      %v3675 = vrot.slane %v3673, 2
      %v3676 = vor.u32 %v3672, %v3675
      %v3677 = vsel %vm1013, %v3667, %v3676
      %v3679 = vsel %vm556, %v3641, 0
      %v3682 = vsel %vm556, %v3650, 0
      %v3685 = vsel %vm556, %v3659, 0
      %v3688 = vsel %vm556, %v3668, 0
      %v3691 = vsel %vm556, %v3677, 0
      %v3694 = vsel %vm572, %v3621, 0
      %3696 = vmatprep.subr.bf16.mxu0 0
      %3697 = vmatpush1.bf16.msra.mxu0 0
      %3698 = vmatprep.subr.bf16.mxu0 0
      %3699 = vmatpush1.bf16.msra.mxu0 0
      %3700 = vmatprep.subr.bf16.mxu0 0
      %3701 = vmatpush1.bf16.msra.mxu0 0
      %3702 = vmatprep.subr.bf16.mxu0 0
      %3703 = vmatpush1.bf16.msra.mxu0 0
      %3704 = vmatprep.subr.bf16.mxu0 0
      %3705 = vmatpush1.bf16.msra.mxu0 0
      %3706 = vmatprep.subr.bf16.mxu0 0
      %3707 = vmatpush1.bf16.msra.mxu0 0
      %3708 = vmatprep.subr.bf16.mxu0 0
      %3709 = vmatpush1.bf16.msra.mxu0 0
      %3710 = vmatprep.subr.bf16.mxu0 0
      %3711 = vmatpush1.bf16.msra.mxu0 %v3694
      %3712 = vmatprep.subr.bf16.mxu0 0
      %3713 = vmatpush2.bf16.msra.mxu0 0
      %3714 = vmatprep.subr.bf16.mxu0 0
      %3715 = vmatpush2.bf16.msra.mxu0 0
      %3716 = vmatprep.subr.bf16.mxu0 0
      %3717 = vmatpush2.bf16.msra.mxu0 0
      %3718 = vmatprep.subr.bf16.mxu0 0
      %3719 = vmatpush2.bf16.msra.mxu0 0
      %3720 = vmatprep.subr.bf16.mxu0 0
      %3721 = vmatpush2.bf16.msra.mxu0 0
      %3722 = vmatprep.subr.bf16.mxu0 0
      %3723 = vmatpush2.bf16.msra.mxu0 0
      %3724 = vmatprep.subr.bf16.mxu0 0
      %3725 = vmatpush2.bf16.msra.mxu0 0
      %3726 = vmatprep.subr.bf16.mxu0 0
      %3727 = vmatpush2.bf16.msra.mxu0 0
      %3728 = vmatprep.mubr.bf16.mxu0 0
      %3729 = vmatmul.mubr.bf16.gmra.mxu0 %v3679
      %v3730 = vpop.f32.mrf.mxu0
      %v3731 = vadd.f32 0.0, %v3730
      %v3732 = vpop.f32.mrf.mxu0
      %v3733 = vpop.f32.mrf.mxu0
      %v3734 = vadd.f32 0.0, %v3733
      %v3735 = vpop.f32.mrf.mxu0
      %3736 = vmatprep.mubr.bf16.mxu0 0
      %3737 = vmatmul.mubr.bf16.gmra.mxu0 %v3682
      %v3738 = vpop.f32.mrf.mxu0
      %v3739 = vadd.f32 0.0, %v3738
      %v3740 = vpop.f32.mrf.mxu0
      %v3741 = vpop.f32.mrf.mxu0
      %v3742 = vadd.f32 0.0, %v3741
      %v3743 = vpop.f32.mrf.mxu0
      %3744 = vmatprep.mubr.bf16.mxu0 0
      %3745 = vmatmul.mubr.bf16.gmra.mxu0 %v3685
      %v3746 = vpop.f32.mrf.mxu0
      %v3747 = vadd.f32 0.0, %v3746
      %v3748 = vpop.f32.mrf.mxu0
      %v3749 = vpop.f32.mrf.mxu0
      %v3750 = vadd.f32 0.0, %v3749
      %v3751 = vpop.f32.mrf.mxu0
      %3752 = vmatprep.mubr.bf16.mxu0 0
      %3753 = vmatmul.mubr.bf16.gmra.mxu0 %v3688
      %v3754 = vpop.f32.mrf.mxu0
      %v3755 = vadd.f32 0.0, %v3754
      %v3756 = vpop.f32.mrf.mxu0
      %v3757 = vpop.f32.mrf.mxu0
      %v3758 = vadd.f32 0.0, %v3757
      %v3759 = vpop.f32.mrf.mxu0
      %3760 = vmatprep.mubr.bf16.mxu0 0
      %3761 = vmatmul.mubr.bf16.gmra.mxu0 %v3691
      %v3762 = vpop.f32.mrf.mxu0
      %v3763 = vadd.f32 0.0, %v3762
      %v3764 = vpop.f32.mrf.mxu0
      %v3765 = vpop.f32.mrf.mxu0
      %v3766 = vadd.f32 0.0, %v3765
      %v3767 = vpop.f32.mrf.mxu0
      %3768 = vdwg.mxu0
      %v3769 = vadd.f32 %v3609, %v3731
      %v3770 = vadd.f32 %v3610, %v3734
      %v3771 = vadd.f32 %v3611, %v3739
      %v3772 = vadd.f32 %v3612, %v3742
      %v3773 = vadd.f32 %v3613, %v3747
      %v3774 = vadd.f32 %v3614, %v3750
      %v3775 = vadd.f32 %v3615, %v3755
      %v3776 = vadd.f32 %v3616, %v3758
      %v3777 = vadd.f32 %v3617, %v3763
      %v3778 = vadd.f32 %v3618, %v3766
      %v3779 = vld [vmem:[%s433 + $0x4] sm:$0xc]
      %s3780 = scalar_lea.vmem %s452, 92
      %v3781 = vld [vmem:[%s3780] sm:$0xf]
      %v3783 = vunpack.c.l.b16 %v3779
      %v3784 = vpack.c.b16 %v3491, %v3783
      %v3785 = vrot.slane %v3784, 2
      %v3786 = vrot.slane %v3502, 2
      %v3787 = vsel %vm1174, %v3785, %v3786
      %v3788 = vrot.slane %v3503, 2
      %v3789 = vsel %vm1174, %v3786, %v3788
      %v3790 = vrot.slane %v3504, 2
      %v3791 = vsel %vm1174, %v3788, %v3790
      %v3792 = vrot.slane %v3505, 2
      %v3793 = vsel %vm1174, %v3790, %v3792
      %v3794 = vrot.slane %v3624, 2
      %v3795 = vsel %vm1174, %v3792, %v3794
      %v3797 = vsel %vm556, %v3787, 0
      %v3800 = vsel %vm556, %v3789, 0
      %v3803 = vsel %vm556, %v3791, 0
      %v3806 = vsel %vm556, %v3793, 0
      %v3809 = vsel %vm556, %v3795, 0
      %v3812 = vsel %vm572, %v3781, 0
      %3814 = vmatprep.subr.bf16.mxu0 0
      %3815 = vmatpush1.bf16.msra.mxu0 0
      %3816 = vmatprep.subr.bf16.mxu0 0
      %3817 = vmatpush1.bf16.msra.mxu0 0
      %3818 = vmatprep.subr.bf16.mxu0 0
      %3819 = vmatpush1.bf16.msra.mxu0 0
      %3820 = vmatprep.subr.bf16.mxu0 0
      %3821 = vmatpush1.bf16.msra.mxu0 0
      %3822 = vmatprep.subr.bf16.mxu0 0
      %3823 = vmatpush1.bf16.msra.mxu0 0
      %3824 = vmatprep.subr.bf16.mxu0 0
      %3825 = vmatpush1.bf16.msra.mxu0 0
      %3826 = vmatprep.subr.bf16.mxu0 0
      %3827 = vmatpush1.bf16.msra.mxu0 0
      %3828 = vmatprep.subr.bf16.mxu0 0
      %3829 = vmatpush1.bf16.msra.mxu0 %v3812
      %3830 = vmatprep.subr.bf16.mxu0 0
      %3831 = vmatpush2.bf16.msra.mxu0 0
      %3832 = vmatprep.subr.bf16.mxu0 0
      %3833 = vmatpush2.bf16.msra.mxu0 0
      %3834 = vmatprep.subr.bf16.mxu0 0
      %3835 = vmatpush2.bf16.msra.mxu0 0
      %3836 = vmatprep.subr.bf16.mxu0 0
      %3837 = vmatpush2.bf16.msra.mxu0 0
      %3838 = vmatprep.subr.bf16.mxu0 0
      %3839 = vmatpush2.bf16.msra.mxu0 0
      %3840 = vmatprep.subr.bf16.mxu0 0
      %3841 = vmatpush2.bf16.msra.mxu0 0
      %3842 = vmatprep.subr.bf16.mxu0 0
      %3843 = vmatpush2.bf16.msra.mxu0 0
      %3844 = vmatprep.subr.bf16.mxu0 0
      %3845 = vmatpush2.bf16.msra.mxu0 0
      %3846 = vmatprep.mubr.bf16.mxu0 0
      %3847 = vmatmul.mubr.bf16.gmra.mxu0 %v3797
      %v3848 = vpop.f32.mrf.mxu0
      %v3849 = vadd.f32 0.0, %v3848
      %v3850 = vpop.f32.mrf.mxu0
      %v3851 = vpop.f32.mrf.mxu0
      %v3852 = vadd.f32 0.0, %v3851
      %v3853 = vpop.f32.mrf.mxu0
      %3854 = vmatprep.mubr.bf16.mxu0 0
      %3855 = vmatmul.mubr.bf16.gmra.mxu0 %v3800
      %v3856 = vpop.f32.mrf.mxu0
      %v3857 = vadd.f32 0.0, %v3856
      %v3858 = vpop.f32.mrf.mxu0
      %v3859 = vpop.f32.mrf.mxu0
      %v3860 = vadd.f32 0.0, %v3859
      %v3861 = vpop.f32.mrf.mxu0
      %3862 = vmatprep.mubr.bf16.mxu0 0
      %3863 = vmatmul.mubr.bf16.gmra.mxu0 %v3803
      %v3864 = vpop.f32.mrf.mxu0
      %v3865 = vadd.f32 0.0, %v3864
      %v3866 = vpop.f32.mrf.mxu0
      %v3867 = vpop.f32.mrf.mxu0
      %v3868 = vadd.f32 0.0, %v3867
      %v3869 = vpop.f32.mrf.mxu0
      %3870 = vmatprep.mubr.bf16.mxu0 0
      %3871 = vmatmul.mubr.bf16.gmra.mxu0 %v3806
      %v3872 = vpop.f32.mrf.mxu0
      %v3873 = vadd.f32 0.0, %v3872
      %v3874 = vpop.f32.mrf.mxu0
      %v3875 = vpop.f32.mrf.mxu0
      %v3876 = vadd.f32 0.0, %v3875
      %v3877 = vpop.f32.mrf.mxu0
      %3878 = vmatprep.mubr.bf16.mxu0 0
      %3879 = vmatmul.mubr.bf16.gmra.mxu0 %v3809
      %v3880 = vpop.f32.mrf.mxu0
      %v3881 = vadd.f32 0.0, %v3880
      %v3882 = vpop.f32.mrf.mxu0
      %v3883 = vpop.f32.mrf.mxu0
      %v3884 = vadd.f32 0.0, %v3883
      %v3885 = vpop.f32.mrf.mxu0
      %3886 = vdwg.mxu0
      %v3887 = vadd.f32 %v3769, %v3849
      %v3888 = vadd.f32 %v3770, %v3852
      %v3889 = vadd.f32 %v3771, %v3857
      %v3890 = vadd.f32 %v3772, %v3860
      %v3891 = vadd.f32 %v3773, %v3865
      %v3892 = vadd.f32 %v3774, %v3868
      %v3893 = vadd.f32 %v3775, %v3873
      %v3894 = vadd.f32 %v3776, %v3876
      %v3895 = vadd.f32 %v3777, %v3881
      %v3896 = vadd.f32 %v3778, %v3884
      %v3897 = vld [vmem:[%s433 + $0x8] sm:$0xc]
      %v3898 = vld [vmem:[%s433 + $0xc] sm:$0xf]
      %v3899 = vld [vmem:[%s433 + $0x10] sm:$0xf]
      %v3900 = vld [vmem:[%s433 + $0x14] sm:$0xf]
      %v3901 = vld [vmem:[%s433 + $0x18] sm:$0xf]
      %v3902 = vld [vmem:[%s433 + $0x1c] sm:$0xf]
      %v3903 = vld [vmem:[%s433 + $0x20] sm:$0xf]
      %v3904 = vld [vmem:[%s433 + $0x24] sm:$0xf]
      %v3905 = vld [vmem:[%s433 + $0x28] sm:$0xf]
      %v3906 = vld [vmem:[%s433 + $0x2c] sm:$0xf]
      %v3907 = vld [vmem:[%s433 + $0x30] sm:$0x3]
      %s3908 = scalar_lea.vmem %s452, 96
      %v3909 = vld [vmem:[%s3908] sm:$0xf]
      %v3921 = vunpack.c.l.b16 %v3897
      %v3922 = vunpack.c.l.b16 %v3898
      %v3923 = vunpack.c.l.b16 %v3899
      %v3924 = vunpack.c.l.b16 %v3900
      %v3925 = vunpack.c.l.b16 %v3901
      %v3926 = vunpack.c.l.b16 %v3902
      %v3927 = vunpack.c.l.b16 %v3903
      %v3928 = vunpack.c.l.b16 %v3904
      %v3929 = vunpack.c.l.b16 %v3905
      %v3930 = vunpack.c.l.b16 %v3906
      %v3931 = vunpack.c.l.b16 %v3907
      %v3932 = vpack.c.b16 %v3922, %v3921
      %v3933 = vpack.c.b16 %v3924, %v3923
      %v3934 = vpack.c.b16 %v3926, %v3925
      %v3935 = vpack.c.b16 %v3928, %v3927
      %v3936 = vpack.c.b16 %v3930, %v3929
      %v3937 = vpack.c.b16 %v3931, %v3931
      %v3938 = vrot.slane %v3932, 2
      %v3939 = vrot.slane %v3933, 2
      %v3940 = vsel %vm1174, %v3938, %v3939
      %v3941 = vrot.slane %v3934, 2
      %v3942 = vsel %vm1174, %v3939, %v3941
      %v3943 = vrot.slane %v3935, 2
      %v3944 = vsel %vm1174, %v3941, %v3943
      %v3945 = vrot.slane %v3936, 2
      %v3946 = vsel %vm1174, %v3943, %v3945
      %v3947 = vrot.slane %v3937, 2
      %v3948 = vsel %vm1174, %v3945, %v3947
      %v3950 = vsel %vm556, %v3940, 0
      %v3953 = vsel %vm556, %v3942, 0
      %v3956 = vsel %vm556, %v3944, 0
      %v3959 = vsel %vm556, %v3946, 0
      %v3962 = vsel %vm556, %v3948, 0
      %v3965 = vsel %vm572, %v3909, 0
      %3967 = vmatprep.subr.bf16.mxu0 0
      %3968 = vmatpush1.bf16.msra.mxu0 0
      %3969 = vmatprep.subr.bf16.mxu0 0
      %3970 = vmatpush1.bf16.msra.mxu0 0
      %3971 = vmatprep.subr.bf16.mxu0 0
      %3972 = vmatpush1.bf16.msra.mxu0 0
      %3973 = vmatprep.subr.bf16.mxu0 0
      %3974 = vmatpush1.bf16.msra.mxu0 0
      %3975 = vmatprep.subr.bf16.mxu0 0
      %3976 = vmatpush1.bf16.msra.mxu0 0
      %3977 = vmatprep.subr.bf16.mxu0 0
      %3978 = vmatpush1.bf16.msra.mxu0 0
      %3979 = vmatprep.subr.bf16.mxu0 0
      %3980 = vmatpush1.bf16.msra.mxu0 0
      %3981 = vmatprep.subr.bf16.mxu0 0
      %3982 = vmatpush1.bf16.msra.mxu0 %v3965
      %3983 = vmatprep.subr.bf16.mxu0 0
      %3984 = vmatpush2.bf16.msra.mxu0 0
      %3985 = vmatprep.subr.bf16.mxu0 0
      %3986 = vmatpush2.bf16.msra.mxu0 0
      %3987 = vmatprep.subr.bf16.mxu0 0
      %3988 = vmatpush2.bf16.msra.mxu0 0
      %3989 = vmatprep.subr.bf16.mxu0 0
      %3990 = vmatpush2.bf16.msra.mxu0 0
      %3991 = vmatprep.subr.bf16.mxu0 0
      %3992 = vmatpush2.bf16.msra.mxu0 0
      %3993 = vmatprep.subr.bf16.mxu0 0
      %3994 = vmatpush2.bf16.msra.mxu0 0
      %3995 = vmatprep.subr.bf16.mxu0 0
      %3996 = vmatpush2.bf16.msra.mxu0 0
      %3997 = vmatprep.subr.bf16.mxu0 0
      %3998 = vmatpush2.bf16.msra.mxu0 0
      %3999 = vmatprep.mubr.bf16.mxu0 0
      %4000 = vmatmul.mubr.bf16.gmra.mxu0 %v3950
      %v4001 = vpop.f32.mrf.mxu0
      %v4002 = vadd.f32 0.0, %v4001
      %v4003 = vpop.f32.mrf.mxu0
      %v4004 = vpop.f32.mrf.mxu0
      %v4005 = vadd.f32 0.0, %v4004
      %v4006 = vpop.f32.mrf.mxu0
      %4007 = vmatprep.mubr.bf16.mxu0 0
      %4008 = vmatmul.mubr.bf16.gmra.mxu0 %v3953
      %v4009 = vpop.f32.mrf.mxu0
      %v4010 = vadd.f32 0.0, %v4009
      %v4011 = vpop.f32.mrf.mxu0
      %v4012 = vpop.f32.mrf.mxu0
      %v4013 = vadd.f32 0.0, %v4012
      %v4014 = vpop.f32.mrf.mxu0
      %4015 = vmatprep.mubr.bf16.mxu0 0
      %4016 = vmatmul.mubr.bf16.gmra.mxu0 %v3956
      %v4017 = vpop.f32.mrf.mxu0
      %v4018 = vadd.f32 0.0, %v4017
      %v4019 = vpop.f32.mrf.mxu0
      %v4020 = vpop.f32.mrf.mxu0
      %v4021 = vadd.f32 0.0, %v4020
      %v4022 = vpop.f32.mrf.mxu0
      %4023 = vmatprep.mubr.bf16.mxu0 0
      %4024 = vmatmul.mubr.bf16.gmra.mxu0 %v3959
      %v4025 = vpop.f32.mrf.mxu0
      %v4026 = vadd.f32 0.0, %v4025
      %v4027 = vpop.f32.mrf.mxu0
      %v4028 = vpop.f32.mrf.mxu0
      %v4029 = vadd.f32 0.0, %v4028
      %v4030 = vpop.f32.mrf.mxu0
      %4031 = vmatprep.mubr.bf16.mxu0 0
      %4032 = vmatmul.mubr.bf16.gmra.mxu0 %v3962
      %v4033 = vpop.f32.mrf.mxu0
      %v4034 = vadd.f32 0.0, %v4033
      %v4035 = vpop.f32.mrf.mxu0
      %v4036 = vpop.f32.mrf.mxu0
      %v4037 = vadd.f32 0.0, %v4036
      %v4038 = vpop.f32.mrf.mxu0
      %4039 = vdwg.mxu0
      %v4040 = vadd.f32 %v3887, %v4002
      %v4041 = vadd.f32 %v3888, %v4005
      %v4042 = vadd.f32 %v3889, %v4010
      %v4043 = vadd.f32 %v3890, %v4013
      %v4044 = vadd.f32 %v3891, %v4018
      %v4045 = vadd.f32 %v3892, %v4021
      %v4046 = vadd.f32 %v3893, %v4026
      %v4047 = vadd.f32 %v3894, %v4029
      %v4048 = vadd.f32 %v3895, %v4034
      %v4049 = vadd.f32 %v3896, %v4037
      %v4050 = vld [vmem:[%s433 + $0x30] sm:$0x7]
      %s4051 = scalar_lea.vmem %s452, 100
      %v4052 = vld [vmem:[%s4051] sm:$0xf]
      %v4054 = vunpack.c.l.b16 %v4050
      %v4055 = vpack.c.b16 %v4054, %v4054
      %v4057 = vshrl.u32 %v3932, 16
      %v4059 = vrot.slane %v4057, 2
      %v4060 = vshll.u32 %v3932, 16
      %v4062 = vrot.slane %v4060, 3
      %v4063 = vor.u32 %v4059, %v4062
      %v4065 = vshrl.u32 %v3933, 16
      %v4067 = vrot.slane %v4065, 2
      %v4068 = vshll.u32 %v3933, 16
      %v4070 = vrot.slane %v4068, 3
      %v4071 = vor.u32 %v4067, %v4070
      %v4072 = vsel %vm1446, %v4063, %v4071
      %v4074 = vshrl.u32 %v3934, 16
      %v4076 = vrot.slane %v4074, 2
      %v4077 = vshll.u32 %v3934, 16
      %v4079 = vrot.slane %v4077, 3
      %v4080 = vor.u32 %v4076, %v4079
      %v4081 = vsel %vm1446, %v4071, %v4080
      %v4083 = vshrl.u32 %v3935, 16
      %v4085 = vrot.slane %v4083, 2
      %v4086 = vshll.u32 %v3935, 16
      %v4088 = vrot.slane %v4086, 3
      %v4089 = vor.u32 %v4085, %v4088
      %v4090 = vsel %vm1446, %v4080, %v4089
      %v4092 = vshrl.u32 %v3936, 16
      %v4094 = vrot.slane %v4092, 2
      %v4095 = vshll.u32 %v3936, 16
      %v4097 = vrot.slane %v4095, 3
      %v4098 = vor.u32 %v4094, %v4097
      %v4099 = vsel %vm1446, %v4089, %v4098
      %v4101 = vshrl.u32 %v4055, 16
      %v4103 = vrot.slane %v4101, 2
      %v4104 = vshll.u32 %v4055, 16
      %v4106 = vrot.slane %v4104, 3
      %v4107 = vor.u32 %v4103, %v4106
      %v4108 = vsel %vm1446, %v4098, %v4107
      %v4110 = vsel %vm556, %v4072, 0
      %v4113 = vsel %vm556, %v4081, 0
      %v4116 = vsel %vm556, %v4090, 0
      %v4119 = vsel %vm556, %v4099, 0
      %v4122 = vsel %vm556, %v4108, 0
      %v4125 = vsel %vm572, %v4052, 0
      %4127 = vmatprep.subr.bf16.mxu0 0
      %4128 = vmatpush1.bf16.msra.mxu0 0
      %4129 = vmatprep.subr.bf16.mxu0 0
      %4130 = vmatpush1.bf16.msra.mxu0 0
      %4131 = vmatprep.subr.bf16.mxu0 0
      %4132 = vmatpush1.bf16.msra.mxu0 0
      %4133 = vmatprep.subr.bf16.mxu0 0
      %4134 = vmatpush1.bf16.msra.mxu0 0
      %4135 = vmatprep.subr.bf16.mxu0 0
      %4136 = vmatpush1.bf16.msra.mxu0 0
      %4137 = vmatprep.subr.bf16.mxu0 0
      %4138 = vmatpush1.bf16.msra.mxu0 0
      %4139 = vmatprep.subr.bf16.mxu0 0
      %4140 = vmatpush1.bf16.msra.mxu0 0
      %4141 = vmatprep.subr.bf16.mxu0 0
      %4142 = vmatpush1.bf16.msra.mxu0 %v4125
      %4143 = vmatprep.subr.bf16.mxu0 0
      %4144 = vmatpush2.bf16.msra.mxu0 0
      %4145 = vmatprep.subr.bf16.mxu0 0
      %4146 = vmatpush2.bf16.msra.mxu0 0
      %4147 = vmatprep.subr.bf16.mxu0 0
      %4148 = vmatpush2.bf16.msra.mxu0 0
      %4149 = vmatprep.subr.bf16.mxu0 0
      %4150 = vmatpush2.bf16.msra.mxu0 0
      %4151 = vmatprep.subr.bf16.mxu0 0
      %4152 = vmatpush2.bf16.msra.mxu0 0
      %4153 = vmatprep.subr.bf16.mxu0 0
      %4154 = vmatpush2.bf16.msra.mxu0 0
      %4155 = vmatprep.subr.bf16.mxu0 0
      %4156 = vmatpush2.bf16.msra.mxu0 0
      %4157 = vmatprep.subr.bf16.mxu0 0
      %4158 = vmatpush2.bf16.msra.mxu0 0
      %4159 = vmatprep.mubr.bf16.mxu0 0
      %4160 = vmatmul.mubr.bf16.gmra.mxu0 %v4110
      %v4161 = vpop.f32.mrf.mxu0
      %v4162 = vadd.f32 0.0, %v4161
      %v4163 = vpop.f32.mrf.mxu0
      %v4164 = vpop.f32.mrf.mxu0
      %v4165 = vadd.f32 0.0, %v4164
      %v4166 = vpop.f32.mrf.mxu0
      %4167 = vmatprep.mubr.bf16.mxu0 0
      %4168 = vmatmul.mubr.bf16.gmra.mxu0 %v4113
      %v4169 = vpop.f32.mrf.mxu0
      %v4170 = vadd.f32 0.0, %v4169
      %v4171 = vpop.f32.mrf.mxu0
      %v4172 = vpop.f32.mrf.mxu0
      %v4173 = vadd.f32 0.0, %v4172
      %v4174 = vpop.f32.mrf.mxu0
      %4175 = vmatprep.mubr.bf16.mxu0 0
      %4176 = vmatmul.mubr.bf16.gmra.mxu0 %v4116
      %v4177 = vpop.f32.mrf.mxu0
      %v4178 = vadd.f32 0.0, %v4177
      %v4179 = vpop.f32.mrf.mxu0
      %v4180 = vpop.f32.mrf.mxu0
      %v4181 = vadd.f32 0.0, %v4180
      %v4182 = vpop.f32.mrf.mxu0
      %4183 = vmatprep.mubr.bf16.mxu0 0
      %4184 = vmatmul.mubr.bf16.gmra.mxu0 %v4119
      %v4185 = vpop.f32.mrf.mxu0
      %v4186 = vadd.f32 0.0, %v4185
      %v4187 = vpop.f32.mrf.mxu0
      %v4188 = vpop.f32.mrf.mxu0
      %v4189 = vadd.f32 0.0, %v4188
      %v4190 = vpop.f32.mrf.mxu0
      %4191 = vmatprep.mubr.bf16.mxu0 0
      %4192 = vmatmul.mubr.bf16.gmra.mxu0 %v4122
      %v4193 = vpop.f32.mrf.mxu0
      %v4194 = vadd.f32 0.0, %v4193
      %v4195 = vpop.f32.mrf.mxu0
      %v4196 = vpop.f32.mrf.mxu0
      %v4197 = vadd.f32 0.0, %v4196
      %v4198 = vpop.f32.mrf.mxu0
      %4199 = vdwg.mxu0
      %v4200 = vadd.f32 %v4040, %v4162
      %v4201 = vadd.f32 %v4041, %v4165
      %v4202 = vadd.f32 %v4042, %v4170
      %v4203 = vadd.f32 %v4043, %v4173
      %v4204 = vadd.f32 %v4044, %v4178
      %v4205 = vadd.f32 %v4045, %v4181
      %v4206 = vadd.f32 %v4046, %v4186
      %v4207 = vadd.f32 %v4047, %v4189
      %v4208 = vadd.f32 %v4048, %v4194
      %v4209 = vadd.f32 %v4049, %v4197
      %v4210 = vld [vmem:[%s433 + $0x8] sm:$0x8]
      %s4211 = scalar_lea.vmem %s452, 104
      %v4212 = vld [vmem:[%s4211] sm:$0xf]
      %v4214 = vunpack.c.l.b16 %v4210
      %v4215 = vpack.c.b16 %v3922, %v4214
      %v4216 = vrot.slane %v4215, 3
      %v4217 = vrot.slane %v3933, 3
      %v4218 = vsel %vm1607, %v4216, %v4217
      %v4219 = vrot.slane %v3934, 3
      %v4220 = vsel %vm1607, %v4217, %v4219
      %v4221 = vrot.slane %v3935, 3
      %v4222 = vsel %vm1607, %v4219, %v4221
      %v4223 = vrot.slane %v3936, 3
      %v4224 = vsel %vm1607, %v4221, %v4223
      %v4225 = vrot.slane %v4055, 3
      %v4226 = vsel %vm1607, %v4223, %v4225
      %v4228 = vsel %vm556, %v4218, 0
      %v4231 = vsel %vm556, %v4220, 0
      %v4234 = vsel %vm556, %v4222, 0
      %v4237 = vsel %vm556, %v4224, 0
      %v4240 = vsel %vm556, %v4226, 0
      %v4243 = vsel %vm572, %v4212, 0
      %4245 = vmatprep.subr.bf16.mxu0 0
      %4246 = vmatpush1.bf16.msra.mxu0 0
      %4247 = vmatprep.subr.bf16.mxu0 0
      %4248 = vmatpush1.bf16.msra.mxu0 0
      %4249 = vmatprep.subr.bf16.mxu0 0
      %4250 = vmatpush1.bf16.msra.mxu0 0
      %4251 = vmatprep.subr.bf16.mxu0 0
      %4252 = vmatpush1.bf16.msra.mxu0 0
      %4253 = vmatprep.subr.bf16.mxu0 0
      %4254 = vmatpush1.bf16.msra.mxu0 0
      %4255 = vmatprep.subr.bf16.mxu0 0
      %4256 = vmatpush1.bf16.msra.mxu0 0
      %4257 = vmatprep.subr.bf16.mxu0 0
      %4258 = vmatpush1.bf16.msra.mxu0 0
      %4259 = vmatprep.subr.bf16.mxu0 0
      %4260 = vmatpush1.bf16.msra.mxu0 %v4243
      %4261 = vmatprep.subr.bf16.mxu0 0
      %4262 = vmatpush2.bf16.msra.mxu0 0
      %4263 = vmatprep.subr.bf16.mxu0 0
      %4264 = vmatpush2.bf16.msra.mxu0 0
      %4265 = vmatprep.subr.bf16.mxu0 0
      %4266 = vmatpush2.bf16.msra.mxu0 0
      %4267 = vmatprep.subr.bf16.mxu0 0
      %4268 = vmatpush2.bf16.msra.mxu0 0
      %4269 = vmatprep.subr.bf16.mxu0 0
      %4270 = vmatpush2.bf16.msra.mxu0 0
      %4271 = vmatprep.subr.bf16.mxu0 0
      %4272 = vmatpush2.bf16.msra.mxu0 0
      %4273 = vmatprep.subr.bf16.mxu0 0
      %4274 = vmatpush2.bf16.msra.mxu0 0
      %4275 = vmatprep.subr.bf16.mxu0 0
      %4276 = vmatpush2.bf16.msra.mxu0 0
      %4277 = vmatprep.mubr.bf16.mxu0 0
      %4278 = vmatmul.mubr.bf16.gmra.mxu0 %v4228
      %v4279 = vpop.f32.mrf.mxu0
      %v4280 = vadd.f32 0.0, %v4279
      %v4281 = vpop.f32.mrf.mxu0
      %v4282 = vpop.f32.mrf.mxu0
      %v4283 = vadd.f32 0.0, %v4282
      %v4284 = vpop.f32.mrf.mxu0
      %4285 = vmatprep.mubr.bf16.mxu0 0
      %4286 = vmatmul.mubr.bf16.gmra.mxu0 %v4231
      %v4287 = vpop.f32.mrf.mxu0
      %v4288 = vadd.f32 0.0, %v4287
      %v4289 = vpop.f32.mrf.mxu0
      %v4290 = vpop.f32.mrf.mxu0
      %v4291 = vadd.f32 0.0, %v4290
      %v4292 = vpop.f32.mrf.mxu0
      %4293 = vmatprep.mubr.bf16.mxu0 0
      %4294 = vmatmul.mubr.bf16.gmra.mxu0 %v4234
      %v4295 = vpop.f32.mrf.mxu0
      %v4296 = vadd.f32 0.0, %v4295
      %v4297 = vpop.f32.mrf.mxu0
      %v4298 = vpop.f32.mrf.mxu0
      %v4299 = vadd.f32 0.0, %v4298
      %v4300 = vpop.f32.mrf.mxu0
      %4301 = vmatprep.mubr.bf16.mxu0 0
      %4302 = vmatmul.mubr.bf16.gmra.mxu0 %v4237
      %v4303 = vpop.f32.mrf.mxu0
      %v4304 = vadd.f32 0.0, %v4303
      %v4305 = vpop.f32.mrf.mxu0
      %v4306 = vpop.f32.mrf.mxu0
      %v4307 = vadd.f32 0.0, %v4306
      %v4308 = vpop.f32.mrf.mxu0
      %4309 = vmatprep.mubr.bf16.mxu0 0
      %4310 = vmatmul.mubr.bf16.gmra.mxu0 %v4240
      %v4311 = vpop.f32.mrf.mxu0
      %v4312 = vadd.f32 0.0, %v4311
      %v4313 = vpop.f32.mrf.mxu0
      %v4314 = vpop.f32.mrf.mxu0
      %v4315 = vadd.f32 0.0, %v4314
      %v4316 = vpop.f32.mrf.mxu0
      %4317 = vdwg.mxu0
      %v4318 = vadd.f32 %v4200, %v4280
      %v4319 = vadd.f32 %v4201, %v4283
      %v4320 = vadd.f32 %v4202, %v4288
      %v4321 = vadd.f32 %v4203, %v4291
      %v4322 = vadd.f32 %v4204, %v4296
      %v4323 = vadd.f32 %v4205, %v4299
      %v4324 = vadd.f32 %v4206, %v4304
      %v4325 = vadd.f32 %v4207, %v4307
      %v4326 = vadd.f32 %v4208, %v4312
      %v4327 = vadd.f32 %v4209, %v4315
      %v4328 = vld [vmem:[%s455] sm:$0x1]
      %v4330 = vlaneseq
      %v4331 = vshrl.u32 %v4330, 7
      %v4332 = vsub.s32 0, %v4331
      %v4333 = vrot.slane %v4328, %v4332
      %v4335 = vadd.f32 %v4318, %v4333
      %v4336 = vadd.f32 %v4319, %v4333
      %v4337 = vadd.f32 %v4320, %v4333
      %v4338 = vadd.f32 %v4321, %v4333
      %v4339 = vadd.f32 %v4322, %v4333
      %v4340 = vadd.f32 %v4323, %v4333
      %v4341 = vadd.f32 %v4324, %v4333
      %v4342 = vadd.f32 %v4325, %v4333
      %v4343 = vadd.f32 %v4326, %v4333
      %v4344 = vadd.f32 %v4327, %v4333
      %v4345 = vld [vmem:[%s447 + $0x4] sm:$0xe]
      %v4346 = vld [vmem:[%s447 + $0x8] sm:$0xf]
      %v4347 = vld [vmem:[%s447 + $0xc] sm:$0xf]
      %v4348 = vld [vmem:[%s447 + $0x10] sm:$0xf]
      %v4349 = vld [vmem:[%s447 + $0x14] sm:$0xf]
      %v4350 = vld [vmem:[%s447 + $0x18] sm:$0xf]
      %v4351 = vld [vmem:[%s447 + $0x1c] sm:$0xf]
      %v4352 = vld [vmem:[%s447 + $0x20] sm:$0xf]
      %v4353 = vld [vmem:[%s447 + $0x24] sm:$0xf]
      %v4354 = vld [vmem:[%s447 + $0x28] sm:$0xf]
      %v4355 = vld [vmem:[%s447 + $0x2c] sm:$0x3]
      %v4356 = vunpack.c.l.bf16 %v4345
      %v4357 = vunpack.c.l.bf16 %v4346
      %v4358 = vunpack.c.l.bf16 %v4347
      %v4359 = vunpack.c.l.bf16 %v4348
      %v4360 = vunpack.c.l.bf16 %v4349
      %v4361 = vunpack.c.l.bf16 %v4350
      %v4362 = vunpack.c.l.bf16 %v4351
      %v4363 = vunpack.c.l.bf16 %v4352
      %v4364 = vunpack.c.l.bf16 %v4353
      %v4365 = vunpack.c.l.bf16 %v4354
      %v4366 = vunpack.c.l.bf16 %v4355
      %vm4378 = vcmask 1044480
      %v4379 = vrot.slane %v4356, 3
      %v4380 = vrot.slane %v4357, 3
      %v4381 = vsel %vm4378, %v4379, %v4380
      %v4382 = vrot.slane %v4358, 3
      %v4383 = vsel %vm4378, %v4380, %v4382
      %v4384 = vrot.slane %v4359, 3
      %v4385 = vsel %vm4378, %v4382, %v4384
      %v4386 = vrot.slane %v4360, 3
      %v4387 = vsel %vm4378, %v4384, %v4386
      %v4388 = vrot.slane %v4361, 3
      %v4389 = vsel %vm4378, %v4386, %v4388
      %v4390 = vrot.slane %v4362, 3
      %v4391 = vsel %vm4378, %v4388, %v4390
      %v4392 = vrot.slane %v4363, 3
      %v4393 = vsel %vm4378, %v4390, %v4392
      %v4394 = vrot.slane %v4364, 3
      %v4395 = vsel %vm4378, %v4392, %v4394
      %v4396 = vrot.slane %v4365, 3
      %v4397 = vsel %vm4378, %v4394, %v4396
      %v4398 = vrot.slane %v4366, 3
      %v4399 = vsel %vm4378, %v4396, %v4398
      %v4410 = vadd.f32 %v4335, %v4381
      %v4411 = vadd.f32 %v4336, %v4383
      %v4412 = vadd.f32 %v4337, %v4385
      %v4413 = vadd.f32 %v4338, %v4387
      %v4414 = vadd.f32 %v4339, %v4389
      %v4415 = vadd.f32 %v4340, %v4391
      %v4416 = vadd.f32 %v4341, %v4393
      %v4417 = vadd.f32 %v4342, %v4395
      %v4418 = vadd.f32 %v4343, %v4397
      %v4419 = vadd.f32 %v4344, %v4399
      %v4420 = vmax.f32 %v4410, 0.0
      %v4421 = vmax.f32 %v4411, 0.0
      %v4422 = vmax.f32 %v4412, 0.0
      %v4423 = vmax.f32 %v4413, 0.0
      %v4424 = vmax.f32 %v4414, 0.0
      %v4425 = vmax.f32 %v4415, 0.0
      %v4426 = vmax.f32 %v4416, 0.0
      %v4427 = vmax.f32 %v4417, 0.0
      %v4428 = vmax.f32 %v4418, 0.0
      %v4429 = vmax.f32 %v4419, 0.0
      %4430 = vst.msk [vmem:[%s467] sm:$0xff] %vm556, %v4420
      %4431 = vst.msk [vmem:[%s467 + $0x8] sm:$0xff] %vm556, %v4421
      %4432 = vst.msk [vmem:[%s467 + $0x10] sm:$0xff] %vm556, %v4422
      %4433 = vst.msk [vmem:[%s467 + $0x18] sm:$0xff] %vm556, %v4423
      %4434 = vst.msk [vmem:[%s467 + $0x20] sm:$0xff] %vm556, %v4424
      %4435 = vst.msk [vmem:[%s467 + $0x28] sm:$0xff] %vm556, %v4425
      %4436 = vst.msk [vmem:[%s467 + $0x30] sm:$0xff] %vm556, %v4426
      %4437 = vst.msk [vmem:[%s467 + $0x38] sm:$0xff] %vm556, %v4427
      %4438 = vst.msk [vmem:[%s467 + $0x40] sm:$0xff] %vm556, %v4428
      %4439 = vst.msk [vmem:[%s467 + $0x48] sm:$0xff] %vm556, %v4429
      %p4440 = scmp.lt.s32.totalorder %s22, 1
      %s4441 = scalar_select %p4440, %s22, 1
      %p4442 = scmp.lt.s32.totalorder %s24, 3
      %s4443 = scalar_select %p4442, %s24, 3
      %p4444 = scmp.lt.s32.totalorder %s23, 0
      %s4445 = scalar_select %p4444, %s23, 0
      %s4446 = smul.addr %s4443, 10
      %s4447 = sadd.s32 %s4445, %s4446
      %s4448 = smul.addr %s4441, 40
      %s4449 = sadd.s32 %s4447, %s4448
      %s4450 = smul.addr %s4449, 8
      %s4451 = scalar_lea.vmem %s6, %s4450
      // Predicated region
      $region45: #{basic_block3d_forward.3} parent=43 // pred_check
        %p4452 = pneg %p230
      $region46: #{basic_block3d_forward.3} parent=43 // pred_check_branch
        %4454 = sbr.rel (%p4452) target = $region48
      $region47: #{basic_block3d_forward.3} parent=43 // pred_region
        _
      $region48: #{basic_block3d_forward.3} parent=43 // pred_fallthru
        _
    $region44: #{basic_block3d_forward.3} parent=5 // pred_fallthru
      _
    %p4455 = scmp.le.s32.totalorder 2, %s12
    // Predicated region
    $region49: #{basic_block3d_forward.3} parent=5 // pred_check
      %p4456 = pneg %p4455
    $region50: #{basic_block3d_forward.3} parent=5 // pred_check_branch
      %4458 = sbr.rel (%p4456) target = $region52
    $region51: #{basic_block3d_forward.3} parent=5 // pred_region
      %s4459 = ssub.s32 %s12, 2
      // Predicated region
      $region53: #{basic_block3d_forward.3} parent=51 // pred_check
        %p4460 = pneg %p236
      $region54: #{basic_block3d_forward.3} parent=51 // pred_check_branch
        %4462 = sbr.rel (%p4460) target = $region56
      $region55: #{basic_block3d_forward.3} parent=51 // pred_region
        %p4463 = scmp.lt.s32.totalorder %s25, 1
        %s4464 = scalar_select %p4463, %s25, 1
        %p4465 = scmp.lt.s32.totalorder %s27, 3
        %s4466 = scalar_select %p4465, %s27, 3
        %p4467 = scmp.lt.s32.totalorder %s26, 0
        %s4468 = scalar_select %p4467, %s26, 0
        %s4469 = smul.addr %s4466, 10
        %s4470 = sadd.s32 %s4468, %s4469
        %s4471 = smul.addr %s4464, 40
        %s4472 = sadd.s32 %s4470, %s4471
        %s4473 = smul.addr %s4472, 8
        %s4474 = scalar_lea.vmem %s6, %s4473
      $region56: #{basic_block3d_forward.3} parent=51 // pred_fallthru
        _
    $region52: #{basic_block3d_forward.3} parent=5 // pred_fallthru
      _
  $region6: #{basic_block3d_forward.3} parent=0 // loop_footer
    %s16 = sadd.s32 1, %s12
  $region7: #{basic_block3d_forward.3} parent=0 // loop_footer_branch
    %11 = sbr.rel target = $region3
  $region8: #{basic_block3d_forward.3} parent=0 // loop_exit
    _

</llo_original>
